<compile_context>
chip_gen: v7x
topology: tpu7x:2x2x1
jax: 0.10.0
libtpu: 0.0.40
codegen_flags: <defaults>
</compile_context>

<pallas_src>
import functools

import jax
import jax.numpy as jnp
from jax.experimental import pallas as pl
from jax.experimental.pallas import tpu as pltpu


def _w2v_loss_kernel(idx_ref, emb_ref, loss_ref, acc_ref, *,
                     batch_size, tile_b, num_neg):
    """One batch tile: fused gather -> lane-dense scores -> logsigmoid -> reduce."""
    S = num_neg + 2                       # row groups per batch element: x, y, neg_0..K-1
    TB = tile_b
    M = TB * S                            # gathered rows per tile
    step = pl.program_id(1)               # serial (reduction) axis within this core

    @pl.when(step == 0)
    def _init():
        acc_ref[...] = jnp.zeros_like(acc_ref)

    emb = emb_ref[...]                    # (V, D) f32, resident across grid steps
    V = emb.shape[0]
    D = emb.shape[1]
    idx = idx_ref[...]                    # (M, 1) i32: [x_tile | y_tile | neg_col0 | ...]

    # --- Fused gather: ONE (M, V) one-hot, ONE MXU matmul for all x/y/neg rows.
    # precision=HIGHEST keeps the gathered rows f32-exact (one-hot has a single 1.0).
    lane = jax.lax.broadcasted_iota(jnp.int32, (M, V), 1)
    onehot = (lane == idx).astype(jnp.float32)                           # (M, V)
    all_emb = jnp.dot(onehot, emb,
                      preferred_element_type=jnp.float32,
                      precision=jax.lax.Precision.HIGHEST)               # (M, D)

    # Cheap sublane split into row groups; broadcast the output embedding
    # instead of materializing S concatenated copies.
    all3 = all_emb.reshape(S, TB, D)                                     # (S, TB, D)
    out_emb = all3[1]                                                    # (TB, D) = emb(y_b)

    # Per-group dot products against emb(y_b), lane-dense result (S, TB):
    #   group 0      : <emb(x_b), emb(y_b)>          (positive score)
    #   group 1      : <emb(y_b), emb(y_b)>          (dummy, skipped below)
    #   group 2+k    : <emb(neg_{b,k}), emb(y_b)>    (negated below)
    dots = jnp.sum(all3 * out_emb[None, :, :], axis=-1)                  # (S, TB)

    # Skip the dummy y.y group entirely; flip the sign of the negative groups.
    scores = jnp.concatenate([dots[0:1], -dots[2:]], axis=0)             # (K+1, TB)

    # Single numerically-stable logsigmoid pass over the lane-dense tile.
    logsig = jnp.minimum(scores, 0.0) - jnp.log1p(jnp.exp(-jnp.abs(scores)))

    # Mask padded batch columns, reduce over groups, accumulate per-lane partials.
    tile_global = pl.program_id(0) * pl.num_programs(1) + step
    bpos = tile_global * TB + jax.lax.broadcasted_iota(jnp.int32, (1, TB), 1)
    bvalid = (bpos < batch_size).astype(jnp.float32)                     # (1, TB)
    acc_ref[...] += jnp.sum(logsig * bvalid, axis=0, keepdims=True)      # (1, TB)

    @pl.when(step == pl.num_programs(1) - 1)
    def _finalize():
        total = jnp.sum(acc_ref[...], axis=1, keepdims=True)             # (1, 1)
        loss_ref[...] = jnp.broadcast_to(total, loss_ref.shape)          # lane-dense store


def word2vec_loss(x_idx, y_idx, neg_idx, emb_table, *, tile_b=128, core_splits=2):
    """Pallas forward pass of word2vec.forward(batch=(x, y, neg))."""
    B = x_idx.shape[0]
    K = neg_idx.shape[1]
    V, D = emb_table.shape
    S = K + 2
    assert tile_b % 8 == 0, "tile_b must be a multiple of 8 (sublane tiling)"

    nt = pl.cdiv(B, tile_b)
    nt_per_core = pl.cdiv(nt, core_splits)
    nt_total = nt_per_core * core_splits
    B_pad = nt_total * tile_b

    x = x_idx.reshape(B).astype(jnp.int32)
    y = y_idx.reshape(B).astype(jnp.int32)
    neg = neg_idx.astype(jnp.int32)
    if B_pad != B:
        pad = B_pad - B
        x = jnp.concatenate([x, jnp.zeros((pad,), jnp.int32)])
        y = jnp.concatenate([y, jnp.zeros((pad,), jnp.int32)])
        neg = jnp.concatenate([neg, jnp.zeros((pad, K), jnp.int32)], axis=0)

    # Pack indices column-major per tile: tile t occupies rows [t*M, (t+1)*M) as
    # [x_tile(TB) | y_tile(TB) | neg[:,0]_tile(TB) | ... | neg[:,K-1]_tile(TB)].
    x3 = x.reshape(nt_total, 1, tile_b)
    y3 = y.reshape(nt_total, 1, tile_b)
    n3 = jnp.transpose(neg.reshape(nt_total, tile_b, K), (0, 2, 1))      # (nt_total, K, TB)
    idx_flat = jnp.concatenate([x3, y3, n3], axis=1).reshape(nt_total * S * tile_b, 1)

    M = tile_b * S
    kernel = functools.partial(_w2v_loss_kernel,
                               batch_size=B, tile_b=tile_b, num_neg=K)

    out = pl.pallas_call(
        kernel,
        grid=(core_splits, nt_per_core),
        in_specs=[
            # Per-tile fused index column.
            pl.BlockSpec((M, 1), lambda c, i: (c * nt_per_core + i, 0)),
            # Embedding table resident in VMEM across all grid steps.
            pl.BlockSpec((V, D), lambda c, i: (0, 0)),
        ],
        # Lane-dense per-core partial-sum slab: core c writes lanes [c*128, (c+1)*128).
        out_specs=pl.BlockSpec((1, 128), lambda c, i: (0, c)),
        out_shape=jax.ShapeDtypeStruct((1, core_splits * 128), jnp.float32),
        scratch_shapes=[pltpu.VMEM((1, tile_b), jnp.float32)],   # per-lane loss partials
        compiler_params=pltpu.CompilerParams(
            dimension_semantics=("parallel", "arbitrary"),
            vmem_limit_bytes=32 * 1024 * 1024,
        ),
    )(idx_flat, emb_table.astype(jnp.float32))

    partials = out.reshape(core_splits, 128)[:, 0]
    return -jnp.sum(partials)


def _reference_loss(x_idx, y_idx, neg_idx, emb_table):
    # Pure-JAX mirror of the PyTorch forward (for correctness checking).
    ie = emb_table[x_idx]                                # (B, D)
    oe = emb_table[y_idx]                                # (B, D)
    score = jnp.sum(ie * oe, axis=1)                     # (B,)
    log_target = jax.nn.log_sigmoid(score)
    B, K = neg_idx.shape
    ne = emb_table[neg_idx.reshape(-1)].reshape(B, K, -1)
    neg_score = -jnp.sum(oe[:, None, :] * ne, axis=2)    # (B, K)
    log_neg = jax.nn.log_sigmoid(neg_score)
    return -(log_target.sum() + log_neg.sum())


if __name__ == "__main__":
    # Module hyper-params (small, consistent with word2vec.__init__)
    vocab_size = 127                # module uses vocab_size + 1 rows
    embedding_dim = 32
    negative_samples = 4
    batch = 12                      # not a multiple of tile_b -> exercises mask path

    V = vocab_size + 1
    D = embedding_dim

    key = jax.random.PRNGKey(0)
    k_emb, k_x, k_y, k_neg = jax.random.split(key, 4)

    # Embedding init: uniform(-0.5/D, 0.5/D), as in the module.
    init_range = 0.5 / embedding_dim
    emb_table = jax.random.uniform(
        k_emb, (V, D), dtype=jnp.float32, minval=-init_range, maxval=init_range
    )

    x_idx = jax.random.randint(k_x, (batch,), 0, V, dtype=jnp.int32)
    y_idx = jax.random.randint(k_y, (batch,), 0, V, dtype=jnp.int32)
    neg_idx = jax.random.randint(k_neg, (batch, negative_samples), 0, V, dtype=jnp.int32)

    loss = jax.block_until_ready(word2vec_loss(x_idx, y_idx, neg_idx, emb_table))
    ref = jax.block_until_ready(_reference_loss(x_idx, y_idx, neg_idx, emb_table))

    assert jnp.allclose(loss, ref, rtol=1e-5, atol=1e-5), (loss, ref)
    print("KERNEL_OK")
</pallas_src>

<mosaic_0001>
module attributes {stable_mosaic.version = 11 : i64} {
  func.func @_w2v_loss_kernel(%arg0: i32, %arg1: i32, %arg2: memref<768x1xi32, #tpu.memory_space<vmem>>, %arg3: memref<128x32xf32, #tpu.memory_space<vmem>>, %arg4: memref<1x128xf32, #tpu.memory_space<vmem>>, %arg5: memref<1x128xf32, #tpu.memory_space<vmem>>) attributes {dimension_semantics = [#tpu.dimension_semantics<parallel>, #tpu.dimension_semantics<arbitrary>], iteration_bounds = array<i64: 2, 1>, scalar_prefetch = 0 : i64, scratch_operands = 1 : i64, tpu.core_type = #tpu.core_type<tc>, window_params = [{transform_indices = @transform_0, window_bounds = array<i64: 768, 1>}, {pipeline_mode = #tpu.pipeline_mode<synchronous>, transform_indices = @transform_1, window_bounds = array<i64: 128, 32>}, {transform_indices = @transform_2, window_bounds = array<i64: 1, 128>}]} {
    %c0_i32 = arith.constant 0 : i32
    %0 = arith.cmpi eq, %arg1, %c0_i32 : i32
    %1 = arith.extui %0 : i1 to i32
    %c0_i32_0 = arith.constant 0 : i32
    %2 = arith.cmpi ne, %1, %c0_i32_0 : i32
    scf.if %2 {
      %cst_15 = arith.constant 0.000000e+00 : f32
      %51 = vector.broadcast %cst_15 : f32 to vector<1x128xf32>
      %c0_16 = arith.constant 0 : index
      %c0_17 = arith.constant 0 : index
      %52 = vector.load %arg5[%c0_16, %c0_17] : memref<1x128xf32, #tpu.memory_space<vmem>>, vector<1x128xf32>
      tpu.vector_store %arg5[%c0_16, %c0_17], %51 {strides = array<i32>} : memref<1x128xf32, #tpu.memory_space<vmem>>, vector<1x128xf32>,
    } else {
    }
    %c0 = arith.constant 0 : index
    %c0_1 = arith.constant 0 : index
    %3 = vector.load %arg3[%c0, %c0_1] : memref<128x32xf32, #tpu.memory_space<vmem>>, vector<128x32xf32>
    %c0_2 = arith.constant 0 : index
    %c0_3 = arith.constant 0 : index
    %4 = vector.load %arg2[%c0_2, %c0_3] : memref<768x1xi32, #tpu.memory_space<vmem>>, vector<768x1xi32>
    %5 = tpu.iota {dimensions = array<i32: 1>} : vector<768x128xi32>
    %6 = vector.broadcast %4 : vector<768x1xi32> to vector<768x128xi32>
    %7 = arith.cmpi eq, %5, %6 : vector<768x128xi32>
    %8 = arith.extui %7 : vector<768x128xi1> to vector<768x128xi32>
    %9 = arith.sitofp %8 : vector<768x128xi32> to vector<768x128xf32>
    %cst = arith.constant dense<0.000000e+00> : vector<768x32xf32>
    %10 = tpu.matmul %9, %3, %cst {dimension_numbers = #tpu.dot_dimension_numbers<[1], [0], [0], [1], [0, 0, 1, 1], [], []>, precision = #tpu.contract_precision<fp32>} : vector<768x128xf32>, vector<128x32xf32>, vector<768x32xf32> -> vector<768x32xf32>
    %11 = vector.shape_cast %10 : vector<768x32xf32> to vector<6x128x32xf32>
    %12 = vector.extract_strided_slice %11 {offsets = [1, 0, 0], sizes = [1, 128, 32], strides = [1, 1, 1]} : vector<6x128x32xf32> to vector<1x128x32xf32>
    %13 = vector.shape_cast %12 : vector<1x128x32xf32> to vector<128x32xf32>
    %14 = vector.shape_cast %13 : vector<128x32xf32> to vector<1x128x32xf32>
    %15 = vector.broadcast %14 : vector<1x128x32xf32> to vector<6x128x32xf32>
    %16 = arith.mulf %11, %15 : vector<6x128x32xf32>
    %cst_4 = arith.constant dense<0.000000e+00> : vector<6x128xf32>
    %17 = vector.multi_reduction <add>, %16, %cst_4 [2] : vector<6x128x32xf32> to vector<6x128xf32>
    %18 = vector.extract_strided_slice %17 {offsets = [0, 0], sizes = [1, 128], strides = [1, 1]} : vector<6x128xf32> to vector<1x128xf32>
    %19 = vector.extract_strided_slice %17 {offsets = [2, 0], sizes = [4, 128], strides = [1, 1]} : vector<6x128xf32> to vector<4x128xf32>
    %cst_5 = arith.constant 0.000000e+00 : f32
    %20 = vector.broadcast %cst_5 : f32 to vector<4x128xf32>
    %21 = arith.subf %20, %19 : vector<4x128xf32>
    %22 = tpu.concatenate %18, %21 in 0 : vector<1x128xf32>, vector<4x128xf32> -> vector<5x128xf32>
    %cst_6 = arith.constant 0.000000e+00 : f32
    %23 = vector.broadcast %cst_6 : f32 to vector<5x128xf32>
    %24 = arith.minimumf %22, %23 : vector<5x128xf32>
    %25 = math.absf %22 : vector<5x128xf32>
    %cst_7 = arith.constant 0.000000e+00 : f32
    %26 = vector.broadcast %cst_7 : f32 to vector<5x128xf32>
    %27 = arith.subf %26, %25 : vector<5x128xf32>
    %28 = math.exp %27 : vector<5x128xf32>
    %29 = math.log1p %28 : vector<5x128xf32>
    %30 = arith.subf %24, %29 : vector<5x128xf32>
    %c1_i32 = arith.constant 1 : i32
    %31 = arith.muli %arg0, %c1_i32 : i32
    %32 = arith.addi %31, %arg1 : i32
    %c128_i32 = arith.constant 128 : i32
    %33 = arith.muli %32, %c128_i32 : i32
    %34 = tpu.iota {dimensions = array<i32: 1>} : vector<1x128xi32>
    %35 = vector.broadcast %33 : i32 to vector<1x128xi32>
    %36 = arith.addi %35, %34 : vector<1x128xi32>
    %c12_i32 = arith.constant 12 : i32
    %37 = vector.broadcast %c12_i32 : i32 to vector<1x128xi32>
    %38 = arith.cmpi slt, %36, %37 : vector<1x128xi32>
    %39 = arith.extui %38 : vector<1x128xi1> to vector<1x128xi32>
    %40 = arith.sitofp %39 : vector<1x128xi32> to vector<1x128xf32>
    %c0_8 = arith.constant 0 : index
    %c0_9 = arith.constant 0 : index
    %41 = vector.load %arg5[%c0_8, %c0_9] : memref<1x128xf32, #tpu.memory_space<vmem>>, vector<1x128xf32>
    %42 = vector.broadcast %40 : vector<1x128xf32> to vector<5x128xf32>
    %43 = arith.mulf %30, %42 : vector<5x128xf32>
    %cst_10 = arith.constant dense<0.000000e+00> : vector<128xf32>
    %44 = vector.multi_reduction <add>, %43, %cst_10 [0] : vector<5x128xf32> to vector<128xf32>
    %45 = vector.shape_cast %44 : vector<128xf32> to vector<1x128xf32>
    %46 = arith.addf %41, %45 : vector<1x128xf32>
    %c0_11 = arith.constant 0 : index
    %c0_12 = arith.constant 0 : index
    %47 = vector.load %arg5[%c0_11, %c0_12] : memref<1x128xf32, #tpu.memory_space<vmem>>, vector<1x128xf32>
    tpu.vector_store %arg5[%c0_11, %c0_12], %46 {strides = array<i32>} : memref<1x128xf32, #tpu.memory_space<vmem>>, vector<1x128xf32>,
    %c0_i32_13 = arith.constant 0 : i32
    %48 = arith.cmpi eq, %arg1, %c0_i32_13 : i32
    %49 = arith.extui %48 : i1 to i32
    %c0_i32_14 = arith.constant 0 : i32
    %50 = arith.cmpi ne, %49, %c0_i32_14 : i32
    scf.if %50 {
      %c0_15 = arith.constant 0 : index
      %c0_16 = arith.constant 0 : index
      %51 = vector.load %arg5[%c0_15, %c0_16] : memref<1x128xf32, #tpu.memory_space<vmem>>, vector<1x128xf32>
      %cst_17 = arith.constant dense<0.000000e+00> : vector<1xf32>
      %52 = vector.multi_reduction <add>, %51, %cst_17 [1] : vector<1x128xf32> to vector<1xf32>
      %53 = vector.shape_cast %52 : vector<1xf32> to vector<1x1xf32>
      %54 = vector.shape_cast %53 : vector<1x1xf32> to vector<1x1xf32>
      %55 = vector.broadcast %54 : vector<1x1xf32> to vector<1x128xf32>
      %c0_18 = arith.constant 0 : index
      %c0_19 = arith.constant 0 : index
      %56 = vector.load %arg4[%c0_18, %c0_19] : memref<1x128xf32, #tpu.memory_space<vmem>>, vector<1x128xf32>
      tpu.vector_store %arg4[%c0_18, %c0_19], %55 {strides = array<i32>} : memref<1x128xf32, #tpu.memory_space<vmem>>, vector<1x128xf32>,
    } else {
    }
    return
  }
  func.func @transform_0(%arg0: i32, %arg1: i32) -> (i32, i32) {
    %c1_i32 = arith.constant 1 : i32
    %0 = arith.muli %arg0, %c1_i32 : i32
    %1 = arith.addi %0, %arg1 : i32
    %c0_i32 = arith.constant 0 : i32
    %c0_i32_0 = arith.constant 0 : i32
    return %1, %c0_i32 : i32, i32
  }
  func.func @transform_1(%arg0: i32, %arg1: i32) -> (i32, i32) {
    %c0_i32 = arith.constant 0 : i32
    %c0_i32_0 = arith.constant 0 : i32
    %c0_i32_1 = arith.constant 0 : i32
    return %c0_i32, %c0_i32_0 : i32, i32
  }
  func.func @transform_2(%arg0: i32, %arg1: i32) -> (i32, i32) {
    %c0_i32 = arith.constant 0 : i32
    %c0_i32_0 = arith.constant 0 : i32
    return %c0_i32, %arg0 : i32, i32
  }
}

</mosaic_0001>

<llo_original>
// kernel: tpu_custom_call.1
$region0: #{tpu_custom_call.1}
  #allocation0 [shape = 'u32[]', space=smem, size = 0x4, offset = 0x4, fixed_abs, tag = 'smem constant byte address 0x4 - core index']
  #allocation1 [shape = 'u32[144,128]{1,0:T(1,128)}', space=vmem, size = 0x12000, scoped, tag = 'internal scratch']
  #allocation2 [shape = 'f32[1,128]{1,0:T(1,128)}', space=vmem, size = 0x200, scoped, tag = 'scratch operand']
  %s0 = inlined_call_operand.vmem [shape: s32[1536,1], index: 0, kind: input, shape index: {}]
  %s1 = inlined_call_operand.vmem [shape: f32[128,32], index: 1, kind: input, shape index: {}]
  %s2 = inlined_call_operand.hbm [shape: f32[1,256], index: 2, kind: output, shape index: {}]
  %s3 = sld [smem:[#allocation0]]
  $region49: #{tpu_custom_call.1} parent=0
    _
  %s5 = ssub.s32 1, %s3
  %s6 = scalar_select 0, %s5, %s3
  $region1: #{tpu_custom_call.1} parent=0
    #allocation3 [shape = 'u8[1024]{0}', space=vmem, size = 0x400, scoped, tag = 'output window, operand 0']
    #allocation4 [shape = 's32[2]{0}', space=sflag, size = 0x8, scoped, tag = 'scoped memory for tpu_custom_call.1']
    %7 = vsyncpa [#allocation4], 0
    %s8 = scalar_lea.sflag [#allocation4], 1
    %9 = vsyncpa %s8, 0
    loop: start=0, step=1, limit=4
    $region2: #{tpu_custom_call.1} parent=1 // loop_pre_header
      _
    $region3: #{tpu_custom_call.1} parent=1 // loop_header
      %s11 = sphi 0, %s15
      %p12 = scmp.ge.s32.totalorder %s11, 4
      %s18 = sphi 0, %s30
      %s19 = sphi 0, %s26
      %s20 = sphi 0, %s18
      %s21 = sphi 0, %s19
      %s22 = sphi 0, %s20
      %s23 = sphi 0, %s21
      %s35 = sphi 0, %s37
      %s38 = sphi 0, %s35
      %s39 = sphi 0, %s38
      %s55 = sphi 0, %s39
      %s59 = sphi 0, %s59
      %s61 = sphi 0, %s59
      %s62 = sphi 0, %s61
      %s76 = sphi 0, %s62
      %s82 = sphi 0, %s84
      %s85 = sphi 0, %s82
      %s86 = sphi 0, %s85
      %s102 = sphi 0, %s86
    $region4: #{tpu_custom_call.1} parent=1 // loop_header_branch
      %14 = sbr.rel (%p12) target = $region8
    $region5: #{tpu_custom_call.1} parent=1 // loop_body
      %s16 = ssub.s32 %s11, 1
      %s17 = ssub.s32 %s11, 2
      %s24 = sadd.s32 1, %s19
      %p25 = scmp.ge.s32.totalorder %s24, 1
      %s26 = scalar_select %p25, 0, %s24
      %s27 = sadd.s32 1, %s18
      %s28 = scalar_select %p25, %s27, %s18
      %p29 = scmp.ge.s32.totalorder %s28, 2
      %s30 = scalar_select %p29, 0, %s28
      %s31 = sadd.s32 %s18, %s19
      %s32 = sadd.s32 %s30, %s26
      %s33 = ssub.s32 %s31, %s32
      %p34 = scmp.eq.s32.totalorder %s33, 0
      %s36 = sadd.s32 %s35, 1
      %s37 = scalar_select %p34, %s35, %s36
      %p40 = pneg %p34
      %p41 = scmp.eq.s32.totalorder %s11, 1
      %p42 = por %p40, %p41
      %p43 = scmp.ne.s32.totalorder %s35, %s38
      %p44 = scmp.eq.s32.totalorder %s11, 0
      %p45 = por %p43, %p44
      %p46 = scmp.ne.s32.totalorder %s35, %s38
      %p47 = scmp.eq.s32.totalorder %s16, 1
      %p48 = por %p46, %p47
      %p49 = scmp.ne.s32.totalorder %s38, %s39
      %p50 = scmp.eq.s32.totalorder %s16, 0
      %p51 = por %p49, %p50
      %p52 = scmp.ne.s32.totalorder %s38, %s39
      %p53 = scmp.eq.s32.totalorder %s17, 1
      %p54 = por %p52, %p53
      %p56 = scmp.ne.s32.totalorder %s39, %s55
      %p57 = scmp.eq.s32.totalorder %s17, 0
      %p58 = por %p56, %p57
      %s60 = sadd.s32 %s59, 1
      %p63 = scmp.eq.s32.totalorder %s11, 1
      %p64 = scmp.ne.s32.totalorder %s59, %s61
      %p65 = scmp.eq.s32.totalorder %s11, 0
      %p66 = por %p64, %p65
      %p67 = scmp.ne.s32.totalorder %s59, %s61
      %p68 = scmp.eq.s32.totalorder %s16, 1
      %p69 = por %p67, %p68
      %p70 = scmp.ne.s32.totalorder %s61, %s62
      %p71 = scmp.eq.s32.totalorder %s16, 0
      %p72 = por %p70, %p71
      %p73 = scmp.ne.s32.totalorder %s61, %s62
      %p74 = scmp.eq.s32.totalorder %s17, 1
      %p75 = por %p73, %p74
      %p77 = scmp.ne.s32.totalorder %s62, %s76
      %p78 = scmp.eq.s32.totalorder %s17, 0
      %p79 = por %p77, %p78
      %s80 = ssub.s32 %s18, %s30
      %p81 = scmp.eq.s32.totalorder %s80, 0
      %s83 = sadd.s32 %s82, 1
      %s84 = scalar_select %p81, %s82, %s83
      %p87 = pneg %p81
      %p88 = scmp.eq.s32.totalorder %s11, 1
      %p89 = por %p87, %p88
      %p90 = scmp.ne.s32.totalorder %s82, %s85
      %p91 = scmp.eq.s32.totalorder %s11, 0
      %p92 = por %p90, %p91
      %p93 = scmp.ne.s32.totalorder %s82, %s85
      %p94 = scmp.eq.s32.totalorder %s16, 1
      %p95 = por %p93, %p94
      %p96 = scmp.ne.s32.totalorder %s85, %s86
      %p97 = scmp.eq.s32.totalorder %s16, 0
      %p98 = por %p96, %p97
      %p99 = scmp.ne.s32.totalorder %s85, %s86
      %p100 = scmp.eq.s32.totalorder %s17, 1
      %p101 = por %p99, %p100
      %p103 = scmp.ne.s32.totalorder %s86, %s102
      %p104 = scmp.eq.s32.totalorder %s17, 0
      %p105 = por %p103, %p104
      %p106 = scmp.le.s32.totalorder 1, %s11
      %p107 = scmp.lt.s32.totalorder %s11, 3
      %p108 = pnand %p106, %p107
      %p109 = pneg %p108
      // Predicated region
      $region9: #{tpu_custom_call.1} parent=5 // pred_check
        _
      $region10: #{tpu_custom_call.1} parent=5 // pred_check_branch
        %111 = sbr.rel (%p108) target = $region12
      $region11: #{tpu_custom_call.1} parent=5 // pred_region
        %s112 = ssub.s32 %s11, 1
        // Predicated region
        $region13: #{tpu_custom_call.1} parent=11 // pred_check
          %p113 = pneg %p72
        $region14: #{tpu_custom_call.1} parent=11 // pred_check_branch
          %115 = sbr.rel (%p113) target = $region16
        $region15: #{tpu_custom_call.1} parent=11 // pred_region
          _
        $region16: #{tpu_custom_call.1} parent=11 // pred_fallthru
          _
      $region12: #{tpu_custom_call.1} parent=5 // pred_fallthru
        _
      %p116 = scmp.lt.s32.totalorder %s11, 2
      // Predicated region
      $region17: #{tpu_custom_call.1} parent=5 // pred_check
        %p117 = pneg %p116
      $region18: #{tpu_custom_call.1} parent=5 // pred_check_branch
        %119 = sbr.rel (%p117) target = $region20
      $region19: #{tpu_custom_call.1} parent=5 // pred_region
        // Predicated region
        $region21: #{tpu_custom_call.1} parent=19 // pred_check
          %p120 = pneg %p45
        $region22: #{tpu_custom_call.1} parent=19 // pred_check_branch
          %122 = sbr.rel (%p120) target = $region24
        $region23: #{tpu_custom_call.1} parent=19 // pred_region
          %s123 = sadd.s32 %s18, %s19
          %s124 = smul.u32 96, %s123
          %p125 = scmp.lt.s32.totalorder %s124, 191
          %s126 = scalar_select %p125, %s124, 191
          %s127 = smul.addr %s126, 8
          %s128 = scalar_lea.vmem %s0, %s127
          %s129 = sadd.s32 %s18, %s19
          %s130 = smul.u32 96, %s129
        $region24: #{tpu_custom_call.1} parent=19 // pred_fallthru
          _
      $region20: #{tpu_custom_call.1} parent=5 // pred_fallthru
        _
      %p131 = scmp.le.s32.totalorder 1, %s11
      %p132 = scmp.lt.s32.totalorder %s11, 3
      %p133 = pnand %p131, %p132
      %p134 = pneg %p133
      // Predicated region
      $region25: #{tpu_custom_call.1} parent=5 // pred_check
        _
      $region26: #{tpu_custom_call.1} parent=5 // pred_check_branch
        %136 = sbr.rel (%p133) target = $region28
      $region27: #{tpu_custom_call.1} parent=5 // pred_region
        %s137 = ssub.s32 %s11, 1
        %s138 = sadd.s32 %s20, %s21
        %s139 = smul.u32 96, %s138
        %p140 = scmp.lt.s32.totalorder %s139, 191
        %s141 = scalar_select %p140, %s139, 191
        %s142 = smul.addr %s141, 8
        %s143 = scalar_lea.vmem %s0, %s142
        %p144 = pneg %p51
        %p145 = pneg %p48
        %p146 = pneg %p72
        %p147 = pneg %p69
        %p148 = pneg %p98
        %p149 = pneg %p95
        %s150 = sand.u32 %s85, 1
        %s151 = scalar_lea.sflag [#allocation4], %s150
        %s152 = sand.u32 %s85, 1
        %s153 = scalar_lea.vmem [#allocation3], %s152
        %s154 = sadd.s32 %s20, %s21
        %s155 = smul.u32 96, %s154
        %p156 = scmp.lt.s32.totalorder %s155, 191
        %s157 = scalar_select %p156, %s155, 191
        %s158 = smul.addr %s157, 8
        %s159 = scalar_lea.vmem %s0, %s158
        %s160 = sadd.s32 %s20, %s21
        %s161 = smul.u32 96, %s160
        %p162 = scmp.eq.s32.totalorder %s21, 0
        // Predicated region
        $region29: #{tpu_custom_call.1} parent=27 // pred_check
          %p163 = pneg %p162
        $region30: #{tpu_custom_call.1} parent=27 // pred_check_branch
          %165 = sbr.rel (%p163) target = $region32
        $region31: #{tpu_custom_call.1} parent=27 // pred_region
          %166 = vst [vmem:[#allocation2] sm:$0x1] 0.0
        $region32: #{tpu_custom_call.1} parent=27 // pred_fallthru
          _
        %v167 = vld [vmem:[%s1] sm:$0xff]
        %v168 = vld [vmem:[%s1 + $0x8] sm:$0xff]
        %v169 = vld [vmem:[%s1 + $0x10] sm:$0xff]
        %v170 = vld [vmem:[%s1 + $0x18] sm:$0xff]
        %v171 = vld [vmem:[%s1 + $0x20] sm:$0xff]
        %v172 = vld [vmem:[%s1 + $0x28] sm:$0xff]
        %v173 = vld [vmem:[%s1 + $0x30] sm:$0xff]
        %v174 = vld [vmem:[%s1 + $0x38] sm:$0xff]
        %v175 = vld [vmem:[%s1 + $0x40] sm:$0xff]
        %v176 = vld [vmem:[%s1 + $0x48] sm:$0xff]
        %v177 = vld [vmem:[%s1 + $0x50] sm:$0xff]
        %v178 = vld [vmem:[%s1 + $0x58] sm:$0xff]
        %v179 = vld [vmem:[%s1 + $0x60] sm:$0xff]
        %v180 = vld [vmem:[%s1 + $0x68] sm:$0xff]
        %v181 = vld [vmem:[%s1 + $0x70] sm:$0xff]
        %v182 = vld [vmem:[%s1 + $0x78] sm:$0xff]
        %v183 = vld [vmem:[%s159] sm:$0xff]
        %v184 = vld [vmem:[%s159 + $0x8] sm:$0xff]
        %v185 = vld [vmem:[%s159 + $0x10] sm:$0xff]
        %v186 = vld [vmem:[%s159 + $0x18] sm:$0xff]
        %v187 = vld [vmem:[%s159 + $0x20] sm:$0xff]
        %v188 = vld [vmem:[%s159 + $0x28] sm:$0xff]
        %v189 = vld [vmem:[%s159 + $0x30] sm:$0xff]
        %v190 = vld [vmem:[%s159 + $0x38] sm:$0xff]
        %v191 = vld [vmem:[%s159 + $0x40] sm:$0xff]
        %v192 = vld [vmem:[%s159 + $0x48] sm:$0xff]
        %v193 = vld [vmem:[%s159 + $0x50] sm:$0xff]
        %v194 = vld [vmem:[%s159 + $0x58] sm:$0xff]
        %v195 = vld [vmem:[%s159 + $0x60] sm:$0xff]
        %v196 = vld [vmem:[%s159 + $0x68] sm:$0xff]
        %v197 = vld [vmem:[%s159 + $0x70] sm:$0xff]
        %v198 = vld [vmem:[%s159 + $0x78] sm:$0xff]
        %v199 = vld [vmem:[%s159 + $0x80] sm:$0xff]
        %v200 = vld [vmem:[%s159 + $0x88] sm:$0xff]
        %v201 = vld [vmem:[%s159 + $0x90] sm:$0xff]
        %v202 = vld [vmem:[%s159 + $0x98] sm:$0xff]
        %v203 = vld [vmem:[%s159 + $0xa0] sm:$0xff]
        %v204 = vld [vmem:[%s159 + $0xa8] sm:$0xff]
        %v205 = vld [vmem:[%s159 + $0xb0] sm:$0xff]
        %v206 = vld [vmem:[%s159 + $0xb8] sm:$0xff]
        %v207 = vld [vmem:[%s159 + $0xc0] sm:$0xff]
        %v208 = vld [vmem:[%s159 + $0xc8] sm:$0xff]
        %v209 = vld [vmem:[%s159 + $0xd0] sm:$0xff]
        %v210 = vld [vmem:[%s159 + $0xd8] sm:$0xff]
        %v211 = vld [vmem:[%s159 + $0xe0] sm:$0xff]
        %v212 = vld [vmem:[%s159 + $0xe8] sm:$0xff]
        %v213 = vld [vmem:[%s159 + $0xf0] sm:$0xff]
        %v214 = vld [vmem:[%s159 + $0xf8] sm:$0xff]
        %v215 = vld [vmem:[%s159 + $0x100] sm:$0xff]
        %v216 = vld [vmem:[%s159 + $0x108] sm:$0xff]
        %v217 = vld [vmem:[%s159 + $0x110] sm:$0xff]
        %v218 = vld [vmem:[%s159 + $0x118] sm:$0xff]
        %v219 = vld [vmem:[%s159 + $0x120] sm:$0xff]
        %v220 = vld [vmem:[%s159 + $0x128] sm:$0xff]
        %v221 = vld [vmem:[%s159 + $0x130] sm:$0xff]
        %v222 = vld [vmem:[%s159 + $0x138] sm:$0xff]
        %v223 = vld [vmem:[%s159 + $0x140] sm:$0xff]
        %v224 = vld [vmem:[%s159 + $0x148] sm:$0xff]
        %v225 = vld [vmem:[%s159 + $0x150] sm:$0xff]
        %v226 = vld [vmem:[%s159 + $0x158] sm:$0xff]
        %v227 = vld [vmem:[%s159 + $0x160] sm:$0xff]
        %v228 = vld [vmem:[%s159 + $0x168] sm:$0xff]
        %v229 = vld [vmem:[%s159 + $0x170] sm:$0xff]
        %v230 = vld [vmem:[%s159 + $0x178] sm:$0xff]
        %v231 = vld [vmem:[%s159 + $0x180] sm:$0xff]
        %v232 = vld [vmem:[%s159 + $0x188] sm:$0xff]
        %v233 = vld [vmem:[%s159 + $0x190] sm:$0xff]
        %v234 = vld [vmem:[%s159 + $0x198] sm:$0xff]
        %v235 = vld [vmem:[%s159 + $0x1a0] sm:$0xff]
        %v236 = vld [vmem:[%s159 + $0x1a8] sm:$0xff]
        %v237 = vld [vmem:[%s159 + $0x1b0] sm:$0xff]
        %v238 = vld [vmem:[%s159 + $0x1b8] sm:$0xff]
        %v239 = vld [vmem:[%s159 + $0x1c0] sm:$0xff]
        %v240 = vld [vmem:[%s159 + $0x1c8] sm:$0xff]
        %v241 = vld [vmem:[%s159 + $0x1d0] sm:$0xff]
        %v242 = vld [vmem:[%s159 + $0x1d8] sm:$0xff]
        %v243 = vld [vmem:[%s159 + $0x1e0] sm:$0xff]
        %v244 = vld [vmem:[%s159 + $0x1e8] sm:$0xff]
        %v245 = vld [vmem:[%s159 + $0x1f0] sm:$0xff]
        %v246 = vld [vmem:[%s159 + $0x1f8] sm:$0xff]
        %v247 = vld [vmem:[%s159 + $0x200] sm:$0xff]
        %v248 = vld [vmem:[%s159 + $0x208] sm:$0xff]
        %v249 = vld [vmem:[%s159 + $0x210] sm:$0xff]
        %v250 = vld [vmem:[%s159 + $0x218] sm:$0xff]
        %v251 = vld [vmem:[%s159 + $0x220] sm:$0xff]
        %v252 = vld [vmem:[%s159 + $0x228] sm:$0xff]
        %v253 = vld [vmem:[%s159 + $0x230] sm:$0xff]
        %v254 = vld [vmem:[%s159 + $0x238] sm:$0xff]
        %v255 = vld [vmem:[%s159 + $0x240] sm:$0xff]
        %v256 = vld [vmem:[%s159 + $0x248] sm:$0xff]
        %v257 = vld [vmem:[%s159 + $0x250] sm:$0xff]
        %v258 = vld [vmem:[%s159 + $0x258] sm:$0xff]
        %v259 = vld [vmem:[%s159 + $0x260] sm:$0xff]
        %v260 = vld [vmem:[%s159 + $0x268] sm:$0xff]
        %v261 = vld [vmem:[%s159 + $0x270] sm:$0xff]
        %v262 = vld [vmem:[%s159 + $0x278] sm:$0xff]
        %v263 = vld [vmem:[%s159 + $0x280] sm:$0xff]
        %v264 = vld [vmem:[%s159 + $0x288] sm:$0xff]
        %v265 = vld [vmem:[%s159 + $0x290] sm:$0xff]
        %v266 = vld [vmem:[%s159 + $0x298] sm:$0xff]
        %v267 = vld [vmem:[%s159 + $0x2a0] sm:$0xff]
        %v268 = vld [vmem:[%s159 + $0x2a8] sm:$0xff]
        %v269 = vld [vmem:[%s159 + $0x2b0] sm:$0xff]
        %v270 = vld [vmem:[%s159 + $0x2b8] sm:$0xff]
        %v271 = vld [vmem:[%s159 + $0x2c0] sm:$0xff]
        %v272 = vld [vmem:[%s159 + $0x2c8] sm:$0xff]
        %v273 = vld [vmem:[%s159 + $0x2d0] sm:$0xff]
        %v274 = vld [vmem:[%s159 + $0x2d8] sm:$0xff]
        %v275 = vld [vmem:[%s159 + $0x2e0] sm:$0xff]
        %v276 = vld [vmem:[%s159 + $0x2e8] sm:$0xff]
        %v277 = vld [vmem:[%s159 + $0x2f0] sm:$0xff]
        %v278 = vld [vmem:[%s159 + $0x2f8] sm:$0xff]
        %v279 = vlaneseq
        %v280 = vand.u32 %v279, 127
        %281 = vset.pattern.permute.xlu0 0
        %282 = vperm.xlu0 %281, %v183
        %v283 = vpop.permute.xlu0 %282
        %284 = vset.pattern.permute.xlu0 0
        %285 = vperm.xlu0 %284, %v184
        %v286 = vpop.permute.xlu0 %285
        %287 = vset.pattern.permute.xlu0 0
        %288 = vperm.xlu0 %287, %v185
        %v289 = vpop.permute.xlu0 %288
        %290 = vset.pattern.permute.xlu0 0
        %291 = vperm.xlu0 %290, %v186
        %v292 = vpop.permute.xlu0 %291
        %293 = vset.pattern.permute.xlu0 0
        %294 = vperm.xlu0 %293, %v187
        %v295 = vpop.permute.xlu0 %294
        %296 = vset.pattern.permute.xlu0 0
        %297 = vperm.xlu0 %296, %v188
        %v298 = vpop.permute.xlu0 %297
        %299 = vset.pattern.permute.xlu0 0
        %300 = vperm.xlu0 %299, %v189
        %v301 = vpop.permute.xlu0 %300
        %302 = vset.pattern.permute.xlu0 0
        %303 = vperm.xlu0 %302, %v190
        %v304 = vpop.permute.xlu0 %303
        %305 = vset.pattern.permute.xlu0 0
        %306 = vperm.xlu0 %305, %v191
        %v307 = vpop.permute.xlu0 %306
        %308 = vset.pattern.permute.xlu0 0
        %309 = vperm.xlu0 %308, %v192
        %v310 = vpop.permute.xlu0 %309
        %311 = vset.pattern.permute.xlu0 0
        %312 = vperm.xlu0 %311, %v193
        %v313 = vpop.permute.xlu0 %312
        %314 = vset.pattern.permute.xlu0 0
        %315 = vperm.xlu0 %314, %v194
        %v316 = vpop.permute.xlu0 %315
        %317 = vset.pattern.permute.xlu0 0
        %318 = vperm.xlu0 %317, %v195
        %v319 = vpop.permute.xlu0 %318
        %320 = vset.pattern.permute.xlu0 0
        %321 = vperm.xlu0 %320, %v196
        %v322 = vpop.permute.xlu0 %321
        %323 = vset.pattern.permute.xlu0 0
        %324 = vperm.xlu0 %323, %v197
        %v325 = vpop.permute.xlu0 %324
        %326 = vset.pattern.permute.xlu0 0
        %327 = vperm.xlu0 %326, %v198
        %v328 = vpop.permute.xlu0 %327
        %329 = vset.pattern.permute.xlu0 0
        %330 = vperm.xlu0 %329, %v199
        %v331 = vpop.permute.xlu0 %330
        %332 = vset.pattern.permute.xlu0 0
        %333 = vperm.xlu0 %332, %v200
        %v334 = vpop.permute.xlu0 %333
        %335 = vset.pattern.permute.xlu0 0
        %336 = vperm.xlu0 %335, %v201
        %v337 = vpop.permute.xlu0 %336
        %338 = vset.pattern.permute.xlu0 0
        %339 = vperm.xlu0 %338, %v202
        %v340 = vpop.permute.xlu0 %339
        %341 = vset.pattern.permute.xlu0 0
        %342 = vperm.xlu0 %341, %v203
        %v343 = vpop.permute.xlu0 %342
        %344 = vset.pattern.permute.xlu0 0
        %345 = vperm.xlu0 %344, %v204
        %v346 = vpop.permute.xlu0 %345
        %347 = vset.pattern.permute.xlu0 0
        %348 = vperm.xlu0 %347, %v205
        %v349 = vpop.permute.xlu0 %348
        %350 = vset.pattern.permute.xlu0 0
        %351 = vperm.xlu0 %350, %v206
        %v352 = vpop.permute.xlu0 %351
        %353 = vset.pattern.permute.xlu0 0
        %354 = vperm.xlu0 %353, %v207
        %v355 = vpop.permute.xlu0 %354
        %356 = vset.pattern.permute.xlu0 0
        %357 = vperm.xlu0 %356, %v208
        %v358 = vpop.permute.xlu0 %357
        %359 = vset.pattern.permute.xlu0 0
        %360 = vperm.xlu0 %359, %v209
        %v361 = vpop.permute.xlu0 %360
        %362 = vset.pattern.permute.xlu0 0
        %363 = vperm.xlu0 %362, %v210
        %v364 = vpop.permute.xlu0 %363
        %365 = vset.pattern.permute.xlu0 0
        %366 = vperm.xlu0 %365, %v211
        %v367 = vpop.permute.xlu0 %366
        %368 = vset.pattern.permute.xlu0 0
        %369 = vperm.xlu0 %368, %v212
        %v370 = vpop.permute.xlu0 %369
        %371 = vset.pattern.permute.xlu0 0
        %372 = vperm.xlu0 %371, %v213
        %v373 = vpop.permute.xlu0 %372
        %374 = vset.pattern.permute.xlu0 0
        %375 = vperm.xlu0 %374, %v214
        %v376 = vpop.permute.xlu0 %375
        %377 = vset.pattern.permute.xlu0 0
        %378 = vperm.xlu0 %377, %v215
        %v379 = vpop.permute.xlu0 %378
        %380 = vset.pattern.permute.xlu0 0
        %381 = vperm.xlu0 %380, %v216
        %v382 = vpop.permute.xlu0 %381
        %383 = vset.pattern.permute.xlu0 0
        %384 = vperm.xlu0 %383, %v217
        %v385 = vpop.permute.xlu0 %384
        %386 = vset.pattern.permute.xlu0 0
        %387 = vperm.xlu0 %386, %v218
        %v388 = vpop.permute.xlu0 %387
        %389 = vset.pattern.permute.xlu0 0
        %390 = vperm.xlu0 %389, %v219
        %v391 = vpop.permute.xlu0 %390
        %392 = vset.pattern.permute.xlu0 0
        %393 = vperm.xlu0 %392, %v220
        %v394 = vpop.permute.xlu0 %393
        %395 = vset.pattern.permute.xlu0 0
        %396 = vperm.xlu0 %395, %v221
        %v397 = vpop.permute.xlu0 %396
        %398 = vset.pattern.permute.xlu0 0
        %399 = vperm.xlu0 %398, %v222
        %v400 = vpop.permute.xlu0 %399
        %401 = vset.pattern.permute.xlu0 0
        %402 = vperm.xlu0 %401, %v223
        %v403 = vpop.permute.xlu0 %402
        %404 = vset.pattern.permute.xlu0 0
        %405 = vperm.xlu0 %404, %v224
        %v406 = vpop.permute.xlu0 %405
        %407 = vset.pattern.permute.xlu0 0
        %408 = vperm.xlu0 %407, %v225
        %v409 = vpop.permute.xlu0 %408
        %410 = vset.pattern.permute.xlu0 0
        %411 = vperm.xlu0 %410, %v226
        %v412 = vpop.permute.xlu0 %411
        %413 = vset.pattern.permute.xlu0 0
        %414 = vperm.xlu0 %413, %v227
        %v415 = vpop.permute.xlu0 %414
        %416 = vset.pattern.permute.xlu0 0
        %417 = vperm.xlu0 %416, %v228
        %v418 = vpop.permute.xlu0 %417
        %419 = vset.pattern.permute.xlu0 0
        %420 = vperm.xlu0 %419, %v229
        %v421 = vpop.permute.xlu0 %420
        %422 = vset.pattern.permute.xlu0 0
        %423 = vperm.xlu0 %422, %v230
        %v424 = vpop.permute.xlu0 %423
        %425 = vset.pattern.permute.xlu0 0
        %426 = vperm.xlu0 %425, %v231
        %v427 = vpop.permute.xlu0 %426
        %428 = vset.pattern.permute.xlu0 0
        %429 = vperm.xlu0 %428, %v232
        %v430 = vpop.permute.xlu0 %429
        %431 = vset.pattern.permute.xlu0 0
        %432 = vperm.xlu0 %431, %v233
        %v433 = vpop.permute.xlu0 %432
        %434 = vset.pattern.permute.xlu0 0
        %435 = vperm.xlu0 %434, %v234
        %v436 = vpop.permute.xlu0 %435
        %437 = vset.pattern.permute.xlu0 0
        %438 = vperm.xlu0 %437, %v235
        %v439 = vpop.permute.xlu0 %438
        %440 = vset.pattern.permute.xlu0 0
        %441 = vperm.xlu0 %440, %v236
        %v442 = vpop.permute.xlu0 %441
        %443 = vset.pattern.permute.xlu0 0
        %444 = vperm.xlu0 %443, %v237
        %v445 = vpop.permute.xlu0 %444
        %446 = vset.pattern.permute.xlu0 0
        %447 = vperm.xlu0 %446, %v238
        %v448 = vpop.permute.xlu0 %447
        %449 = vset.pattern.permute.xlu0 0
        %450 = vperm.xlu0 %449, %v239
        %v451 = vpop.permute.xlu0 %450
        %452 = vset.pattern.permute.xlu0 0
        %453 = vperm.xlu0 %452, %v240
        %v454 = vpop.permute.xlu0 %453
        %455 = vset.pattern.permute.xlu0 0
        %456 = vperm.xlu0 %455, %v241
        %v457 = vpop.permute.xlu0 %456
        %458 = vset.pattern.permute.xlu0 0
        %459 = vperm.xlu0 %458, %v242
        %v460 = vpop.permute.xlu0 %459
        %461 = vset.pattern.permute.xlu0 0
        %462 = vperm.xlu0 %461, %v243
        %v463 = vpop.permute.xlu0 %462
        %464 = vset.pattern.permute.xlu0 0
        %465 = vperm.xlu0 %464, %v244
        %v466 = vpop.permute.xlu0 %465
        %467 = vset.pattern.permute.xlu0 0
        %468 = vperm.xlu0 %467, %v245
        %v469 = vpop.permute.xlu0 %468
        %470 = vset.pattern.permute.xlu0 0
        %471 = vperm.xlu0 %470, %v246
        %v472 = vpop.permute.xlu0 %471
        %473 = vset.pattern.permute.xlu0 0
        %474 = vperm.xlu0 %473, %v247
        %v475 = vpop.permute.xlu0 %474
        %476 = vset.pattern.permute.xlu0 0
        %477 = vperm.xlu0 %476, %v248
        %v478 = vpop.permute.xlu0 %477
        %479 = vset.pattern.permute.xlu0 0
        %480 = vperm.xlu0 %479, %v249
        %v481 = vpop.permute.xlu0 %480
        %482 = vset.pattern.permute.xlu0 0
        %483 = vperm.xlu0 %482, %v250
        %v484 = vpop.permute.xlu0 %483
        %485 = vset.pattern.permute.xlu0 0
        %486 = vperm.xlu0 %485, %v251
        %v487 = vpop.permute.xlu0 %486
        %488 = vset.pattern.permute.xlu0 0
        %489 = vperm.xlu0 %488, %v252
        %v490 = vpop.permute.xlu0 %489
        %491 = vset.pattern.permute.xlu0 0
        %492 = vperm.xlu0 %491, %v253
        %v493 = vpop.permute.xlu0 %492
        %494 = vset.pattern.permute.xlu0 0
        %495 = vperm.xlu0 %494, %v254
        %v496 = vpop.permute.xlu0 %495
        %497 = vset.pattern.permute.xlu0 0
        %498 = vperm.xlu0 %497, %v255
        %v499 = vpop.permute.xlu0 %498
        %500 = vset.pattern.permute.xlu0 0
        %501 = vperm.xlu0 %500, %v256
        %v502 = vpop.permute.xlu0 %501
        %503 = vset.pattern.permute.xlu0 0
        %504 = vperm.xlu0 %503, %v257
        %v505 = vpop.permute.xlu0 %504
        %506 = vset.pattern.permute.xlu0 0
        %507 = vperm.xlu0 %506, %v258
        %v508 = vpop.permute.xlu0 %507
        %509 = vset.pattern.permute.xlu0 0
        %510 = vperm.xlu0 %509, %v259
        %v511 = vpop.permute.xlu0 %510
        %512 = vset.pattern.permute.xlu0 0
        %513 = vperm.xlu0 %512, %v260
        %v514 = vpop.permute.xlu0 %513
        %515 = vset.pattern.permute.xlu0 0
        %516 = vperm.xlu0 %515, %v261
        %v517 = vpop.permute.xlu0 %516
        %518 = vset.pattern.permute.xlu0 0
        %519 = vperm.xlu0 %518, %v262
        %v520 = vpop.permute.xlu0 %519
        %521 = vset.pattern.permute.xlu0 0
        %522 = vperm.xlu0 %521, %v263
        %v523 = vpop.permute.xlu0 %522
        %524 = vset.pattern.permute.xlu0 0
        %525 = vperm.xlu0 %524, %v264
        %v526 = vpop.permute.xlu0 %525
        %527 = vset.pattern.permute.xlu0 0
        %528 = vperm.xlu0 %527, %v265
        %v529 = vpop.permute.xlu0 %528
        %530 = vset.pattern.permute.xlu0 0
        %531 = vperm.xlu0 %530, %v266
        %v532 = vpop.permute.xlu0 %531
        %533 = vset.pattern.permute.xlu0 0
        %534 = vperm.xlu0 %533, %v267
        %v535 = vpop.permute.xlu0 %534
        %536 = vset.pattern.permute.xlu0 0
        %537 = vperm.xlu0 %536, %v268
        %v538 = vpop.permute.xlu0 %537
        %539 = vset.pattern.permute.xlu0 0
        %540 = vperm.xlu0 %539, %v269
        %v541 = vpop.permute.xlu0 %540
        %542 = vset.pattern.permute.xlu0 0
        %543 = vperm.xlu0 %542, %v270
        %v544 = vpop.permute.xlu0 %543
        %545 = vset.pattern.permute.xlu0 0
        %546 = vperm.xlu0 %545, %v271
        %v547 = vpop.permute.xlu0 %546
        %548 = vset.pattern.permute.xlu0 0
        %549 = vperm.xlu0 %548, %v272
        %v550 = vpop.permute.xlu0 %549
        %551 = vset.pattern.permute.xlu0 0
        %552 = vperm.xlu0 %551, %v273
        %v553 = vpop.permute.xlu0 %552
        %554 = vset.pattern.permute.xlu0 0
        %555 = vperm.xlu0 %554, %v274
        %v556 = vpop.permute.xlu0 %555
        %557 = vset.pattern.permute.xlu0 0
        %558 = vperm.xlu0 %557, %v275
        %v559 = vpop.permute.xlu0 %558
        %560 = vset.pattern.permute.xlu0 0
        %561 = vperm.xlu0 %560, %v276
        %v562 = vpop.permute.xlu0 %561
        %563 = vset.pattern.permute.xlu0 0
        %564 = vperm.xlu0 %563, %v277
        %v565 = vpop.permute.xlu0 %564
        %566 = vset.pattern.permute.xlu0 0
        %567 = vperm.xlu0 %566, %v278
        %v568 = vpop.permute.xlu0 %567
        %vm569 = vcmp.eq.s32.totalorder %v280, %v283
        %vm570 = vcmp.eq.s32.totalorder %v280, %v286
        %vm571 = vcmp.eq.s32.totalorder %v280, %v289
        %vm572 = vcmp.eq.s32.totalorder %v280, %v292
        %vm573 = vcmp.eq.s32.totalorder %v280, %v295
        %vm574 = vcmp.eq.s32.totalorder %v280, %v298
        %vm575 = vcmp.eq.s32.totalorder %v280, %v301
        %vm576 = vcmp.eq.s32.totalorder %v280, %v304
        %vm577 = vcmp.eq.s32.totalorder %v280, %v307
        %vm578 = vcmp.eq.s32.totalorder %v280, %v310
        %vm579 = vcmp.eq.s32.totalorder %v280, %v313
        %vm580 = vcmp.eq.s32.totalorder %v280, %v316
        %vm581 = vcmp.eq.s32.totalorder %v280, %v319
        %vm582 = vcmp.eq.s32.totalorder %v280, %v322
        %vm583 = vcmp.eq.s32.totalorder %v280, %v325
        %vm584 = vcmp.eq.s32.totalorder %v280, %v328
        %vm585 = vcmp.eq.s32.totalorder %v280, %v331
        %vm586 = vcmp.eq.s32.totalorder %v280, %v334
        %vm587 = vcmp.eq.s32.totalorder %v280, %v337
        %vm588 = vcmp.eq.s32.totalorder %v280, %v340
        %vm589 = vcmp.eq.s32.totalorder %v280, %v343
        %vm590 = vcmp.eq.s32.totalorder %v280, %v346
        %vm591 = vcmp.eq.s32.totalorder %v280, %v349
        %vm592 = vcmp.eq.s32.totalorder %v280, %v352
        %vm593 = vcmp.eq.s32.totalorder %v280, %v355
        %vm594 = vcmp.eq.s32.totalorder %v280, %v358
        %vm595 = vcmp.eq.s32.totalorder %v280, %v361
        %vm596 = vcmp.eq.s32.totalorder %v280, %v364
        %vm597 = vcmp.eq.s32.totalorder %v280, %v367
        %vm598 = vcmp.eq.s32.totalorder %v280, %v370
        %vm599 = vcmp.eq.s32.totalorder %v280, %v373
        %vm600 = vcmp.eq.s32.totalorder %v280, %v376
        %vm601 = vcmp.eq.s32.totalorder %v280, %v379
        %vm602 = vcmp.eq.s32.totalorder %v280, %v382
        %vm603 = vcmp.eq.s32.totalorder %v280, %v385
        %vm604 = vcmp.eq.s32.totalorder %v280, %v388
        %vm605 = vcmp.eq.s32.totalorder %v280, %v391
        %vm606 = vcmp.eq.s32.totalorder %v280, %v394
        %vm607 = vcmp.eq.s32.totalorder %v280, %v397
        %vm608 = vcmp.eq.s32.totalorder %v280, %v400
        %vm609 = vcmp.eq.s32.totalorder %v280, %v403
        %vm610 = vcmp.eq.s32.totalorder %v280, %v406
        %vm611 = vcmp.eq.s32.totalorder %v280, %v409
        %vm612 = vcmp.eq.s32.totalorder %v280, %v412
        %vm613 = vcmp.eq.s32.totalorder %v280, %v415
        %vm614 = vcmp.eq.s32.totalorder %v280, %v418
        %vm615 = vcmp.eq.s32.totalorder %v280, %v421
        %vm616 = vcmp.eq.s32.totalorder %v280, %v424
        %vm617 = vcmp.eq.s32.totalorder %v280, %v427
        %vm618 = vcmp.eq.s32.totalorder %v280, %v430
        %vm619 = vcmp.eq.s32.totalorder %v280, %v433
        %vm620 = vcmp.eq.s32.totalorder %v280, %v436
        %vm621 = vcmp.eq.s32.totalorder %v280, %v439
        %vm622 = vcmp.eq.s32.totalorder %v280, %v442
        %vm623 = vcmp.eq.s32.totalorder %v280, %v445
        %vm624 = vcmp.eq.s32.totalorder %v280, %v448
        %vm625 = vcmp.eq.s32.totalorder %v280, %v451
        %vm626 = vcmp.eq.s32.totalorder %v280, %v454
        %vm627 = vcmp.eq.s32.totalorder %v280, %v457
        %vm628 = vcmp.eq.s32.totalorder %v280, %v460
        %vm629 = vcmp.eq.s32.totalorder %v280, %v463
        %vm630 = vcmp.eq.s32.totalorder %v280, %v466
        %vm631 = vcmp.eq.s32.totalorder %v280, %v469
        %vm632 = vcmp.eq.s32.totalorder %v280, %v472
        %vm633 = vcmp.eq.s32.totalorder %v280, %v475
        %vm634 = vcmp.eq.s32.totalorder %v280, %v478
        %vm635 = vcmp.eq.s32.totalorder %v280, %v481
        %vm636 = vcmp.eq.s32.totalorder %v280, %v484
        %vm637 = vcmp.eq.s32.totalorder %v280, %v487
        %vm638 = vcmp.eq.s32.totalorder %v280, %v490
        %vm639 = vcmp.eq.s32.totalorder %v280, %v493
        %vm640 = vcmp.eq.s32.totalorder %v280, %v496
        %vm641 = vcmp.eq.s32.totalorder %v280, %v499
        %vm642 = vcmp.eq.s32.totalorder %v280, %v502
        %vm643 = vcmp.eq.s32.totalorder %v280, %v505
        %vm644 = vcmp.eq.s32.totalorder %v280, %v508
        %vm645 = vcmp.eq.s32.totalorder %v280, %v511
        %vm646 = vcmp.eq.s32.totalorder %v280, %v514
        %vm647 = vcmp.eq.s32.totalorder %v280, %v517
        %vm648 = vcmp.eq.s32.totalorder %v280, %v520
        %vm649 = vcmp.eq.s32.totalorder %v280, %v523
        %vm650 = vcmp.eq.s32.totalorder %v280, %v526
        %vm651 = vcmp.eq.s32.totalorder %v280, %v529
        %vm652 = vcmp.eq.s32.totalorder %v280, %v532
        %vm653 = vcmp.eq.s32.totalorder %v280, %v535
        %vm654 = vcmp.eq.s32.totalorder %v280, %v538
        %vm655 = vcmp.eq.s32.totalorder %v280, %v541
        %vm656 = vcmp.eq.s32.totalorder %v280, %v544
        %vm657 = vcmp.eq.s32.totalorder %v280, %v547
        %vm658 = vcmp.eq.s32.totalorder %v280, %v550
        %vm659 = vcmp.eq.s32.totalorder %v280, %v553
        %vm660 = vcmp.eq.s32.totalorder %v280, %v556
        %vm661 = vcmp.eq.s32.totalorder %v280, %v559
        %vm662 = vcmp.eq.s32.totalorder %v280, %v562
        %vm663 = vcmp.eq.s32.totalorder %v280, %v565
        %vm664 = vcmp.eq.s32.totalorder %v280, %v568
        %v665 = vsel %vm569, 1, 0
        %v666 = vsel %vm570, 1, 0
        %v667 = vsel %vm571, 1, 0
        %v668 = vsel %vm572, 1, 0
        %v669 = vsel %vm573, 1, 0
        %v670 = vsel %vm574, 1, 0
        %v671 = vsel %vm575, 1, 0
        %v672 = vsel %vm576, 1, 0
        %v673 = vsel %vm577, 1, 0
        %v674 = vsel %vm578, 1, 0
        %v675 = vsel %vm579, 1, 0
        %v676 = vsel %vm580, 1, 0
        %v677 = vsel %vm581, 1, 0
        %v678 = vsel %vm582, 1, 0
        %v679 = vsel %vm583, 1, 0
        %v680 = vsel %vm584, 1, 0
        %v681 = vsel %vm585, 1, 0
        %v682 = vsel %vm586, 1, 0
        %v683 = vsel %vm587, 1, 0
        %v684 = vsel %vm588, 1, 0
        %v685 = vsel %vm589, 1, 0
        %v686 = vsel %vm590, 1, 0
        %v687 = vsel %vm591, 1, 0
        %v688 = vsel %vm592, 1, 0
        %v689 = vsel %vm593, 1, 0
        %v690 = vsel %vm594, 1, 0
        %v691 = vsel %vm595, 1, 0
        %v692 = vsel %vm596, 1, 0
        %v693 = vsel %vm597, 1, 0
        %v694 = vsel %vm598, 1, 0
        %v695 = vsel %vm599, 1, 0
        %v696 = vsel %vm600, 1, 0
        %v697 = vsel %vm601, 1, 0
        %v698 = vsel %vm602, 1, 0
        %v699 = vsel %vm603, 1, 0
        %v700 = vsel %vm604, 1, 0
        %v701 = vsel %vm605, 1, 0
        %v702 = vsel %vm606, 1, 0
        %v703 = vsel %vm607, 1, 0
        %v704 = vsel %vm608, 1, 0
        %v705 = vsel %vm609, 1, 0
        %v706 = vsel %vm610, 1, 0
        %v707 = vsel %vm611, 1, 0
        %v708 = vsel %vm612, 1, 0
        %v709 = vsel %vm613, 1, 0
        %v710 = vsel %vm614, 1, 0
        %v711 = vsel %vm615, 1, 0
        %v712 = vsel %vm616, 1, 0
        %v713 = vsel %vm617, 1, 0
        %v714 = vsel %vm618, 1, 0
        %v715 = vsel %vm619, 1, 0
        %v716 = vsel %vm620, 1, 0
        %v717 = vsel %vm621, 1, 0
        %v718 = vsel %vm622, 1, 0
        %v719 = vsel %vm623, 1, 0
        %v720 = vsel %vm624, 1, 0
        %v721 = vsel %vm625, 1, 0
        %v722 = vsel %vm626, 1, 0
        %v723 = vsel %vm627, 1, 0
        %v724 = vsel %vm628, 1, 0
        %v725 = vsel %vm629, 1, 0
        %v726 = vsel %vm630, 1, 0
        %v727 = vsel %vm631, 1, 0
        %v728 = vsel %vm632, 1, 0
        %v729 = vsel %vm633, 1, 0
        %v730 = vsel %vm634, 1, 0
        %v731 = vsel %vm635, 1, 0
        %v732 = vsel %vm636, 1, 0
        %v733 = vsel %vm637, 1, 0
        %v734 = vsel %vm638, 1, 0
        %v735 = vsel %vm639, 1, 0
        %v736 = vsel %vm640, 1, 0
        %v737 = vsel %vm641, 1, 0
        %v738 = vsel %vm642, 1, 0
        %v739 = vsel %vm643, 1, 0
        %v740 = vsel %vm644, 1, 0
        %v741 = vsel %vm645, 1, 0
        %v742 = vsel %vm646, 1, 0
        %v743 = vsel %vm647, 1, 0
        %v744 = vsel %vm648, 1, 0
        %v745 = vsel %vm649, 1, 0
        %v746 = vsel %vm650, 1, 0
        %v747 = vsel %vm651, 1, 0
        %v748 = vsel %vm652, 1, 0
        %v749 = vsel %vm653, 1, 0
        %v750 = vsel %vm654, 1, 0
        %v751 = vsel %vm655, 1, 0
        %v752 = vsel %vm656, 1, 0
        %v753 = vsel %vm657, 1, 0
        %v754 = vsel %vm658, 1, 0
        %v755 = vsel %vm659, 1, 0
        %v756 = vsel %vm660, 1, 0
        %v757 = vsel %vm661, 1, 0
        %v758 = vsel %vm662, 1, 0
        %v759 = vsel %vm663, 1, 0
        %v760 = vsel %vm664, 1, 0
        %v761 = vcvt.s32.f32 %v665
        %v762 = vcvt.s32.f32 %v666
        %v763 = vcvt.s32.f32 %v667
        %v764 = vcvt.s32.f32 %v668
        %v765 = vcvt.s32.f32 %v669
        %v766 = vcvt.s32.f32 %v670
        %v767 = vcvt.s32.f32 %v671
        %v768 = vcvt.s32.f32 %v672
        %v769 = vcvt.s32.f32 %v673
        %v770 = vcvt.s32.f32 %v674
        %v771 = vcvt.s32.f32 %v675
        %v772 = vcvt.s32.f32 %v676
        %v773 = vcvt.s32.f32 %v677
        %v774 = vcvt.s32.f32 %v678
        %v775 = vcvt.s32.f32 %v679
        %v776 = vcvt.s32.f32 %v680
        %v777 = vcvt.s32.f32 %v681
        %v778 = vcvt.s32.f32 %v682
        %v779 = vcvt.s32.f32 %v683
        %v780 = vcvt.s32.f32 %v684
        %v781 = vcvt.s32.f32 %v685
        %v782 = vcvt.s32.f32 %v686
        %v783 = vcvt.s32.f32 %v687
        %v784 = vcvt.s32.f32 %v688
        %v785 = vcvt.s32.f32 %v689
        %v786 = vcvt.s32.f32 %v690
        %v787 = vcvt.s32.f32 %v691
        %v788 = vcvt.s32.f32 %v692
        %v789 = vcvt.s32.f32 %v693
        %v790 = vcvt.s32.f32 %v694
        %v791 = vcvt.s32.f32 %v695
        %v792 = vcvt.s32.f32 %v696
        %v793 = vcvt.s32.f32 %v697
        %v794 = vcvt.s32.f32 %v698
        %v795 = vcvt.s32.f32 %v699
        %v796 = vcvt.s32.f32 %v700
        %v797 = vcvt.s32.f32 %v701
        %v798 = vcvt.s32.f32 %v702
        %v799 = vcvt.s32.f32 %v703
        %v800 = vcvt.s32.f32 %v704
        %v801 = vcvt.s32.f32 %v705
        %v802 = vcvt.s32.f32 %v706
        %v803 = vcvt.s32.f32 %v707
        %v804 = vcvt.s32.f32 %v708
        %v805 = vcvt.s32.f32 %v709
        %v806 = vcvt.s32.f32 %v710
        %v807 = vcvt.s32.f32 %v711
        %v808 = vcvt.s32.f32 %v712
        %v809 = vcvt.s32.f32 %v713
        %v810 = vcvt.s32.f32 %v714
        %v811 = vcvt.s32.f32 %v715
        %v812 = vcvt.s32.f32 %v716
        %v813 = vcvt.s32.f32 %v717
        %v814 = vcvt.s32.f32 %v718
        %v815 = vcvt.s32.f32 %v719
        %v816 = vcvt.s32.f32 %v720
        %v817 = vcvt.s32.f32 %v721
        %v818 = vcvt.s32.f32 %v722
        %v819 = vcvt.s32.f32 %v723
        %v820 = vcvt.s32.f32 %v724
        %v821 = vcvt.s32.f32 %v725
        %v822 = vcvt.s32.f32 %v726
        %v823 = vcvt.s32.f32 %v727
        %v824 = vcvt.s32.f32 %v728
        %v825 = vcvt.s32.f32 %v729
        %v826 = vcvt.s32.f32 %v730
        %v827 = vcvt.s32.f32 %v731
        %v828 = vcvt.s32.f32 %v732
        %v829 = vcvt.s32.f32 %v733
        %v830 = vcvt.s32.f32 %v734
        %v831 = vcvt.s32.f32 %v735
        %v832 = vcvt.s32.f32 %v736
        %v833 = vcvt.s32.f32 %v737
        %v834 = vcvt.s32.f32 %v738
        %v835 = vcvt.s32.f32 %v739
        %v836 = vcvt.s32.f32 %v740
        %v837 = vcvt.s32.f32 %v741
        %v838 = vcvt.s32.f32 %v742
        %v839 = vcvt.s32.f32 %v743
        %v840 = vcvt.s32.f32 %v744
        %v841 = vcvt.s32.f32 %v745
        %v842 = vcvt.s32.f32 %v746
        %v843 = vcvt.s32.f32 %v747
        %v844 = vcvt.s32.f32 %v748
        %v845 = vcvt.s32.f32 %v749
        %v846 = vcvt.s32.f32 %v750
        %v847 = vcvt.s32.f32 %v751
        %v848 = vcvt.s32.f32 %v752
        %v849 = vcvt.s32.f32 %v753
        %v850 = vcvt.s32.f32 %v754
        %v851 = vcvt.s32.f32 %v755
        %v852 = vcvt.s32.f32 %v756
        %v853 = vcvt.s32.f32 %v757
        %v854 = vcvt.s32.f32 %v758
        %v855 = vcvt.s32.f32 %v759
        %v856 = vcvt.s32.f32 %v760
        %857 = vmatprep.subr.mxu0 0.0
        %v858 = vand.u32 %v167, 4294901760
        %859 = vmatpush1.msra.mxu0 %v858
        %860 = vmatprep.subr.mxu0 0.0
        %v861 = vand.u32 %v168, 4294901760
        %862 = vmatpush1.msra.mxu0 %v861
        %863 = vmatprep.subr.mxu0 0.0
        %v864 = vand.u32 %v169, 4294901760
        %865 = vmatpush1.msra.mxu0 %v864
        %866 = vmatprep.subr.mxu0 0.0
        %v867 = vand.u32 %v170, 4294901760
        %868 = vmatpush1.msra.mxu0 %v867
        %869 = vmatprep.subr.mxu0 0.0
        %v870 = vand.u32 %v171, 4294901760
        %871 = vmatpush1.msra.mxu0 %v870
        %872 = vmatprep.subr.mxu0 0.0
        %v873 = vand.u32 %v172, 4294901760
        %874 = vmatpush1.msra.mxu0 %v873
        %875 = vmatprep.subr.mxu0 0.0
        %v876 = vand.u32 %v173, 4294901760
        %877 = vmatpush1.msra.mxu0 %v876
        %878 = vmatprep.subr.mxu0 0.0
        %v879 = vand.u32 %v174, 4294901760
        %880 = vmatpush1.msra.mxu0 %v879
        %881 = vmatprep.subr.mxu0 0.0
        %v882 = vand.u32 %v175, 4294901760
        %883 = vmatpush1.msra.mxu0 %v882
        %884 = vmatprep.subr.mxu0 0.0
        %v885 = vand.u32 %v176, 4294901760
        %886 = vmatpush1.msra.mxu0 %v885
        %887 = vmatprep.subr.mxu0 0.0
        %v888 = vand.u32 %v177, 4294901760
        %889 = vmatpush1.msra.mxu0 %v888
        %890 = vmatprep.subr.mxu0 0.0
        %v891 = vand.u32 %v178, 4294901760
        %892 = vmatpush1.msra.mxu0 %v891
        %893 = vmatprep.subr.mxu0 0.0
        %v894 = vand.u32 %v179, 4294901760
        %895 = vmatpush1.msra.mxu0 %v894
        %896 = vmatprep.subr.mxu0 0.0
        %v897 = vand.u32 %v180, 4294901760
        %898 = vmatpush1.msra.mxu0 %v897
        %899 = vmatprep.subr.mxu0 0.0
        %v900 = vand.u32 %v181, 4294901760
        %901 = vmatpush1.msra.mxu0 %v900
        %902 = vmatprep.subr.mxu0 0.0
        %v903 = vand.u32 %v182, 4294901760
        %904 = vmatpush1.msra.mxu0 %v903
        %905 = vmatprep.subr.mxu0 0.0
        %906 = vmatpush1.msra.mxu0 0.0
        %907 = vmatprep.subr.mxu0 0.0
        %908 = vmatpush1.msra.mxu0 0.0
        %909 = vmatprep.subr.mxu0 0.0
        %910 = vmatpush1.msra.mxu0 0.0
        %911 = vmatprep.subr.mxu0 0.0
        %912 = vmatpush1.msra.mxu0 0.0
        %913 = vmatprep.subr.mxu0 0.0
        %914 = vmatpush1.msra.mxu0 0.0
        %915 = vmatprep.subr.mxu0 0.0
        %916 = vmatpush1.msra.mxu0 0.0
        %917 = vmatprep.subr.mxu0 0.0
        %918 = vmatpush1.msra.mxu0 0.0
        %919 = vmatprep.subr.mxu0 0.0
        %920 = vmatpush1.msra.mxu0 0.0
        %921 = vmatprep.subr.mxu0 0.0
        %922 = vmatpush1.msra.mxu0 0.0
        %923 = vmatprep.subr.mxu0 0.0
        %924 = vmatpush1.msra.mxu0 0.0
        %925 = vmatprep.subr.mxu0 0.0
        %926 = vmatpush1.msra.mxu0 0.0
        %927 = vmatprep.subr.mxu0 0.0
        %928 = vmatpush1.msra.mxu0 0.0
        %929 = vmatprep.subr.mxu0 0.0
        %930 = vmatpush1.msra.mxu0 0.0
        %931 = vmatprep.subr.mxu0 0.0
        %932 = vmatpush1.msra.mxu0 0.0
        %933 = vmatprep.subr.mxu0 0.0
        %934 = vmatpush1.msra.mxu0 0.0
        %935 = vmatprep.subr.mxu0 0.0
        %936 = vmatpush1.msra.mxu0 0.0
        %937 = vmatprep.mubr.f32.mxu0 0.0
        %v938 = vand.u32 %v761, 4294901760
        %v939 = vsub.f32 %v761, %v938
        %v940 = vand.u32 %v939, 4294901760
        %v941 = vsub.f32 %v939, %v940
        %v942 = vand.u32 %v941, 4294901760
        %943 = vmatmul.mubr.f32.gmra.mrb[0].mxu0 %v942
        %v944 = vpop.f32.mrb[0].mxu0
        %v945 = vadd.f32 0.0, %v944
        %v946 = vpop.f32.mrb[0].mxu0
        %947 = vmatprep.mubr.f32.mxu0 0.0
        %v948 = vand.u32 %v762, 4294901760
        %v949 = vsub.f32 %v762, %v948
        %v950 = vand.u32 %v949, 4294901760
        %v951 = vsub.f32 %v949, %v950
        %v952 = vand.u32 %v951, 4294901760
        %953 = vmatmul.mubr.f32.gmra.mrb[0].mxu0 %v952
        %v954 = vpop.f32.mrb[0].mxu0
        %v955 = vadd.f32 0.0, %v954
        %v956 = vpop.f32.mrb[0].mxu0
        %957 = vmatprep.mubr.f32.mxu0 0.0
        %v958 = vand.u32 %v763, 4294901760
        %v959 = vsub.f32 %v763, %v958
        %v960 = vand.u32 %v959, 4294901760
        %v961 = vsub.f32 %v959, %v960
        %v962 = vand.u32 %v961, 4294901760
        %963 = vmatmul.mubr.f32.gmra.mrb[0].mxu0 %v962
        %v964 = vpop.f32.mrb[0].mxu0
        %v965 = vadd.f32 0.0, %v964
        %v966 = vpop.f32.mrb[0].mxu0
        %967 = vmatprep.mubr.f32.mxu0 0.0
        %v968 = vand.u32 %v764, 4294901760
        %v969 = vsub.f32 %v764, %v968
        %v970 = vand.u32 %v969, 4294901760
        %v971 = vsub.f32 %v969, %v970
        %v972 = vand.u32 %v971, 4294901760
        %973 = vmatmul.mubr.f32.gmra.mrb[0].mxu0 %v972
        %v974 = vpop.f32.mrb[0].mxu0
        %v975 = vadd.f32 0.0, %v974
        %v976 = vpop.f32.mrb[0].mxu0
        %977 = vmatprep.mubr.f32.mxu0 0.0
        %v978 = vand.u32 %v765, 4294901760
        %v979 = vsub.f32 %v765, %v978
        %v980 = vand.u32 %v979, 4294901760
        %v981 = vsub.f32 %v979, %v980
        %v982 = vand.u32 %v981, 4294901760
        %983 = vmatmul.mubr.f32.gmra.mrb[0].mxu0 %v982
        %v984 = vpop.f32.mrb[0].mxu0
        %v985 = vadd.f32 0.0, %v984
        %v986 = vpop.f32.mrb[0].mxu0
        %987 = vmatprep.mubr.f32.mxu0 0.0
        %v988 = vand.u32 %v766, 4294901760
        %v989 = vsub.f32 %v766, %v988
        %v990 = vand.u32 %v989, 4294901760
        %v991 = vsub.f32 %v989, %v990
        %v992 = vand.u32 %v991, 4294901760
        %993 = vmatmul.mubr.f32.gmra.mrb[0].mxu0 %v992
        %v994 = vpop.f32.mrb[0].mxu0
        %v995 = vadd.f32 0.0, %v994
        %v996 = vpop.f32.mrb[0].mxu0
        %997 = vmatprep.mubr.f32.mxu0 0.0
        %v998 = vand.u32 %v767, 4294901760
        %v999 = vsub.f32 %v767, %v998
        %v1000 = vand.u32 %v999, 4294901760
        %v1001 = vsub.f32 %v999, %v1000
        %v1002 = vand.u32 %v1001, 4294901760
        %1003 = vmatmul.mubr.f32.gmra.mrb[0].mxu0 %v1002
        %v1004 = vpop.f32.mrb[0].mxu0
        %v1005 = vadd.f32 0.0, %v1004
        %v1006 = vpop.f32.mrb[0].mxu0
        %1007 = vmatprep.mubr.f32.mxu0 0.0
        %v1008 = vand.u32 %v768, 4294901760
        %v1009 = vsub.f32 %v768, %v1008
        %v1010 = vand.u32 %v1009, 4294901760
        %v1011 = vsub.f32 %v1009, %v1010
        %v1012 = vand.u32 %v1011, 4294901760
        %1013 = vmatmul.mubr.f32.gmra.mrb[0].mxu0 %v1012
        %v1014 = vpop.f32.mrb[0].mxu0
        %v1015 = vadd.f32 0.0, %v1014
        %v1016 = vpop.f32.mrb[0].mxu0
        %1017 = vmatprep.mubr.f32.mxu0 0.0
        %v1018 = vand.u32 %v769, 4294901760
        %v1019 = vsub.f32 %v769, %v1018
        %v1020 = vand.u32 %v1019, 4294901760
        %v1021 = vsub.f32 %v1019, %v1020
        %v1022 = vand.u32 %v1021, 4294901760
        %1023 = vmatmul.mubr.f32.gmra.mrb[0].mxu0 %v1022
        %v1024 = vpop.f32.mrb[0].mxu0
        %v1025 = vadd.f32 0.0, %v1024
        %v1026 = vpop.f32.mrb[0].mxu0
        %1027 = vmatprep.mubr.f32.mxu0 0.0
        %v1028 = vand.u32 %v770, 4294901760
        %v1029 = vsub.f32 %v770, %v1028
        %v1030 = vand.u32 %v1029, 4294901760
        %v1031 = vsub.f32 %v1029, %v1030
        %v1032 = vand.u32 %v1031, 4294901760
        %1033 = vmatmul.mubr.f32.gmra.mrb[0].mxu0 %v1032
        %v1034 = vpop.f32.mrb[0].mxu0
        %v1035 = vadd.f32 0.0, %v1034
        %v1036 = vpop.f32.mrb[0].mxu0
        %1037 = vmatprep.mubr.f32.mxu0 0.0
        %v1038 = vand.u32 %v771, 4294901760
        %v1039 = vsub.f32 %v771, %v1038
        %v1040 = vand.u32 %v1039, 4294901760
        %v1041 = vsub.f32 %v1039, %v1040
        %v1042 = vand.u32 %v1041, 4294901760
        %1043 = vmatmul.mubr.f32.gmra.mrb[0].mxu0 %v1042
        %v1044 = vpop.f32.mrb[0].mxu0
        %v1045 = vadd.f32 0.0, %v1044
        %v1046 = vpop.f32.mrb[0].mxu0
        %1047 = vmatprep.mubr.f32.mxu0 0.0
        %v1048 = vand.u32 %v772, 4294901760
        %v1049 = vsub.f32 %v772, %v1048
        %v1050 = vand.u32 %v1049, 4294901760
        %v1051 = vsub.f32 %v1049, %v1050
        %v1052 = vand.u32 %v1051, 4294901760
        %1053 = vmatmul.mubr.f32.gmra.mrb[0].mxu0 %v1052
        %v1054 = vpop.f32.mrb[0].mxu0
        %v1055 = vadd.f32 0.0, %v1054
        %v1056 = vpop.f32.mrb[0].mxu0
        %1057 = vmatprep.mubr.f32.mxu0 0.0
        %v1058 = vand.u32 %v773, 4294901760
        %v1059 = vsub.f32 %v773, %v1058
        %v1060 = vand.u32 %v1059, 4294901760
        %v1061 = vsub.f32 %v1059, %v1060
        %v1062 = vand.u32 %v1061, 4294901760
        %1063 = vmatmul.mubr.f32.gmra.mrb[0].mxu0 %v1062
        %v1064 = vpop.f32.mrb[0].mxu0
        %v1065 = vadd.f32 0.0, %v1064
        %v1066 = vpop.f32.mrb[0].mxu0
        %1067 = vmatprep.mubr.f32.mxu0 0.0
        %v1068 = vand.u32 %v774, 4294901760
        %v1069 = vsub.f32 %v774, %v1068
        %v1070 = vand.u32 %v1069, 4294901760
        %v1071 = vsub.f32 %v1069, %v1070
        %v1072 = vand.u32 %v1071, 4294901760
        %1073 = vmatmul.mubr.f32.gmra.mrb[0].mxu0 %v1072
        %v1074 = vpop.f32.mrb[0].mxu0
        %v1075 = vadd.f32 0.0, %v1074
        %v1076 = vpop.f32.mrb[0].mxu0
        %1077 = vmatprep.mubr.f32.mxu0 0.0
        %v1078 = vand.u32 %v775, 4294901760
        %v1079 = vsub.f32 %v775, %v1078
        %v1080 = vand.u32 %v1079, 4294901760
        %v1081 = vsub.f32 %v1079, %v1080
        %v1082 = vand.u32 %v1081, 4294901760
        %1083 = vmatmul.mubr.f32.gmra.mrb[0].mxu0 %v1082
        %v1084 = vpop.f32.mrb[0].mxu0
        %v1085 = vadd.f32 0.0, %v1084
        %v1086 = vpop.f32.mrb[0].mxu0
        %1087 = vmatprep.mubr.f32.mxu0 0.0
        %v1088 = vand.u32 %v776, 4294901760
        %v1089 = vsub.f32 %v776, %v1088
        %v1090 = vand.u32 %v1089, 4294901760
        %v1091 = vsub.f32 %v1089, %v1090
        %v1092 = vand.u32 %v1091, 4294901760
        %1093 = vmatmul.mubr.f32.gmra.mrb[0].mxu0 %v1092
        %v1094 = vpop.f32.mrb[0].mxu0
        %v1095 = vadd.f32 0.0, %v1094
        %v1096 = vpop.f32.mrb[0].mxu0
        %1097 = vmatprep.mubr.f32.mxu0 0.0
        %v1098 = vand.u32 %v777, 4294901760
        %v1099 = vsub.f32 %v777, %v1098
        %v1100 = vand.u32 %v1099, 4294901760
        %v1101 = vsub.f32 %v1099, %v1100
        %v1102 = vand.u32 %v1101, 4294901760
        %1103 = vmatmul.mubr.f32.gmra.mrb[0].mxu0 %v1102
        %v1104 = vpop.f32.mrb[0].mxu0
        %v1105 = vadd.f32 0.0, %v1104
        %v1106 = vpop.f32.mrb[0].mxu0
        %1107 = vmatprep.mubr.f32.mxu0 0.0
        %v1108 = vand.u32 %v778, 4294901760
        %v1109 = vsub.f32 %v778, %v1108
        %v1110 = vand.u32 %v1109, 4294901760
        %v1111 = vsub.f32 %v1109, %v1110
        %v1112 = vand.u32 %v1111, 4294901760
        %1113 = vmatmul.mubr.f32.gmra.mrb[0].mxu0 %v1112
        %v1114 = vpop.f32.mrb[0].mxu0
        %v1115 = vadd.f32 0.0, %v1114
        %v1116 = vpop.f32.mrb[0].mxu0
        %1117 = vmatprep.mubr.f32.mxu0 0.0
        %v1118 = vand.u32 %v779, 4294901760
        %v1119 = vsub.f32 %v779, %v1118
        %v1120 = vand.u32 %v1119, 4294901760
        %v1121 = vsub.f32 %v1119, %v1120
        %v1122 = vand.u32 %v1121, 4294901760
        %1123 = vmatmul.mubr.f32.gmra.mrb[0].mxu0 %v1122
        %v1124 = vpop.f32.mrb[0].mxu0
        %v1125 = vadd.f32 0.0, %v1124
        %v1126 = vpop.f32.mrb[0].mxu0
        %1127 = vmatprep.mubr.f32.mxu0 0.0
        %v1128 = vand.u32 %v780, 4294901760
        %v1129 = vsub.f32 %v780, %v1128
        %v1130 = vand.u32 %v1129, 4294901760
        %v1131 = vsub.f32 %v1129, %v1130
        %v1132 = vand.u32 %v1131, 4294901760
        %1133 = vmatmul.mubr.f32.gmra.mrb[0].mxu0 %v1132
        %v1134 = vpop.f32.mrb[0].mxu0
        %v1135 = vadd.f32 0.0, %v1134
        %v1136 = vpop.f32.mrb[0].mxu0
        %1137 = vmatprep.mubr.f32.mxu0 0.0
        %v1138 = vand.u32 %v781, 4294901760
        %v1139 = vsub.f32 %v781, %v1138
        %v1140 = vand.u32 %v1139, 4294901760
        %v1141 = vsub.f32 %v1139, %v1140
        %v1142 = vand.u32 %v1141, 4294901760
        %1143 = vmatmul.mubr.f32.gmra.mrb[0].mxu0 %v1142
        %v1144 = vpop.f32.mrb[0].mxu0
        %v1145 = vadd.f32 0.0, %v1144
        %v1146 = vpop.f32.mrb[0].mxu0
        %1147 = vmatprep.mubr.f32.mxu0 0.0
        %v1148 = vand.u32 %v782, 4294901760
        %v1149 = vsub.f32 %v782, %v1148
        %v1150 = vand.u32 %v1149, 4294901760
        %v1151 = vsub.f32 %v1149, %v1150
        %v1152 = vand.u32 %v1151, 4294901760
        %1153 = vmatmul.mubr.f32.gmra.mrb[0].mxu0 %v1152
        %v1154 = vpop.f32.mrb[0].mxu0
        %v1155 = vadd.f32 0.0, %v1154
        %v1156 = vpop.f32.mrb[0].mxu0
        %1157 = vmatprep.mubr.f32.mxu0 0.0
        %v1158 = vand.u32 %v783, 4294901760
        %v1159 = vsub.f32 %v783, %v1158
        %v1160 = vand.u32 %v1159, 4294901760
        %v1161 = vsub.f32 %v1159, %v1160
        %v1162 = vand.u32 %v1161, 4294901760
        %1163 = vmatmul.mubr.f32.gmra.mrb[0].mxu0 %v1162
        %v1164 = vpop.f32.mrb[0].mxu0
        %v1165 = vadd.f32 0.0, %v1164
        %v1166 = vpop.f32.mrb[0].mxu0
        %1167 = vmatprep.mubr.f32.mxu0 0.0
        %v1168 = vand.u32 %v784, 4294901760
        %v1169 = vsub.f32 %v784, %v1168
        %v1170 = vand.u32 %v1169, 4294901760
        %v1171 = vsub.f32 %v1169, %v1170
        %v1172 = vand.u32 %v1171, 4294901760
        %1173 = vmatmul.mubr.f32.gmra.mrb[0].mxu0 %v1172
        %v1174 = vpop.f32.mrb[0].mxu0
        %v1175 = vadd.f32 0.0, %v1174
        %v1176 = vpop.f32.mrb[0].mxu0
        %1177 = vmatprep.mubr.f32.mxu0 0.0
        %v1178 = vand.u32 %v785, 4294901760
        %v1179 = vsub.f32 %v785, %v1178
        %v1180 = vand.u32 %v1179, 4294901760
        %v1181 = vsub.f32 %v1179, %v1180
        %v1182 = vand.u32 %v1181, 4294901760
        %1183 = vmatmul.mubr.f32.gmra.mrb[0].mxu0 %v1182
        %v1184 = vpop.f32.mrb[0].mxu0
        %v1185 = vadd.f32 0.0, %v1184
        %v1186 = vpop.f32.mrb[0].mxu0
        %1187 = vmatprep.mubr.f32.mxu0 0.0
        %v1188 = vand.u32 %v786, 4294901760
        %v1189 = vsub.f32 %v786, %v1188
        %v1190 = vand.u32 %v1189, 4294901760
        %v1191 = vsub.f32 %v1189, %v1190
        %v1192 = vand.u32 %v1191, 4294901760
        %1193 = vmatmul.mubr.f32.gmra.mrb[0].mxu0 %v1192
        %v1194 = vpop.f32.mrb[0].mxu0
        %v1195 = vadd.f32 0.0, %v1194
        %v1196 = vpop.f32.mrb[0].mxu0
        %1197 = vmatprep.mubr.f32.mxu0 0.0
        %v1198 = vand.u32 %v787, 4294901760
        %v1199 = vsub.f32 %v787, %v1198
        %v1200 = vand.u32 %v1199, 4294901760
        %v1201 = vsub.f32 %v1199, %v1200
        %v1202 = vand.u32 %v1201, 4294901760
        %1203 = vmatmul.mubr.f32.gmra.mrb[0].mxu0 %v1202
        %v1204 = vpop.f32.mrb[0].mxu0
        %v1205 = vadd.f32 0.0, %v1204
        %v1206 = vpop.f32.mrb[0].mxu0
        %1207 = vmatprep.mubr.f32.mxu0 0.0
        %v1208 = vand.u32 %v788, 4294901760
        %v1209 = vsub.f32 %v788, %v1208
        %v1210 = vand.u32 %v1209, 4294901760
        %v1211 = vsub.f32 %v1209, %v1210
        %v1212 = vand.u32 %v1211, 4294901760
        %1213 = vmatmul.mubr.f32.gmra.mrb[0].mxu0 %v1212
        %v1214 = vpop.f32.mrb[0].mxu0
        %v1215 = vadd.f32 0.0, %v1214
        %v1216 = vpop.f32.mrb[0].mxu0
        %1217 = vmatprep.mubr.f32.mxu0 0.0
        %v1218 = vand.u32 %v789, 4294901760
        %v1219 = vsub.f32 %v789, %v1218
        %v1220 = vand.u32 %v1219, 4294901760
        %v1221 = vsub.f32 %v1219, %v1220
        %v1222 = vand.u32 %v1221, 4294901760
        %1223 = vmatmul.mubr.f32.gmra.mrb[0].mxu0 %v1222
        %v1224 = vpop.f32.mrb[0].mxu0
        %v1225 = vadd.f32 0.0, %v1224
        %v1226 = vpop.f32.mrb[0].mxu0
        %1227 = vmatprep.mubr.f32.mxu0 0.0
        %v1228 = vand.u32 %v790, 4294901760
        %v1229 = vsub.f32 %v790, %v1228
        %v1230 = vand.u32 %v1229, 4294901760
        %v1231 = vsub.f32 %v1229, %v1230
        %v1232 = vand.u32 %v1231, 4294901760
        %1233 = vmatmul.mubr.f32.gmra.mrb[0].mxu0 %v1232
        %v1234 = vpop.f32.mrb[0].mxu0
        %v1235 = vadd.f32 0.0, %v1234
        %v1236 = vpop.f32.mrb[0].mxu0
        %1237 = vmatprep.mubr.f32.mxu0 0.0
        %v1238 = vand.u32 %v791, 4294901760
        %v1239 = vsub.f32 %v791, %v1238
        %v1240 = vand.u32 %v1239, 4294901760
        %v1241 = vsub.f32 %v1239, %v1240
        %v1242 = vand.u32 %v1241, 4294901760
        %1243 = vmatmul.mubr.f32.gmra.mrb[0].mxu0 %v1242
        %v1244 = vpop.f32.mrb[0].mxu0
        %v1245 = vadd.f32 0.0, %v1244
        %v1246 = vpop.f32.mrb[0].mxu0
        %1247 = vmatprep.mubr.f32.mxu0 0.0
        %v1248 = vand.u32 %v792, 4294901760
        %v1249 = vsub.f32 %v792, %v1248
        %v1250 = vand.u32 %v1249, 4294901760
        %v1251 = vsub.f32 %v1249, %v1250
        %v1252 = vand.u32 %v1251, 4294901760
        %1253 = vmatmul.mubr.f32.gmra.mrb[0].mxu0 %v1252
        %v1254 = vpop.f32.mrb[0].mxu0
        %v1255 = vadd.f32 0.0, %v1254
        %v1256 = vpop.f32.mrb[0].mxu0
        %1257 = vmatprep.mubr.f32.mxu0 0.0
        %v1258 = vand.u32 %v793, 4294901760
        %v1259 = vsub.f32 %v793, %v1258
        %v1260 = vand.u32 %v1259, 4294901760
        %v1261 = vsub.f32 %v1259, %v1260
        %v1262 = vand.u32 %v1261, 4294901760
        %1263 = vmatmul.mubr.f32.gmra.mrb[0].mxu0 %v1262
        %v1264 = vpop.f32.mrb[0].mxu0
        %v1265 = vadd.f32 0.0, %v1264
        %v1266 = vpop.f32.mrb[0].mxu0
        %1267 = vmatprep.mubr.f32.mxu0 0.0
        %v1268 = vand.u32 %v794, 4294901760
        %v1269 = vsub.f32 %v794, %v1268
        %v1270 = vand.u32 %v1269, 4294901760
        %v1271 = vsub.f32 %v1269, %v1270
        %v1272 = vand.u32 %v1271, 4294901760
        %1273 = vmatmul.mubr.f32.gmra.mrb[0].mxu0 %v1272
        %v1274 = vpop.f32.mrb[0].mxu0
        %v1275 = vadd.f32 0.0, %v1274
        %v1276 = vpop.f32.mrb[0].mxu0
        %1277 = vmatprep.mubr.f32.mxu0 0.0
        %v1278 = vand.u32 %v795, 4294901760
        %v1279 = vsub.f32 %v795, %v1278
        %v1280 = vand.u32 %v1279, 4294901760
        %v1281 = vsub.f32 %v1279, %v1280
        %v1282 = vand.u32 %v1281, 4294901760
        %1283 = vmatmul.mubr.f32.gmra.mrb[0].mxu0 %v1282
        %v1284 = vpop.f32.mrb[0].mxu0
        %v1285 = vadd.f32 0.0, %v1284
        %v1286 = vpop.f32.mrb[0].mxu0
        %1287 = vmatprep.mubr.f32.mxu0 0.0
        %v1288 = vand.u32 %v796, 4294901760
        %v1289 = vsub.f32 %v796, %v1288
        %v1290 = vand.u32 %v1289, 4294901760
        %v1291 = vsub.f32 %v1289, %v1290
        %v1292 = vand.u32 %v1291, 4294901760
        %1293 = vmatmul.mubr.f32.gmra.mrb[0].mxu0 %v1292
        %v1294 = vpop.f32.mrb[0].mxu0
        %v1295 = vadd.f32 0.0, %v1294
        %v1296 = vpop.f32.mrb[0].mxu0
        %1297 = vmatprep.mubr.f32.mxu0 0.0
        %v1298 = vand.u32 %v797, 4294901760
        %v1299 = vsub.f32 %v797, %v1298
        %v1300 = vand.u32 %v1299, 4294901760
        %v1301 = vsub.f32 %v1299, %v1300
        %v1302 = vand.u32 %v1301, 4294901760
        %1303 = vmatmul.mubr.f32.gmra.mrb[0].mxu0 %v1302
        %v1304 = vpop.f32.mrb[0].mxu0
        %v1305 = vadd.f32 0.0, %v1304
        %v1306 = vpop.f32.mrb[0].mxu0
        %1307 = vmatprep.mubr.f32.mxu0 0.0
        %v1308 = vand.u32 %v798, 4294901760
        %v1309 = vsub.f32 %v798, %v1308
        %v1310 = vand.u32 %v1309, 4294901760
        %v1311 = vsub.f32 %v1309, %v1310
        %v1312 = vand.u32 %v1311, 4294901760
        %1313 = vmatmul.mubr.f32.gmra.mrb[0].mxu0 %v1312
        %v1314 = vpop.f32.mrb[0].mxu0
        %v1315 = vadd.f32 0.0, %v1314
        %v1316 = vpop.f32.mrb[0].mxu0
        %1317 = vmatprep.mubr.f32.mxu0 0.0
        %v1318 = vand.u32 %v799, 4294901760
        %v1319 = vsub.f32 %v799, %v1318
        %v1320 = vand.u32 %v1319, 4294901760
        %v1321 = vsub.f32 %v1319, %v1320
        %v1322 = vand.u32 %v1321, 4294901760
        %1323 = vmatmul.mubr.f32.gmra.mrb[0].mxu0 %v1322
        %v1324 = vpop.f32.mrb[0].mxu0
        %v1325 = vadd.f32 0.0, %v1324
        %v1326 = vpop.f32.mrb[0].mxu0
        %1327 = vmatprep.mubr.f32.mxu0 0.0
        %v1328 = vand.u32 %v800, 4294901760
        %v1329 = vsub.f32 %v800, %v1328
        %v1330 = vand.u32 %v1329, 4294901760
        %v1331 = vsub.f32 %v1329, %v1330
        %v1332 = vand.u32 %v1331, 4294901760
        %1333 = vmatmul.mubr.f32.gmra.mrb[0].mxu0 %v1332
        %v1334 = vpop.f32.mrb[0].mxu0
        %v1335 = vadd.f32 0.0, %v1334
        %v1336 = vpop.f32.mrb[0].mxu0
        %1337 = vmatprep.mubr.f32.mxu0 0.0
        %v1338 = vand.u32 %v801, 4294901760
        %v1339 = vsub.f32 %v801, %v1338
        %v1340 = vand.u32 %v1339, 4294901760
        %v1341 = vsub.f32 %v1339, %v1340
        %v1342 = vand.u32 %v1341, 4294901760
        %1343 = vmatmul.mubr.f32.gmra.mrb[0].mxu0 %v1342
        %v1344 = vpop.f32.mrb[0].mxu0
        %v1345 = vadd.f32 0.0, %v1344
        %v1346 = vpop.f32.mrb[0].mxu0
        %1347 = vmatprep.mubr.f32.mxu0 0.0
        %v1348 = vand.u32 %v802, 4294901760
        %v1349 = vsub.f32 %v802, %v1348
        %v1350 = vand.u32 %v1349, 4294901760
        %v1351 = vsub.f32 %v1349, %v1350
        %v1352 = vand.u32 %v1351, 4294901760
        %1353 = vmatmul.mubr.f32.gmra.mrb[0].mxu0 %v1352
        %v1354 = vpop.f32.mrb[0].mxu0
        %v1355 = vadd.f32 0.0, %v1354
        %v1356 = vpop.f32.mrb[0].mxu0
        %1357 = vmatprep.mubr.f32.mxu0 0.0
        %v1358 = vand.u32 %v803, 4294901760
        %v1359 = vsub.f32 %v803, %v1358
        %v1360 = vand.u32 %v1359, 4294901760
        %v1361 = vsub.f32 %v1359, %v1360
        %v1362 = vand.u32 %v1361, 4294901760
        %1363 = vmatmul.mubr.f32.gmra.mrb[0].mxu0 %v1362
        %v1364 = vpop.f32.mrb[0].mxu0
        %v1365 = vadd.f32 0.0, %v1364
        %v1366 = vpop.f32.mrb[0].mxu0
        %1367 = vmatprep.mubr.f32.mxu0 0.0
        %v1368 = vand.u32 %v804, 4294901760
        %v1369 = vsub.f32 %v804, %v1368
        %v1370 = vand.u32 %v1369, 4294901760
        %v1371 = vsub.f32 %v1369, %v1370
        %v1372 = vand.u32 %v1371, 4294901760
        %1373 = vmatmul.mubr.f32.gmra.mrb[0].mxu0 %v1372
        %v1374 = vpop.f32.mrb[0].mxu0
        %v1375 = vadd.f32 0.0, %v1374
        %v1376 = vpop.f32.mrb[0].mxu0
        %1377 = vmatprep.mubr.f32.mxu0 0.0
        %v1378 = vand.u32 %v805, 4294901760
        %v1379 = vsub.f32 %v805, %v1378
        %v1380 = vand.u32 %v1379, 4294901760
        %v1381 = vsub.f32 %v1379, %v1380
        %v1382 = vand.u32 %v1381, 4294901760
        %1383 = vmatmul.mubr.f32.gmra.mrb[0].mxu0 %v1382
        %v1384 = vpop.f32.mrb[0].mxu0
        %v1385 = vadd.f32 0.0, %v1384
        %v1386 = vpop.f32.mrb[0].mxu0
        %1387 = vmatprep.mubr.f32.mxu0 0.0
        %v1388 = vand.u32 %v806, 4294901760
        %v1389 = vsub.f32 %v806, %v1388
        %v1390 = vand.u32 %v1389, 4294901760
        %v1391 = vsub.f32 %v1389, %v1390
        %v1392 = vand.u32 %v1391, 4294901760
        %1393 = vmatmul.mubr.f32.gmra.mrb[0].mxu0 %v1392
        %v1394 = vpop.f32.mrb[0].mxu0
        %v1395 = vadd.f32 0.0, %v1394
        %v1396 = vpop.f32.mrb[0].mxu0
        %1397 = vmatprep.mubr.f32.mxu0 0.0
        %v1398 = vand.u32 %v807, 4294901760
        %v1399 = vsub.f32 %v807, %v1398
        %v1400 = vand.u32 %v1399, 4294901760
        %v1401 = vsub.f32 %v1399, %v1400
        %v1402 = vand.u32 %v1401, 4294901760
        %1403 = vmatmul.mubr.f32.gmra.mrb[0].mxu0 %v1402
        %v1404 = vpop.f32.mrb[0].mxu0
        %v1405 = vadd.f32 0.0, %v1404
        %v1406 = vpop.f32.mrb[0].mxu0
        %1407 = vmatprep.mubr.f32.mxu0 0.0
        %v1408 = vand.u32 %v808, 4294901760
        %v1409 = vsub.f32 %v808, %v1408
        %v1410 = vand.u32 %v1409, 4294901760
        %v1411 = vsub.f32 %v1409, %v1410
        %v1412 = vand.u32 %v1411, 4294901760
        %1413 = vmatmul.mubr.f32.gmra.mrb[0].mxu0 %v1412
        %v1414 = vpop.f32.mrb[0].mxu0
        %v1415 = vadd.f32 0.0, %v1414
        %v1416 = vpop.f32.mrb[0].mxu0
        %1417 = vmatprep.mubr.f32.mxu0 0.0
        %v1418 = vand.u32 %v809, 4294901760
        %v1419 = vsub.f32 %v809, %v1418
        %v1420 = vand.u32 %v1419, 4294901760
        %v1421 = vsub.f32 %v1419, %v1420
        %v1422 = vand.u32 %v1421, 4294901760
        %1423 = vmatmul.mubr.f32.gmra.mrb[0].mxu0 %v1422
        %v1424 = vpop.f32.mrb[0].mxu0
        %v1425 = vadd.f32 0.0, %v1424
        %v1426 = vpop.f32.mrb[0].mxu0
        %1427 = vmatprep.mubr.f32.mxu0 0.0
        %v1428 = vand.u32 %v810, 4294901760
        %v1429 = vsub.f32 %v810, %v1428
        %v1430 = vand.u32 %v1429, 4294901760
        %v1431 = vsub.f32 %v1429, %v1430
        %v1432 = vand.u32 %v1431, 4294901760
        %1433 = vmatmul.mubr.f32.gmra.mrb[0].mxu0 %v1432
        %v1434 = vpop.f32.mrb[0].mxu0
        %v1435 = vadd.f32 0.0, %v1434
        %v1436 = vpop.f32.mrb[0].mxu0
        %1437 = vmatprep.mubr.f32.mxu0 0.0
        %v1438 = vand.u32 %v811, 4294901760
        %v1439 = vsub.f32 %v811, %v1438
        %v1440 = vand.u32 %v1439, 4294901760
        %v1441 = vsub.f32 %v1439, %v1440
        %v1442 = vand.u32 %v1441, 4294901760
        %1443 = vmatmul.mubr.f32.gmra.mrb[0].mxu0 %v1442
        %v1444 = vpop.f32.mrb[0].mxu0
        %v1445 = vadd.f32 0.0, %v1444
        %v1446 = vpop.f32.mrb[0].mxu0
        %1447 = vmatprep.mubr.f32.mxu0 0.0
        %v1448 = vand.u32 %v812, 4294901760
        %v1449 = vsub.f32 %v812, %v1448
        %v1450 = vand.u32 %v1449, 4294901760
        %v1451 = vsub.f32 %v1449, %v1450
        %v1452 = vand.u32 %v1451, 4294901760
        %1453 = vmatmul.mubr.f32.gmra.mrb[0].mxu0 %v1452
        %v1454 = vpop.f32.mrb[0].mxu0
        %v1455 = vadd.f32 0.0, %v1454
        %v1456 = vpop.f32.mrb[0].mxu0
        %1457 = vmatprep.mubr.f32.mxu0 0.0
        %v1458 = vand.u32 %v813, 4294901760
        %v1459 = vsub.f32 %v813, %v1458
        %v1460 = vand.u32 %v1459, 4294901760
        %v1461 = vsub.f32 %v1459, %v1460
        %v1462 = vand.u32 %v1461, 4294901760
        %1463 = vmatmul.mubr.f32.gmra.mrb[0].mxu0 %v1462
        %v1464 = vpop.f32.mrb[0].mxu0
        %v1465 = vadd.f32 0.0, %v1464
        %v1466 = vpop.f32.mrb[0].mxu0
        %1467 = vmatprep.mubr.f32.mxu0 0.0
        %v1468 = vand.u32 %v814, 4294901760
        %v1469 = vsub.f32 %v814, %v1468
        %v1470 = vand.u32 %v1469, 4294901760
        %v1471 = vsub.f32 %v1469, %v1470
        %v1472 = vand.u32 %v1471, 4294901760
        %1473 = vmatmul.mubr.f32.gmra.mrb[0].mxu0 %v1472
        %v1474 = vpop.f32.mrb[0].mxu0
        %v1475 = vadd.f32 0.0, %v1474
        %v1476 = vpop.f32.mrb[0].mxu0
        %1477 = vmatprep.mubr.f32.mxu0 0.0
        %v1478 = vand.u32 %v815, 4294901760
        %v1479 = vsub.f32 %v815, %v1478
        %v1480 = vand.u32 %v1479, 4294901760
        %v1481 = vsub.f32 %v1479, %v1480
        %v1482 = vand.u32 %v1481, 4294901760
        %1483 = vmatmul.mubr.f32.gmra.mrb[0].mxu0 %v1482
        %v1484 = vpop.f32.mrb[0].mxu0
        %v1485 = vadd.f32 0.0, %v1484
        %v1486 = vpop.f32.mrb[0].mxu0
        %1487 = vmatprep.mubr.f32.mxu0 0.0
        %v1488 = vand.u32 %v816, 4294901760
        %v1489 = vsub.f32 %v816, %v1488
        %v1490 = vand.u32 %v1489, 4294901760
        %v1491 = vsub.f32 %v1489, %v1490
        %v1492 = vand.u32 %v1491, 4294901760
        %1493 = vmatmul.mubr.f32.gmra.mrb[0].mxu0 %v1492
        %v1494 = vpop.f32.mrb[0].mxu0
        %v1495 = vadd.f32 0.0, %v1494
        %v1496 = vpop.f32.mrb[0].mxu0
        %1497 = vmatprep.mubr.f32.mxu0 0.0
        %v1498 = vand.u32 %v817, 4294901760
        %v1499 = vsub.f32 %v817, %v1498
        %v1500 = vand.u32 %v1499, 4294901760
        %v1501 = vsub.f32 %v1499, %v1500
        %v1502 = vand.u32 %v1501, 4294901760
        %1503 = vmatmul.mubr.f32.gmra.mrb[0].mxu0 %v1502
        %v1504 = vpop.f32.mrb[0].mxu0
        %v1505 = vadd.f32 0.0, %v1504
        %v1506 = vpop.f32.mrb[0].mxu0
        %1507 = vmatprep.mubr.f32.mxu0 0.0
        %v1508 = vand.u32 %v818, 4294901760
        %v1509 = vsub.f32 %v818, %v1508
        %v1510 = vand.u32 %v1509, 4294901760
        %v1511 = vsub.f32 %v1509, %v1510
        %v1512 = vand.u32 %v1511, 4294901760
        %1513 = vmatmul.mubr.f32.gmra.mrb[0].mxu0 %v1512
        %v1514 = vpop.f32.mrb[0].mxu0
        %v1515 = vadd.f32 0.0, %v1514
        %v1516 = vpop.f32.mrb[0].mxu0
        %1517 = vmatprep.mubr.f32.mxu0 0.0
        %v1518 = vand.u32 %v819, 4294901760
        %v1519 = vsub.f32 %v819, %v1518
        %v1520 = vand.u32 %v1519, 4294901760
        %v1521 = vsub.f32 %v1519, %v1520
        %v1522 = vand.u32 %v1521, 4294901760
        %1523 = vmatmul.mubr.f32.gmra.mrb[0].mxu0 %v1522
        %v1524 = vpop.f32.mrb[0].mxu0
        %v1525 = vadd.f32 0.0, %v1524
        %v1526 = vpop.f32.mrb[0].mxu0
        %1527 = vmatprep.mubr.f32.mxu0 0.0
        %v1528 = vand.u32 %v820, 4294901760
        %v1529 = vsub.f32 %v820, %v1528
        %v1530 = vand.u32 %v1529, 4294901760
        %v1531 = vsub.f32 %v1529, %v1530
        %v1532 = vand.u32 %v1531, 4294901760
        %1533 = vmatmul.mubr.f32.gmra.mrb[0].mxu0 %v1532
        %v1534 = vpop.f32.mrb[0].mxu0
        %v1535 = vadd.f32 0.0, %v1534
        %v1536 = vpop.f32.mrb[0].mxu0
        %1537 = vmatprep.mubr.f32.mxu0 0.0
        %v1538 = vand.u32 %v821, 4294901760
        %v1539 = vsub.f32 %v821, %v1538
        %v1540 = vand.u32 %v1539, 4294901760
        %v1541 = vsub.f32 %v1539, %v1540
        %v1542 = vand.u32 %v1541, 4294901760
        %1543 = vmatmul.mubr.f32.gmra.mrb[0].mxu0 %v1542
        %v1544 = vpop.f32.mrb[0].mxu0
        %v1545 = vadd.f32 0.0, %v1544
        %v1546 = vpop.f32.mrb[0].mxu0
        %1547 = vmatprep.mubr.f32.mxu0 0.0
        %v1548 = vand.u32 %v822, 4294901760
        %v1549 = vsub.f32 %v822, %v1548
        %v1550 = vand.u32 %v1549, 4294901760
        %v1551 = vsub.f32 %v1549, %v1550
        %v1552 = vand.u32 %v1551, 4294901760
        %1553 = vmatmul.mubr.f32.gmra.mrb[0].mxu0 %v1552
        %v1554 = vpop.f32.mrb[0].mxu0
        %v1555 = vadd.f32 0.0, %v1554
        %v1556 = vpop.f32.mrb[0].mxu0
        %1557 = vmatprep.mubr.f32.mxu0 0.0
        %v1558 = vand.u32 %v823, 4294901760
        %v1559 = vsub.f32 %v823, %v1558
        %v1560 = vand.u32 %v1559, 4294901760
        %v1561 = vsub.f32 %v1559, %v1560
        %v1562 = vand.u32 %v1561, 4294901760
        %1563 = vmatmul.mubr.f32.gmra.mrb[0].mxu0 %v1562
        %v1564 = vpop.f32.mrb[0].mxu0
        %v1565 = vadd.f32 0.0, %v1564
        %v1566 = vpop.f32.mrb[0].mxu0
        %1567 = vmatprep.mubr.f32.mxu0 0.0
        %v1568 = vand.u32 %v824, 4294901760
        %v1569 = vsub.f32 %v824, %v1568
        %v1570 = vand.u32 %v1569, 4294901760
        %v1571 = vsub.f32 %v1569, %v1570
        %v1572 = vand.u32 %v1571, 4294901760
        %1573 = vmatmul.mubr.f32.gmra.mrb[0].mxu0 %v1572
        %v1574 = vpop.f32.mrb[0].mxu0
        %v1575 = vadd.f32 0.0, %v1574
        %v1576 = vpop.f32.mrb[0].mxu0
        %1577 = vmatprep.mubr.f32.mxu0 0.0
        %v1578 = vand.u32 %v825, 4294901760
        %v1579 = vsub.f32 %v825, %v1578
        %v1580 = vand.u32 %v1579, 4294901760
        %v1581 = vsub.f32 %v1579, %v1580
        %v1582 = vand.u32 %v1581, 4294901760
        %1583 = vmatmul.mubr.f32.gmra.mrb[0].mxu0 %v1582
        %v1584 = vpop.f32.mrb[0].mxu0
        %v1585 = vadd.f32 0.0, %v1584
        %v1586 = vpop.f32.mrb[0].mxu0
        %1587 = vmatprep.mubr.f32.mxu0 0.0
        %v1588 = vand.u32 %v826, 4294901760
        %v1589 = vsub.f32 %v826, %v1588
        %v1590 = vand.u32 %v1589, 4294901760
        %v1591 = vsub.f32 %v1589, %v1590
        %v1592 = vand.u32 %v1591, 4294901760
        %1593 = vmatmul.mubr.f32.gmra.mrb[0].mxu0 %v1592
        %v1594 = vpop.f32.mrb[0].mxu0
        %v1595 = vadd.f32 0.0, %v1594
        %v1596 = vpop.f32.mrb[0].mxu0
        %1597 = vmatprep.mubr.f32.mxu0 0.0
        %v1598 = vand.u32 %v827, 4294901760
        %v1599 = vsub.f32 %v827, %v1598
        %v1600 = vand.u32 %v1599, 4294901760
        %v1601 = vsub.f32 %v1599, %v1600
        %v1602 = vand.u32 %v1601, 4294901760
        %1603 = vmatmul.mubr.f32.gmra.mrb[0].mxu0 %v1602
        %v1604 = vpop.f32.mrb[0].mxu0
        %v1605 = vadd.f32 0.0, %v1604
        %v1606 = vpop.f32.mrb[0].mxu0
        %1607 = vmatprep.mubr.f32.mxu0 0.0
        %v1608 = vand.u32 %v828, 4294901760
        %v1609 = vsub.f32 %v828, %v1608
        %v1610 = vand.u32 %v1609, 4294901760
        %v1611 = vsub.f32 %v1609, %v1610
        %v1612 = vand.u32 %v1611, 4294901760
        %1613 = vmatmul.mubr.f32.gmra.mrb[0].mxu0 %v1612
        %v1614 = vpop.f32.mrb[0].mxu0
        %v1615 = vadd.f32 0.0, %v1614
        %v1616 = vpop.f32.mrb[0].mxu0
        %1617 = vmatprep.mubr.f32.mxu0 0.0
        %v1618 = vand.u32 %v829, 4294901760
        %v1619 = vsub.f32 %v829, %v1618
        %v1620 = vand.u32 %v1619, 4294901760
        %v1621 = vsub.f32 %v1619, %v1620
        %v1622 = vand.u32 %v1621, 4294901760
        %1623 = vmatmul.mubr.f32.gmra.mrb[0].mxu0 %v1622
        %v1624 = vpop.f32.mrb[0].mxu0
        %v1625 = vadd.f32 0.0, %v1624
        %v1626 = vpop.f32.mrb[0].mxu0
        %1627 = vmatprep.mubr.f32.mxu0 0.0
        %v1628 = vand.u32 %v830, 4294901760
        %v1629 = vsub.f32 %v830, %v1628
        %v1630 = vand.u32 %v1629, 4294901760
        %v1631 = vsub.f32 %v1629, %v1630
        %v1632 = vand.u32 %v1631, 4294901760
        %1633 = vmatmul.mubr.f32.gmra.mrb[0].mxu0 %v1632
        %v1634 = vpop.f32.mrb[0].mxu0
        %v1635 = vadd.f32 0.0, %v1634
        %v1636 = vpop.f32.mrb[0].mxu0
        %1637 = vmatprep.mubr.f32.mxu0 0.0
        %v1638 = vand.u32 %v831, 4294901760
        %v1639 = vsub.f32 %v831, %v1638
        %v1640 = vand.u32 %v1639, 4294901760
        %v1641 = vsub.f32 %v1639, %v1640
        %v1642 = vand.u32 %v1641, 4294901760
        %1643 = vmatmul.mubr.f32.gmra.mrb[0].mxu0 %v1642
        %v1644 = vpop.f32.mrb[0].mxu0
        %v1645 = vadd.f32 0.0, %v1644
        %v1646 = vpop.f32.mrb[0].mxu0
        %1647 = vmatprep.mubr.f32.mxu0 0.0
        %v1648 = vand.u32 %v832, 4294901760
        %v1649 = vsub.f32 %v832, %v1648
        %v1650 = vand.u32 %v1649, 4294901760
        %v1651 = vsub.f32 %v1649, %v1650
        %v1652 = vand.u32 %v1651, 4294901760
        %1653 = vmatmul.mubr.f32.gmra.mrb[0].mxu0 %v1652
        %v1654 = vpop.f32.mrb[0].mxu0
        %v1655 = vadd.f32 0.0, %v1654
        %v1656 = vpop.f32.mrb[0].mxu0
        %1657 = vmatprep.mubr.f32.mxu0 0.0
        %v1658 = vand.u32 %v833, 4294901760
        %v1659 = vsub.f32 %v833, %v1658
        %v1660 = vand.u32 %v1659, 4294901760
        %v1661 = vsub.f32 %v1659, %v1660
        %v1662 = vand.u32 %v1661, 4294901760
        %1663 = vmatmul.mubr.f32.gmra.mrb[0].mxu0 %v1662
        %v1664 = vpop.f32.mrb[0].mxu0
        %v1665 = vadd.f32 0.0, %v1664
        %v1666 = vpop.f32.mrb[0].mxu0
        %1667 = vmatprep.mubr.f32.mxu0 0.0
        %v1668 = vand.u32 %v834, 4294901760
        %v1669 = vsub.f32 %v834, %v1668
        %v1670 = vand.u32 %v1669, 4294901760
        %v1671 = vsub.f32 %v1669, %v1670
        %v1672 = vand.u32 %v1671, 4294901760
        %1673 = vmatmul.mubr.f32.gmra.mrb[0].mxu0 %v1672
        %v1674 = vpop.f32.mrb[0].mxu0
        %v1675 = vadd.f32 0.0, %v1674
        %v1676 = vpop.f32.mrb[0].mxu0
        %1677 = vmatprep.mubr.f32.mxu0 0.0
        %v1678 = vand.u32 %v835, 4294901760
        %v1679 = vsub.f32 %v835, %v1678
        %v1680 = vand.u32 %v1679, 4294901760
        %v1681 = vsub.f32 %v1679, %v1680
        %v1682 = vand.u32 %v1681, 4294901760
        %1683 = vmatmul.mubr.f32.gmra.mrb[0].mxu0 %v1682
        %v1684 = vpop.f32.mrb[0].mxu0
        %v1685 = vadd.f32 0.0, %v1684
        %v1686 = vpop.f32.mrb[0].mxu0
        %1687 = vmatprep.mubr.f32.mxu0 0.0
        %v1688 = vand.u32 %v836, 4294901760
        %v1689 = vsub.f32 %v836, %v1688
        %v1690 = vand.u32 %v1689, 4294901760
        %v1691 = vsub.f32 %v1689, %v1690
        %v1692 = vand.u32 %v1691, 4294901760
        %1693 = vmatmul.mubr.f32.gmra.mrb[0].mxu0 %v1692
        %v1694 = vpop.f32.mrb[0].mxu0
        %v1695 = vadd.f32 0.0, %v1694
        %v1696 = vpop.f32.mrb[0].mxu0
        %1697 = vmatprep.mubr.f32.mxu0 0.0
        %v1698 = vand.u32 %v837, 4294901760
        %v1699 = vsub.f32 %v837, %v1698
        %v1700 = vand.u32 %v1699, 4294901760
        %v1701 = vsub.f32 %v1699, %v1700
        %v1702 = vand.u32 %v1701, 4294901760
        %1703 = vmatmul.mubr.f32.gmra.mrb[0].mxu0 %v1702
        %v1704 = vpop.f32.mrb[0].mxu0
        %v1705 = vadd.f32 0.0, %v1704
        %v1706 = vpop.f32.mrb[0].mxu0
        %1707 = vmatprep.mubr.f32.mxu0 0.0
        %v1708 = vand.u32 %v838, 4294901760
        %v1709 = vsub.f32 %v838, %v1708
        %v1710 = vand.u32 %v1709, 4294901760
        %v1711 = vsub.f32 %v1709, %v1710
        %v1712 = vand.u32 %v1711, 4294901760
        %1713 = vmatmul.mubr.f32.gmra.mrb[0].mxu0 %v1712
        %v1714 = vpop.f32.mrb[0].mxu0
        %v1715 = vadd.f32 0.0, %v1714
        %v1716 = vpop.f32.mrb[0].mxu0
        %1717 = vmatprep.mubr.f32.mxu0 0.0
        %v1718 = vand.u32 %v839, 4294901760
        %v1719 = vsub.f32 %v839, %v1718
        %v1720 = vand.u32 %v1719, 4294901760
        %v1721 = vsub.f32 %v1719, %v1720
        %v1722 = vand.u32 %v1721, 4294901760
        %1723 = vmatmul.mubr.f32.gmra.mrb[0].mxu0 %v1722
        %v1724 = vpop.f32.mrb[0].mxu0
        %v1725 = vadd.f32 0.0, %v1724
        %v1726 = vpop.f32.mrb[0].mxu0
        %1727 = vmatprep.mubr.f32.mxu0 0.0
        %v1728 = vand.u32 %v840, 4294901760
        %v1729 = vsub.f32 %v840, %v1728
        %v1730 = vand.u32 %v1729, 4294901760
        %v1731 = vsub.f32 %v1729, %v1730
        %v1732 = vand.u32 %v1731, 4294901760
        %1733 = vmatmul.mubr.f32.gmra.mrb[0].mxu0 %v1732
        %v1734 = vpop.f32.mrb[0].mxu0
        %v1735 = vadd.f32 0.0, %v1734
        %v1736 = vpop.f32.mrb[0].mxu0
        %1737 = vmatprep.mubr.f32.mxu0 0.0
        %v1738 = vand.u32 %v841, 4294901760
        %v1739 = vsub.f32 %v841, %v1738
        %v1740 = vand.u32 %v1739, 4294901760
        %v1741 = vsub.f32 %v1739, %v1740
        %v1742 = vand.u32 %v1741, 4294901760
        %1743 = vmatmul.mubr.f32.gmra.mrb[0].mxu0 %v1742
        %v1744 = vpop.f32.mrb[0].mxu0
        %v1745 = vadd.f32 0.0, %v1744
        %v1746 = vpop.f32.mrb[0].mxu0
        %1747 = vmatprep.mubr.f32.mxu0 0.0
        %v1748 = vand.u32 %v842, 4294901760
        %v1749 = vsub.f32 %v842, %v1748
        %v1750 = vand.u32 %v1749, 4294901760
        %v1751 = vsub.f32 %v1749, %v1750
        %v1752 = vand.u32 %v1751, 4294901760
        %1753 = vmatmul.mubr.f32.gmra.mrb[0].mxu0 %v1752
        %v1754 = vpop.f32.mrb[0].mxu0
        %v1755 = vadd.f32 0.0, %v1754
        %v1756 = vpop.f32.mrb[0].mxu0
        %1757 = vmatprep.mubr.f32.mxu0 0.0
        %v1758 = vand.u32 %v843, 4294901760
        %v1759 = vsub.f32 %v843, %v1758
        %v1760 = vand.u32 %v1759, 4294901760
        %v1761 = vsub.f32 %v1759, %v1760
        %v1762 = vand.u32 %v1761, 4294901760
        %1763 = vmatmul.mubr.f32.gmra.mrb[0].mxu0 %v1762
        %v1764 = vpop.f32.mrb[0].mxu0
        %v1765 = vadd.f32 0.0, %v1764
        %v1766 = vpop.f32.mrb[0].mxu0
        %1767 = vmatprep.mubr.f32.mxu0 0.0
        %v1768 = vand.u32 %v844, 4294901760
        %v1769 = vsub.f32 %v844, %v1768
        %v1770 = vand.u32 %v1769, 4294901760
        %v1771 = vsub.f32 %v1769, %v1770
        %v1772 = vand.u32 %v1771, 4294901760
        %1773 = vmatmul.mubr.f32.gmra.mrb[0].mxu0 %v1772
        %v1774 = vpop.f32.mrb[0].mxu0
        %v1775 = vadd.f32 0.0, %v1774
        %v1776 = vpop.f32.mrb[0].mxu0
        %1777 = vmatprep.mubr.f32.mxu0 0.0
        %v1778 = vand.u32 %v845, 4294901760
        %v1779 = vsub.f32 %v845, %v1778
        %v1780 = vand.u32 %v1779, 4294901760
        %v1781 = vsub.f32 %v1779, %v1780
        %v1782 = vand.u32 %v1781, 4294901760
        %1783 = vmatmul.mubr.f32.gmra.mrb[0].mxu0 %v1782
        %v1784 = vpop.f32.mrb[0].mxu0
        %v1785 = vadd.f32 0.0, %v1784
        %v1786 = vpop.f32.mrb[0].mxu0
        %1787 = vmatprep.mubr.f32.mxu0 0.0
        %v1788 = vand.u32 %v846, 4294901760
        %v1789 = vsub.f32 %v846, %v1788
        %v1790 = vand.u32 %v1789, 4294901760
        %v1791 = vsub.f32 %v1789, %v1790
        %v1792 = vand.u32 %v1791, 4294901760
        %1793 = vmatmul.mubr.f32.gmra.mrb[0].mxu0 %v1792
        %v1794 = vpop.f32.mrb[0].mxu0
        %v1795 = vadd.f32 0.0, %v1794
        %v1796 = vpop.f32.mrb[0].mxu0
        %1797 = vmatprep.mubr.f32.mxu0 0.0
        %v1798 = vand.u32 %v847, 4294901760
        %v1799 = vsub.f32 %v847, %v1798
        %v1800 = vand.u32 %v1799, 4294901760
        %v1801 = vsub.f32 %v1799, %v1800
        %v1802 = vand.u32 %v1801, 4294901760
        %1803 = vmatmul.mubr.f32.gmra.mrb[0].mxu0 %v1802
        %v1804 = vpop.f32.mrb[0].mxu0
        %v1805 = vadd.f32 0.0, %v1804
        %v1806 = vpop.f32.mrb[0].mxu0
        %1807 = vmatprep.mubr.f32.mxu0 0.0
        %v1808 = vand.u32 %v848, 4294901760
        %v1809 = vsub.f32 %v848, %v1808
        %v1810 = vand.u32 %v1809, 4294901760
        %v1811 = vsub.f32 %v1809, %v1810
        %v1812 = vand.u32 %v1811, 4294901760
        %1813 = vmatmul.mubr.f32.gmra.mrb[0].mxu0 %v1812
        %v1814 = vpop.f32.mrb[0].mxu0
        %v1815 = vadd.f32 0.0, %v1814
        %v1816 = vpop.f32.mrb[0].mxu0
        %1817 = vmatprep.mubr.f32.mxu0 0.0
        %v1818 = vand.u32 %v849, 4294901760
        %v1819 = vsub.f32 %v849, %v1818
        %v1820 = vand.u32 %v1819, 4294901760
        %v1821 = vsub.f32 %v1819, %v1820
        %v1822 = vand.u32 %v1821, 4294901760
        %1823 = vmatmul.mubr.f32.gmra.mrb[0].mxu0 %v1822
        %v1824 = vpop.f32.mrb[0].mxu0
        %v1825 = vadd.f32 0.0, %v1824
        %v1826 = vpop.f32.mrb[0].mxu0
        %1827 = vmatprep.mubr.f32.mxu0 0.0
        %v1828 = vand.u32 %v850, 4294901760
        %v1829 = vsub.f32 %v850, %v1828
        %v1830 = vand.u32 %v1829, 4294901760
        %v1831 = vsub.f32 %v1829, %v1830
        %v1832 = vand.u32 %v1831, 4294901760
        %1833 = vmatmul.mubr.f32.gmra.mrb[0].mxu0 %v1832
        %v1834 = vpop.f32.mrb[0].mxu0
        %v1835 = vadd.f32 0.0, %v1834
        %v1836 = vpop.f32.mrb[0].mxu0
        %1837 = vmatprep.mubr.f32.mxu0 0.0
        %v1838 = vand.u32 %v851, 4294901760
        %v1839 = vsub.f32 %v851, %v1838
        %v1840 = vand.u32 %v1839, 4294901760
        %v1841 = vsub.f32 %v1839, %v1840
        %v1842 = vand.u32 %v1841, 4294901760
        %1843 = vmatmul.mubr.f32.gmra.mrb[0].mxu0 %v1842
        %v1844 = vpop.f32.mrb[0].mxu0
        %v1845 = vadd.f32 0.0, %v1844
        %v1846 = vpop.f32.mrb[0].mxu0
        %1847 = vmatprep.mubr.f32.mxu0 0.0
        %v1848 = vand.u32 %v852, 4294901760
        %v1849 = vsub.f32 %v852, %v1848
        %v1850 = vand.u32 %v1849, 4294901760
        %v1851 = vsub.f32 %v1849, %v1850
        %v1852 = vand.u32 %v1851, 4294901760
        %1853 = vmatmul.mubr.f32.gmra.mrb[0].mxu0 %v1852
        %v1854 = vpop.f32.mrb[0].mxu0
        %v1855 = vadd.f32 0.0, %v1854
        %v1856 = vpop.f32.mrb[0].mxu0
        %1857 = vmatprep.mubr.f32.mxu0 0.0
        %v1858 = vand.u32 %v853, 4294901760
        %v1859 = vsub.f32 %v853, %v1858
        %v1860 = vand.u32 %v1859, 4294901760
        %v1861 = vsub.f32 %v1859, %v1860
        %v1862 = vand.u32 %v1861, 4294901760
        %1863 = vmatmul.mubr.f32.gmra.mrb[0].mxu0 %v1862
        %v1864 = vpop.f32.mrb[0].mxu0
        %v1865 = vadd.f32 0.0, %v1864
        %v1866 = vpop.f32.mrb[0].mxu0
        %1867 = vmatprep.mubr.f32.mxu0 0.0
        %v1868 = vand.u32 %v854, 4294901760
        %v1869 = vsub.f32 %v854, %v1868
        %v1870 = vand.u32 %v1869, 4294901760
        %v1871 = vsub.f32 %v1869, %v1870
        %v1872 = vand.u32 %v1871, 4294901760
        %1873 = vmatmul.mubr.f32.gmra.mrb[0].mxu0 %v1872
        %v1874 = vpop.f32.mrb[0].mxu0
        %v1875 = vadd.f32 0.0, %v1874
        %v1876 = vpop.f32.mrb[0].mxu0
        %1877 = vmatprep.mubr.f32.mxu0 0.0
        %v1878 = vand.u32 %v855, 4294901760
        %v1879 = vsub.f32 %v855, %v1878
        %v1880 = vand.u32 %v1879, 4294901760
        %v1881 = vsub.f32 %v1879, %v1880
        %v1882 = vand.u32 %v1881, 4294901760
        %1883 = vmatmul.mubr.f32.gmra.mrb[0].mxu0 %v1882
        %v1884 = vpop.f32.mrb[0].mxu0
        %v1885 = vadd.f32 0.0, %v1884
        %v1886 = vpop.f32.mrb[0].mxu0
        %1887 = vmatprep.mubr.f32.mxu0 0.0
        %v1888 = vand.u32 %v856, 4294901760
        %v1889 = vsub.f32 %v856, %v1888
        %v1890 = vand.u32 %v1889, 4294901760
        %v1891 = vsub.f32 %v1889, %v1890
        %v1892 = vand.u32 %v1891, 4294901760
        %1893 = vmatmul.mubr.f32.gmra.mrb[0].mxu0 %v1892
        %v1894 = vpop.f32.mrb[0].mxu0
        %v1895 = vadd.f32 0.0, %v1894
        %v1896 = vpop.f32.mrb[0].mxu0
        %1897 = vdwg.mxu0
        %1898 = vmatprep.subr.mxu0 0.0
        %v1899 = vand.u32 %v167, 4294901760
        %v1900 = vsub.f32 %v167, %v1899
        %v1901 = vand.u32 %v1900, 4294901760
        %v1902 = vsub.f32 %v1900, %v1901
        %v1903 = vand.u32 %v1902, 4294901760
        %1904 = vmatpush1.msra.mxu0 %v1903
        %1905 = vmatprep.subr.mxu0 0.0
        %v1906 = vand.u32 %v168, 4294901760
        %v1907 = vsub.f32 %v168, %v1906
        %v1908 = vand.u32 %v1907, 4294901760
        %v1909 = vsub.f32 %v1907, %v1908
        %v1910 = vand.u32 %v1909, 4294901760
        %1911 = vmatpush1.msra.mxu0 %v1910
        %1912 = vmatprep.subr.mxu0 0.0
        %v1913 = vand.u32 %v169, 4294901760
        %v1914 = vsub.f32 %v169, %v1913
        %v1915 = vand.u32 %v1914, 4294901760
        %v1916 = vsub.f32 %v1914, %v1915
        %v1917 = vand.u32 %v1916, 4294901760
        %1918 = vmatpush1.msra.mxu0 %v1917
        %1919 = vmatprep.subr.mxu0 0.0
        %v1920 = vand.u32 %v170, 4294901760
        %v1921 = vsub.f32 %v170, %v1920
        %v1922 = vand.u32 %v1921, 4294901760
        %v1923 = vsub.f32 %v1921, %v1922
        %v1924 = vand.u32 %v1923, 4294901760
        %1925 = vmatpush1.msra.mxu0 %v1924
        %1926 = vmatprep.subr.mxu0 0.0
        %v1927 = vand.u32 %v171, 4294901760
        %v1928 = vsub.f32 %v171, %v1927
        %v1929 = vand.u32 %v1928, 4294901760
        %v1930 = vsub.f32 %v1928, %v1929
        %v1931 = vand.u32 %v1930, 4294901760
        %1932 = vmatpush1.msra.mxu0 %v1931
        %1933 = vmatprep.subr.mxu0 0.0
        %v1934 = vand.u32 %v172, 4294901760
        %v1935 = vsub.f32 %v172, %v1934
        %v1936 = vand.u32 %v1935, 4294901760
        %v1937 = vsub.f32 %v1935, %v1936
        %v1938 = vand.u32 %v1937, 4294901760
        %1939 = vmatpush1.msra.mxu0 %v1938
        %1940 = vmatprep.subr.mxu0 0.0
        %v1941 = vand.u32 %v173, 4294901760
        %v1942 = vsub.f32 %v173, %v1941
        %v1943 = vand.u32 %v1942, 4294901760
        %v1944 = vsub.f32 %v1942, %v1943
        %v1945 = vand.u32 %v1944, 4294901760
        %1946 = vmatpush1.msra.mxu0 %v1945
        %1947 = vmatprep.subr.mxu0 0.0
        %v1948 = vand.u32 %v174, 4294901760
        %v1949 = vsub.f32 %v174, %v1948
        %v1950 = vand.u32 %v1949, 4294901760
        %v1951 = vsub.f32 %v1949, %v1950
        %v1952 = vand.u32 %v1951, 4294901760
        %1953 = vmatpush1.msra.mxu0 %v1952
        %1954 = vmatprep.subr.mxu0 0.0
        %v1955 = vand.u32 %v175, 4294901760
        %v1956 = vsub.f32 %v175, %v1955
        %v1957 = vand.u32 %v1956, 4294901760
        %v1958 = vsub.f32 %v1956, %v1957
        %v1959 = vand.u32 %v1958, 4294901760
        %1960 = vmatpush1.msra.mxu0 %v1959
        %1961 = vmatprep.subr.mxu0 0.0
        %v1962 = vand.u32 %v176, 4294901760
        %v1963 = vsub.f32 %v176, %v1962
        %v1964 = vand.u32 %v1963, 4294901760
        %v1965 = vsub.f32 %v1963, %v1964
        %v1966 = vand.u32 %v1965, 4294901760
        %1967 = vmatpush1.msra.mxu0 %v1966
        %1968 = vmatprep.subr.mxu0 0.0
        %v1969 = vand.u32 %v177, 4294901760
        %v1970 = vsub.f32 %v177, %v1969
        %v1971 = vand.u32 %v1970, 4294901760
        %v1972 = vsub.f32 %v1970, %v1971
        %v1973 = vand.u32 %v1972, 4294901760
        %1974 = vmatpush1.msra.mxu0 %v1973
        %1975 = vmatprep.subr.mxu0 0.0
        %v1976 = vand.u32 %v178, 4294901760
        %v1977 = vsub.f32 %v178, %v1976
        %v1978 = vand.u32 %v1977, 4294901760
        %v1979 = vsub.f32 %v1977, %v1978
        %v1980 = vand.u32 %v1979, 4294901760
        %1981 = vmatpush1.msra.mxu0 %v1980
        %1982 = vmatprep.subr.mxu0 0.0
        %v1983 = vand.u32 %v179, 4294901760
        %v1984 = vsub.f32 %v179, %v1983
        %v1985 = vand.u32 %v1984, 4294901760
        %v1986 = vsub.f32 %v1984, %v1985
        %v1987 = vand.u32 %v1986, 4294901760
        %1988 = vmatpush1.msra.mxu0 %v1987
        %1989 = vmatprep.subr.mxu0 0.0
        %v1990 = vand.u32 %v180, 4294901760
        %v1991 = vsub.f32 %v180, %v1990
        %v1992 = vand.u32 %v1991, 4294901760
        %v1993 = vsub.f32 %v1991, %v1992
        %v1994 = vand.u32 %v1993, 4294901760
        %1995 = vmatpush1.msra.mxu0 %v1994
        %1996 = vmatprep.subr.mxu0 0.0
        %v1997 = vand.u32 %v181, 4294901760
        %v1998 = vsub.f32 %v181, %v1997
        %v1999 = vand.u32 %v1998, 4294901760
        %v2000 = vsub.f32 %v1998, %v1999
        %v2001 = vand.u32 %v2000, 4294901760
        %2002 = vmatpush1.msra.mxu0 %v2001
        %2003 = vmatprep.subr.mxu0 0.0
        %v2004 = vand.u32 %v182, 4294901760
        %v2005 = vsub.f32 %v182, %v2004
        %v2006 = vand.u32 %v2005, 4294901760
        %v2007 = vsub.f32 %v2005, %v2006
        %v2008 = vand.u32 %v2007, 4294901760
        %2009 = vmatpush1.msra.mxu0 %v2008
        %2010 = vmatprep.subr.mxu0 0.0
        %2011 = vmatpush1.msra.mxu0 0.0
        %2012 = vmatprep.subr.mxu0 0.0
        %2013 = vmatpush1.msra.mxu0 0.0
        %2014 = vmatprep.subr.mxu0 0.0
        %2015 = vmatpush1.msra.mxu0 0.0
        %2016 = vmatprep.subr.mxu0 0.0
        %2017 = vmatpush1.msra.mxu0 0.0
        %2018 = vmatprep.subr.mxu0 0.0
        %2019 = vmatpush1.msra.mxu0 0.0
        %2020 = vmatprep.subr.mxu0 0.0
        %2021 = vmatpush1.msra.mxu0 0.0
        %2022 = vmatprep.subr.mxu0 0.0
        %2023 = vmatpush1.msra.mxu0 0.0
        %2024 = vmatprep.subr.mxu0 0.0
        %2025 = vmatpush1.msra.mxu0 0.0
        %2026 = vmatprep.subr.mxu0 0.0
        %2027 = vmatpush1.msra.mxu0 0.0
        %2028 = vmatprep.subr.mxu0 0.0
        %2029 = vmatpush1.msra.mxu0 0.0
        %2030 = vmatprep.subr.mxu0 0.0
        %2031 = vmatpush1.msra.mxu0 0.0
        %2032 = vmatprep.subr.mxu0 0.0
        %2033 = vmatpush1.msra.mxu0 0.0
        %2034 = vmatprep.subr.mxu0 0.0
        %2035 = vmatpush1.msra.mxu0 0.0
        %2036 = vmatprep.subr.mxu0 0.0
        %2037 = vmatpush1.msra.mxu0 0.0
        %2038 = vmatprep.subr.mxu0 0.0
        %2039 = vmatpush1.msra.mxu0 0.0
        %2040 = vmatprep.subr.mxu0 0.0
        %2041 = vmatpush1.msra.mxu0 0.0
        %2042 = vmatprep.mubr.f32.mxu0 0.0
        %v2043 = vand.u32 %v761, 4294901760
        %2044 = vmatmul.mubr.f32.gmra.mrb[0].mxu0 %v2043
        %v2045 = vpop.f32.mrb[0].mxu0
        %v2046 = vadd.f32 %v945, %v2045
        %v2047 = vpop.f32.mrb[0].mxu0
        %2048 = vmatprep.mubr.f32.mxu0 0.0
        %v2049 = vand.u32 %v762, 4294901760
        %2050 = vmatmul.mubr.f32.gmra.mrb[0].mxu0 %v2049
        %v2051 = vpop.f32.mrb[0].mxu0
        %v2052 = vadd.f32 %v955, %v2051
        %v2053 = vpop.f32.mrb[0].mxu0
        %2054 = vmatprep.mubr.f32.mxu0 0.0
        %v2055 = vand.u32 %v763, 4294901760
        %2056 = vmatmul.mubr.f32.gmra.mrb[0].mxu0 %v2055
        %v2057 = vpop.f32.mrb[0].mxu0
        %v2058 = vadd.f32 %v965, %v2057
        %v2059 = vpop.f32.mrb[0].mxu0
        %2060 = vmatprep.mubr.f32.mxu0 0.0
        %v2061 = vand.u32 %v764, 4294901760
        %2062 = vmatmul.mubr.f32.gmra.mrb[0].mxu0 %v2061
        %v2063 = vpop.f32.mrb[0].mxu0
        %v2064 = vadd.f32 %v975, %v2063
        %v2065 = vpop.f32.mrb[0].mxu0
        %2066 = vmatprep.mubr.f32.mxu0 0.0
        %v2067 = vand.u32 %v765, 4294901760
        %2068 = vmatmul.mubr.f32.gmra.mrb[0].mxu0 %v2067
        %v2069 = vpop.f32.mrb[0].mxu0
        %v2070 = vadd.f32 %v985, %v2069
        %v2071 = vpop.f32.mrb[0].mxu0
        %2072 = vmatprep.mubr.f32.mxu0 0.0
        %v2073 = vand.u32 %v766, 4294901760
        %2074 = vmatmul.mubr.f32.gmra.mrb[0].mxu0 %v2073
        %v2075 = vpop.f32.mrb[0].mxu0
        %v2076 = vadd.f32 %v995, %v2075
        %v2077 = vpop.f32.mrb[0].mxu0
        %2078 = vmatprep.mubr.f32.mxu0 0.0
        %v2079 = vand.u32 %v767, 4294901760
        %2080 = vmatmul.mubr.f32.gmra.mrb[0].mxu0 %v2079
        %v2081 = vpop.f32.mrb[0].mxu0
        %v2082 = vadd.f32 %v1005, %v2081
        %v2083 = vpop.f32.mrb[0].mxu0
        %2084 = vmatprep.mubr.f32.mxu0 0.0
        %v2085 = vand.u32 %v768, 4294901760
        %2086 = vmatmul.mubr.f32.gmra.mrb[0].mxu0 %v2085
        %v2087 = vpop.f32.mrb[0].mxu0
        %v2088 = vadd.f32 %v1015, %v2087
        %v2089 = vpop.f32.mrb[0].mxu0
        %2090 = vmatprep.mubr.f32.mxu0 0.0
        %v2091 = vand.u32 %v769, 4294901760
        %2092 = vmatmul.mubr.f32.gmra.mrb[0].mxu0 %v2091
        %v2093 = vpop.f32.mrb[0].mxu0
        %v2094 = vadd.f32 %v1025, %v2093
        %v2095 = vpop.f32.mrb[0].mxu0
        %2096 = vmatprep.mubr.f32.mxu0 0.0
        %v2097 = vand.u32 %v770, 4294901760
        %2098 = vmatmul.mubr.f32.gmra.mrb[0].mxu0 %v2097
        %v2099 = vpop.f32.mrb[0].mxu0
        %v2100 = vadd.f32 %v1035, %v2099
        %v2101 = vpop.f32.mrb[0].mxu0
        %2102 = vmatprep.mubr.f32.mxu0 0.0
        %v2103 = vand.u32 %v771, 4294901760
        %2104 = vmatmul.mubr.f32.gmra.mrb[0].mxu0 %v2103
        %v2105 = vpop.f32.mrb[0].mxu0
        %v2106 = vadd.f32 %v1045, %v2105
        %v2107 = vpop.f32.mrb[0].mxu0
        %2108 = vmatprep.mubr.f32.mxu0 0.0
        %v2109 = vand.u32 %v772, 4294901760
        %2110 = vmatmul.mubr.f32.gmra.mrb[0].mxu0 %v2109
        %v2111 = vpop.f32.mrb[0].mxu0
        %v2112 = vadd.f32 %v1055, %v2111
        %v2113 = vpop.f32.mrb[0].mxu0
        %2114 = vmatprep.mubr.f32.mxu0 0.0
        %v2115 = vand.u32 %v773, 4294901760
        %2116 = vmatmul.mubr.f32.gmra.mrb[0].mxu0 %v2115
        %v2117 = vpop.f32.mrb[0].mxu0
        %v2118 = vadd.f32 %v1065, %v2117
        %v2119 = vpop.f32.mrb[0].mxu0
        %2120 = vmatprep.mubr.f32.mxu0 0.0
        %v2121 = vand.u32 %v774, 4294901760
        %2122 = vmatmul.mubr.f32.gmra.mrb[0].mxu0 %v2121
        %v2123 = vpop.f32.mrb[0].mxu0
        %v2124 = vadd.f32 %v1075, %v2123
        %v2125 = vpop.f32.mrb[0].mxu0
        %2126 = vmatprep.mubr.f32.mxu0 0.0
        %v2127 = vand.u32 %v775, 4294901760
        %2128 = vmatmul.mubr.f32.gmra.mrb[0].mxu0 %v2127
        %v2129 = vpop.f32.mrb[0].mxu0
        %v2130 = vadd.f32 %v1085, %v2129
        %v2131 = vpop.f32.mrb[0].mxu0
        %2132 = vmatprep.mubr.f32.mxu0 0.0
        %v2133 = vand.u32 %v776, 4294901760
        %2134 = vmatmul.mubr.f32.gmra.mrb[0].mxu0 %v2133
        %v2135 = vpop.f32.mrb[0].mxu0
        %v2136 = vadd.f32 %v1095, %v2135
        %v2137 = vpop.f32.mrb[0].mxu0
        %2138 = vmatprep.mubr.f32.mxu0 0.0
        %v2139 = vand.u32 %v777, 4294901760
        %2140 = vmatmul.mubr.f32.gmra.mrb[0].mxu0 %v2139
        %v2141 = vpop.f32.mrb[0].mxu0
        %v2142 = vadd.f32 %v1105, %v2141
        %v2143 = vpop.f32.mrb[0].mxu0
        %2144 = vmatprep.mubr.f32.mxu0 0.0
        %v2145 = vand.u32 %v778, 4294901760
        %2146 = vmatmul.mubr.f32.gmra.mrb[0].mxu0 %v2145
        %v2147 = vpop.f32.mrb[0].mxu0
        %v2148 = vadd.f32 %v1115, %v2147
        %v2149 = vpop.f32.mrb[0].mxu0
        %2150 = vmatprep.mubr.f32.mxu0 0.0
        %v2151 = vand.u32 %v779, 4294901760
        %2152 = vmatmul.mubr.f32.gmra.mrb[0].mxu0 %v2151
        %v2153 = vpop.f32.mrb[0].mxu0
        %v2154 = vadd.f32 %v1125, %v2153
        %v2155 = vpop.f32.mrb[0].mxu0
        %2156 = vmatprep.mubr.f32.mxu0 0.0
        %v2157 = vand.u32 %v780, 4294901760
        %2158 = vmatmul.mubr.f32.gmra.mrb[0].mxu0 %v2157
        %v2159 = vpop.f32.mrb[0].mxu0
        %v2160 = vadd.f32 %v1135, %v2159
        %v2161 = vpop.f32.mrb[0].mxu0
        %2162 = vmatprep.mubr.f32.mxu0 0.0
        %v2163 = vand.u32 %v781, 4294901760
        %2164 = vmatmul.mubr.f32.gmra.mrb[0].mxu0 %v2163
        %v2165 = vpop.f32.mrb[0].mxu0
        %v2166 = vadd.f32 %v1145, %v2165
        %v2167 = vpop.f32.mrb[0].mxu0
        %2168 = vmatprep.mubr.f32.mxu0 0.0
        %v2169 = vand.u32 %v782, 4294901760
        %2170 = vmatmul.mubr.f32.gmra.mrb[0].mxu0 %v2169
        %v2171 = vpop.f32.mrb[0].mxu0
        %v2172 = vadd.f32 %v1155, %v2171
        %v2173 = vpop.f32.mrb[0].mxu0
        %2174 = vmatprep.mubr.f32.mxu0 0.0
        %v2175 = vand.u32 %v783, 4294901760
        %2176 = vmatmul.mubr.f32.gmra.mrb[0].mxu0 %v2175
        %v2177 = vpop.f32.mrb[0].mxu0
        %v2178 = vadd.f32 %v1165, %v2177
        %v2179 = vpop.f32.mrb[0].mxu0
        %2180 = vmatprep.mubr.f32.mxu0 0.0
        %v2181 = vand.u32 %v784, 4294901760
        %2182 = vmatmul.mubr.f32.gmra.mrb[0].mxu0 %v2181
        %v2183 = vpop.f32.mrb[0].mxu0
        %v2184 = vadd.f32 %v1175, %v2183
        %v2185 = vpop.f32.mrb[0].mxu0
        %2186 = vmatprep.mubr.f32.mxu0 0.0
        %v2187 = vand.u32 %v785, 4294901760
        %2188 = vmatmul.mubr.f32.gmra.mrb[0].mxu0 %v2187
        %v2189 = vpop.f32.mrb[0].mxu0
        %v2190 = vadd.f32 %v1185, %v2189
        %v2191 = vpop.f32.mrb[0].mxu0
        %2192 = vmatprep.mubr.f32.mxu0 0.0
        %v2193 = vand.u32 %v786, 4294901760
        %2194 = vmatmul.mubr.f32.gmra.mrb[0].mxu0 %v2193
        %v2195 = vpop.f32.mrb[0].mxu0
        %v2196 = vadd.f32 %v1195, %v2195
        %v2197 = vpop.f32.mrb[0].mxu0
        %2198 = vmatprep.mubr.f32.mxu0 0.0
        %v2199 = vand.u32 %v787, 4294901760
        %2200 = vmatmul.mubr.f32.gmra.mrb[0].mxu0 %v2199
        %v2201 = vpop.f32.mrb[0].mxu0
        %v2202 = vadd.f32 %v1205, %v2201
        %v2203 = vpop.f32.mrb[0].mxu0
        %2204 = vmatprep.mubr.f32.mxu0 0.0
        %v2205 = vand.u32 %v788, 4294901760
        %2206 = vmatmul.mubr.f32.gmra.mrb[0].mxu0 %v2205
        %v2207 = vpop.f32.mrb[0].mxu0
        %v2208 = vadd.f32 %v1215, %v2207
        %v2209 = vpop.f32.mrb[0].mxu0
        %2210 = vmatprep.mubr.f32.mxu0 0.0
        %v2211 = vand.u32 %v789, 4294901760
        %2212 = vmatmul.mubr.f32.gmra.mrb[0].mxu0 %v2211
        %v2213 = vpop.f32.mrb[0].mxu0
        %v2214 = vadd.f32 %v1225, %v2213
        %v2215 = vpop.f32.mrb[0].mxu0
        %2216 = vmatprep.mubr.f32.mxu0 0.0
        %v2217 = vand.u32 %v790, 4294901760
        %2218 = vmatmul.mubr.f32.gmra.mrb[0].mxu0 %v2217
        %v2219 = vpop.f32.mrb[0].mxu0
        %v2220 = vadd.f32 %v1235, %v2219
        %v2221 = vpop.f32.mrb[0].mxu0
        %2222 = vmatprep.mubr.f32.mxu0 0.0
        %v2223 = vand.u32 %v791, 4294901760
        %2224 = vmatmul.mubr.f32.gmra.mrb[0].mxu0 %v2223
        %v2225 = vpop.f32.mrb[0].mxu0
        %v2226 = vadd.f32 %v1245, %v2225
        %v2227 = vpop.f32.mrb[0].mxu0
        %2228 = vmatprep.mubr.f32.mxu0 0.0
        %v2229 = vand.u32 %v792, 4294901760
        %2230 = vmatmul.mubr.f32.gmra.mrb[0].mxu0 %v2229
        %v2231 = vpop.f32.mrb[0].mxu0
        %v2232 = vadd.f32 %v1255, %v2231
        %v2233 = vpop.f32.mrb[0].mxu0
        %2234 = vmatprep.mubr.f32.mxu0 0.0
        %v2235 = vand.u32 %v793, 4294901760
        %2236 = vmatmul.mubr.f32.gmra.mrb[0].mxu0 %v2235
        %v2237 = vpop.f32.mrb[0].mxu0
        %v2238 = vadd.f32 %v1265, %v2237
        %v2239 = vpop.f32.mrb[0].mxu0
        %2240 = vmatprep.mubr.f32.mxu0 0.0
        %v2241 = vand.u32 %v794, 4294901760
        %2242 = vmatmul.mubr.f32.gmra.mrb[0].mxu0 %v2241
        %v2243 = vpop.f32.mrb[0].mxu0
        %v2244 = vadd.f32 %v1275, %v2243
        %v2245 = vpop.f32.mrb[0].mxu0
        %2246 = vmatprep.mubr.f32.mxu0 0.0
        %v2247 = vand.u32 %v795, 4294901760
        %2248 = vmatmul.mubr.f32.gmra.mrb[0].mxu0 %v2247
        %v2249 = vpop.f32.mrb[0].mxu0
        %v2250 = vadd.f32 %v1285, %v2249
        %v2251 = vpop.f32.mrb[0].mxu0
        %2252 = vmatprep.mubr.f32.mxu0 0.0
        %v2253 = vand.u32 %v796, 4294901760
        %2254 = vmatmul.mubr.f32.gmra.mrb[0].mxu0 %v2253
        %v2255 = vpop.f32.mrb[0].mxu0
        %v2256 = vadd.f32 %v1295, %v2255
        %v2257 = vpop.f32.mrb[0].mxu0
        %2258 = vmatprep.mubr.f32.mxu0 0.0
        %v2259 = vand.u32 %v797, 4294901760
        %2260 = vmatmul.mubr.f32.gmra.mrb[0].mxu0 %v2259
        %v2261 = vpop.f32.mrb[0].mxu0
        %v2262 = vadd.f32 %v1305, %v2261
        %v2263 = vpop.f32.mrb[0].mxu0
        %2264 = vmatprep.mubr.f32.mxu0 0.0
        %v2265 = vand.u32 %v798, 4294901760
        %2266 = vmatmul.mubr.f32.gmra.mrb[0].mxu0 %v2265
        %v2267 = vpop.f32.mrb[0].mxu0
        %v2268 = vadd.f32 %v1315, %v2267
        %v2269 = vpop.f32.mrb[0].mxu0
        %2270 = vmatprep.mubr.f32.mxu0 0.0
        %v2271 = vand.u32 %v799, 4294901760
        %2272 = vmatmul.mubr.f32.gmra.mrb[0].mxu0 %v2271
        %v2273 = vpop.f32.mrb[0].mxu0
        %v2274 = vadd.f32 %v1325, %v2273
        %v2275 = vpop.f32.mrb[0].mxu0
        %2276 = vmatprep.mubr.f32.mxu0 0.0
        %v2277 = vand.u32 %v800, 4294901760
        %2278 = vmatmul.mubr.f32.gmra.mrb[0].mxu0 %v2277
        %v2279 = vpop.f32.mrb[0].mxu0
        %v2280 = vadd.f32 %v1335, %v2279
        %v2281 = vpop.f32.mrb[0].mxu0
        %2282 = vmatprep.mubr.f32.mxu0 0.0
        %v2283 = vand.u32 %v801, 4294901760
        %2284 = vmatmul.mubr.f32.gmra.mrb[0].mxu0 %v2283
        %v2285 = vpop.f32.mrb[0].mxu0
        %v2286 = vadd.f32 %v1345, %v2285
        %v2287 = vpop.f32.mrb[0].mxu0
        %2288 = vmatprep.mubr.f32.mxu0 0.0
        %v2289 = vand.u32 %v802, 4294901760
        %2290 = vmatmul.mubr.f32.gmra.mrb[0].mxu0 %v2289
        %v2291 = vpop.f32.mrb[0].mxu0
        %v2292 = vadd.f32 %v1355, %v2291
        %v2293 = vpop.f32.mrb[0].mxu0
        %2294 = vmatprep.mubr.f32.mxu0 0.0
        %v2295 = vand.u32 %v803, 4294901760
        %2296 = vmatmul.mubr.f32.gmra.mrb[0].mxu0 %v2295
        %v2297 = vpop.f32.mrb[0].mxu0
        %v2298 = vadd.f32 %v1365, %v2297
        %v2299 = vpop.f32.mrb[0].mxu0
        %2300 = vmatprep.mubr.f32.mxu0 0.0
        %v2301 = vand.u32 %v804, 4294901760
        %2302 = vmatmul.mubr.f32.gmra.mrb[0].mxu0 %v2301
        %v2303 = vpop.f32.mrb[0].mxu0
        %v2304 = vadd.f32 %v1375, %v2303
        %v2305 = vpop.f32.mrb[0].mxu0
        %2306 = vmatprep.mubr.f32.mxu0 0.0
        %v2307 = vand.u32 %v805, 4294901760
        %2308 = vmatmul.mubr.f32.gmra.mrb[0].mxu0 %v2307
        %v2309 = vpop.f32.mrb[0].mxu0
        %v2310 = vadd.f32 %v1385, %v2309
        %v2311 = vpop.f32.mrb[0].mxu0
        %2312 = vmatprep.mubr.f32.mxu0 0.0
        %v2313 = vand.u32 %v806, 4294901760
        %2314 = vmatmul.mubr.f32.gmra.mrb[0].mxu0 %v2313
        %v2315 = vpop.f32.mrb[0].mxu0
        %v2316 = vadd.f32 %v1395, %v2315
        %v2317 = vpop.f32.mrb[0].mxu0
        %2318 = vmatprep.mubr.f32.mxu0 0.0
        %v2319 = vand.u32 %v807, 4294901760
        %2320 = vmatmul.mubr.f32.gmra.mrb[0].mxu0 %v2319
        %v2321 = vpop.f32.mrb[0].mxu0
        %v2322 = vadd.f32 %v1405, %v2321
        %v2323 = vpop.f32.mrb[0].mxu0
        %2324 = vmatprep.mubr.f32.mxu0 0.0
        %v2325 = vand.u32 %v808, 4294901760
        %2326 = vmatmul.mubr.f32.gmra.mrb[0].mxu0 %v2325
        %v2327 = vpop.f32.mrb[0].mxu0
        %v2328 = vadd.f32 %v1415, %v2327
        %v2329 = vpop.f32.mrb[0].mxu0
        %2330 = vmatprep.mubr.f32.mxu0 0.0
        %v2331 = vand.u32 %v809, 4294901760
        %2332 = vmatmul.mubr.f32.gmra.mrb[0].mxu0 %v2331
        %v2333 = vpop.f32.mrb[0].mxu0
        %v2334 = vadd.f32 %v1425, %v2333
        %v2335 = vpop.f32.mrb[0].mxu0
        %2336 = vmatprep.mubr.f32.mxu0 0.0
        %v2337 = vand.u32 %v810, 4294901760
        %2338 = vmatmul.mubr.f32.gmra.mrb[0].mxu0 %v2337
        %v2339 = vpop.f32.mrb[0].mxu0
        %v2340 = vadd.f32 %v1435, %v2339
        %v2341 = vpop.f32.mrb[0].mxu0
        %2342 = vmatprep.mubr.f32.mxu0 0.0
        %v2343 = vand.u32 %v811, 4294901760
        %2344 = vmatmul.mubr.f32.gmra.mrb[0].mxu0 %v2343
        %v2345 = vpop.f32.mrb[0].mxu0
        %v2346 = vadd.f32 %v1445, %v2345
        %v2347 = vpop.f32.mrb[0].mxu0
        %2348 = vmatprep.mubr.f32.mxu0 0.0
        %v2349 = vand.u32 %v812, 4294901760
        %2350 = vmatmul.mubr.f32.gmra.mrb[0].mxu0 %v2349
        %v2351 = vpop.f32.mrb[0].mxu0
        %v2352 = vadd.f32 %v1455, %v2351
        %v2353 = vpop.f32.mrb[0].mxu0
        %2354 = vmatprep.mubr.f32.mxu0 0.0
        %v2355 = vand.u32 %v813, 4294901760
        %2356 = vmatmul.mubr.f32.gmra.mrb[0].mxu0 %v2355
        %v2357 = vpop.f32.mrb[0].mxu0
        %v2358 = vadd.f32 %v1465, %v2357
        %v2359 = vpop.f32.mrb[0].mxu0
        %2360 = vmatprep.mubr.f32.mxu0 0.0
        %v2361 = vand.u32 %v814, 4294901760
        %2362 = vmatmul.mubr.f32.gmra.mrb[0].mxu0 %v2361
        %v2363 = vpop.f32.mrb[0].mxu0
        %v2364 = vadd.f32 %v1475, %v2363
        %v2365 = vpop.f32.mrb[0].mxu0
        %2366 = vmatprep.mubr.f32.mxu0 0.0
        %v2367 = vand.u32 %v815, 4294901760
        %2368 = vmatmul.mubr.f32.gmra.mrb[0].mxu0 %v2367
        %v2369 = vpop.f32.mrb[0].mxu0
        %v2370 = vadd.f32 %v1485, %v2369
        %v2371 = vpop.f32.mrb[0].mxu0
        %2372 = vmatprep.mubr.f32.mxu0 0.0
        %v2373 = vand.u32 %v816, 4294901760
        %2374 = vmatmul.mubr.f32.gmra.mrb[0].mxu0 %v2373
        %v2375 = vpop.f32.mrb[0].mxu0
        %v2376 = vadd.f32 %v1495, %v2375
        %v2377 = vpop.f32.mrb[0].mxu0
        %2378 = vmatprep.mubr.f32.mxu0 0.0
        %v2379 = vand.u32 %v817, 4294901760
        %2380 = vmatmul.mubr.f32.gmra.mrb[0].mxu0 %v2379
        %v2381 = vpop.f32.mrb[0].mxu0
        %v2382 = vadd.f32 %v1505, %v2381
        %v2383 = vpop.f32.mrb[0].mxu0
        %2384 = vmatprep.mubr.f32.mxu0 0.0
        %v2385 = vand.u32 %v818, 4294901760
        %2386 = vmatmul.mubr.f32.gmra.mrb[0].mxu0 %v2385
        %v2387 = vpop.f32.mrb[0].mxu0
        %v2388 = vadd.f32 %v1515, %v2387
        %v2389 = vpop.f32.mrb[0].mxu0
        %2390 = vmatprep.mubr.f32.mxu0 0.0
        %v2391 = vand.u32 %v819, 4294901760
        %2392 = vmatmul.mubr.f32.gmra.mrb[0].mxu0 %v2391
        %v2393 = vpop.f32.mrb[0].mxu0
        %v2394 = vadd.f32 %v1525, %v2393
        %v2395 = vpop.f32.mrb[0].mxu0
        %2396 = vmatprep.mubr.f32.mxu0 0.0
        %v2397 = vand.u32 %v820, 4294901760
        %2398 = vmatmul.mubr.f32.gmra.mrb[0].mxu0 %v2397
        %v2399 = vpop.f32.mrb[0].mxu0
        %v2400 = vadd.f32 %v1535, %v2399
        %v2401 = vpop.f32.mrb[0].mxu0
        %2402 = vmatprep.mubr.f32.mxu0 0.0
        %v2403 = vand.u32 %v821, 4294901760
        %2404 = vmatmul.mubr.f32.gmra.mrb[0].mxu0 %v2403
        %v2405 = vpop.f32.mrb[0].mxu0
        %v2406 = vadd.f32 %v1545, %v2405
        %v2407 = vpop.f32.mrb[0].mxu0
        %2408 = vmatprep.mubr.f32.mxu0 0.0
        %v2409 = vand.u32 %v822, 4294901760
        %2410 = vmatmul.mubr.f32.gmra.mrb[0].mxu0 %v2409
        %v2411 = vpop.f32.mrb[0].mxu0
        %v2412 = vadd.f32 %v1555, %v2411
        %v2413 = vpop.f32.mrb[0].mxu0
        %2414 = vmatprep.mubr.f32.mxu0 0.0
        %v2415 = vand.u32 %v823, 4294901760
        %2416 = vmatmul.mubr.f32.gmra.mrb[0].mxu0 %v2415
        %v2417 = vpop.f32.mrb[0].mxu0
        %v2418 = vadd.f32 %v1565, %v2417
        %v2419 = vpop.f32.mrb[0].mxu0
        %2420 = vmatprep.mubr.f32.mxu0 0.0
        %v2421 = vand.u32 %v824, 4294901760
        %2422 = vmatmul.mubr.f32.gmra.mrb[0].mxu0 %v2421
        %v2423 = vpop.f32.mrb[0].mxu0
        %v2424 = vadd.f32 %v1575, %v2423
        %v2425 = vpop.f32.mrb[0].mxu0
        %2426 = vmatprep.mubr.f32.mxu0 0.0
        %v2427 = vand.u32 %v825, 4294901760
        %2428 = vmatmul.mubr.f32.gmra.mrb[0].mxu0 %v2427
        %v2429 = vpop.f32.mrb[0].mxu0
        %v2430 = vadd.f32 %v1585, %v2429
        %v2431 = vpop.f32.mrb[0].mxu0
        %2432 = vmatprep.mubr.f32.mxu0 0.0
        %v2433 = vand.u32 %v826, 4294901760
        %2434 = vmatmul.mubr.f32.gmra.mrb[0].mxu0 %v2433
        %v2435 = vpop.f32.mrb[0].mxu0
        %v2436 = vadd.f32 %v1595, %v2435
        %v2437 = vpop.f32.mrb[0].mxu0
        %2438 = vmatprep.mubr.f32.mxu0 0.0
        %v2439 = vand.u32 %v827, 4294901760
        %2440 = vmatmul.mubr.f32.gmra.mrb[0].mxu0 %v2439
        %v2441 = vpop.f32.mrb[0].mxu0
        %v2442 = vadd.f32 %v1605, %v2441
        %v2443 = vpop.f32.mrb[0].mxu0
        %2444 = vmatprep.mubr.f32.mxu0 0.0
        %v2445 = vand.u32 %v828, 4294901760
        %2446 = vmatmul.mubr.f32.gmra.mrb[0].mxu0 %v2445
        %v2447 = vpop.f32.mrb[0].mxu0
        %v2448 = vadd.f32 %v1615, %v2447
        %v2449 = vpop.f32.mrb[0].mxu0
        %2450 = vmatprep.mubr.f32.mxu0 0.0
        %v2451 = vand.u32 %v829, 4294901760
        %2452 = vmatmul.mubr.f32.gmra.mrb[0].mxu0 %v2451
        %v2453 = vpop.f32.mrb[0].mxu0
        %v2454 = vadd.f32 %v1625, %v2453
        %v2455 = vpop.f32.mrb[0].mxu0
        %2456 = vmatprep.mubr.f32.mxu0 0.0
        %v2457 = vand.u32 %v830, 4294901760
        %2458 = vmatmul.mubr.f32.gmra.mrb[0].mxu0 %v2457
        %v2459 = vpop.f32.mrb[0].mxu0
        %v2460 = vadd.f32 %v1635, %v2459
        %v2461 = vpop.f32.mrb[0].mxu0
        %2462 = vmatprep.mubr.f32.mxu0 0.0
        %v2463 = vand.u32 %v831, 4294901760
        %2464 = vmatmul.mubr.f32.gmra.mrb[0].mxu0 %v2463
        %v2465 = vpop.f32.mrb[0].mxu0
        %v2466 = vadd.f32 %v1645, %v2465
        %v2467 = vpop.f32.mrb[0].mxu0
        %2468 = vmatprep.mubr.f32.mxu0 0.0
        %v2469 = vand.u32 %v832, 4294901760
        %2470 = vmatmul.mubr.f32.gmra.mrb[0].mxu0 %v2469
        %v2471 = vpop.f32.mrb[0].mxu0
        %v2472 = vadd.f32 %v1655, %v2471
        %v2473 = vpop.f32.mrb[0].mxu0
        %2474 = vmatprep.mubr.f32.mxu0 0.0
        %v2475 = vand.u32 %v833, 4294901760
        %2476 = vmatmul.mubr.f32.gmra.mrb[0].mxu0 %v2475
        %v2477 = vpop.f32.mrb[0].mxu0
        %v2478 = vadd.f32 %v1665, %v2477
        %v2479 = vpop.f32.mrb[0].mxu0
        %2480 = vmatprep.mubr.f32.mxu0 0.0
        %v2481 = vand.u32 %v834, 4294901760
        %2482 = vmatmul.mubr.f32.gmra.mrb[0].mxu0 %v2481
        %v2483 = vpop.f32.mrb[0].mxu0
        %v2484 = vadd.f32 %v1675, %v2483
        %v2485 = vpop.f32.mrb[0].mxu0
        %2486 = vmatprep.mubr.f32.mxu0 0.0
        %v2487 = vand.u32 %v835, 4294901760
        %2488 = vmatmul.mubr.f32.gmra.mrb[0].mxu0 %v2487
        %v2489 = vpop.f32.mrb[0].mxu0
        %v2490 = vadd.f32 %v1685, %v2489
        %v2491 = vpop.f32.mrb[0].mxu0
        %2492 = vmatprep.mubr.f32.mxu0 0.0
        %v2493 = vand.u32 %v836, 4294901760
        %2494 = vmatmul.mubr.f32.gmra.mrb[0].mxu0 %v2493
        %v2495 = vpop.f32.mrb[0].mxu0
        %v2496 = vadd.f32 %v1695, %v2495
        %v2497 = vpop.f32.mrb[0].mxu0
        %2498 = vmatprep.mubr.f32.mxu0 0.0
        %v2499 = vand.u32 %v837, 4294901760
        %2500 = vmatmul.mubr.f32.gmra.mrb[0].mxu0 %v2499
        %v2501 = vpop.f32.mrb[0].mxu0
        %v2502 = vadd.f32 %v1705, %v2501
        %v2503 = vpop.f32.mrb[0].mxu0
        %2504 = vmatprep.mubr.f32.mxu0 0.0
        %v2505 = vand.u32 %v838, 4294901760
        %2506 = vmatmul.mubr.f32.gmra.mrb[0].mxu0 %v2505
        %v2507 = vpop.f32.mrb[0].mxu0
        %v2508 = vadd.f32 %v1715, %v2507
        %v2509 = vpop.f32.mrb[0].mxu0
        %2510 = vmatprep.mubr.f32.mxu0 0.0
        %v2511 = vand.u32 %v839, 4294901760
        %2512 = vmatmul.mubr.f32.gmra.mrb[0].mxu0 %v2511
        %v2513 = vpop.f32.mrb[0].mxu0
        %v2514 = vadd.f32 %v1725, %v2513
        %v2515 = vpop.f32.mrb[0].mxu0
        %2516 = vmatprep.mubr.f32.mxu0 0.0
        %v2517 = vand.u32 %v840, 4294901760
        %2518 = vmatmul.mubr.f32.gmra.mrb[0].mxu0 %v2517
        %v2519 = vpop.f32.mrb[0].mxu0
        %v2520 = vadd.f32 %v1735, %v2519
        %v2521 = vpop.f32.mrb[0].mxu0
        %2522 = vmatprep.mubr.f32.mxu0 0.0
        %v2523 = vand.u32 %v841, 4294901760
        %2524 = vmatmul.mubr.f32.gmra.mrb[0].mxu0 %v2523
        %v2525 = vpop.f32.mrb[0].mxu0
        %v2526 = vadd.f32 %v1745, %v2525
        %v2527 = vpop.f32.mrb[0].mxu0
        %2528 = vmatprep.mubr.f32.mxu0 0.0
        %v2529 = vand.u32 %v842, 4294901760
        %2530 = vmatmul.mubr.f32.gmra.mrb[0].mxu0 %v2529
        %v2531 = vpop.f32.mrb[0].mxu0
        %v2532 = vadd.f32 %v1755, %v2531
        %v2533 = vpop.f32.mrb[0].mxu0
        %2534 = vmatprep.mubr.f32.mxu0 0.0
        %v2535 = vand.u32 %v843, 4294901760
        %2536 = vmatmul.mubr.f32.gmra.mrb[0].mxu0 %v2535
        %v2537 = vpop.f32.mrb[0].mxu0
        %v2538 = vadd.f32 %v1765, %v2537
        %v2539 = vpop.f32.mrb[0].mxu0
        %2540 = vmatprep.mubr.f32.mxu0 0.0
        %v2541 = vand.u32 %v844, 4294901760
        %2542 = vmatmul.mubr.f32.gmra.mrb[0].mxu0 %v2541
        %v2543 = vpop.f32.mrb[0].mxu0
        %v2544 = vadd.f32 %v1775, %v2543
        %v2545 = vpop.f32.mrb[0].mxu0
        %2546 = vmatprep.mubr.f32.mxu0 0.0
        %v2547 = vand.u32 %v845, 4294901760
        %2548 = vmatmul.mubr.f32.gmra.mrb[0].mxu0 %v2547
        %v2549 = vpop.f32.mrb[0].mxu0
        %v2550 = vadd.f32 %v1785, %v2549
        %v2551 = vpop.f32.mrb[0].mxu0
        %2552 = vmatprep.mubr.f32.mxu0 0.0
        %v2553 = vand.u32 %v846, 4294901760
        %2554 = vmatmul.mubr.f32.gmra.mrb[0].mxu0 %v2553
        %v2555 = vpop.f32.mrb[0].mxu0
        %v2556 = vadd.f32 %v1795, %v2555
        %v2557 = vpop.f32.mrb[0].mxu0
        %2558 = vmatprep.mubr.f32.mxu0 0.0
        %v2559 = vand.u32 %v847, 4294901760
        %2560 = vmatmul.mubr.f32.gmra.mrb[0].mxu0 %v2559
        %v2561 = vpop.f32.mrb[0].mxu0
        %v2562 = vadd.f32 %v1805, %v2561
        %v2563 = vpop.f32.mrb[0].mxu0
        %2564 = vmatprep.mubr.f32.mxu0 0.0
        %v2565 = vand.u32 %v848, 4294901760
        %2566 = vmatmul.mubr.f32.gmra.mrb[0].mxu0 %v2565
        %v2567 = vpop.f32.mrb[0].mxu0
        %v2568 = vadd.f32 %v1815, %v2567
        %v2569 = vpop.f32.mrb[0].mxu0
        %2570 = vmatprep.mubr.f32.mxu0 0.0
        %v2571 = vand.u32 %v849, 4294901760
        %2572 = vmatmul.mubr.f32.gmra.mrb[0].mxu0 %v2571
        %v2573 = vpop.f32.mrb[0].mxu0
        %v2574 = vadd.f32 %v1825, %v2573
        %v2575 = vpop.f32.mrb[0].mxu0
        %2576 = vmatprep.mubr.f32.mxu0 0.0
        %v2577 = vand.u32 %v850, 4294901760
        %2578 = vmatmul.mubr.f32.gmra.mrb[0].mxu0 %v2577
        %v2579 = vpop.f32.mrb[0].mxu0
        %v2580 = vadd.f32 %v1835, %v2579
        %v2581 = vpop.f32.mrb[0].mxu0
        %2582 = vmatprep.mubr.f32.mxu0 0.0
        %v2583 = vand.u32 %v851, 4294901760
        %2584 = vmatmul.mubr.f32.gmra.mrb[0].mxu0 %v2583
        %v2585 = vpop.f32.mrb[0].mxu0
        %v2586 = vadd.f32 %v1845, %v2585
        %v2587 = vpop.f32.mrb[0].mxu0
        %2588 = vmatprep.mubr.f32.mxu0 0.0
        %v2589 = vand.u32 %v852, 4294901760
        %2590 = vmatmul.mubr.f32.gmra.mrb[0].mxu0 %v2589
        %v2591 = vpop.f32.mrb[0].mxu0
        %v2592 = vadd.f32 %v1855, %v2591
        %v2593 = vpop.f32.mrb[0].mxu0
        %2594 = vmatprep.mubr.f32.mxu0 0.0
        %v2595 = vand.u32 %v853, 4294901760
        %2596 = vmatmul.mubr.f32.gmra.mrb[0].mxu0 %v2595
        %v2597 = vpop.f32.mrb[0].mxu0
        %v2598 = vadd.f32 %v1865, %v2597
        %v2599 = vpop.f32.mrb[0].mxu0
        %2600 = vmatprep.mubr.f32.mxu0 0.0
        %v2601 = vand.u32 %v854, 4294901760
        %2602 = vmatmul.mubr.f32.gmra.mrb[0].mxu0 %v2601
        %v2603 = vpop.f32.mrb[0].mxu0
        %v2604 = vadd.f32 %v1875, %v2603
        %v2605 = vpop.f32.mrb[0].mxu0
        %2606 = vmatprep.mubr.f32.mxu0 0.0
        %v2607 = vand.u32 %v855, 4294901760
        %2608 = vmatmul.mubr.f32.gmra.mrb[0].mxu0 %v2607
        %v2609 = vpop.f32.mrb[0].mxu0
        %v2610 = vadd.f32 %v1885, %v2609
        %v2611 = vpop.f32.mrb[0].mxu0
        %2612 = vmatprep.mubr.f32.mxu0 0.0
        %v2613 = vand.u32 %v856, 4294901760
        %2614 = vmatmul.mubr.f32.gmra.mrb[0].mxu0 %v2613
        %v2615 = vpop.f32.mrb[0].mxu0
        %v2616 = vadd.f32 %v1895, %v2615
        %v2617 = vpop.f32.mrb[0].mxu0
        %2618 = vdwg.mxu0
        %2619 = vmatprep.subr.mxu0 0.0
        %v2620 = vand.u32 %v167, 4294901760
        %v2621 = vsub.f32 %v167, %v2620
        %2622 = vmatpush1.msra.mxu0 %v2621
        %2623 = vmatprep.subr.mxu0 0.0
        %v2624 = vand.u32 %v168, 4294901760
        %v2625 = vsub.f32 %v168, %v2624
        %2626 = vmatpush1.msra.mxu0 %v2625
        %2627 = vmatprep.subr.mxu0 0.0
        %v2628 = vand.u32 %v169, 4294901760
        %v2629 = vsub.f32 %v169, %v2628
        %2630 = vmatpush1.msra.mxu0 %v2629
        %2631 = vmatprep.subr.mxu0 0.0
        %v2632 = vand.u32 %v170, 4294901760
        %v2633 = vsub.f32 %v170, %v2632
        %2634 = vmatpush1.msra.mxu0 %v2633
        %2635 = vmatprep.subr.mxu0 0.0
        %v2636 = vand.u32 %v171, 4294901760
        %v2637 = vsub.f32 %v171, %v2636
        %2638 = vmatpush1.msra.mxu0 %v2637
        %2639 = vmatprep.subr.mxu0 0.0
        %v2640 = vand.u32 %v172, 4294901760
        %v2641 = vsub.f32 %v172, %v2640
        %2642 = vmatpush1.msra.mxu0 %v2641
        %2643 = vmatprep.subr.mxu0 0.0
        %v2644 = vand.u32 %v173, 4294901760
        %v2645 = vsub.f32 %v173, %v2644
        %2646 = vmatpush1.msra.mxu0 %v2645
        %2647 = vmatprep.subr.mxu0 0.0
        %v2648 = vand.u32 %v174, 4294901760
        %v2649 = vsub.f32 %v174, %v2648
        %2650 = vmatpush1.msra.mxu0 %v2649
        %2651 = vmatprep.subr.mxu0 0.0
        %v2652 = vand.u32 %v175, 4294901760
        %v2653 = vsub.f32 %v175, %v2652
        %2654 = vmatpush1.msra.mxu0 %v2653
        %2655 = vmatprep.subr.mxu0 0.0
        %v2656 = vand.u32 %v176, 4294901760
        %v2657 = vsub.f32 %v176, %v2656
        %2658 = vmatpush1.msra.mxu0 %v2657
        %2659 = vmatprep.subr.mxu0 0.0
        %v2660 = vand.u32 %v177, 4294901760
        %v2661 = vsub.f32 %v177, %v2660
        %2662 = vmatpush1.msra.mxu0 %v2661
        %2663 = vmatprep.subr.mxu0 0.0
        %v2664 = vand.u32 %v178, 4294901760
        %v2665 = vsub.f32 %v178, %v2664
        %2666 = vmatpush1.msra.mxu0 %v2665
        %2667 = vmatprep.subr.mxu0 0.0
        %v2668 = vand.u32 %v179, 4294901760
        %v2669 = vsub.f32 %v179, %v2668
        %2670 = vmatpush1.msra.mxu0 %v2669
        %2671 = vmatprep.subr.mxu0 0.0
        %v2672 = vand.u32 %v180, 4294901760
        %v2673 = vsub.f32 %v180, %v2672
        %2674 = vmatpush1.msra.mxu0 %v2673
        %2675 = vmatprep.subr.mxu0 0.0
        %v2676 = vand.u32 %v181, 4294901760
        %v2677 = vsub.f32 %v181, %v2676
        %2678 = vmatpush1.msra.mxu0 %v2677
        %2679 = vmatprep.subr.mxu0 0.0
        %v2680 = vand.u32 %v182, 4294901760
        %v2681 = vsub.f32 %v182, %v2680
        %2682 = vmatpush1.msra.mxu0 %v2681
        %2683 = vmatprep.subr.mxu0 0.0
        %2684 = vmatpush1.msra.mxu0 0.0
        %2685 = vmatprep.subr.mxu0 0.0
        %2686 = vmatpush1.msra.mxu0 0.0
        %2687 = vmatprep.subr.mxu0 0.0
        %2688 = vmatpush1.msra.mxu0 0.0
        %2689 = vmatprep.subr.mxu0 0.0
        %2690 = vmatpush1.msra.mxu0 0.0
        %2691 = vmatprep.subr.mxu0 0.0
        %2692 = vmatpush1.msra.mxu0 0.0
        %2693 = vmatprep.subr.mxu0 0.0
        %2694 = vmatpush1.msra.mxu0 0.0
        %2695 = vmatprep.subr.mxu0 0.0
        %2696 = vmatpush1.msra.mxu0 0.0
        %2697 = vmatprep.subr.mxu0 0.0
        %2698 = vmatpush1.msra.mxu0 0.0
        %2699 = vmatprep.subr.mxu0 0.0
        %2700 = vmatpush1.msra.mxu0 0.0
        %2701 = vmatprep.subr.mxu0 0.0
        %2702 = vmatpush1.msra.mxu0 0.0
        %2703 = vmatprep.subr.mxu0 0.0
        %2704 = vmatpush1.msra.mxu0 0.0
        %2705 = vmatprep.subr.mxu0 0.0
        %2706 = vmatpush1.msra.mxu0 0.0
        %2707 = vmatprep.subr.mxu0 0.0
        %2708 = vmatpush1.msra.mxu0 0.0
        %2709 = vmatprep.subr.mxu0 0.0
        %2710 = vmatpush1.msra.mxu0 0.0
        %2711 = vmatprep.subr.mxu0 0.0
        %2712 = vmatpush1.msra.mxu0 0.0
        %2713 = vmatprep.subr.mxu0 0.0
        %2714 = vmatpush1.msra.mxu0 0.0
        %2715 = vmatprep.mubr.f32.mxu0 0.0
        %v2716 = vand.u32 %v761, 4294901760
        %v2717 = vsub.f32 %v761, %v2716
        %2718 = vmatmul.mubr.f32.gmra.mrb[0].mxu0 %v2717
        %v2719 = vpop.f32.mrb[0].mxu0
        %v2720 = vadd.f32 %v2046, %v2719
        %v2721 = vpop.f32.mrb[0].mxu0
        %2722 = vmatprep.mubr.f32.mxu0 0.0
        %v2723 = vand.u32 %v762, 4294901760
        %v2724 = vsub.f32 %v762, %v2723
        %2725 = vmatmul.mubr.f32.gmra.mrb[0].mxu0 %v2724
        %v2726 = vpop.f32.mrb[0].mxu0
        %v2727 = vadd.f32 %v2052, %v2726
        %v2728 = vpop.f32.mrb[0].mxu0
        %2729 = vmatprep.mubr.f32.mxu0 0.0
        %v2730 = vand.u32 %v763, 4294901760
        %v2731 = vsub.f32 %v763, %v2730
        %2732 = vmatmul.mubr.f32.gmra.mrb[0].mxu0 %v2731
        %v2733 = vpop.f32.mrb[0].mxu0
        %v2734 = vadd.f32 %v2058, %v2733
        %v2735 = vpop.f32.mrb[0].mxu0
        %2736 = vmatprep.mubr.f32.mxu0 0.0
        %v2737 = vand.u32 %v764, 4294901760
        %v2738 = vsub.f32 %v764, %v2737
        %2739 = vmatmul.mubr.f32.gmra.mrb[0].mxu0 %v2738
        %v2740 = vpop.f32.mrb[0].mxu0
        %v2741 = vadd.f32 %v2064, %v2740
        %v2742 = vpop.f32.mrb[0].mxu0
        %2743 = vmatprep.mubr.f32.mxu0 0.0
        %v2744 = vand.u32 %v765, 4294901760
        %v2745 = vsub.f32 %v765, %v2744
        %2746 = vmatmul.mubr.f32.gmra.mrb[0].mxu0 %v2745
        %v2747 = vpop.f32.mrb[0].mxu0
        %v2748 = vadd.f32 %v2070, %v2747
        %v2749 = vpop.f32.mrb[0].mxu0
        %2750 = vmatprep.mubr.f32.mxu0 0.0
        %v2751 = vand.u32 %v766, 4294901760
        %v2752 = vsub.f32 %v766, %v2751
        %2753 = vmatmul.mubr.f32.gmra.mrb[0].mxu0 %v2752
        %v2754 = vpop.f32.mrb[0].mxu0
        %v2755 = vadd.f32 %v2076, %v2754
        %v2756 = vpop.f32.mrb[0].mxu0
        %2757 = vmatprep.mubr.f32.mxu0 0.0
        %v2758 = vand.u32 %v767, 4294901760
        %v2759 = vsub.f32 %v767, %v2758
        %2760 = vmatmul.mubr.f32.gmra.mrb[0].mxu0 %v2759
        %v2761 = vpop.f32.mrb[0].mxu0
        %v2762 = vadd.f32 %v2082, %v2761
        %v2763 = vpop.f32.mrb[0].mxu0
        %2764 = vmatprep.mubr.f32.mxu0 0.0
        %v2765 = vand.u32 %v768, 4294901760
        %v2766 = vsub.f32 %v768, %v2765
        %2767 = vmatmul.mubr.f32.gmra.mrb[0].mxu0 %v2766
        %v2768 = vpop.f32.mrb[0].mxu0
        %v2769 = vadd.f32 %v2088, %v2768
        %v2770 = vpop.f32.mrb[0].mxu0
        %2771 = vmatprep.mubr.f32.mxu0 0.0
        %v2772 = vand.u32 %v769, 4294901760
        %v2773 = vsub.f32 %v769, %v2772
        %2774 = vmatmul.mubr.f32.gmra.mrb[0].mxu0 %v2773
        %v2775 = vpop.f32.mrb[0].mxu0
        %v2776 = vadd.f32 %v2094, %v2775
        %v2777 = vpop.f32.mrb[0].mxu0
        %2778 = vmatprep.mubr.f32.mxu0 0.0
        %v2779 = vand.u32 %v770, 4294901760
        %v2780 = vsub.f32 %v770, %v2779
        %2781 = vmatmul.mubr.f32.gmra.mrb[0].mxu0 %v2780
        %v2782 = vpop.f32.mrb[0].mxu0
        %v2783 = vadd.f32 %v2100, %v2782
        %v2784 = vpop.f32.mrb[0].mxu0
        %2785 = vmatprep.mubr.f32.mxu0 0.0
        %v2786 = vand.u32 %v771, 4294901760
        %v2787 = vsub.f32 %v771, %v2786
        %2788 = vmatmul.mubr.f32.gmra.mrb[0].mxu0 %v2787
        %v2789 = vpop.f32.mrb[0].mxu0
        %v2790 = vadd.f32 %v2106, %v2789
        %v2791 = vpop.f32.mrb[0].mxu0
        %2792 = vmatprep.mubr.f32.mxu0 0.0
        %v2793 = vand.u32 %v772, 4294901760
        %v2794 = vsub.f32 %v772, %v2793
        %2795 = vmatmul.mubr.f32.gmra.mrb[0].mxu0 %v2794
        %v2796 = vpop.f32.mrb[0].mxu0
        %v2797 = vadd.f32 %v2112, %v2796
        %v2798 = vpop.f32.mrb[0].mxu0
        %2799 = vmatprep.mubr.f32.mxu0 0.0
        %v2800 = vand.u32 %v773, 4294901760
        %v2801 = vsub.f32 %v773, %v2800
        %2802 = vmatmul.mubr.f32.gmra.mrb[0].mxu0 %v2801
        %v2803 = vpop.f32.mrb[0].mxu0
        %v2804 = vadd.f32 %v2118, %v2803
        %v2805 = vpop.f32.mrb[0].mxu0
        %2806 = vmatprep.mubr.f32.mxu0 0.0
        %v2807 = vand.u32 %v774, 4294901760
        %v2808 = vsub.f32 %v774, %v2807
        %2809 = vmatmul.mubr.f32.gmra.mrb[0].mxu0 %v2808
        %v2810 = vpop.f32.mrb[0].mxu0
        %v2811 = vadd.f32 %v2124, %v2810
        %v2812 = vpop.f32.mrb[0].mxu0
        %2813 = vmatprep.mubr.f32.mxu0 0.0
        %v2814 = vand.u32 %v775, 4294901760
        %v2815 = vsub.f32 %v775, %v2814
        %2816 = vmatmul.mubr.f32.gmra.mrb[0].mxu0 %v2815
        %v2817 = vpop.f32.mrb[0].mxu0
        %v2818 = vadd.f32 %v2130, %v2817
        %v2819 = vpop.f32.mrb[0].mxu0
        %2820 = vmatprep.mubr.f32.mxu0 0.0
        %v2821 = vand.u32 %v776, 4294901760
        %v2822 = vsub.f32 %v776, %v2821
        %2823 = vmatmul.mubr.f32.gmra.mrb[0].mxu0 %v2822
        %v2824 = vpop.f32.mrb[0].mxu0
        %v2825 = vadd.f32 %v2136, %v2824
        %v2826 = vpop.f32.mrb[0].mxu0
        %2827 = vmatprep.mubr.f32.mxu0 0.0
        %v2828 = vand.u32 %v777, 4294901760
        %v2829 = vsub.f32 %v777, %v2828
        %2830 = vmatmul.mubr.f32.gmra.mrb[0].mxu0 %v2829
        %v2831 = vpop.f32.mrb[0].mxu0
        %v2832 = vadd.f32 %v2142, %v2831
        %v2833 = vpop.f32.mrb[0].mxu0
        %2834 = vmatprep.mubr.f32.mxu0 0.0
        %v2835 = vand.u32 %v778, 4294901760
        %v2836 = vsub.f32 %v778, %v2835
        %2837 = vmatmul.mubr.f32.gmra.mrb[0].mxu0 %v2836
        %v2838 = vpop.f32.mrb[0].mxu0
        %v2839 = vadd.f32 %v2148, %v2838
        %v2840 = vpop.f32.mrb[0].mxu0
        %2841 = vmatprep.mubr.f32.mxu0 0.0
        %v2842 = vand.u32 %v779, 4294901760
        %v2843 = vsub.f32 %v779, %v2842
        %2844 = vmatmul.mubr.f32.gmra.mrb[0].mxu0 %v2843
        %v2845 = vpop.f32.mrb[0].mxu0
        %v2846 = vadd.f32 %v2154, %v2845
        %v2847 = vpop.f32.mrb[0].mxu0
        %2848 = vmatprep.mubr.f32.mxu0 0.0
        %v2849 = vand.u32 %v780, 4294901760
        %v2850 = vsub.f32 %v780, %v2849
        %2851 = vmatmul.mubr.f32.gmra.mrb[0].mxu0 %v2850
        %v2852 = vpop.f32.mrb[0].mxu0
        %v2853 = vadd.f32 %v2160, %v2852
        %v2854 = vpop.f32.mrb[0].mxu0
        %2855 = vmatprep.mubr.f32.mxu0 0.0
        %v2856 = vand.u32 %v781, 4294901760
        %v2857 = vsub.f32 %v781, %v2856
        %2858 = vmatmul.mubr.f32.gmra.mrb[0].mxu0 %v2857
        %v2859 = vpop.f32.mrb[0].mxu0
        %v2860 = vadd.f32 %v2166, %v2859
        %v2861 = vpop.f32.mrb[0].mxu0
        %2862 = vmatprep.mubr.f32.mxu0 0.0
        %v2863 = vand.u32 %v782, 4294901760
        %v2864 = vsub.f32 %v782, %v2863
        %2865 = vmatmul.mubr.f32.gmra.mrb[0].mxu0 %v2864
        %v2866 = vpop.f32.mrb[0].mxu0
        %v2867 = vadd.f32 %v2172, %v2866
        %v2868 = vpop.f32.mrb[0].mxu0
        %2869 = vmatprep.mubr.f32.mxu0 0.0
        %v2870 = vand.u32 %v783, 4294901760
        %v2871 = vsub.f32 %v783, %v2870
        %2872 = vmatmul.mubr.f32.gmra.mrb[0].mxu0 %v2871
        %v2873 = vpop.f32.mrb[0].mxu0
        %v2874 = vadd.f32 %v2178, %v2873
        %v2875 = vpop.f32.mrb[0].mxu0
        %2876 = vmatprep.mubr.f32.mxu0 0.0
        %v2877 = vand.u32 %v784, 4294901760
        %v2878 = vsub.f32 %v784, %v2877
        %2879 = vmatmul.mubr.f32.gmra.mrb[0].mxu0 %v2878
        %v2880 = vpop.f32.mrb[0].mxu0
        %v2881 = vadd.f32 %v2184, %v2880
        %v2882 = vpop.f32.mrb[0].mxu0
        %2883 = vmatprep.mubr.f32.mxu0 0.0
        %v2884 = vand.u32 %v785, 4294901760
        %v2885 = vsub.f32 %v785, %v2884
        %2886 = vmatmul.mubr.f32.gmra.mrb[0].mxu0 %v2885
        %v2887 = vpop.f32.mrb[0].mxu0
        %v2888 = vadd.f32 %v2190, %v2887
        %v2889 = vpop.f32.mrb[0].mxu0
        %2890 = vmatprep.mubr.f32.mxu0 0.0
        %v2891 = vand.u32 %v786, 4294901760
        %v2892 = vsub.f32 %v786, %v2891
        %2893 = vmatmul.mubr.f32.gmra.mrb[0].mxu0 %v2892
        %v2894 = vpop.f32.mrb[0].mxu0
        %v2895 = vadd.f32 %v2196, %v2894
        %v2896 = vpop.f32.mrb[0].mxu0
        %2897 = vmatprep.mubr.f32.mxu0 0.0
        %v2898 = vand.u32 %v787, 4294901760
        %v2899 = vsub.f32 %v787, %v2898
        %2900 = vmatmul.mubr.f32.gmra.mrb[0].mxu0 %v2899
        %v2901 = vpop.f32.mrb[0].mxu0
        %v2902 = vadd.f32 %v2202, %v2901
        %v2903 = vpop.f32.mrb[0].mxu0
        %2904 = vmatprep.mubr.f32.mxu0 0.0
        %v2905 = vand.u32 %v788, 4294901760
        %v2906 = vsub.f32 %v788, %v2905
        %2907 = vmatmul.mubr.f32.gmra.mrb[0].mxu0 %v2906
        %v2908 = vpop.f32.mrb[0].mxu0
        %v2909 = vadd.f32 %v2208, %v2908
        %v2910 = vpop.f32.mrb[0].mxu0
        %2911 = vmatprep.mubr.f32.mxu0 0.0
        %v2912 = vand.u32 %v789, 4294901760
        %v2913 = vsub.f32 %v789, %v2912
        %2914 = vmatmul.mubr.f32.gmra.mrb[0].mxu0 %v2913
        %v2915 = vpop.f32.mrb[0].mxu0
        %v2916 = vadd.f32 %v2214, %v2915
        %v2917 = vpop.f32.mrb[0].mxu0
        %2918 = vmatprep.mubr.f32.mxu0 0.0
        %v2919 = vand.u32 %v790, 4294901760
        %v2920 = vsub.f32 %v790, %v2919
        %2921 = vmatmul.mubr.f32.gmra.mrb[0].mxu0 %v2920
        %v2922 = vpop.f32.mrb[0].mxu0
        %v2923 = vadd.f32 %v2220, %v2922
        %v2924 = vpop.f32.mrb[0].mxu0
        %2925 = vmatprep.mubr.f32.mxu0 0.0
        %v2926 = vand.u32 %v791, 4294901760
        %v2927 = vsub.f32 %v791, %v2926
        %2928 = vmatmul.mubr.f32.gmra.mrb[0].mxu0 %v2927
        %v2929 = vpop.f32.mrb[0].mxu0
        %v2930 = vadd.f32 %v2226, %v2929
        %v2931 = vpop.f32.mrb[0].mxu0
        %2932 = vmatprep.mubr.f32.mxu0 0.0
        %v2933 = vand.u32 %v792, 4294901760
        %v2934 = vsub.f32 %v792, %v2933
        %2935 = vmatmul.mubr.f32.gmra.mrb[0].mxu0 %v2934
        %v2936 = vpop.f32.mrb[0].mxu0
        %v2937 = vadd.f32 %v2232, %v2936
        %v2938 = vpop.f32.mrb[0].mxu0
        %2939 = vmatprep.mubr.f32.mxu0 0.0
        %v2940 = vand.u32 %v793, 4294901760
        %v2941 = vsub.f32 %v793, %v2940
        %2942 = vmatmul.mubr.f32.gmra.mrb[0].mxu0 %v2941
        %v2943 = vpop.f32.mrb[0].mxu0
        %v2944 = vadd.f32 %v2238, %v2943
        %v2945 = vpop.f32.mrb[0].mxu0
        %2946 = vmatprep.mubr.f32.mxu0 0.0
        %v2947 = vand.u32 %v794, 4294901760
        %v2948 = vsub.f32 %v794, %v2947
        %2949 = vmatmul.mubr.f32.gmra.mrb[0].mxu0 %v2948
        %v2950 = vpop.f32.mrb[0].mxu0
        %v2951 = vadd.f32 %v2244, %v2950
        %v2952 = vpop.f32.mrb[0].mxu0
        %2953 = vmatprep.mubr.f32.mxu0 0.0
        %v2954 = vand.u32 %v795, 4294901760
        %v2955 = vsub.f32 %v795, %v2954
        %2956 = vmatmul.mubr.f32.gmra.mrb[0].mxu0 %v2955
        %v2957 = vpop.f32.mrb[0].mxu0
        %v2958 = vadd.f32 %v2250, %v2957
        %v2959 = vpop.f32.mrb[0].mxu0
        %2960 = vmatprep.mubr.f32.mxu0 0.0
        %v2961 = vand.u32 %v796, 4294901760
        %v2962 = vsub.f32 %v796, %v2961
        %2963 = vmatmul.mubr.f32.gmra.mrb[0].mxu0 %v2962
        %v2964 = vpop.f32.mrb[0].mxu0
        %v2965 = vadd.f32 %v2256, %v2964
        %v2966 = vpop.f32.mrb[0].mxu0
        %2967 = vmatprep.mubr.f32.mxu0 0.0
        %v2968 = vand.u32 %v797, 4294901760
        %v2969 = vsub.f32 %v797, %v2968
        %2970 = vmatmul.mubr.f32.gmra.mrb[0].mxu0 %v2969
        %v2971 = vpop.f32.mrb[0].mxu0
        %v2972 = vadd.f32 %v2262, %v2971
        %v2973 = vpop.f32.mrb[0].mxu0
        %2974 = vmatprep.mubr.f32.mxu0 0.0
        %v2975 = vand.u32 %v798, 4294901760
        %v2976 = vsub.f32 %v798, %v2975
        %2977 = vmatmul.mubr.f32.gmra.mrb[0].mxu0 %v2976
        %v2978 = vpop.f32.mrb[0].mxu0
        %v2979 = vadd.f32 %v2268, %v2978
        %v2980 = vpop.f32.mrb[0].mxu0
        %2981 = vmatprep.mubr.f32.mxu0 0.0
        %v2982 = vand.u32 %v799, 4294901760
        %v2983 = vsub.f32 %v799, %v2982
        %2984 = vmatmul.mubr.f32.gmra.mrb[0].mxu0 %v2983
        %v2985 = vpop.f32.mrb[0].mxu0
        %v2986 = vadd.f32 %v2274, %v2985
        %v2987 = vpop.f32.mrb[0].mxu0
        %2988 = vmatprep.mubr.f32.mxu0 0.0
        %v2989 = vand.u32 %v800, 4294901760
        %v2990 = vsub.f32 %v800, %v2989
        %2991 = vmatmul.mubr.f32.gmra.mrb[0].mxu0 %v2990
        %v2992 = vpop.f32.mrb[0].mxu0
        %v2993 = vadd.f32 %v2280, %v2992
        %v2994 = vpop.f32.mrb[0].mxu0
        %2995 = vmatprep.mubr.f32.mxu0 0.0
        %v2996 = vand.u32 %v801, 4294901760
        %v2997 = vsub.f32 %v801, %v2996
        %2998 = vmatmul.mubr.f32.gmra.mrb[0].mxu0 %v2997
        %v2999 = vpop.f32.mrb[0].mxu0
        %v3000 = vadd.f32 %v2286, %v2999
        %v3001 = vpop.f32.mrb[0].mxu0
        %3002 = vmatprep.mubr.f32.mxu0 0.0
        %v3003 = vand.u32 %v802, 4294901760
        %v3004 = vsub.f32 %v802, %v3003
        %3005 = vmatmul.mubr.f32.gmra.mrb[0].mxu0 %v3004
        %v3006 = vpop.f32.mrb[0].mxu0
        %v3007 = vadd.f32 %v2292, %v3006
        %v3008 = vpop.f32.mrb[0].mxu0
        %3009 = vmatprep.mubr.f32.mxu0 0.0
        %v3010 = vand.u32 %v803, 4294901760
        %v3011 = vsub.f32 %v803, %v3010
        %3012 = vmatmul.mubr.f32.gmra.mrb[0].mxu0 %v3011
        %v3013 = vpop.f32.mrb[0].mxu0
        %v3014 = vadd.f32 %v2298, %v3013
        %v3015 = vpop.f32.mrb[0].mxu0
        %3016 = vmatprep.mubr.f32.mxu0 0.0
        %v3017 = vand.u32 %v804, 4294901760
        %v3018 = vsub.f32 %v804, %v3017
        %3019 = vmatmul.mubr.f32.gmra.mrb[0].mxu0 %v3018
        %v3020 = vpop.f32.mrb[0].mxu0
        %v3021 = vadd.f32 %v2304, %v3020
        %v3022 = vpop.f32.mrb[0].mxu0
        %3023 = vmatprep.mubr.f32.mxu0 0.0
        %v3024 = vand.u32 %v805, 4294901760
        %v3025 = vsub.f32 %v805, %v3024
        %3026 = vmatmul.mubr.f32.gmra.mrb[0].mxu0 %v3025
        %v3027 = vpop.f32.mrb[0].mxu0
        %v3028 = vadd.f32 %v2310, %v3027
        %v3029 = vpop.f32.mrb[0].mxu0
        %3030 = vmatprep.mubr.f32.mxu0 0.0
        %v3031 = vand.u32 %v806, 4294901760
        %v3032 = vsub.f32 %v806, %v3031
        %3033 = vmatmul.mubr.f32.gmra.mrb[0].mxu0 %v3032
        %v3034 = vpop.f32.mrb[0].mxu0
        %v3035 = vadd.f32 %v2316, %v3034
        %v3036 = vpop.f32.mrb[0].mxu0
        %3037 = vmatprep.mubr.f32.mxu0 0.0
        %v3038 = vand.u32 %v807, 4294901760
        %v3039 = vsub.f32 %v807, %v3038
        %3040 = vmatmul.mubr.f32.gmra.mrb[0].mxu0 %v3039
        %v3041 = vpop.f32.mrb[0].mxu0
        %v3042 = vadd.f32 %v2322, %v3041
        %v3043 = vpop.f32.mrb[0].mxu0
        %3044 = vmatprep.mubr.f32.mxu0 0.0
        %v3045 = vand.u32 %v808, 4294901760
        %v3046 = vsub.f32 %v808, %v3045
        %3047 = vmatmul.mubr.f32.gmra.mrb[0].mxu0 %v3046
        %v3048 = vpop.f32.mrb[0].mxu0
        %v3049 = vadd.f32 %v2328, %v3048
        %v3050 = vpop.f32.mrb[0].mxu0
        %3051 = vmatprep.mubr.f32.mxu0 0.0
        %v3052 = vand.u32 %v809, 4294901760
        %v3053 = vsub.f32 %v809, %v3052
        %3054 = vmatmul.mubr.f32.gmra.mrb[0].mxu0 %v3053
        %v3055 = vpop.f32.mrb[0].mxu0
        %v3056 = vadd.f32 %v2334, %v3055
        %v3057 = vpop.f32.mrb[0].mxu0
        %3058 = vmatprep.mubr.f32.mxu0 0.0
        %v3059 = vand.u32 %v810, 4294901760
        %v3060 = vsub.f32 %v810, %v3059
        %3061 = vmatmul.mubr.f32.gmra.mrb[0].mxu0 %v3060
        %v3062 = vpop.f32.mrb[0].mxu0
        %v3063 = vadd.f32 %v2340, %v3062
        %v3064 = vpop.f32.mrb[0].mxu0
        %3065 = vmatprep.mubr.f32.mxu0 0.0
        %v3066 = vand.u32 %v811, 4294901760
        %v3067 = vsub.f32 %v811, %v3066
        %3068 = vmatmul.mubr.f32.gmra.mrb[0].mxu0 %v3067
        %v3069 = vpop.f32.mrb[0].mxu0
        %v3070 = vadd.f32 %v2346, %v3069
        %v3071 = vpop.f32.mrb[0].mxu0
        %3072 = vmatprep.mubr.f32.mxu0 0.0
        %v3073 = vand.u32 %v812, 4294901760
        %v3074 = vsub.f32 %v812, %v3073
        %3075 = vmatmul.mubr.f32.gmra.mrb[0].mxu0 %v3074
        %v3076 = vpop.f32.mrb[0].mxu0
        %v3077 = vadd.f32 %v2352, %v3076
        %v3078 = vpop.f32.mrb[0].mxu0
        %3079 = vmatprep.mubr.f32.mxu0 0.0
        %v3080 = vand.u32 %v813, 4294901760
        %v3081 = vsub.f32 %v813, %v3080
        %3082 = vmatmul.mubr.f32.gmra.mrb[0].mxu0 %v3081
        %v3083 = vpop.f32.mrb[0].mxu0
        %v3084 = vadd.f32 %v2358, %v3083
        %v3085 = vpop.f32.mrb[0].mxu0
        %3086 = vmatprep.mubr.f32.mxu0 0.0
        %v3087 = vand.u32 %v814, 4294901760
        %v3088 = vsub.f32 %v814, %v3087
        %3089 = vmatmul.mubr.f32.gmra.mrb[0].mxu0 %v3088
        %v3090 = vpop.f32.mrb[0].mxu0
        %v3091 = vadd.f32 %v2364, %v3090
        %v3092 = vpop.f32.mrb[0].mxu0
        %3093 = vmatprep.mubr.f32.mxu0 0.0
        %v3094 = vand.u32 %v815, 4294901760
        %v3095 = vsub.f32 %v815, %v3094
        %3096 = vmatmul.mubr.f32.gmra.mrb[0].mxu0 %v3095
        %v3097 = vpop.f32.mrb[0].mxu0
        %v3098 = vadd.f32 %v2370, %v3097
        %v3099 = vpop.f32.mrb[0].mxu0
        %3100 = vmatprep.mubr.f32.mxu0 0.0
        %v3101 = vand.u32 %v816, 4294901760
        %v3102 = vsub.f32 %v816, %v3101
        %3103 = vmatmul.mubr.f32.gmra.mrb[0].mxu0 %v3102
        %v3104 = vpop.f32.mrb[0].mxu0
        %v3105 = vadd.f32 %v2376, %v3104
        %v3106 = vpop.f32.mrb[0].mxu0
        %3107 = vmatprep.mubr.f32.mxu0 0.0
        %v3108 = vand.u32 %v817, 4294901760
        %v3109 = vsub.f32 %v817, %v3108
        %3110 = vmatmul.mubr.f32.gmra.mrb[0].mxu0 %v3109
        %v3111 = vpop.f32.mrb[0].mxu0
        %v3112 = vadd.f32 %v2382, %v3111
        %v3113 = vpop.f32.mrb[0].mxu0
        %3114 = vmatprep.mubr.f32.mxu0 0.0
        %v3115 = vand.u32 %v818, 4294901760
        %v3116 = vsub.f32 %v818, %v3115
        %3117 = vmatmul.mubr.f32.gmra.mrb[0].mxu0 %v3116
        %v3118 = vpop.f32.mrb[0].mxu0
        %v3119 = vadd.f32 %v2388, %v3118
        %v3120 = vpop.f32.mrb[0].mxu0
        %3121 = vmatprep.mubr.f32.mxu0 0.0
        %v3122 = vand.u32 %v819, 4294901760
        %v3123 = vsub.f32 %v819, %v3122
        %3124 = vmatmul.mubr.f32.gmra.mrb[0].mxu0 %v3123
        %v3125 = vpop.f32.mrb[0].mxu0
        %v3126 = vadd.f32 %v2394, %v3125
        %v3127 = vpop.f32.mrb[0].mxu0
        %3128 = vmatprep.mubr.f32.mxu0 0.0
        %v3129 = vand.u32 %v820, 4294901760
        %v3130 = vsub.f32 %v820, %v3129
        %3131 = vmatmul.mubr.f32.gmra.mrb[0].mxu0 %v3130
        %v3132 = vpop.f32.mrb[0].mxu0
        %v3133 = vadd.f32 %v2400, %v3132
        %v3134 = vpop.f32.mrb[0].mxu0
        %3135 = vmatprep.mubr.f32.mxu0 0.0
        %v3136 = vand.u32 %v821, 4294901760
        %v3137 = vsub.f32 %v821, %v3136
        %3138 = vmatmul.mubr.f32.gmra.mrb[0].mxu0 %v3137
        %v3139 = vpop.f32.mrb[0].mxu0
        %v3140 = vadd.f32 %v2406, %v3139
        %v3141 = vpop.f32.mrb[0].mxu0
        %3142 = vmatprep.mubr.f32.mxu0 0.0
        %v3143 = vand.u32 %v822, 4294901760
        %v3144 = vsub.f32 %v822, %v3143
        %3145 = vmatmul.mubr.f32.gmra.mrb[0].mxu0 %v3144
        %v3146 = vpop.f32.mrb[0].mxu0
        %v3147 = vadd.f32 %v2412, %v3146
        %v3148 = vpop.f32.mrb[0].mxu0
        %3149 = vmatprep.mubr.f32.mxu0 0.0
        %v3150 = vand.u32 %v823, 4294901760
        %v3151 = vsub.f32 %v823, %v3150
        %3152 = vmatmul.mubr.f32.gmra.mrb[0].mxu0 %v3151
        %v3153 = vpop.f32.mrb[0].mxu0
        %v3154 = vadd.f32 %v2418, %v3153
        %v3155 = vpop.f32.mrb[0].mxu0
        %3156 = vmatprep.mubr.f32.mxu0 0.0
        %v3157 = vand.u32 %v824, 4294901760
        %v3158 = vsub.f32 %v824, %v3157
        %3159 = vmatmul.mubr.f32.gmra.mrb[0].mxu0 %v3158
        %v3160 = vpop.f32.mrb[0].mxu0
        %v3161 = vadd.f32 %v2424, %v3160
        %v3162 = vpop.f32.mrb[0].mxu0
        %3163 = vmatprep.mubr.f32.mxu0 0.0
        %v3164 = vand.u32 %v825, 4294901760
        %v3165 = vsub.f32 %v825, %v3164
        %3166 = vmatmul.mubr.f32.gmra.mrb[0].mxu0 %v3165
        %v3167 = vpop.f32.mrb[0].mxu0
        %v3168 = vadd.f32 %v2430, %v3167
        %v3169 = vpop.f32.mrb[0].mxu0
        %3170 = vmatprep.mubr.f32.mxu0 0.0
        %v3171 = vand.u32 %v826, 4294901760
        %v3172 = vsub.f32 %v826, %v3171
        %3173 = vmatmul.mubr.f32.gmra.mrb[0].mxu0 %v3172
        %v3174 = vpop.f32.mrb[0].mxu0
        %v3175 = vadd.f32 %v2436, %v3174
        %v3176 = vpop.f32.mrb[0].mxu0
        %3177 = vmatprep.mubr.f32.mxu0 0.0
        %v3178 = vand.u32 %v827, 4294901760
        %v3179 = vsub.f32 %v827, %v3178
        %3180 = vmatmul.mubr.f32.gmra.mrb[0].mxu0 %v3179
        %v3181 = vpop.f32.mrb[0].mxu0
        %v3182 = vadd.f32 %v2442, %v3181
        %v3183 = vpop.f32.mrb[0].mxu0
        %3184 = vmatprep.mubr.f32.mxu0 0.0
        %v3185 = vand.u32 %v828, 4294901760
        %v3186 = vsub.f32 %v828, %v3185
        %3187 = vmatmul.mubr.f32.gmra.mrb[0].mxu0 %v3186
        %v3188 = vpop.f32.mrb[0].mxu0
        %v3189 = vadd.f32 %v2448, %v3188
        %v3190 = vpop.f32.mrb[0].mxu0
        %3191 = vmatprep.mubr.f32.mxu0 0.0
        %v3192 = vand.u32 %v829, 4294901760
        %v3193 = vsub.f32 %v829, %v3192
        %3194 = vmatmul.mubr.f32.gmra.mrb[0].mxu0 %v3193
        %v3195 = vpop.f32.mrb[0].mxu0
        %v3196 = vadd.f32 %v2454, %v3195
        %v3197 = vpop.f32.mrb[0].mxu0
        %3198 = vmatprep.mubr.f32.mxu0 0.0
        %v3199 = vand.u32 %v830, 4294901760
        %v3200 = vsub.f32 %v830, %v3199
        %3201 = vmatmul.mubr.f32.gmra.mrb[0].mxu0 %v3200
        %v3202 = vpop.f32.mrb[0].mxu0
        %v3203 = vadd.f32 %v2460, %v3202
        %v3204 = vpop.f32.mrb[0].mxu0
        %3205 = vmatprep.mubr.f32.mxu0 0.0
        %v3206 = vand.u32 %v831, 4294901760
        %v3207 = vsub.f32 %v831, %v3206
        %3208 = vmatmul.mubr.f32.gmra.mrb[0].mxu0 %v3207
        %v3209 = vpop.f32.mrb[0].mxu0
        %v3210 = vadd.f32 %v2466, %v3209
        %v3211 = vpop.f32.mrb[0].mxu0
        %3212 = vmatprep.mubr.f32.mxu0 0.0
        %v3213 = vand.u32 %v832, 4294901760
        %v3214 = vsub.f32 %v832, %v3213
        %3215 = vmatmul.mubr.f32.gmra.mrb[0].mxu0 %v3214
        %v3216 = vpop.f32.mrb[0].mxu0
        %v3217 = vadd.f32 %v2472, %v3216
        %v3218 = vpop.f32.mrb[0].mxu0
        %3219 = vmatprep.mubr.f32.mxu0 0.0
        %v3220 = vand.u32 %v833, 4294901760
        %v3221 = vsub.f32 %v833, %v3220
        %3222 = vmatmul.mubr.f32.gmra.mrb[0].mxu0 %v3221
        %v3223 = vpop.f32.mrb[0].mxu0
        %v3224 = vadd.f32 %v2478, %v3223
        %v3225 = vpop.f32.mrb[0].mxu0
        %3226 = vmatprep.mubr.f32.mxu0 0.0
        %v3227 = vand.u32 %v834, 4294901760
        %v3228 = vsub.f32 %v834, %v3227
        %3229 = vmatmul.mubr.f32.gmra.mrb[0].mxu0 %v3228
        %v3230 = vpop.f32.mrb[0].mxu0
        %v3231 = vadd.f32 %v2484, %v3230
        %v3232 = vpop.f32.mrb[0].mxu0
        %3233 = vmatprep.mubr.f32.mxu0 0.0
        %v3234 = vand.u32 %v835, 4294901760
        %v3235 = vsub.f32 %v835, %v3234
        %3236 = vmatmul.mubr.f32.gmra.mrb[0].mxu0 %v3235
        %v3237 = vpop.f32.mrb[0].mxu0
        %v3238 = vadd.f32 %v2490, %v3237
        %v3239 = vpop.f32.mrb[0].mxu0
        %3240 = vmatprep.mubr.f32.mxu0 0.0
        %v3241 = vand.u32 %v836, 4294901760
        %v3242 = vsub.f32 %v836, %v3241
        %3243 = vmatmul.mubr.f32.gmra.mrb[0].mxu0 %v3242
        %v3244 = vpop.f32.mrb[0].mxu0
        %v3245 = vadd.f32 %v2496, %v3244
        %v3246 = vpop.f32.mrb[0].mxu0
        %3247 = vmatprep.mubr.f32.mxu0 0.0
        %v3248 = vand.u32 %v837, 4294901760
        %v3249 = vsub.f32 %v837, %v3248
        %3250 = vmatmul.mubr.f32.gmra.mrb[0].mxu0 %v3249
        %v3251 = vpop.f32.mrb[0].mxu0
        %v3252 = vadd.f32 %v2502, %v3251
        %v3253 = vpop.f32.mrb[0].mxu0
        %3254 = vmatprep.mubr.f32.mxu0 0.0
        %v3255 = vand.u32 %v838, 4294901760
        %v3256 = vsub.f32 %v838, %v3255
        %3257 = vmatmul.mubr.f32.gmra.mrb[0].mxu0 %v3256
        %v3258 = vpop.f32.mrb[0].mxu0
        %v3259 = vadd.f32 %v2508, %v3258
        %v3260 = vpop.f32.mrb[0].mxu0
        %3261 = vmatprep.mubr.f32.mxu0 0.0
        %v3262 = vand.u32 %v839, 4294901760
        %v3263 = vsub.f32 %v839, %v3262
        %3264 = vmatmul.mubr.f32.gmra.mrb[0].mxu0 %v3263
        %v3265 = vpop.f32.mrb[0].mxu0
        %v3266 = vadd.f32 %v2514, %v3265
        %v3267 = vpop.f32.mrb[0].mxu0
        %3268 = vmatprep.mubr.f32.mxu0 0.0
        %v3269 = vand.u32 %v840, 4294901760
        %v3270 = vsub.f32 %v840, %v3269
        %3271 = vmatmul.mubr.f32.gmra.mrb[0].mxu0 %v3270
        %v3272 = vpop.f32.mrb[0].mxu0
        %v3273 = vadd.f32 %v2520, %v3272
        %v3274 = vpop.f32.mrb[0].mxu0
        %3275 = vmatprep.mubr.f32.mxu0 0.0
        %v3276 = vand.u32 %v841, 4294901760
        %v3277 = vsub.f32 %v841, %v3276
        %3278 = vmatmul.mubr.f32.gmra.mrb[0].mxu0 %v3277
        %v3279 = vpop.f32.mrb[0].mxu0
        %v3280 = vadd.f32 %v2526, %v3279
        %v3281 = vpop.f32.mrb[0].mxu0
        %3282 = vmatprep.mubr.f32.mxu0 0.0
        %v3283 = vand.u32 %v842, 4294901760
        %v3284 = vsub.f32 %v842, %v3283
        %3285 = vmatmul.mubr.f32.gmra.mrb[0].mxu0 %v3284
        %v3286 = vpop.f32.mrb[0].mxu0
        %v3287 = vadd.f32 %v2532, %v3286
        %v3288 = vpop.f32.mrb[0].mxu0
        %3289 = vmatprep.mubr.f32.mxu0 0.0
        %v3290 = vand.u32 %v843, 4294901760
        %v3291 = vsub.f32 %v843, %v3290
        %3292 = vmatmul.mubr.f32.gmra.mrb[0].mxu0 %v3291
        %v3293 = vpop.f32.mrb[0].mxu0
        %v3294 = vadd.f32 %v2538, %v3293
        %v3295 = vpop.f32.mrb[0].mxu0
        %3296 = vmatprep.mubr.f32.mxu0 0.0
        %v3297 = vand.u32 %v844, 4294901760
        %v3298 = vsub.f32 %v844, %v3297
        %3299 = vmatmul.mubr.f32.gmra.mrb[0].mxu0 %v3298
        %v3300 = vpop.f32.mrb[0].mxu0
        %v3301 = vadd.f32 %v2544, %v3300
        %v3302 = vpop.f32.mrb[0].mxu0
        %3303 = vmatprep.mubr.f32.mxu0 0.0
        %v3304 = vand.u32 %v845, 4294901760
        %v3305 = vsub.f32 %v845, %v3304
        %3306 = vmatmul.mubr.f32.gmra.mrb[0].mxu0 %v3305
        %v3307 = vpop.f32.mrb[0].mxu0
        %v3308 = vadd.f32 %v2550, %v3307
        %v3309 = vpop.f32.mrb[0].mxu0
        %3310 = vmatprep.mubr.f32.mxu0 0.0
        %v3311 = vand.u32 %v846, 4294901760
        %v3312 = vsub.f32 %v846, %v3311
        %3313 = vmatmul.mubr.f32.gmra.mrb[0].mxu0 %v3312
        %v3314 = vpop.f32.mrb[0].mxu0
        %v3315 = vadd.f32 %v2556, %v3314
        %v3316 = vpop.f32.mrb[0].mxu0
        %3317 = vmatprep.mubr.f32.mxu0 0.0
        %v3318 = vand.u32 %v847, 4294901760
        %v3319 = vsub.f32 %v847, %v3318
        %3320 = vmatmul.mubr.f32.gmra.mrb[0].mxu0 %v3319
        %v3321 = vpop.f32.mrb[0].mxu0
        %v3322 = vadd.f32 %v2562, %v3321
        %v3323 = vpop.f32.mrb[0].mxu0
        %3324 = vmatprep.mubr.f32.mxu0 0.0
        %v3325 = vand.u32 %v848, 4294901760
        %v3326 = vsub.f32 %v848, %v3325
        %3327 = vmatmul.mubr.f32.gmra.mrb[0].mxu0 %v3326
        %v3328 = vpop.f32.mrb[0].mxu0
        %v3329 = vadd.f32 %v2568, %v3328
        %v3330 = vpop.f32.mrb[0].mxu0
        %3331 = vmatprep.mubr.f32.mxu0 0.0
        %v3332 = vand.u32 %v849, 4294901760
        %v3333 = vsub.f32 %v849, %v3332
        %3334 = vmatmul.mubr.f32.gmra.mrb[0].mxu0 %v3333
        %v3335 = vpop.f32.mrb[0].mxu0
        %v3336 = vadd.f32 %v2574, %v3335
        %v3337 = vpop.f32.mrb[0].mxu0
        %3338 = vmatprep.mubr.f32.mxu0 0.0
        %v3339 = vand.u32 %v850, 4294901760
        %v3340 = vsub.f32 %v850, %v3339
        %3341 = vmatmul.mubr.f32.gmra.mrb[0].mxu0 %v3340
        %v3342 = vpop.f32.mrb[0].mxu0
        %v3343 = vadd.f32 %v2580, %v3342
        %v3344 = vpop.f32.mrb[0].mxu0
        %3345 = vmatprep.mubr.f32.mxu0 0.0
        %v3346 = vand.u32 %v851, 4294901760
        %v3347 = vsub.f32 %v851, %v3346
        %3348 = vmatmul.mubr.f32.gmra.mrb[0].mxu0 %v3347
        %v3349 = vpop.f32.mrb[0].mxu0
        %v3350 = vadd.f32 %v2586, %v3349
        %v3351 = vpop.f32.mrb[0].mxu0
        %3352 = vmatprep.mubr.f32.mxu0 0.0
        %v3353 = vand.u32 %v852, 4294901760
        %v3354 = vsub.f32 %v852, %v3353
        %3355 = vmatmul.mubr.f32.gmra.mrb[0].mxu0 %v3354
        %v3356 = vpop.f32.mrb[0].mxu0
        %v3357 = vadd.f32 %v2592, %v3356
        %v3358 = vpop.f32.mrb[0].mxu0
        %3359 = vmatprep.mubr.f32.mxu0 0.0
        %v3360 = vand.u32 %v853, 4294901760
        %v3361 = vsub.f32 %v853, %v3360
        %3362 = vmatmul.mubr.f32.gmra.mrb[0].mxu0 %v3361
        %v3363 = vpop.f32.mrb[0].mxu0
        %v3364 = vadd.f32 %v2598, %v3363
        %v3365 = vpop.f32.mrb[0].mxu0
        %3366 = vmatprep.mubr.f32.mxu0 0.0
        %v3367 = vand.u32 %v854, 4294901760
        %v3368 = vsub.f32 %v854, %v3367
        %3369 = vmatmul.mubr.f32.gmra.mrb[0].mxu0 %v3368
        %v3370 = vpop.f32.mrb[0].mxu0
        %v3371 = vadd.f32 %v2604, %v3370
        %v3372 = vpop.f32.mrb[0].mxu0
        %3373 = vmatprep.mubr.f32.mxu0 0.0
        %v3374 = vand.u32 %v855, 4294901760
        %v3375 = vsub.f32 %v855, %v3374
        %3376 = vmatmul.mubr.f32.gmra.mrb[0].mxu0 %v3375
        %v3377 = vpop.f32.mrb[0].mxu0
        %v3378 = vadd.f32 %v2610, %v3377
        %v3379 = vpop.f32.mrb[0].mxu0
        %3380 = vmatprep.mubr.f32.mxu0 0.0
        %v3381 = vand.u32 %v856, 4294901760
        %v3382 = vsub.f32 %v856, %v3381
        %3383 = vmatmul.mubr.f32.gmra.mrb[0].mxu0 %v3382
        %v3384 = vpop.f32.mrb[0].mxu0
        %v3385 = vadd.f32 %v2616, %v3384
        %v3386 = vpop.f32.mrb[0].mxu0
        %3387 = vdwg.mxu0
        %3388 = vmatprep.subr.mxu0 0.0
        %v3389 = vand.u32 %v167, 4294901760
        %3390 = vmatpush1.msra.mxu0 %v3389
        %3391 = vmatprep.subr.mxu0 0.0
        %v3392 = vand.u32 %v168, 4294901760
        %3393 = vmatpush1.msra.mxu0 %v3392
        %3394 = vmatprep.subr.mxu0 0.0
        %v3395 = vand.u32 %v169, 4294901760
        %3396 = vmatpush1.msra.mxu0 %v3395
        %3397 = vmatprep.subr.mxu0 0.0
        %v3398 = vand.u32 %v170, 4294901760
        %3399 = vmatpush1.msra.mxu0 %v3398
        %3400 = vmatprep.subr.mxu0 0.0
        %v3401 = vand.u32 %v171, 4294901760
        %3402 = vmatpush1.msra.mxu0 %v3401
        %3403 = vmatprep.subr.mxu0 0.0
        %v3404 = vand.u32 %v172, 4294901760
        %3405 = vmatpush1.msra.mxu0 %v3404
        %3406 = vmatprep.subr.mxu0 0.0
        %v3407 = vand.u32 %v173, 4294901760
        %3408 = vmatpush1.msra.mxu0 %v3407
        %3409 = vmatprep.subr.mxu0 0.0
        %v3410 = vand.u32 %v174, 4294901760
        %3411 = vmatpush1.msra.mxu0 %v3410
        %3412 = vmatprep.subr.mxu0 0.0
        %v3413 = vand.u32 %v175, 4294901760
        %3414 = vmatpush1.msra.mxu0 %v3413
        %3415 = vmatprep.subr.mxu0 0.0
        %v3416 = vand.u32 %v176, 4294901760
        %3417 = vmatpush1.msra.mxu0 %v3416
        %3418 = vmatprep.subr.mxu0 0.0
        %v3419 = vand.u32 %v177, 4294901760
        %3420 = vmatpush1.msra.mxu0 %v3419
        %3421 = vmatprep.subr.mxu0 0.0
        %v3422 = vand.u32 %v178, 4294901760
        %3423 = vmatpush1.msra.mxu0 %v3422
        %3424 = vmatprep.subr.mxu0 0.0
        %v3425 = vand.u32 %v179, 4294901760
        %3426 = vmatpush1.msra.mxu0 %v3425
        %3427 = vmatprep.subr.mxu0 0.0
        %v3428 = vand.u32 %v180, 4294901760
        %3429 = vmatpush1.msra.mxu0 %v3428
        %3430 = vmatprep.subr.mxu0 0.0
        %v3431 = vand.u32 %v181, 4294901760
        %3432 = vmatpush1.msra.mxu0 %v3431
        %3433 = vmatprep.subr.mxu0 0.0
        %v3434 = vand.u32 %v182, 4294901760
        %3435 = vmatpush1.msra.mxu0 %v3434
        %3436 = vmatprep.subr.mxu0 0.0
        %3437 = vmatpush1.msra.mxu0 0.0
        %3438 = vmatprep.subr.mxu0 0.0
        %3439 = vmatpush1.msra.mxu0 0.0
        %3440 = vmatprep.subr.mxu0 0.0
        %3441 = vmatpush1.msra.mxu0 0.0
        %3442 = vmatprep.subr.mxu0 0.0
        %3443 = vmatpush1.msra.mxu0 0.0
        %3444 = vmatprep.subr.mxu0 0.0
        %3445 = vmatpush1.msra.mxu0 0.0
        %3446 = vmatprep.subr.mxu0 0.0
        %3447 = vmatpush1.msra.mxu0 0.0
        %3448 = vmatprep.subr.mxu0 0.0
        %3449 = vmatpush1.msra.mxu0 0.0
        %3450 = vmatprep.subr.mxu0 0.0
        %3451 = vmatpush1.msra.mxu0 0.0
        %3452 = vmatprep.subr.mxu0 0.0
        %3453 = vmatpush1.msra.mxu0 0.0
        %3454 = vmatprep.subr.mxu0 0.0
        %3455 = vmatpush1.msra.mxu0 0.0
        %3456 = vmatprep.subr.mxu0 0.0
        %3457 = vmatpush1.msra.mxu0 0.0
        %3458 = vmatprep.subr.mxu0 0.0
        %3459 = vmatpush1.msra.mxu0 0.0
        %3460 = vmatprep.subr.mxu0 0.0
        %3461 = vmatpush1.msra.mxu0 0.0
        %3462 = vmatprep.subr.mxu0 0.0
        %3463 = vmatpush1.msra.mxu0 0.0
        %3464 = vmatprep.subr.mxu0 0.0
        %3465 = vmatpush1.msra.mxu0 0.0
        %3466 = vmatprep.subr.mxu0 0.0
        %3467 = vmatpush1.msra.mxu0 0.0
        %3468 = vmatprep.mubr.f32.mxu0 0.0
        %v3469 = vand.u32 %v761, 4294901760
        %v3470 = vsub.f32 %v761, %v3469
        %v3471 = vand.u32 %v3470, 4294901760
        %3472 = vmatmul.mubr.f32.gmra.mrb[0].mxu0 %v3471
        %v3473 = vpop.f32.mrb[0].mxu0
        %v3474 = vadd.f32 %v2720, %v3473
        %v3475 = vpop.f32.mrb[0].mxu0
        %3476 = vmatprep.mubr.f32.mxu0 0.0
        %v3477 = vand.u32 %v762, 4294901760
        %v3478 = vsub.f32 %v762, %v3477
        %v3479 = vand.u32 %v3478, 4294901760
        %3480 = vmatmul.mubr.f32.gmra.mrb[0].mxu0 %v3479
        %v3481 = vpop.f32.mrb[0].mxu0
        %v3482 = vadd.f32 %v2727, %v3481
        %v3483 = vpop.f32.mrb[0].mxu0
        %3484 = vmatprep.mubr.f32.mxu0 0.0
        %v3485 = vand.u32 %v763, 4294901760
        %v3486 = vsub.f32 %v763, %v3485
        %v3487 = vand.u32 %v3486, 4294901760
        %3488 = vmatmul.mubr.f32.gmra.mrb[0].mxu0 %v3487
        %v3489 = vpop.f32.mrb[0].mxu0
        %v3490 = vadd.f32 %v2734, %v3489
        %v3491 = vpop.f32.mrb[0].mxu0
        %3492 = vmatprep.mubr.f32.mxu0 0.0
        %v3493 = vand.u32 %v764, 4294901760
        %v3494 = vsub.f32 %v764, %v3493
        %v3495 = vand.u32 %v3494, 4294901760
        %3496 = vmatmul.mubr.f32.gmra.mrb[0].mxu0 %v3495
        %v3497 = vpop.f32.mrb[0].mxu0
        %v3498 = vadd.f32 %v2741, %v3497
        %v3499 = vpop.f32.mrb[0].mxu0
        %3500 = vmatprep.mubr.f32.mxu0 0.0
        %v3501 = vand.u32 %v765, 4294901760
        %v3502 = vsub.f32 %v765, %v3501
        %v3503 = vand.u32 %v3502, 4294901760
        %3504 = vmatmul.mubr.f32.gmra.mrb[0].mxu0 %v3503
        %v3505 = vpop.f32.mrb[0].mxu0
        %v3506 = vadd.f32 %v2748, %v3505
        %v3507 = vpop.f32.mrb[0].mxu0
        %3508 = vmatprep.mubr.f32.mxu0 0.0
        %v3509 = vand.u32 %v766, 4294901760
        %v3510 = vsub.f32 %v766, %v3509
        %v3511 = vand.u32 %v3510, 4294901760
        %3512 = vmatmul.mubr.f32.gmra.mrb[0].mxu0 %v3511
        %v3513 = vpop.f32.mrb[0].mxu0
        %v3514 = vadd.f32 %v2755, %v3513
        %v3515 = vpop.f32.mrb[0].mxu0
        %3516 = vmatprep.mubr.f32.mxu0 0.0
        %v3517 = vand.u32 %v767, 4294901760
        %v3518 = vsub.f32 %v767, %v3517
        %v3519 = vand.u32 %v3518, 4294901760
        %3520 = vmatmul.mubr.f32.gmra.mrb[0].mxu0 %v3519
        %v3521 = vpop.f32.mrb[0].mxu0
        %v3522 = vadd.f32 %v2762, %v3521
        %v3523 = vpop.f32.mrb[0].mxu0
        %3524 = vmatprep.mubr.f32.mxu0 0.0
        %v3525 = vand.u32 %v768, 4294901760
        %v3526 = vsub.f32 %v768, %v3525
        %v3527 = vand.u32 %v3526, 4294901760
        %3528 = vmatmul.mubr.f32.gmra.mrb[0].mxu0 %v3527
        %v3529 = vpop.f32.mrb[0].mxu0
        %v3530 = vadd.f32 %v2769, %v3529
        %v3531 = vpop.f32.mrb[0].mxu0
        %3532 = vmatprep.mubr.f32.mxu0 0.0
        %v3533 = vand.u32 %v769, 4294901760
        %v3534 = vsub.f32 %v769, %v3533
        %v3535 = vand.u32 %v3534, 4294901760
        %3536 = vmatmul.mubr.f32.gmra.mrb[0].mxu0 %v3535
        %v3537 = vpop.f32.mrb[0].mxu0
        %v3538 = vadd.f32 %v2776, %v3537
        %v3539 = vpop.f32.mrb[0].mxu0
        %3540 = vmatprep.mubr.f32.mxu0 0.0
        %v3541 = vand.u32 %v770, 4294901760
        %v3542 = vsub.f32 %v770, %v3541
        %v3543 = vand.u32 %v3542, 4294901760
        %3544 = vmatmul.mubr.f32.gmra.mrb[0].mxu0 %v3543
        %v3545 = vpop.f32.mrb[0].mxu0
        %v3546 = vadd.f32 %v2783, %v3545
        %v3547 = vpop.f32.mrb[0].mxu0
        %3548 = vmatprep.mubr.f32.mxu0 0.0
        %v3549 = vand.u32 %v771, 4294901760
        %v3550 = vsub.f32 %v771, %v3549
        %v3551 = vand.u32 %v3550, 4294901760
        %3552 = vmatmul.mubr.f32.gmra.mrb[0].mxu0 %v3551
        %v3553 = vpop.f32.mrb[0].mxu0
        %v3554 = vadd.f32 %v2790, %v3553
        %v3555 = vpop.f32.mrb[0].mxu0
        %3556 = vmatprep.mubr.f32.mxu0 0.0
        %v3557 = vand.u32 %v772, 4294901760
        %v3558 = vsub.f32 %v772, %v3557
        %v3559 = vand.u32 %v3558, 4294901760
        %3560 = vmatmul.mubr.f32.gmra.mrb[0].mxu0 %v3559
        %v3561 = vpop.f32.mrb[0].mxu0
        %v3562 = vadd.f32 %v2797, %v3561
        %v3563 = vpop.f32.mrb[0].mxu0
        %3564 = vmatprep.mubr.f32.mxu0 0.0
        %v3565 = vand.u32 %v773, 4294901760
        %v3566 = vsub.f32 %v773, %v3565
        %v3567 = vand.u32 %v3566, 4294901760
        %3568 = vmatmul.mubr.f32.gmra.mrb[0].mxu0 %v3567
        %v3569 = vpop.f32.mrb[0].mxu0
        %v3570 = vadd.f32 %v2804, %v3569
        %v3571 = vpop.f32.mrb[0].mxu0
        %3572 = vmatprep.mubr.f32.mxu0 0.0
        %v3573 = vand.u32 %v774, 4294901760
        %v3574 = vsub.f32 %v774, %v3573
        %v3575 = vand.u32 %v3574, 4294901760
        %3576 = vmatmul.mubr.f32.gmra.mrb[0].mxu0 %v3575
        %v3577 = vpop.f32.mrb[0].mxu0
        %v3578 = vadd.f32 %v2811, %v3577
        %v3579 = vpop.f32.mrb[0].mxu0
        %3580 = vmatprep.mubr.f32.mxu0 0.0
        %v3581 = vand.u32 %v775, 4294901760
        %v3582 = vsub.f32 %v775, %v3581
        %v3583 = vand.u32 %v3582, 4294901760
        %3584 = vmatmul.mubr.f32.gmra.mrb[0].mxu0 %v3583
        %v3585 = vpop.f32.mrb[0].mxu0
        %v3586 = vadd.f32 %v2818, %v3585
        %v3587 = vpop.f32.mrb[0].mxu0
        %3588 = vmatprep.mubr.f32.mxu0 0.0
        %v3589 = vand.u32 %v776, 4294901760
        %v3590 = vsub.f32 %v776, %v3589
        %v3591 = vand.u32 %v3590, 4294901760
        %3592 = vmatmul.mubr.f32.gmra.mrb[0].mxu0 %v3591
        %v3593 = vpop.f32.mrb[0].mxu0
        %v3594 = vadd.f32 %v2825, %v3593
        %v3595 = vpop.f32.mrb[0].mxu0
        %3596 = vmatprep.mubr.f32.mxu0 0.0
        %v3597 = vand.u32 %v777, 4294901760
        %v3598 = vsub.f32 %v777, %v3597
        %v3599 = vand.u32 %v3598, 4294901760
        %3600 = vmatmul.mubr.f32.gmra.mrb[0].mxu0 %v3599
        %v3601 = vpop.f32.mrb[0].mxu0
        %v3602 = vadd.f32 %v2832, %v3601
        %v3603 = vpop.f32.mrb[0].mxu0
        %3604 = vmatprep.mubr.f32.mxu0 0.0
        %v3605 = vand.u32 %v778, 4294901760
        %v3606 = vsub.f32 %v778, %v3605
        %v3607 = vand.u32 %v3606, 4294901760
        %3608 = vmatmul.mubr.f32.gmra.mrb[0].mxu0 %v3607
        %v3609 = vpop.f32.mrb[0].mxu0
        %v3610 = vadd.f32 %v2839, %v3609
        %v3611 = vpop.f32.mrb[0].mxu0
        %3612 = vmatprep.mubr.f32.mxu0 0.0
        %v3613 = vand.u32 %v779, 4294901760
        %v3614 = vsub.f32 %v779, %v3613
        %v3615 = vand.u32 %v3614, 4294901760
        %3616 = vmatmul.mubr.f32.gmra.mrb[0].mxu0 %v3615
        %v3617 = vpop.f32.mrb[0].mxu0
        %v3618 = vadd.f32 %v2846, %v3617
        %v3619 = vpop.f32.mrb[0].mxu0
        %3620 = vmatprep.mubr.f32.mxu0 0.0
        %v3621 = vand.u32 %v780, 4294901760
        %v3622 = vsub.f32 %v780, %v3621
        %v3623 = vand.u32 %v3622, 4294901760
        %3624 = vmatmul.mubr.f32.gmra.mrb[0].mxu0 %v3623
        %v3625 = vpop.f32.mrb[0].mxu0
        %v3626 = vadd.f32 %v2853, %v3625
        %v3627 = vpop.f32.mrb[0].mxu0
        %3628 = vmatprep.mubr.f32.mxu0 0.0
        %v3629 = vand.u32 %v781, 4294901760
        %v3630 = vsub.f32 %v781, %v3629
        %v3631 = vand.u32 %v3630, 4294901760
        %3632 = vmatmul.mubr.f32.gmra.mrb[0].mxu0 %v3631
        %v3633 = vpop.f32.mrb[0].mxu0
        %v3634 = vadd.f32 %v2860, %v3633
        %v3635 = vpop.f32.mrb[0].mxu0
        %3636 = vmatprep.mubr.f32.mxu0 0.0
        %v3637 = vand.u32 %v782, 4294901760
        %v3638 = vsub.f32 %v782, %v3637
        %v3639 = vand.u32 %v3638, 4294901760
        %3640 = vmatmul.mubr.f32.gmra.mrb[0].mxu0 %v3639
        %v3641 = vpop.f32.mrb[0].mxu0
        %v3642 = vadd.f32 %v2867, %v3641
        %v3643 = vpop.f32.mrb[0].mxu0
        %3644 = vmatprep.mubr.f32.mxu0 0.0
        %v3645 = vand.u32 %v783, 4294901760
        %v3646 = vsub.f32 %v783, %v3645
        %v3647 = vand.u32 %v3646, 4294901760
        %3648 = vmatmul.mubr.f32.gmra.mrb[0].mxu0 %v3647
        %v3649 = vpop.f32.mrb[0].mxu0
        %v3650 = vadd.f32 %v2874, %v3649
        %v3651 = vpop.f32.mrb[0].mxu0
        %3652 = vmatprep.mubr.f32.mxu0 0.0
        %v3653 = vand.u32 %v784, 4294901760
        %v3654 = vsub.f32 %v784, %v3653
        %v3655 = vand.u32 %v3654, 4294901760
        %3656 = vmatmul.mubr.f32.gmra.mrb[0].mxu0 %v3655
        %v3657 = vpop.f32.mrb[0].mxu0
        %v3658 = vadd.f32 %v2881, %v3657
        %v3659 = vpop.f32.mrb[0].mxu0
        %3660 = vmatprep.mubr.f32.mxu0 0.0
        %v3661 = vand.u32 %v785, 4294901760
        %v3662 = vsub.f32 %v785, %v3661
        %v3663 = vand.u32 %v3662, 4294901760
        %3664 = vmatmul.mubr.f32.gmra.mrb[0].mxu0 %v3663
        %v3665 = vpop.f32.mrb[0].mxu0
        %v3666 = vadd.f32 %v2888, %v3665
        %v3667 = vpop.f32.mrb[0].mxu0
        %3668 = vmatprep.mubr.f32.mxu0 0.0
        %v3669 = vand.u32 %v786, 4294901760
        %v3670 = vsub.f32 %v786, %v3669
        %v3671 = vand.u32 %v3670, 4294901760
        %3672 = vmatmul.mubr.f32.gmra.mrb[0].mxu0 %v3671
        %v3673 = vpop.f32.mrb[0].mxu0
        %v3674 = vadd.f32 %v2895, %v3673
        %v3675 = vpop.f32.mrb[0].mxu0
        %3676 = vmatprep.mubr.f32.mxu0 0.0
        %v3677 = vand.u32 %v787, 4294901760
        %v3678 = vsub.f32 %v787, %v3677
        %v3679 = vand.u32 %v3678, 4294901760
        %3680 = vmatmul.mubr.f32.gmra.mrb[0].mxu0 %v3679
        %v3681 = vpop.f32.mrb[0].mxu0
        %v3682 = vadd.f32 %v2902, %v3681
        %v3683 = vpop.f32.mrb[0].mxu0
        %3684 = vmatprep.mubr.f32.mxu0 0.0
        %v3685 = vand.u32 %v788, 4294901760
        %v3686 = vsub.f32 %v788, %v3685
        %v3687 = vand.u32 %v3686, 4294901760
        %3688 = vmatmul.mubr.f32.gmra.mrb[0].mxu0 %v3687
        %v3689 = vpop.f32.mrb[0].mxu0
        %v3690 = vadd.f32 %v2909, %v3689
        %v3691 = vpop.f32.mrb[0].mxu0
        %3692 = vmatprep.mubr.f32.mxu0 0.0
        %v3693 = vand.u32 %v789, 4294901760
        %v3694 = vsub.f32 %v789, %v3693
        %v3695 = vand.u32 %v3694, 4294901760
        %3696 = vmatmul.mubr.f32.gmra.mrb[0].mxu0 %v3695
        %v3697 = vpop.f32.mrb[0].mxu0
        %v3698 = vadd.f32 %v2916, %v3697
        %v3699 = vpop.f32.mrb[0].mxu0
        %3700 = vmatprep.mubr.f32.mxu0 0.0
        %v3701 = vand.u32 %v790, 4294901760
        %v3702 = vsub.f32 %v790, %v3701
        %v3703 = vand.u32 %v3702, 4294901760
        %3704 = vmatmul.mubr.f32.gmra.mrb[0].mxu0 %v3703
        %v3705 = vpop.f32.mrb[0].mxu0
        %v3706 = vadd.f32 %v2923, %v3705
        %v3707 = vpop.f32.mrb[0].mxu0
        %3708 = vmatprep.mubr.f32.mxu0 0.0
        %v3709 = vand.u32 %v791, 4294901760
        %v3710 = vsub.f32 %v791, %v3709
        %v3711 = vand.u32 %v3710, 4294901760
        %3712 = vmatmul.mubr.f32.gmra.mrb[0].mxu0 %v3711
        %v3713 = vpop.f32.mrb[0].mxu0
        %v3714 = vadd.f32 %v2930, %v3713
        %v3715 = vpop.f32.mrb[0].mxu0
        %3716 = vmatprep.mubr.f32.mxu0 0.0
        %v3717 = vand.u32 %v792, 4294901760
        %v3718 = vsub.f32 %v792, %v3717
        %v3719 = vand.u32 %v3718, 4294901760
        %3720 = vmatmul.mubr.f32.gmra.mrb[0].mxu0 %v3719
        %v3721 = vpop.f32.mrb[0].mxu0
        %v3722 = vadd.f32 %v2937, %v3721
        %v3723 = vpop.f32.mrb[0].mxu0
        %3724 = vmatprep.mubr.f32.mxu0 0.0
        %v3725 = vand.u32 %v793, 4294901760
        %v3726 = vsub.f32 %v793, %v3725
        %v3727 = vand.u32 %v3726, 4294901760
        %3728 = vmatmul.mubr.f32.gmra.mrb[0].mxu0 %v3727
        %v3729 = vpop.f32.mrb[0].mxu0
        %v3730 = vadd.f32 %v2944, %v3729
        %v3731 = vpop.f32.mrb[0].mxu0
        %3732 = vmatprep.mubr.f32.mxu0 0.0
        %v3733 = vand.u32 %v794, 4294901760
        %v3734 = vsub.f32 %v794, %v3733
        %v3735 = vand.u32 %v3734, 4294901760
        %3736 = vmatmul.mubr.f32.gmra.mrb[0].mxu0 %v3735
        %v3737 = vpop.f32.mrb[0].mxu0
        %v3738 = vadd.f32 %v2951, %v3737
        %v3739 = vpop.f32.mrb[0].mxu0
        %3740 = vmatprep.mubr.f32.mxu0 0.0
        %v3741 = vand.u32 %v795, 4294901760
        %v3742 = vsub.f32 %v795, %v3741
        %v3743 = vand.u32 %v3742, 4294901760
        %3744 = vmatmul.mubr.f32.gmra.mrb[0].mxu0 %v3743
        %v3745 = vpop.f32.mrb[0].mxu0
        %v3746 = vadd.f32 %v2958, %v3745
        %v3747 = vpop.f32.mrb[0].mxu0
        %3748 = vmatprep.mubr.f32.mxu0 0.0
        %v3749 = vand.u32 %v796, 4294901760
        %v3750 = vsub.f32 %v796, %v3749
        %v3751 = vand.u32 %v3750, 4294901760
        %3752 = vmatmul.mubr.f32.gmra.mrb[0].mxu0 %v3751
        %v3753 = vpop.f32.mrb[0].mxu0
        %v3754 = vadd.f32 %v2965, %v3753
        %v3755 = vpop.f32.mrb[0].mxu0
        %3756 = vmatprep.mubr.f32.mxu0 0.0
        %v3757 = vand.u32 %v797, 4294901760
        %v3758 = vsub.f32 %v797, %v3757
        %v3759 = vand.u32 %v3758, 4294901760
        %3760 = vmatmul.mubr.f32.gmra.mrb[0].mxu0 %v3759
        %v3761 = vpop.f32.mrb[0].mxu0
        %v3762 = vadd.f32 %v2972, %v3761
        %v3763 = vpop.f32.mrb[0].mxu0
        %3764 = vmatprep.mubr.f32.mxu0 0.0
        %v3765 = vand.u32 %v798, 4294901760
        %v3766 = vsub.f32 %v798, %v3765
        %v3767 = vand.u32 %v3766, 4294901760
        %3768 = vmatmul.mubr.f32.gmra.mrb[0].mxu0 %v3767
        %v3769 = vpop.f32.mrb[0].mxu0
        %v3770 = vadd.f32 %v2979, %v3769
        %v3771 = vpop.f32.mrb[0].mxu0
        %3772 = vmatprep.mubr.f32.mxu0 0.0
        %v3773 = vand.u32 %v799, 4294901760
        %v3774 = vsub.f32 %v799, %v3773
        %v3775 = vand.u32 %v3774, 4294901760
        %3776 = vmatmul.mubr.f32.gmra.mrb[0].mxu0 %v3775
        %v3777 = vpop.f32.mrb[0].mxu0
        %v3778 = vadd.f32 %v2986, %v3777
        %v3779 = vpop.f32.mrb[0].mxu0
        %3780 = vmatprep.mubr.f32.mxu0 0.0
        %v3781 = vand.u32 %v800, 4294901760
        %v3782 = vsub.f32 %v800, %v3781
        %v3783 = vand.u32 %v3782, 4294901760
        %3784 = vmatmul.mubr.f32.gmra.mrb[0].mxu0 %v3783
        %v3785 = vpop.f32.mrb[0].mxu0
        %v3786 = vadd.f32 %v2993, %v3785
        %v3787 = vpop.f32.mrb[0].mxu0
        %3788 = vmatprep.mubr.f32.mxu0 0.0
        %v3789 = vand.u32 %v801, 4294901760
        %v3790 = vsub.f32 %v801, %v3789
        %v3791 = vand.u32 %v3790, 4294901760
        %3792 = vmatmul.mubr.f32.gmra.mrb[0].mxu0 %v3791
        %v3793 = vpop.f32.mrb[0].mxu0
        %v3794 = vadd.f32 %v3000, %v3793
        %v3795 = vpop.f32.mrb[0].mxu0
        %3796 = vmatprep.mubr.f32.mxu0 0.0
        %v3797 = vand.u32 %v802, 4294901760
        %v3798 = vsub.f32 %v802, %v3797
        %v3799 = vand.u32 %v3798, 4294901760
        %3800 = vmatmul.mubr.f32.gmra.mrb[0].mxu0 %v3799
        %v3801 = vpop.f32.mrb[0].mxu0
        %v3802 = vadd.f32 %v3007, %v3801
        %v3803 = vpop.f32.mrb[0].mxu0
        %3804 = vmatprep.mubr.f32.mxu0 0.0
        %v3805 = vand.u32 %v803, 4294901760
        %v3806 = vsub.f32 %v803, %v3805
        %v3807 = vand.u32 %v3806, 4294901760
        %3808 = vmatmul.mubr.f32.gmra.mrb[0].mxu0 %v3807
        %v3809 = vpop.f32.mrb[0].mxu0
        %v3810 = vadd.f32 %v3014, %v3809
        %v3811 = vpop.f32.mrb[0].mxu0
        %3812 = vmatprep.mubr.f32.mxu0 0.0
        %v3813 = vand.u32 %v804, 4294901760
        %v3814 = vsub.f32 %v804, %v3813
        %v3815 = vand.u32 %v3814, 4294901760
        %3816 = vmatmul.mubr.f32.gmra.mrb[0].mxu0 %v3815
        %v3817 = vpop.f32.mrb[0].mxu0
        %v3818 = vadd.f32 %v3021, %v3817
        %v3819 = vpop.f32.mrb[0].mxu0
        %3820 = vmatprep.mubr.f32.mxu0 0.0
        %v3821 = vand.u32 %v805, 4294901760
        %v3822 = vsub.f32 %v805, %v3821
        %v3823 = vand.u32 %v3822, 4294901760
        %3824 = vmatmul.mubr.f32.gmra.mrb[0].mxu0 %v3823
        %v3825 = vpop.f32.mrb[0].mxu0
        %v3826 = vadd.f32 %v3028, %v3825
        %v3827 = vpop.f32.mrb[0].mxu0
        %3828 = vmatprep.mubr.f32.mxu0 0.0
        %v3829 = vand.u32 %v806, 4294901760
        %v3830 = vsub.f32 %v806, %v3829
        %v3831 = vand.u32 %v3830, 4294901760
        %3832 = vmatmul.mubr.f32.gmra.mrb[0].mxu0 %v3831
        %v3833 = vpop.f32.mrb[0].mxu0
        %v3834 = vadd.f32 %v3035, %v3833
        %v3835 = vpop.f32.mrb[0].mxu0
        %3836 = vmatprep.mubr.f32.mxu0 0.0
        %v3837 = vand.u32 %v807, 4294901760
        %v3838 = vsub.f32 %v807, %v3837
        %v3839 = vand.u32 %v3838, 4294901760
        %3840 = vmatmul.mubr.f32.gmra.mrb[0].mxu0 %v3839
        %v3841 = vpop.f32.mrb[0].mxu0
        %v3842 = vadd.f32 %v3042, %v3841
        %v3843 = vpop.f32.mrb[0].mxu0
        %3844 = vmatprep.mubr.f32.mxu0 0.0
        %v3845 = vand.u32 %v808, 4294901760
        %v3846 = vsub.f32 %v808, %v3845
        %v3847 = vand.u32 %v3846, 4294901760
        %3848 = vmatmul.mubr.f32.gmra.mrb[0].mxu0 %v3847
        %v3849 = vpop.f32.mrb[0].mxu0
        %v3850 = vadd.f32 %v3049, %v3849
        %v3851 = vpop.f32.mrb[0].mxu0
        %3852 = vmatprep.mubr.f32.mxu0 0.0
        %v3853 = vand.u32 %v809, 4294901760
        %v3854 = vsub.f32 %v809, %v3853
        %v3855 = vand.u32 %v3854, 4294901760
        %3856 = vmatmul.mubr.f32.gmra.mrb[0].mxu0 %v3855
        %v3857 = vpop.f32.mrb[0].mxu0
        %v3858 = vadd.f32 %v3056, %v3857
        %v3859 = vpop.f32.mrb[0].mxu0
        %3860 = vmatprep.mubr.f32.mxu0 0.0
        %v3861 = vand.u32 %v810, 4294901760
        %v3862 = vsub.f32 %v810, %v3861
        %v3863 = vand.u32 %v3862, 4294901760
        %3864 = vmatmul.mubr.f32.gmra.mrb[0].mxu0 %v3863
        %v3865 = vpop.f32.mrb[0].mxu0
        %v3866 = vadd.f32 %v3063, %v3865
        %v3867 = vpop.f32.mrb[0].mxu0
        %3868 = vmatprep.mubr.f32.mxu0 0.0
        %v3869 = vand.u32 %v811, 4294901760
        %v3870 = vsub.f32 %v811, %v3869
        %v3871 = vand.u32 %v3870, 4294901760
        %3872 = vmatmul.mubr.f32.gmra.mrb[0].mxu0 %v3871
        %v3873 = vpop.f32.mrb[0].mxu0
        %v3874 = vadd.f32 %v3070, %v3873
        %v3875 = vpop.f32.mrb[0].mxu0
        %3876 = vmatprep.mubr.f32.mxu0 0.0
        %v3877 = vand.u32 %v812, 4294901760
        %v3878 = vsub.f32 %v812, %v3877
        %v3879 = vand.u32 %v3878, 4294901760
        %3880 = vmatmul.mubr.f32.gmra.mrb[0].mxu0 %v3879
        %v3881 = vpop.f32.mrb[0].mxu0
        %v3882 = vadd.f32 %v3077, %v3881
        %v3883 = vpop.f32.mrb[0].mxu0
        %3884 = vmatprep.mubr.f32.mxu0 0.0
        %v3885 = vand.u32 %v813, 4294901760
        %v3886 = vsub.f32 %v813, %v3885
        %v3887 = vand.u32 %v3886, 4294901760
        %3888 = vmatmul.mubr.f32.gmra.mrb[0].mxu0 %v3887
        %v3889 = vpop.f32.mrb[0].mxu0
        %v3890 = vadd.f32 %v3084, %v3889
        %v3891 = vpop.f32.mrb[0].mxu0
        %3892 = vmatprep.mubr.f32.mxu0 0.0
        %v3893 = vand.u32 %v814, 4294901760
        %v3894 = vsub.f32 %v814, %v3893
        %v3895 = vand.u32 %v3894, 4294901760
        %3896 = vmatmul.mubr.f32.gmra.mrb[0].mxu0 %v3895
        %v3897 = vpop.f32.mrb[0].mxu0
        %v3898 = vadd.f32 %v3091, %v3897
        %v3899 = vpop.f32.mrb[0].mxu0
        %3900 = vmatprep.mubr.f32.mxu0 0.0
        %v3901 = vand.u32 %v815, 4294901760
        %v3902 = vsub.f32 %v815, %v3901
        %v3903 = vand.u32 %v3902, 4294901760
        %3904 = vmatmul.mubr.f32.gmra.mrb[0].mxu0 %v3903
        %v3905 = vpop.f32.mrb[0].mxu0
        %v3906 = vadd.f32 %v3098, %v3905
        %v3907 = vpop.f32.mrb[0].mxu0
        %3908 = vmatprep.mubr.f32.mxu0 0.0
        %v3909 = vand.u32 %v816, 4294901760
        %v3910 = vsub.f32 %v816, %v3909
        %v3911 = vand.u32 %v3910, 4294901760
        %3912 = vmatmul.mubr.f32.gmra.mrb[0].mxu0 %v3911
        %v3913 = vpop.f32.mrb[0].mxu0
        %v3914 = vadd.f32 %v3105, %v3913
        %v3915 = vpop.f32.mrb[0].mxu0
        %3916 = vmatprep.mubr.f32.mxu0 0.0
        %v3917 = vand.u32 %v817, 4294901760
        %v3918 = vsub.f32 %v817, %v3917
        %v3919 = vand.u32 %v3918, 4294901760
        %3920 = vmatmul.mubr.f32.gmra.mrb[0].mxu0 %v3919
        %v3921 = vpop.f32.mrb[0].mxu0
        %v3922 = vadd.f32 %v3112, %v3921
        %v3923 = vpop.f32.mrb[0].mxu0
        %3924 = vmatprep.mubr.f32.mxu0 0.0
        %v3925 = vand.u32 %v818, 4294901760
        %v3926 = vsub.f32 %v818, %v3925
        %v3927 = vand.u32 %v3926, 4294901760
        %3928 = vmatmul.mubr.f32.gmra.mrb[0].mxu0 %v3927
        %v3929 = vpop.f32.mrb[0].mxu0
        %v3930 = vadd.f32 %v3119, %v3929
        %v3931 = vpop.f32.mrb[0].mxu0
        %3932 = vmatprep.mubr.f32.mxu0 0.0
        %v3933 = vand.u32 %v819, 4294901760
        %v3934 = vsub.f32 %v819, %v3933
        %v3935 = vand.u32 %v3934, 4294901760
        %3936 = vmatmul.mubr.f32.gmra.mrb[0].mxu0 %v3935
        %v3937 = vpop.f32.mrb[0].mxu0
        %v3938 = vadd.f32 %v3126, %v3937
        %v3939 = vpop.f32.mrb[0].mxu0
        %3940 = vmatprep.mubr.f32.mxu0 0.0
        %v3941 = vand.u32 %v820, 4294901760
        %v3942 = vsub.f32 %v820, %v3941
        %v3943 = vand.u32 %v3942, 4294901760
        %3944 = vmatmul.mubr.f32.gmra.mrb[0].mxu0 %v3943
        %v3945 = vpop.f32.mrb[0].mxu0
        %v3946 = vadd.f32 %v3133, %v3945
        %v3947 = vpop.f32.mrb[0].mxu0
        %3948 = vmatprep.mubr.f32.mxu0 0.0
        %v3949 = vand.u32 %v821, 4294901760
        %v3950 = vsub.f32 %v821, %v3949
        %v3951 = vand.u32 %v3950, 4294901760
        %3952 = vmatmul.mubr.f32.gmra.mrb[0].mxu0 %v3951
        %v3953 = vpop.f32.mrb[0].mxu0
        %v3954 = vadd.f32 %v3140, %v3953
        %v3955 = vpop.f32.mrb[0].mxu0
        %3956 = vmatprep.mubr.f32.mxu0 0.0
        %v3957 = vand.u32 %v822, 4294901760
        %v3958 = vsub.f32 %v822, %v3957
        %v3959 = vand.u32 %v3958, 4294901760
        %3960 = vmatmul.mubr.f32.gmra.mrb[0].mxu0 %v3959
        %v3961 = vpop.f32.mrb[0].mxu0
        %v3962 = vadd.f32 %v3147, %v3961
        %v3963 = vpop.f32.mrb[0].mxu0
        %3964 = vmatprep.mubr.f32.mxu0 0.0
        %v3965 = vand.u32 %v823, 4294901760
        %v3966 = vsub.f32 %v823, %v3965
        %v3967 = vand.u32 %v3966, 4294901760
        %3968 = vmatmul.mubr.f32.gmra.mrb[0].mxu0 %v3967
        %v3969 = vpop.f32.mrb[0].mxu0
        %v3970 = vadd.f32 %v3154, %v3969
        %v3971 = vpop.f32.mrb[0].mxu0
        %3972 = vmatprep.mubr.f32.mxu0 0.0
        %v3973 = vand.u32 %v824, 4294901760
        %v3974 = vsub.f32 %v824, %v3973
        %v3975 = vand.u32 %v3974, 4294901760
        %3976 = vmatmul.mubr.f32.gmra.mrb[0].mxu0 %v3975
        %v3977 = vpop.f32.mrb[0].mxu0
        %v3978 = vadd.f32 %v3161, %v3977
        %v3979 = vpop.f32.mrb[0].mxu0
        %3980 = vmatprep.mubr.f32.mxu0 0.0
        %v3981 = vand.u32 %v825, 4294901760
        %v3982 = vsub.f32 %v825, %v3981
        %v3983 = vand.u32 %v3982, 4294901760
        %3984 = vmatmul.mubr.f32.gmra.mrb[0].mxu0 %v3983
        %v3985 = vpop.f32.mrb[0].mxu0
        %v3986 = vadd.f32 %v3168, %v3985
        %v3987 = vpop.f32.mrb[0].mxu0
        %3988 = vmatprep.mubr.f32.mxu0 0.0
        %v3989 = vand.u32 %v826, 4294901760
        %v3990 = vsub.f32 %v826, %v3989
        %v3991 = vand.u32 %v3990, 4294901760
        %3992 = vmatmul.mubr.f32.gmra.mrb[0].mxu0 %v3991
        %v3993 = vpop.f32.mrb[0].mxu0
        %v3994 = vadd.f32 %v3175, %v3993
        %v3995 = vpop.f32.mrb[0].mxu0
        %3996 = vmatprep.mubr.f32.mxu0 0.0
        %v3997 = vand.u32 %v827, 4294901760
        %v3998 = vsub.f32 %v827, %v3997
        %v3999 = vand.u32 %v3998, 4294901760
        %4000 = vmatmul.mubr.f32.gmra.mrb[0].mxu0 %v3999
        %v4001 = vpop.f32.mrb[0].mxu0
        %v4002 = vadd.f32 %v3182, %v4001
        %v4003 = vpop.f32.mrb[0].mxu0
        %4004 = vmatprep.mubr.f32.mxu0 0.0
        %v4005 = vand.u32 %v828, 4294901760
        %v4006 = vsub.f32 %v828, %v4005
        %v4007 = vand.u32 %v4006, 4294901760
        %4008 = vmatmul.mubr.f32.gmra.mrb[0].mxu0 %v4007
        %v4009 = vpop.f32.mrb[0].mxu0
        %v4010 = vadd.f32 %v3189, %v4009
        %v4011 = vpop.f32.mrb[0].mxu0
        %4012 = vmatprep.mubr.f32.mxu0 0.0
        %v4013 = vand.u32 %v829, 4294901760
        %v4014 = vsub.f32 %v829, %v4013
        %v4015 = vand.u32 %v4014, 4294901760
        %4016 = vmatmul.mubr.f32.gmra.mrb[0].mxu0 %v4015
        %v4017 = vpop.f32.mrb[0].mxu0
        %v4018 = vadd.f32 %v3196, %v4017
        %v4019 = vpop.f32.mrb[0].mxu0
        %4020 = vmatprep.mubr.f32.mxu0 0.0
        %v4021 = vand.u32 %v830, 4294901760
        %v4022 = vsub.f32 %v830, %v4021
        %v4023 = vand.u32 %v4022, 4294901760
        %4024 = vmatmul.mubr.f32.gmra.mrb[0].mxu0 %v4023
        %v4025 = vpop.f32.mrb[0].mxu0
        %v4026 = vadd.f32 %v3203, %v4025
        %v4027 = vpop.f32.mrb[0].mxu0
        %4028 = vmatprep.mubr.f32.mxu0 0.0
        %v4029 = vand.u32 %v831, 4294901760
        %v4030 = vsub.f32 %v831, %v4029
        %v4031 = vand.u32 %v4030, 4294901760
        %4032 = vmatmul.mubr.f32.gmra.mrb[0].mxu0 %v4031
        %v4033 = vpop.f32.mrb[0].mxu0
        %v4034 = vadd.f32 %v3210, %v4033
        %v4035 = vpop.f32.mrb[0].mxu0
        %4036 = vmatprep.mubr.f32.mxu0 0.0
        %v4037 = vand.u32 %v832, 4294901760
        %v4038 = vsub.f32 %v832, %v4037
        %v4039 = vand.u32 %v4038, 4294901760
        %4040 = vmatmul.mubr.f32.gmra.mrb[0].mxu0 %v4039
        %v4041 = vpop.f32.mrb[0].mxu0
        %v4042 = vadd.f32 %v3217, %v4041
        %v4043 = vpop.f32.mrb[0].mxu0
        %4044 = vmatprep.mubr.f32.mxu0 0.0
        %v4045 = vand.u32 %v833, 4294901760
        %v4046 = vsub.f32 %v833, %v4045
        %v4047 = vand.u32 %v4046, 4294901760
        %4048 = vmatmul.mubr.f32.gmra.mrb[0].mxu0 %v4047
        %v4049 = vpop.f32.mrb[0].mxu0
        %v4050 = vadd.f32 %v3224, %v4049
        %v4051 = vpop.f32.mrb[0].mxu0
        %4052 = vmatprep.mubr.f32.mxu0 0.0
        %v4053 = vand.u32 %v834, 4294901760
        %v4054 = vsub.f32 %v834, %v4053
        %v4055 = vand.u32 %v4054, 4294901760
        %4056 = vmatmul.mubr.f32.gmra.mrb[0].mxu0 %v4055
        %v4057 = vpop.f32.mrb[0].mxu0
        %v4058 = vadd.f32 %v3231, %v4057
        %v4059 = vpop.f32.mrb[0].mxu0
        %4060 = vmatprep.mubr.f32.mxu0 0.0
        %v4061 = vand.u32 %v835, 4294901760
        %v4062 = vsub.f32 %v835, %v4061
        %v4063 = vand.u32 %v4062, 4294901760
        %4064 = vmatmul.mubr.f32.gmra.mrb[0].mxu0 %v4063
        %v4065 = vpop.f32.mrb[0].mxu0
        %v4066 = vadd.f32 %v3238, %v4065
        %v4067 = vpop.f32.mrb[0].mxu0
        %4068 = vmatprep.mubr.f32.mxu0 0.0
        %v4069 = vand.u32 %v836, 4294901760
        %v4070 = vsub.f32 %v836, %v4069
        %v4071 = vand.u32 %v4070, 4294901760
        %4072 = vmatmul.mubr.f32.gmra.mrb[0].mxu0 %v4071
        %v4073 = vpop.f32.mrb[0].mxu0
        %v4074 = vadd.f32 %v3245, %v4073
        %v4075 = vpop.f32.mrb[0].mxu0
        %4076 = vmatprep.mubr.f32.mxu0 0.0
        %v4077 = vand.u32 %v837, 4294901760
        %v4078 = vsub.f32 %v837, %v4077
        %v4079 = vand.u32 %v4078, 4294901760
        %4080 = vmatmul.mubr.f32.gmra.mrb[0].mxu0 %v4079
        %v4081 = vpop.f32.mrb[0].mxu0
        %v4082 = vadd.f32 %v3252, %v4081
        %v4083 = vpop.f32.mrb[0].mxu0
        %4084 = vmatprep.mubr.f32.mxu0 0.0
        %v4085 = vand.u32 %v838, 4294901760
        %v4086 = vsub.f32 %v838, %v4085
        %v4087 = vand.u32 %v4086, 4294901760
        %4088 = vmatmul.mubr.f32.gmra.mrb[0].mxu0 %v4087
        %v4089 = vpop.f32.mrb[0].mxu0
        %v4090 = vadd.f32 %v3259, %v4089
        %v4091 = vpop.f32.mrb[0].mxu0
        %4092 = vmatprep.mubr.f32.mxu0 0.0
        %v4093 = vand.u32 %v839, 4294901760
        %v4094 = vsub.f32 %v839, %v4093
        %v4095 = vand.u32 %v4094, 4294901760
        %4096 = vmatmul.mubr.f32.gmra.mrb[0].mxu0 %v4095
        %v4097 = vpop.f32.mrb[0].mxu0
        %v4098 = vadd.f32 %v3266, %v4097
        %v4099 = vpop.f32.mrb[0].mxu0
        %4100 = vmatprep.mubr.f32.mxu0 0.0
        %v4101 = vand.u32 %v840, 4294901760
        %v4102 = vsub.f32 %v840, %v4101
        %v4103 = vand.u32 %v4102, 4294901760
        %4104 = vmatmul.mubr.f32.gmra.mrb[0].mxu0 %v4103
        %v4105 = vpop.f32.mrb[0].mxu0
        %v4106 = vadd.f32 %v3273, %v4105
        %v4107 = vpop.f32.mrb[0].mxu0
        %4108 = vmatprep.mubr.f32.mxu0 0.0
        %v4109 = vand.u32 %v841, 4294901760
        %v4110 = vsub.f32 %v841, %v4109
        %v4111 = vand.u32 %v4110, 4294901760
        %4112 = vmatmul.mubr.f32.gmra.mrb[0].mxu0 %v4111
        %v4113 = vpop.f32.mrb[0].mxu0
        %v4114 = vadd.f32 %v3280, %v4113
        %v4115 = vpop.f32.mrb[0].mxu0
        %4116 = vmatprep.mubr.f32.mxu0 0.0
        %v4117 = vand.u32 %v842, 4294901760
        %v4118 = vsub.f32 %v842, %v4117
        %v4119 = vand.u32 %v4118, 4294901760
        %4120 = vmatmul.mubr.f32.gmra.mrb[0].mxu0 %v4119
        %v4121 = vpop.f32.mrb[0].mxu0
        %v4122 = vadd.f32 %v3287, %v4121
        %v4123 = vpop.f32.mrb[0].mxu0
        %4124 = vmatprep.mubr.f32.mxu0 0.0
        %v4125 = vand.u32 %v843, 4294901760
        %v4126 = vsub.f32 %v843, %v4125
        %v4127 = vand.u32 %v4126, 4294901760
        %4128 = vmatmul.mubr.f32.gmra.mrb[0].mxu0 %v4127
        %v4129 = vpop.f32.mrb[0].mxu0
        %v4130 = vadd.f32 %v3294, %v4129
        %v4131 = vpop.f32.mrb[0].mxu0
        %4132 = vmatprep.mubr.f32.mxu0 0.0
        %v4133 = vand.u32 %v844, 4294901760
        %v4134 = vsub.f32 %v844, %v4133
        %v4135 = vand.u32 %v4134, 4294901760
        %4136 = vmatmul.mubr.f32.gmra.mrb[0].mxu0 %v4135
        %v4137 = vpop.f32.mrb[0].mxu0
        %v4138 = vadd.f32 %v3301, %v4137
        %v4139 = vpop.f32.mrb[0].mxu0
        %4140 = vmatprep.mubr.f32.mxu0 0.0
        %v4141 = vand.u32 %v845, 4294901760
        %v4142 = vsub.f32 %v845, %v4141
        %v4143 = vand.u32 %v4142, 4294901760
        %4144 = vmatmul.mubr.f32.gmra.mrb[0].mxu0 %v4143
        %v4145 = vpop.f32.mrb[0].mxu0
        %v4146 = vadd.f32 %v3308, %v4145
        %v4147 = vpop.f32.mrb[0].mxu0
        %4148 = vmatprep.mubr.f32.mxu0 0.0
        %v4149 = vand.u32 %v846, 4294901760
        %v4150 = vsub.f32 %v846, %v4149
        %v4151 = vand.u32 %v4150, 4294901760
        %4152 = vmatmul.mubr.f32.gmra.mrb[0].mxu0 %v4151
        %v4153 = vpop.f32.mrb[0].mxu0
        %v4154 = vadd.f32 %v3315, %v4153
        %v4155 = vpop.f32.mrb[0].mxu0
        %4156 = vmatprep.mubr.f32.mxu0 0.0
        %v4157 = vand.u32 %v847, 4294901760
        %v4158 = vsub.f32 %v847, %v4157
        %v4159 = vand.u32 %v4158, 4294901760
        %4160 = vmatmul.mubr.f32.gmra.mrb[0].mxu0 %v4159
        %v4161 = vpop.f32.mrb[0].mxu0
        %v4162 = vadd.f32 %v3322, %v4161
        %v4163 = vpop.f32.mrb[0].mxu0
        %4164 = vmatprep.mubr.f32.mxu0 0.0
        %v4165 = vand.u32 %v848, 4294901760
        %v4166 = vsub.f32 %v848, %v4165
        %v4167 = vand.u32 %v4166, 4294901760
        %4168 = vmatmul.mubr.f32.gmra.mrb[0].mxu0 %v4167
        %v4169 = vpop.f32.mrb[0].mxu0
        %v4170 = vadd.f32 %v3329, %v4169
        %v4171 = vpop.f32.mrb[0].mxu0
        %4172 = vmatprep.mubr.f32.mxu0 0.0
        %v4173 = vand.u32 %v849, 4294901760
        %v4174 = vsub.f32 %v849, %v4173
        %v4175 = vand.u32 %v4174, 4294901760
        %4176 = vmatmul.mubr.f32.gmra.mrb[0].mxu0 %v4175
        %v4177 = vpop.f32.mrb[0].mxu0
        %v4178 = vadd.f32 %v3336, %v4177
        %v4179 = vpop.f32.mrb[0].mxu0
        %4180 = vmatprep.mubr.f32.mxu0 0.0
        %v4181 = vand.u32 %v850, 4294901760
        %v4182 = vsub.f32 %v850, %v4181
        %v4183 = vand.u32 %v4182, 4294901760
        %4184 = vmatmul.mubr.f32.gmra.mrb[0].mxu0 %v4183
        %v4185 = vpop.f32.mrb[0].mxu0
        %v4186 = vadd.f32 %v3343, %v4185
        %v4187 = vpop.f32.mrb[0].mxu0
        %4188 = vmatprep.mubr.f32.mxu0 0.0
        %v4189 = vand.u32 %v851, 4294901760
        %v4190 = vsub.f32 %v851, %v4189
        %v4191 = vand.u32 %v4190, 4294901760
        %4192 = vmatmul.mubr.f32.gmra.mrb[0].mxu0 %v4191
        %v4193 = vpop.f32.mrb[0].mxu0
        %v4194 = vadd.f32 %v3350, %v4193
        %v4195 = vpop.f32.mrb[0].mxu0
        %4196 = vmatprep.mubr.f32.mxu0 0.0
        %v4197 = vand.u32 %v852, 4294901760
        %v4198 = vsub.f32 %v852, %v4197
        %v4199 = vand.u32 %v4198, 4294901760
        %4200 = vmatmul.mubr.f32.gmra.mrb[0].mxu0 %v4199
        %v4201 = vpop.f32.mrb[0].mxu0
        %v4202 = vadd.f32 %v3357, %v4201
        %v4203 = vpop.f32.mrb[0].mxu0
        %4204 = vmatprep.mubr.f32.mxu0 0.0
        %v4205 = vand.u32 %v853, 4294901760
        %v4206 = vsub.f32 %v853, %v4205
        %v4207 = vand.u32 %v4206, 4294901760
        %4208 = vmatmul.mubr.f32.gmra.mrb[0].mxu0 %v4207
        %v4209 = vpop.f32.mrb[0].mxu0
        %v4210 = vadd.f32 %v3364, %v4209
        %v4211 = vpop.f32.mrb[0].mxu0
        %4212 = vmatprep.mubr.f32.mxu0 0.0
        %v4213 = vand.u32 %v854, 4294901760
        %v4214 = vsub.f32 %v854, %v4213
        %v4215 = vand.u32 %v4214, 4294901760
        %4216 = vmatmul.mubr.f32.gmra.mrb[0].mxu0 %v4215
        %v4217 = vpop.f32.mrb[0].mxu0
        %v4218 = vadd.f32 %v3371, %v4217
        %v4219 = vpop.f32.mrb[0].mxu0
        %4220 = vmatprep.mubr.f32.mxu0 0.0
        %v4221 = vand.u32 %v855, 4294901760
        %v4222 = vsub.f32 %v855, %v4221
        %v4223 = vand.u32 %v4222, 4294901760
        %4224 = vmatmul.mubr.f32.gmra.mrb[0].mxu0 %v4223
        %v4225 = vpop.f32.mrb[0].mxu0
        %v4226 = vadd.f32 %v3378, %v4225
        %v4227 = vpop.f32.mrb[0].mxu0
        %4228 = vmatprep.mubr.f32.mxu0 0.0
        %v4229 = vand.u32 %v856, 4294901760
        %v4230 = vsub.f32 %v856, %v4229
        %v4231 = vand.u32 %v4230, 4294901760
        %4232 = vmatmul.mubr.f32.gmra.mrb[0].mxu0 %v4231
        %v4233 = vpop.f32.mrb[0].mxu0
        %v4234 = vadd.f32 %v3385, %v4233
        %v4235 = vpop.f32.mrb[0].mxu0
        %4236 = vdwg.mxu0
        %4237 = vmatprep.subr.mxu0 0.0
        %v4238 = vand.u32 %v167, 4294901760
        %v4239 = vsub.f32 %v167, %v4238
        %v4240 = vand.u32 %v4239, 4294901760
        %4241 = vmatpush1.msra.mxu0 %v4240
        %4242 = vmatprep.subr.mxu0 0.0
        %v4243 = vand.u32 %v168, 4294901760
        %v4244 = vsub.f32 %v168, %v4243
        %v4245 = vand.u32 %v4244, 4294901760
        %4246 = vmatpush1.msra.mxu0 %v4245
        %4247 = vmatprep.subr.mxu0 0.0
        %v4248 = vand.u32 %v169, 4294901760
        %v4249 = vsub.f32 %v169, %v4248
        %v4250 = vand.u32 %v4249, 4294901760
        %4251 = vmatpush1.msra.mxu0 %v4250
        %4252 = vmatprep.subr.mxu0 0.0
        %v4253 = vand.u32 %v170, 4294901760
        %v4254 = vsub.f32 %v170, %v4253
        %v4255 = vand.u32 %v4254, 4294901760
        %4256 = vmatpush1.msra.mxu0 %v4255
        %4257 = vmatprep.subr.mxu0 0.0
        %v4258 = vand.u32 %v171, 4294901760
        %v4259 = vsub.f32 %v171, %v4258
        %v4260 = vand.u32 %v4259, 4294901760
        %4261 = vmatpush1.msra.mxu0 %v4260
        %4262 = vmatprep.subr.mxu0 0.0
        %v4263 = vand.u32 %v172, 4294901760
        %v4264 = vsub.f32 %v172, %v4263
        %v4265 = vand.u32 %v4264, 4294901760
        %4266 = vmatpush1.msra.mxu0 %v4265
        %4267 = vmatprep.subr.mxu0 0.0
        %v4268 = vand.u32 %v173, 4294901760
        %v4269 = vsub.f32 %v173, %v4268
        %v4270 = vand.u32 %v4269, 4294901760
        %4271 = vmatpush1.msra.mxu0 %v4270
        %4272 = vmatprep.subr.mxu0 0.0
        %v4273 = vand.u32 %v174, 4294901760
        %v4274 = vsub.f32 %v174, %v4273
        %v4275 = vand.u32 %v4274, 4294901760
        %4276 = vmatpush1.msra.mxu0 %v4275
        %4277 = vmatprep.subr.mxu0 0.0
        %v4278 = vand.u32 %v175, 4294901760
        %v4279 = vsub.f32 %v175, %v4278
        %v4280 = vand.u32 %v4279, 4294901760
        %4281 = vmatpush1.msra.mxu0 %v4280
        %4282 = vmatprep.subr.mxu0 0.0
        %v4283 = vand.u32 %v176, 4294901760
        %v4284 = vsub.f32 %v176, %v4283
        %v4285 = vand.u32 %v4284, 4294901760
        %4286 = vmatpush1.msra.mxu0 %v4285
        %4287 = vmatprep.subr.mxu0 0.0
        %v4288 = vand.u32 %v177, 4294901760
        %v4289 = vsub.f32 %v177, %v4288
        %v4290 = vand.u32 %v4289, 4294901760
        %4291 = vmatpush1.msra.mxu0 %v4290
        %4292 = vmatprep.subr.mxu0 0.0
        %v4293 = vand.u32 %v178, 4294901760
        %v4294 = vsub.f32 %v178, %v4293
        %v4295 = vand.u32 %v4294, 4294901760
        %4296 = vmatpush1.msra.mxu0 %v4295
        %4297 = vmatprep.subr.mxu0 0.0
        %v4298 = vand.u32 %v179, 4294901760
        %v4299 = vsub.f32 %v179, %v4298
        %v4300 = vand.u32 %v4299, 4294901760
        %4301 = vmatpush1.msra.mxu0 %v4300
        %4302 = vmatprep.subr.mxu0 0.0
        %v4303 = vand.u32 %v180, 4294901760
        %v4304 = vsub.f32 %v180, %v4303
        %v4305 = vand.u32 %v4304, 4294901760
        %4306 = vmatpush1.msra.mxu0 %v4305
        %4307 = vmatprep.subr.mxu0 0.0
        %v4308 = vand.u32 %v181, 4294901760
        %v4309 = vsub.f32 %v181, %v4308
        %v4310 = vand.u32 %v4309, 4294901760
        %4311 = vmatpush1.msra.mxu0 %v4310
        %4312 = vmatprep.subr.mxu0 0.0
        %v4313 = vand.u32 %v182, 4294901760
        %v4314 = vsub.f32 %v182, %v4313
        %v4315 = vand.u32 %v4314, 4294901760
        %4316 = vmatpush1.msra.mxu0 %v4315
        %4317 = vmatprep.subr.mxu0 0.0
        %4318 = vmatpush1.msra.mxu0 0.0
        %4319 = vmatprep.subr.mxu0 0.0
        %4320 = vmatpush1.msra.mxu0 0.0
        %4321 = vmatprep.subr.mxu0 0.0
        %4322 = vmatpush1.msra.mxu0 0.0
        %4323 = vmatprep.subr.mxu0 0.0
        %4324 = vmatpush1.msra.mxu0 0.0
        %4325 = vmatprep.subr.mxu0 0.0
        %4326 = vmatpush1.msra.mxu0 0.0
        %4327 = vmatprep.subr.mxu0 0.0
        %4328 = vmatpush1.msra.mxu0 0.0
        %4329 = vmatprep.subr.mxu0 0.0
        %4330 = vmatpush1.msra.mxu0 0.0
        %4331 = vmatprep.subr.mxu0 0.0
        %4332 = vmatpush1.msra.mxu0 0.0
        %4333 = vmatprep.subr.mxu0 0.0
        %4334 = vmatpush1.msra.mxu0 0.0
        %4335 = vmatprep.subr.mxu0 0.0
        %4336 = vmatpush1.msra.mxu0 0.0
        %4337 = vmatprep.subr.mxu0 0.0
        %4338 = vmatpush1.msra.mxu0 0.0
        %4339 = vmatprep.subr.mxu0 0.0
        %4340 = vmatpush1.msra.mxu0 0.0
        %4341 = vmatprep.subr.mxu0 0.0
        %4342 = vmatpush1.msra.mxu0 0.0
        %4343 = vmatprep.subr.mxu0 0.0
        %4344 = vmatpush1.msra.mxu0 0.0
        %4345 = vmatprep.subr.mxu0 0.0
        %4346 = vmatpush1.msra.mxu0 0.0
        %4347 = vmatprep.subr.mxu0 0.0
        %4348 = vmatpush1.msra.mxu0 0.0
        %4349 = vmatprep.mubr.f32.mxu0 0.0
        %v4350 = vand.u32 %v761, 4294901760
        %4351 = vmatmul.mubr.f32.gmra.mrb[0].mxu0 %v4350
        %v4352 = vpop.f32.mrb[0].mxu0
        %v4353 = vadd.f32 %v3474, %v4352
        %v4354 = vpop.f32.mrb[0].mxu0
        %4355 = vmatprep.mubr.f32.mxu0 0.0
        %v4356 = vand.u32 %v762, 4294901760
        %4357 = vmatmul.mubr.f32.gmra.mrb[0].mxu0 %v4356
        %v4358 = vpop.f32.mrb[0].mxu0
        %v4359 = vadd.f32 %v3482, %v4358
        %v4360 = vpop.f32.mrb[0].mxu0
        %4361 = vmatprep.mubr.f32.mxu0 0.0
        %v4362 = vand.u32 %v763, 4294901760
        %4363 = vmatmul.mubr.f32.gmra.mrb[0].mxu0 %v4362
        %v4364 = vpop.f32.mrb[0].mxu0
        %v4365 = vadd.f32 %v3490, %v4364
        %v4366 = vpop.f32.mrb[0].mxu0
        %4367 = vmatprep.mubr.f32.mxu0 0.0
        %v4368 = vand.u32 %v764, 4294901760
        %4369 = vmatmul.mubr.f32.gmra.mrb[0].mxu0 %v4368
        %v4370 = vpop.f32.mrb[0].mxu0
        %v4371 = vadd.f32 %v3498, %v4370
        %v4372 = vpop.f32.mrb[0].mxu0
        %4373 = vmatprep.mubr.f32.mxu0 0.0
        %v4374 = vand.u32 %v765, 4294901760
        %4375 = vmatmul.mubr.f32.gmra.mrb[0].mxu0 %v4374
        %v4376 = vpop.f32.mrb[0].mxu0
        %v4377 = vadd.f32 %v3506, %v4376
        %v4378 = vpop.f32.mrb[0].mxu0
        %4379 = vmatprep.mubr.f32.mxu0 0.0
        %v4380 = vand.u32 %v766, 4294901760
        %4381 = vmatmul.mubr.f32.gmra.mrb[0].mxu0 %v4380
        %v4382 = vpop.f32.mrb[0].mxu0
        %v4383 = vadd.f32 %v3514, %v4382
        %v4384 = vpop.f32.mrb[0].mxu0
        %4385 = vmatprep.mubr.f32.mxu0 0.0
        %v4386 = vand.u32 %v767, 4294901760
        %4387 = vmatmul.mubr.f32.gmra.mrb[0].mxu0 %v4386
        %v4388 = vpop.f32.mrb[0].mxu0
        %v4389 = vadd.f32 %v3522, %v4388
        %v4390 = vpop.f32.mrb[0].mxu0
        %4391 = vmatprep.mubr.f32.mxu0 0.0
        %v4392 = vand.u32 %v768, 4294901760
        %4393 = vmatmul.mubr.f32.gmra.mrb[0].mxu0 %v4392
        %v4394 = vpop.f32.mrb[0].mxu0
        %v4395 = vadd.f32 %v3530, %v4394
        %v4396 = vpop.f32.mrb[0].mxu0
        %4397 = vmatprep.mubr.f32.mxu0 0.0
        %v4398 = vand.u32 %v769, 4294901760
        %4399 = vmatmul.mubr.f32.gmra.mrb[0].mxu0 %v4398
        %v4400 = vpop.f32.mrb[0].mxu0
        %v4401 = vadd.f32 %v3538, %v4400
        %v4402 = vpop.f32.mrb[0].mxu0
        %4403 = vmatprep.mubr.f32.mxu0 0.0
        %v4404 = vand.u32 %v770, 4294901760
        %4405 = vmatmul.mubr.f32.gmra.mrb[0].mxu0 %v4404
        %v4406 = vpop.f32.mrb[0].mxu0
        %v4407 = vadd.f32 %v3546, %v4406
        %v4408 = vpop.f32.mrb[0].mxu0
        %4409 = vmatprep.mubr.f32.mxu0 0.0
        %v4410 = vand.u32 %v771, 4294901760
        %4411 = vmatmul.mubr.f32.gmra.mrb[0].mxu0 %v4410
        %v4412 = vpop.f32.mrb[0].mxu0
        %v4413 = vadd.f32 %v3554, %v4412
        %v4414 = vpop.f32.mrb[0].mxu0
        %4415 = vmatprep.mubr.f32.mxu0 0.0
        %v4416 = vand.u32 %v772, 4294901760
        %4417 = vmatmul.mubr.f32.gmra.mrb[0].mxu0 %v4416
        %v4418 = vpop.f32.mrb[0].mxu0
        %v4419 = vadd.f32 %v3562, %v4418
        %v4420 = vpop.f32.mrb[0].mxu0
        %4421 = vmatprep.mubr.f32.mxu0 0.0
        %v4422 = vand.u32 %v773, 4294901760
        %4423 = vmatmul.mubr.f32.gmra.mrb[0].mxu0 %v4422
        %v4424 = vpop.f32.mrb[0].mxu0
        %v4425 = vadd.f32 %v3570, %v4424
        %v4426 = vpop.f32.mrb[0].mxu0
        %4427 = vmatprep.mubr.f32.mxu0 0.0
        %v4428 = vand.u32 %v774, 4294901760
        %4429 = vmatmul.mubr.f32.gmra.mrb[0].mxu0 %v4428
        %v4430 = vpop.f32.mrb[0].mxu0
        %v4431 = vadd.f32 %v3578, %v4430
        %v4432 = vpop.f32.mrb[0].mxu0
        %4433 = vmatprep.mubr.f32.mxu0 0.0
        %v4434 = vand.u32 %v775, 4294901760
        %4435 = vmatmul.mubr.f32.gmra.mrb[0].mxu0 %v4434
        %v4436 = vpop.f32.mrb[0].mxu0
        %v4437 = vadd.f32 %v3586, %v4436
        %v4438 = vpop.f32.mrb[0].mxu0
        %4439 = vmatprep.mubr.f32.mxu0 0.0
        %v4440 = vand.u32 %v776, 4294901760
        %4441 = vmatmul.mubr.f32.gmra.mrb[0].mxu0 %v4440
        %v4442 = vpop.f32.mrb[0].mxu0
        %v4443 = vadd.f32 %v3594, %v4442
        %v4444 = vpop.f32.mrb[0].mxu0
        %4445 = vmatprep.mubr.f32.mxu0 0.0
        %v4446 = vand.u32 %v777, 4294901760
        %4447 = vmatmul.mubr.f32.gmra.mrb[0].mxu0 %v4446
        %v4448 = vpop.f32.mrb[0].mxu0
        %v4449 = vadd.f32 %v3602, %v4448
        %v4450 = vpop.f32.mrb[0].mxu0
        %4451 = vmatprep.mubr.f32.mxu0 0.0
        %v4452 = vand.u32 %v778, 4294901760
        %4453 = vmatmul.mubr.f32.gmra.mrb[0].mxu0 %v4452
        %v4454 = vpop.f32.mrb[0].mxu0
        %v4455 = vadd.f32 %v3610, %v4454
        %v4456 = vpop.f32.mrb[0].mxu0
        %4457 = vmatprep.mubr.f32.mxu0 0.0
        %v4458 = vand.u32 %v779, 4294901760
        %4459 = vmatmul.mubr.f32.gmra.mrb[0].mxu0 %v4458
        %v4460 = vpop.f32.mrb[0].mxu0
        %v4461 = vadd.f32 %v3618, %v4460
        %v4462 = vpop.f32.mrb[0].mxu0
        %4463 = vmatprep.mubr.f32.mxu0 0.0
        %v4464 = vand.u32 %v780, 4294901760
        %4465 = vmatmul.mubr.f32.gmra.mrb[0].mxu0 %v4464
        %v4466 = vpop.f32.mrb[0].mxu0
        %v4467 = vadd.f32 %v3626, %v4466
        %v4468 = vpop.f32.mrb[0].mxu0
        %4469 = vmatprep.mubr.f32.mxu0 0.0
        %v4470 = vand.u32 %v781, 4294901760
        %4471 = vmatmul.mubr.f32.gmra.mrb[0].mxu0 %v4470
        %v4472 = vpop.f32.mrb[0].mxu0
        %v4473 = vadd.f32 %v3634, %v4472
        %v4474 = vpop.f32.mrb[0].mxu0
        %4475 = vmatprep.mubr.f32.mxu0 0.0
        %v4476 = vand.u32 %v782, 4294901760
        %4477 = vmatmul.mubr.f32.gmra.mrb[0].mxu0 %v4476
        %v4478 = vpop.f32.mrb[0].mxu0
        %v4479 = vadd.f32 %v3642, %v4478
        %v4480 = vpop.f32.mrb[0].mxu0
        %4481 = vmatprep.mubr.f32.mxu0 0.0
        %v4482 = vand.u32 %v783, 4294901760
        %4483 = vmatmul.mubr.f32.gmra.mrb[0].mxu0 %v4482
        %v4484 = vpop.f32.mrb[0].mxu0
        %v4485 = vadd.f32 %v3650, %v4484
        %v4486 = vpop.f32.mrb[0].mxu0
        %4487 = vmatprep.mubr.f32.mxu0 0.0
        %v4488 = vand.u32 %v784, 4294901760
        %4489 = vmatmul.mubr.f32.gmra.mrb[0].mxu0 %v4488
        %v4490 = vpop.f32.mrb[0].mxu0
        %v4491 = vadd.f32 %v3658, %v4490
        %v4492 = vpop.f32.mrb[0].mxu0
        %4493 = vmatprep.mubr.f32.mxu0 0.0
        %v4494 = vand.u32 %v785, 4294901760
        %4495 = vmatmul.mubr.f32.gmra.mrb[0].mxu0 %v4494
        %v4496 = vpop.f32.mrb[0].mxu0
        %v4497 = vadd.f32 %v3666, %v4496
        %v4498 = vpop.f32.mrb[0].mxu0
        %4499 = vmatprep.mubr.f32.mxu0 0.0
        %v4500 = vand.u32 %v786, 4294901760
        %4501 = vmatmul.mubr.f32.gmra.mrb[0].mxu0 %v4500
        %v4502 = vpop.f32.mrb[0].mxu0
        %v4503 = vadd.f32 %v3674, %v4502
        %v4504 = vpop.f32.mrb[0].mxu0
        %4505 = vmatprep.mubr.f32.mxu0 0.0
        %v4506 = vand.u32 %v787, 4294901760
        %4507 = vmatmul.mubr.f32.gmra.mrb[0].mxu0 %v4506
        %v4508 = vpop.f32.mrb[0].mxu0
        %v4509 = vadd.f32 %v3682, %v4508
        %v4510 = vpop.f32.mrb[0].mxu0
        %4511 = vmatprep.mubr.f32.mxu0 0.0
        %v4512 = vand.u32 %v788, 4294901760
        %4513 = vmatmul.mubr.f32.gmra.mrb[0].mxu0 %v4512
        %v4514 = vpop.f32.mrb[0].mxu0
        %v4515 = vadd.f32 %v3690, %v4514
        %v4516 = vpop.f32.mrb[0].mxu0
        %4517 = vmatprep.mubr.f32.mxu0 0.0
        %v4518 = vand.u32 %v789, 4294901760
        %4519 = vmatmul.mubr.f32.gmra.mrb[0].mxu0 %v4518
        %v4520 = vpop.f32.mrb[0].mxu0
        %v4521 = vadd.f32 %v3698, %v4520
        %v4522 = vpop.f32.mrb[0].mxu0
        %4523 = vmatprep.mubr.f32.mxu0 0.0
        %v4524 = vand.u32 %v790, 4294901760
        %4525 = vmatmul.mubr.f32.gmra.mrb[0].mxu0 %v4524
        %v4526 = vpop.f32.mrb[0].mxu0
        %v4527 = vadd.f32 %v3706, %v4526
        %v4528 = vpop.f32.mrb[0].mxu0
        %4529 = vmatprep.mubr.f32.mxu0 0.0
        %v4530 = vand.u32 %v791, 4294901760
        %4531 = vmatmul.mubr.f32.gmra.mrb[0].mxu0 %v4530
        %v4532 = vpop.f32.mrb[0].mxu0
        %v4533 = vadd.f32 %v3714, %v4532
        %v4534 = vpop.f32.mrb[0].mxu0
        %4535 = vmatprep.mubr.f32.mxu0 0.0
        %v4536 = vand.u32 %v792, 4294901760
        %4537 = vmatmul.mubr.f32.gmra.mrb[0].mxu0 %v4536
        %v4538 = vpop.f32.mrb[0].mxu0
        %v4539 = vadd.f32 %v3722, %v4538
        %v4540 = vpop.f32.mrb[0].mxu0
        %4541 = vmatprep.mubr.f32.mxu0 0.0
        %v4542 = vand.u32 %v793, 4294901760
        %4543 = vmatmul.mubr.f32.gmra.mrb[0].mxu0 %v4542
        %v4544 = vpop.f32.mrb[0].mxu0
        %v4545 = vadd.f32 %v3730, %v4544
        %v4546 = vpop.f32.mrb[0].mxu0
        %4547 = vmatprep.mubr.f32.mxu0 0.0
        %v4548 = vand.u32 %v794, 4294901760
        %4549 = vmatmul.mubr.f32.gmra.mrb[0].mxu0 %v4548
        %v4550 = vpop.f32.mrb[0].mxu0
        %v4551 = vadd.f32 %v3738, %v4550
        %v4552 = vpop.f32.mrb[0].mxu0
        %4553 = vmatprep.mubr.f32.mxu0 0.0
        %v4554 = vand.u32 %v795, 4294901760
        %4555 = vmatmul.mubr.f32.gmra.mrb[0].mxu0 %v4554
        %v4556 = vpop.f32.mrb[0].mxu0
        %v4557 = vadd.f32 %v3746, %v4556
        %v4558 = vpop.f32.mrb[0].mxu0
        %4559 = vmatprep.mubr.f32.mxu0 0.0
        %v4560 = vand.u32 %v796, 4294901760
        %4561 = vmatmul.mubr.f32.gmra.mrb[0].mxu0 %v4560
        %v4562 = vpop.f32.mrb[0].mxu0
        %v4563 = vadd.f32 %v3754, %v4562
        %v4564 = vpop.f32.mrb[0].mxu0
        %4565 = vmatprep.mubr.f32.mxu0 0.0
        %v4566 = vand.u32 %v797, 4294901760
        %4567 = vmatmul.mubr.f32.gmra.mrb[0].mxu0 %v4566
        %v4568 = vpop.f32.mrb[0].mxu0
        %v4569 = vadd.f32 %v3762, %v4568
        %v4570 = vpop.f32.mrb[0].mxu0
        %4571 = vmatprep.mubr.f32.mxu0 0.0
        %v4572 = vand.u32 %v798, 4294901760
        %4573 = vmatmul.mubr.f32.gmra.mrb[0].mxu0 %v4572
        %v4574 = vpop.f32.mrb[0].mxu0
        %v4575 = vadd.f32 %v3770, %v4574
        %v4576 = vpop.f32.mrb[0].mxu0
        %4577 = vmatprep.mubr.f32.mxu0 0.0
        %v4578 = vand.u32 %v799, 4294901760
        %4579 = vmatmul.mubr.f32.gmra.mrb[0].mxu0 %v4578
        %v4580 = vpop.f32.mrb[0].mxu0
        %v4581 = vadd.f32 %v3778, %v4580
        %v4582 = vpop.f32.mrb[0].mxu0
        %4583 = vmatprep.mubr.f32.mxu0 0.0
        %v4584 = vand.u32 %v800, 4294901760
        %4585 = vmatmul.mubr.f32.gmra.mrb[0].mxu0 %v4584
        %v4586 = vpop.f32.mrb[0].mxu0
        %v4587 = vadd.f32 %v3786, %v4586
        %v4588 = vpop.f32.mrb[0].mxu0
        %4589 = vmatprep.mubr.f32.mxu0 0.0
        %v4590 = vand.u32 %v801, 4294901760
        %4591 = vmatmul.mubr.f32.gmra.mrb[0].mxu0 %v4590
        %v4592 = vpop.f32.mrb[0].mxu0
        %v4593 = vadd.f32 %v3794, %v4592
        %v4594 = vpop.f32.mrb[0].mxu0
        %4595 = vmatprep.mubr.f32.mxu0 0.0
        %v4596 = vand.u32 %v802, 4294901760
        %4597 = vmatmul.mubr.f32.gmra.mrb[0].mxu0 %v4596
        %v4598 = vpop.f32.mrb[0].mxu0
        %v4599 = vadd.f32 %v3802, %v4598
        %v4600 = vpop.f32.mrb[0].mxu0
        %4601 = vmatprep.mubr.f32.mxu0 0.0
        %v4602 = vand.u32 %v803, 4294901760
        %4603 = vmatmul.mubr.f32.gmra.mrb[0].mxu0 %v4602
        %v4604 = vpop.f32.mrb[0].mxu0
        %v4605 = vadd.f32 %v3810, %v4604
        %v4606 = vpop.f32.mrb[0].mxu0
        %4607 = vmatprep.mubr.f32.mxu0 0.0
        %v4608 = vand.u32 %v804, 4294901760
        %4609 = vmatmul.mubr.f32.gmra.mrb[0].mxu0 %v4608
        %v4610 = vpop.f32.mrb[0].mxu0
        %v4611 = vadd.f32 %v3818, %v4610
        %v4612 = vpop.f32.mrb[0].mxu0
        %4613 = vmatprep.mubr.f32.mxu0 0.0
        %v4614 = vand.u32 %v805, 4294901760
        %4615 = vmatmul.mubr.f32.gmra.mrb[0].mxu0 %v4614
        %v4616 = vpop.f32.mrb[0].mxu0
        %v4617 = vadd.f32 %v3826, %v4616
        %v4618 = vpop.f32.mrb[0].mxu0
        %4619 = vmatprep.mubr.f32.mxu0 0.0
        %v4620 = vand.u32 %v806, 4294901760
        %4621 = vmatmul.mubr.f32.gmra.mrb[0].mxu0 %v4620
        %v4622 = vpop.f32.mrb[0].mxu0
        %v4623 = vadd.f32 %v3834, %v4622
        %v4624 = vpop.f32.mrb[0].mxu0
        %4625 = vmatprep.mubr.f32.mxu0 0.0
        %v4626 = vand.u32 %v807, 4294901760
        %4627 = vmatmul.mubr.f32.gmra.mrb[0].mxu0 %v4626
        %v4628 = vpop.f32.mrb[0].mxu0
        %v4629 = vadd.f32 %v3842, %v4628
        %v4630 = vpop.f32.mrb[0].mxu0
        %4631 = vmatprep.mubr.f32.mxu0 0.0
        %v4632 = vand.u32 %v808, 4294901760
        %4633 = vmatmul.mubr.f32.gmra.mrb[0].mxu0 %v4632
        %v4634 = vpop.f32.mrb[0].mxu0
        %v4635 = vadd.f32 %v3850, %v4634
        %v4636 = vpop.f32.mrb[0].mxu0
        %4637 = vmatprep.mubr.f32.mxu0 0.0
        %v4638 = vand.u32 %v809, 4294901760
        %4639 = vmatmul.mubr.f32.gmra.mrb[0].mxu0 %v4638
        %v4640 = vpop.f32.mrb[0].mxu0
        %v4641 = vadd.f32 %v3858, %v4640
        %v4642 = vpop.f32.mrb[0].mxu0
        %4643 = vmatprep.mubr.f32.mxu0 0.0
        %v4644 = vand.u32 %v810, 4294901760
        %4645 = vmatmul.mubr.f32.gmra.mrb[0].mxu0 %v4644
        %v4646 = vpop.f32.mrb[0].mxu0
        %v4647 = vadd.f32 %v3866, %v4646
        %v4648 = vpop.f32.mrb[0].mxu0
        %4649 = vmatprep.mubr.f32.mxu0 0.0
        %v4650 = vand.u32 %v811, 4294901760
        %4651 = vmatmul.mubr.f32.gmra.mrb[0].mxu0 %v4650
        %v4652 = vpop.f32.mrb[0].mxu0
        %v4653 = vadd.f32 %v3874, %v4652
        %v4654 = vpop.f32.mrb[0].mxu0
        %4655 = vmatprep.mubr.f32.mxu0 0.0
        %v4656 = vand.u32 %v812, 4294901760
        %4657 = vmatmul.mubr.f32.gmra.mrb[0].mxu0 %v4656
        %v4658 = vpop.f32.mrb[0].mxu0
        %v4659 = vadd.f32 %v3882, %v4658
        %v4660 = vpop.f32.mrb[0].mxu0
        %4661 = vmatprep.mubr.f32.mxu0 0.0
        %v4662 = vand.u32 %v813, 4294901760
        %4663 = vmatmul.mubr.f32.gmra.mrb[0].mxu0 %v4662
        %v4664 = vpop.f32.mrb[0].mxu0
        %v4665 = vadd.f32 %v3890, %v4664
        %v4666 = vpop.f32.mrb[0].mxu0
        %4667 = vmatprep.mubr.f32.mxu0 0.0
        %v4668 = vand.u32 %v814, 4294901760
        %4669 = vmatmul.mubr.f32.gmra.mrb[0].mxu0 %v4668
        %v4670 = vpop.f32.mrb[0].mxu0
        %v4671 = vadd.f32 %v3898, %v4670
        %v4672 = vpop.f32.mrb[0].mxu0
        %4673 = vmatprep.mubr.f32.mxu0 0.0
        %v4674 = vand.u32 %v815, 4294901760
        %4675 = vmatmul.mubr.f32.gmra.mrb[0].mxu0 %v4674
        %v4676 = vpop.f32.mrb[0].mxu0
        %v4677 = vadd.f32 %v3906, %v4676
        %v4678 = vpop.f32.mrb[0].mxu0
        %4679 = vmatprep.mubr.f32.mxu0 0.0
        %v4680 = vand.u32 %v816, 4294901760
        %4681 = vmatmul.mubr.f32.gmra.mrb[0].mxu0 %v4680
        %v4682 = vpop.f32.mrb[0].mxu0
        %v4683 = vadd.f32 %v3914, %v4682
        %v4684 = vpop.f32.mrb[0].mxu0
        %4685 = vmatprep.mubr.f32.mxu0 0.0
        %v4686 = vand.u32 %v817, 4294901760
        %4687 = vmatmul.mubr.f32.gmra.mrb[0].mxu0 %v4686
        %v4688 = vpop.f32.mrb[0].mxu0
        %v4689 = vadd.f32 %v3922, %v4688
        %v4690 = vpop.f32.mrb[0].mxu0
        %4691 = vmatprep.mubr.f32.mxu0 0.0
        %v4692 = vand.u32 %v818, 4294901760
        %4693 = vmatmul.mubr.f32.gmra.mrb[0].mxu0 %v4692
        %v4694 = vpop.f32.mrb[0].mxu0
        %v4695 = vadd.f32 %v3930, %v4694
        %v4696 = vpop.f32.mrb[0].mxu0
        %4697 = vmatprep.mubr.f32.mxu0 0.0
        %v4698 = vand.u32 %v819, 4294901760
        %4699 = vmatmul.mubr.f32.gmra.mrb[0].mxu0 %v4698
        %v4700 = vpop.f32.mrb[0].mxu0
        %v4701 = vadd.f32 %v3938, %v4700
        %v4702 = vpop.f32.mrb[0].mxu0
        %4703 = vmatprep.mubr.f32.mxu0 0.0
        %v4704 = vand.u32 %v820, 4294901760
        %4705 = vmatmul.mubr.f32.gmra.mrb[0].mxu0 %v4704
        %v4706 = vpop.f32.mrb[0].mxu0
        %v4707 = vadd.f32 %v3946, %v4706
        %v4708 = vpop.f32.mrb[0].mxu0
        %4709 = vmatprep.mubr.f32.mxu0 0.0
        %v4710 = vand.u32 %v821, 4294901760
        %4711 = vmatmul.mubr.f32.gmra.mrb[0].mxu0 %v4710
        %v4712 = vpop.f32.mrb[0].mxu0
        %v4713 = vadd.f32 %v3954, %v4712
        %v4714 = vpop.f32.mrb[0].mxu0
        %4715 = vmatprep.mubr.f32.mxu0 0.0
        %v4716 = vand.u32 %v822, 4294901760
        %4717 = vmatmul.mubr.f32.gmra.mrb[0].mxu0 %v4716
        %v4718 = vpop.f32.mrb[0].mxu0
        %v4719 = vadd.f32 %v3962, %v4718
        %v4720 = vpop.f32.mrb[0].mxu0
        %4721 = vmatprep.mubr.f32.mxu0 0.0
        %v4722 = vand.u32 %v823, 4294901760
        %4723 = vmatmul.mubr.f32.gmra.mrb[0].mxu0 %v4722
        %v4724 = vpop.f32.mrb[0].mxu0
        %v4725 = vadd.f32 %v3970, %v4724
        %v4726 = vpop.f32.mrb[0].mxu0
        %4727 = vmatprep.mubr.f32.mxu0 0.0
        %v4728 = vand.u32 %v824, 4294901760
        %4729 = vmatmul.mubr.f32.gmra.mrb[0].mxu0 %v4728
        %v4730 = vpop.f32.mrb[0].mxu0
        %v4731 = vadd.f32 %v3978, %v4730
        %v4732 = vpop.f32.mrb[0].mxu0
        %4733 = vmatprep.mubr.f32.mxu0 0.0
        %v4734 = vand.u32 %v825, 4294901760
        %4735 = vmatmul.mubr.f32.gmra.mrb[0].mxu0 %v4734
        %v4736 = vpop.f32.mrb[0].mxu0
        %v4737 = vadd.f32 %v3986, %v4736
        %v4738 = vpop.f32.mrb[0].mxu0
        %4739 = vmatprep.mubr.f32.mxu0 0.0
        %v4740 = vand.u32 %v826, 4294901760
        %4741 = vmatmul.mubr.f32.gmra.mrb[0].mxu0 %v4740
        %v4742 = vpop.f32.mrb[0].mxu0
        %v4743 = vadd.f32 %v3994, %v4742
        %v4744 = vpop.f32.mrb[0].mxu0
        %4745 = vmatprep.mubr.f32.mxu0 0.0
        %v4746 = vand.u32 %v827, 4294901760
        %4747 = vmatmul.mubr.f32.gmra.mrb[0].mxu0 %v4746
        %v4748 = vpop.f32.mrb[0].mxu0
        %v4749 = vadd.f32 %v4002, %v4748
        %v4750 = vpop.f32.mrb[0].mxu0
        %4751 = vmatprep.mubr.f32.mxu0 0.0
        %v4752 = vand.u32 %v828, 4294901760
        %4753 = vmatmul.mubr.f32.gmra.mrb[0].mxu0 %v4752
        %v4754 = vpop.f32.mrb[0].mxu0
        %v4755 = vadd.f32 %v4010, %v4754
        %v4756 = vpop.f32.mrb[0].mxu0
        %4757 = vmatprep.mubr.f32.mxu0 0.0
        %v4758 = vand.u32 %v829, 4294901760
        %4759 = vmatmul.mubr.f32.gmra.mrb[0].mxu0 %v4758
        %v4760 = vpop.f32.mrb[0].mxu0
        %v4761 = vadd.f32 %v4018, %v4760
        %v4762 = vpop.f32.mrb[0].mxu0
        %4763 = vmatprep.mubr.f32.mxu0 0.0
        %v4764 = vand.u32 %v830, 4294901760
        %4765 = vmatmul.mubr.f32.gmra.mrb[0].mxu0 %v4764
        %v4766 = vpop.f32.mrb[0].mxu0
        %v4767 = vadd.f32 %v4026, %v4766
        %v4768 = vpop.f32.mrb[0].mxu0
        %4769 = vmatprep.mubr.f32.mxu0 0.0
        %v4770 = vand.u32 %v831, 4294901760
        %4771 = vmatmul.mubr.f32.gmra.mrb[0].mxu0 %v4770
        %v4772 = vpop.f32.mrb[0].mxu0
        %v4773 = vadd.f32 %v4034, %v4772
        %v4774 = vpop.f32.mrb[0].mxu0
        %4775 = vmatprep.mubr.f32.mxu0 0.0
        %v4776 = vand.u32 %v832, 4294901760
        %4777 = vmatmul.mubr.f32.gmra.mrb[0].mxu0 %v4776
        %v4778 = vpop.f32.mrb[0].mxu0
        %v4779 = vadd.f32 %v4042, %v4778
        %v4780 = vpop.f32.mrb[0].mxu0
        %4781 = vmatprep.mubr.f32.mxu0 0.0
        %v4782 = vand.u32 %v833, 4294901760
        %4783 = vmatmul.mubr.f32.gmra.mrb[0].mxu0 %v4782
        %v4784 = vpop.f32.mrb[0].mxu0
        %v4785 = vadd.f32 %v4050, %v4784
        %v4786 = vpop.f32.mrb[0].mxu0
        %4787 = vmatprep.mubr.f32.mxu0 0.0
        %v4788 = vand.u32 %v834, 4294901760
        %4789 = vmatmul.mubr.f32.gmra.mrb[0].mxu0 %v4788
        %v4790 = vpop.f32.mrb[0].mxu0
        %v4791 = vadd.f32 %v4058, %v4790
        %v4792 = vpop.f32.mrb[0].mxu0
        %4793 = vmatprep.mubr.f32.mxu0 0.0
        %v4794 = vand.u32 %v835, 4294901760
        %4795 = vmatmul.mubr.f32.gmra.mrb[0].mxu0 %v4794
        %v4796 = vpop.f32.mrb[0].mxu0
        %v4797 = vadd.f32 %v4066, %v4796
        %v4798 = vpop.f32.mrb[0].mxu0
        %4799 = vmatprep.mubr.f32.mxu0 0.0
        %v4800 = vand.u32 %v836, 4294901760
        %4801 = vmatmul.mubr.f32.gmra.mrb[0].mxu0 %v4800
        %v4802 = vpop.f32.mrb[0].mxu0
        %v4803 = vadd.f32 %v4074, %v4802
        %v4804 = vpop.f32.mrb[0].mxu0
        %4805 = vmatprep.mubr.f32.mxu0 0.0
        %v4806 = vand.u32 %v837, 4294901760
        %4807 = vmatmul.mubr.f32.gmra.mrb[0].mxu0 %v4806
        %v4808 = vpop.f32.mrb[0].mxu0
        %v4809 = vadd.f32 %v4082, %v4808
        %v4810 = vpop.f32.mrb[0].mxu0
        %4811 = vmatprep.mubr.f32.mxu0 0.0
        %v4812 = vand.u32 %v838, 4294901760
        %4813 = vmatmul.mubr.f32.gmra.mrb[0].mxu0 %v4812
        %v4814 = vpop.f32.mrb[0].mxu0
        %v4815 = vadd.f32 %v4090, %v4814
        %v4816 = vpop.f32.mrb[0].mxu0
        %4817 = vmatprep.mubr.f32.mxu0 0.0
        %v4818 = vand.u32 %v839, 4294901760
        %4819 = vmatmul.mubr.f32.gmra.mrb[0].mxu0 %v4818
        %v4820 = vpop.f32.mrb[0].mxu0
        %v4821 = vadd.f32 %v4098, %v4820
        %v4822 = vpop.f32.mrb[0].mxu0
        %4823 = vmatprep.mubr.f32.mxu0 0.0
        %v4824 = vand.u32 %v840, 4294901760
        %4825 = vmatmul.mubr.f32.gmra.mrb[0].mxu0 %v4824
        %v4826 = vpop.f32.mrb[0].mxu0
        %v4827 = vadd.f32 %v4106, %v4826
        %v4828 = vpop.f32.mrb[0].mxu0
        %4829 = vmatprep.mubr.f32.mxu0 0.0
        %v4830 = vand.u32 %v841, 4294901760
        %4831 = vmatmul.mubr.f32.gmra.mrb[0].mxu0 %v4830
        %v4832 = vpop.f32.mrb[0].mxu0
        %v4833 = vadd.f32 %v4114, %v4832
        %v4834 = vpop.f32.mrb[0].mxu0
        %4835 = vmatprep.mubr.f32.mxu0 0.0
        %v4836 = vand.u32 %v842, 4294901760
        %4837 = vmatmul.mubr.f32.gmra.mrb[0].mxu0 %v4836
        %v4838 = vpop.f32.mrb[0].mxu0
        %v4839 = vadd.f32 %v4122, %v4838
        %v4840 = vpop.f32.mrb[0].mxu0
        %4841 = vmatprep.mubr.f32.mxu0 0.0
        %v4842 = vand.u32 %v843, 4294901760
        %4843 = vmatmul.mubr.f32.gmra.mrb[0].mxu0 %v4842
        %v4844 = vpop.f32.mrb[0].mxu0
        %v4845 = vadd.f32 %v4130, %v4844
        %v4846 = vpop.f32.mrb[0].mxu0
        %4847 = vmatprep.mubr.f32.mxu0 0.0
        %v4848 = vand.u32 %v844, 4294901760
        %4849 = vmatmul.mubr.f32.gmra.mrb[0].mxu0 %v4848
        %v4850 = vpop.f32.mrb[0].mxu0
        %v4851 = vadd.f32 %v4138, %v4850
        %v4852 = vpop.f32.mrb[0].mxu0
        %4853 = vmatprep.mubr.f32.mxu0 0.0
        %v4854 = vand.u32 %v845, 4294901760
        %4855 = vmatmul.mubr.f32.gmra.mrb[0].mxu0 %v4854
        %v4856 = vpop.f32.mrb[0].mxu0
        %v4857 = vadd.f32 %v4146, %v4856
        %v4858 = vpop.f32.mrb[0].mxu0
        %4859 = vmatprep.mubr.f32.mxu0 0.0
        %v4860 = vand.u32 %v846, 4294901760
        %4861 = vmatmul.mubr.f32.gmra.mrb[0].mxu0 %v4860
        %v4862 = vpop.f32.mrb[0].mxu0
        %v4863 = vadd.f32 %v4154, %v4862
        %v4864 = vpop.f32.mrb[0].mxu0
        %4865 = vmatprep.mubr.f32.mxu0 0.0
        %v4866 = vand.u32 %v847, 4294901760
        %4867 = vmatmul.mubr.f32.gmra.mrb[0].mxu0 %v4866
        %v4868 = vpop.f32.mrb[0].mxu0
        %v4869 = vadd.f32 %v4162, %v4868
        %v4870 = vpop.f32.mrb[0].mxu0
        %4871 = vmatprep.mubr.f32.mxu0 0.0
        %v4872 = vand.u32 %v848, 4294901760
        %4873 = vmatmul.mubr.f32.gmra.mrb[0].mxu0 %v4872
        %v4874 = vpop.f32.mrb[0].mxu0
        %v4875 = vadd.f32 %v4170, %v4874
        %v4876 = vpop.f32.mrb[0].mxu0
        %4877 = vmatprep.mubr.f32.mxu0 0.0
        %v4878 = vand.u32 %v849, 4294901760
        %4879 = vmatmul.mubr.f32.gmra.mrb[0].mxu0 %v4878
        %v4880 = vpop.f32.mrb[0].mxu0
        %v4881 = vadd.f32 %v4178, %v4880
        %v4882 = vpop.f32.mrb[0].mxu0
        %4883 = vmatprep.mubr.f32.mxu0 0.0
        %v4884 = vand.u32 %v850, 4294901760
        %4885 = vmatmul.mubr.f32.gmra.mrb[0].mxu0 %v4884
        %v4886 = vpop.f32.mrb[0].mxu0
        %v4887 = vadd.f32 %v4186, %v4886
        %v4888 = vpop.f32.mrb[0].mxu0
        %4889 = vmatprep.mubr.f32.mxu0 0.0
        %v4890 = vand.u32 %v851, 4294901760
        %4891 = vmatmul.mubr.f32.gmra.mrb[0].mxu0 %v4890
        %v4892 = vpop.f32.mrb[0].mxu0
        %v4893 = vadd.f32 %v4194, %v4892
        %v4894 = vpop.f32.mrb[0].mxu0
        %4895 = vmatprep.mubr.f32.mxu0 0.0
        %v4896 = vand.u32 %v852, 4294901760
        %4897 = vmatmul.mubr.f32.gmra.mrb[0].mxu0 %v4896
        %v4898 = vpop.f32.mrb[0].mxu0
        %v4899 = vadd.f32 %v4202, %v4898
        %v4900 = vpop.f32.mrb[0].mxu0
        %4901 = vmatprep.mubr.f32.mxu0 0.0
        %v4902 = vand.u32 %v853, 4294901760
        %4903 = vmatmul.mubr.f32.gmra.mrb[0].mxu0 %v4902
        %v4904 = vpop.f32.mrb[0].mxu0
        %v4905 = vadd.f32 %v4210, %v4904
        %v4906 = vpop.f32.mrb[0].mxu0
        %4907 = vmatprep.mubr.f32.mxu0 0.0
        %v4908 = vand.u32 %v854, 4294901760
        %4909 = vmatmul.mubr.f32.gmra.mrb[0].mxu0 %v4908
        %v4910 = vpop.f32.mrb[0].mxu0
        %v4911 = vadd.f32 %v4218, %v4910
        %v4912 = vpop.f32.mrb[0].mxu0
        %4913 = vmatprep.mubr.f32.mxu0 0.0
        %v4914 = vand.u32 %v855, 4294901760
        %4915 = vmatmul.mubr.f32.gmra.mrb[0].mxu0 %v4914
        %v4916 = vpop.f32.mrb[0].mxu0
        %v4917 = vadd.f32 %v4226, %v4916
        %v4918 = vpop.f32.mrb[0].mxu0
        %4919 = vmatprep.mubr.f32.mxu0 0.0
        %v4920 = vand.u32 %v856, 4294901760
        %4921 = vmatmul.mubr.f32.gmra.mrb[0].mxu0 %v4920
        %v4922 = vpop.f32.mrb[0].mxu0
        %v4923 = vadd.f32 %v4234, %v4922
        %v4924 = vpop.f32.mrb[0].mxu0
        %4925 = vdwg.mxu0
        %4926 = vmatprep.subr.mxu0 0.0
        %v4927 = vand.u32 %v167, 4294901760
        %4928 = vmatpush1.msra.mxu0 %v4927
        %4929 = vmatprep.subr.mxu0 0.0
        %v4930 = vand.u32 %v168, 4294901760
        %4931 = vmatpush1.msra.mxu0 %v4930
        %4932 = vmatprep.subr.mxu0 0.0
        %v4933 = vand.u32 %v169, 4294901760
        %4934 = vmatpush1.msra.mxu0 %v4933
        %4935 = vmatprep.subr.mxu0 0.0
        %v4936 = vand.u32 %v170, 4294901760
        %4937 = vmatpush1.msra.mxu0 %v4936
        %4938 = vmatprep.subr.mxu0 0.0
        %v4939 = vand.u32 %v171, 4294901760
        %4940 = vmatpush1.msra.mxu0 %v4939
        %4941 = vmatprep.subr.mxu0 0.0
        %v4942 = vand.u32 %v172, 4294901760
        %4943 = vmatpush1.msra.mxu0 %v4942
        %4944 = vmatprep.subr.mxu0 0.0
        %v4945 = vand.u32 %v173, 4294901760
        %4946 = vmatpush1.msra.mxu0 %v4945
        %4947 = vmatprep.subr.mxu0 0.0
        %v4948 = vand.u32 %v174, 4294901760
        %4949 = vmatpush1.msra.mxu0 %v4948
        %4950 = vmatprep.subr.mxu0 0.0
        %v4951 = vand.u32 %v175, 4294901760
        %4952 = vmatpush1.msra.mxu0 %v4951
        %4953 = vmatprep.subr.mxu0 0.0
        %v4954 = vand.u32 %v176, 4294901760
        %4955 = vmatpush1.msra.mxu0 %v4954
        %4956 = vmatprep.subr.mxu0 0.0
        %v4957 = vand.u32 %v177, 4294901760
        %4958 = vmatpush1.msra.mxu0 %v4957
        %4959 = vmatprep.subr.mxu0 0.0
        %v4960 = vand.u32 %v178, 4294901760
        %4961 = vmatpush1.msra.mxu0 %v4960
        %4962 = vmatprep.subr.mxu0 0.0
        %v4963 = vand.u32 %v179, 4294901760
        %4964 = vmatpush1.msra.mxu0 %v4963
        %4965 = vmatprep.subr.mxu0 0.0
        %v4966 = vand.u32 %v180, 4294901760
        %4967 = vmatpush1.msra.mxu0 %v4966
        %4968 = vmatprep.subr.mxu0 0.0
        %v4969 = vand.u32 %v181, 4294901760
        %4970 = vmatpush1.msra.mxu0 %v4969
        %4971 = vmatprep.subr.mxu0 0.0
        %v4972 = vand.u32 %v182, 4294901760
        %4973 = vmatpush1.msra.mxu0 %v4972
        %4974 = vmatprep.subr.mxu0 0.0
        %4975 = vmatpush1.msra.mxu0 0.0
        %4976 = vmatprep.subr.mxu0 0.0
        %4977 = vmatpush1.msra.mxu0 0.0
        %4978 = vmatprep.subr.mxu0 0.0
        %4979 = vmatpush1.msra.mxu0 0.0
        %4980 = vmatprep.subr.mxu0 0.0
        %4981 = vmatpush1.msra.mxu0 0.0
        %4982 = vmatprep.subr.mxu0 0.0
        %4983 = vmatpush1.msra.mxu0 0.0
        %4984 = vmatprep.subr.mxu0 0.0
        %4985 = vmatpush1.msra.mxu0 0.0
        %4986 = vmatprep.subr.mxu0 0.0
        %4987 = vmatpush1.msra.mxu0 0.0
        %4988 = vmatprep.subr.mxu0 0.0
        %4989 = vmatpush1.msra.mxu0 0.0
        %4990 = vmatprep.subr.mxu0 0.0
        %4991 = vmatpush1.msra.mxu0 0.0
        %4992 = vmatprep.subr.mxu0 0.0
        %4993 = vmatpush1.msra.mxu0 0.0
        %4994 = vmatprep.subr.mxu0 0.0
        %4995 = vmatpush1.msra.mxu0 0.0
        %4996 = vmatprep.subr.mxu0 0.0
        %4997 = vmatpush1.msra.mxu0 0.0
        %4998 = vmatprep.subr.mxu0 0.0
        %4999 = vmatpush1.msra.mxu0 0.0
        %5000 = vmatprep.subr.mxu0 0.0
        %5001 = vmatpush1.msra.mxu0 0.0
        %5002 = vmatprep.subr.mxu0 0.0
        %5003 = vmatpush1.msra.mxu0 0.0
        %5004 = vmatprep.subr.mxu0 0.0
        %5005 = vmatpush1.msra.mxu0 0.0
        %5006 = vmatprep.mubr.f32.mxu0 0.0
        %v5007 = vand.u32 %v761, 4294901760
        %5008 = vmatmul.mubr.f32.gmra.mrb[0].mxu0 %v5007
        %v5009 = vpop.f32.mrb[0].mxu0
        %v5010 = vadd.f32 %v4353, %v5009
        %v5011 = vpop.f32.mrb[0].mxu0
        %5012 = vmatprep.mubr.f32.mxu0 0.0
        %v5013 = vand.u32 %v762, 4294901760
        %5014 = vmatmul.mubr.f32.gmra.mrb[0].mxu0 %v5013
        %v5015 = vpop.f32.mrb[0].mxu0
        %v5016 = vadd.f32 %v4359, %v5015
        %v5017 = vpop.f32.mrb[0].mxu0
        %5018 = vmatprep.mubr.f32.mxu0 0.0
        %v5019 = vand.u32 %v763, 4294901760
        %5020 = vmatmul.mubr.f32.gmra.mrb[0].mxu0 %v5019
        %v5021 = vpop.f32.mrb[0].mxu0
        %v5022 = vadd.f32 %v4365, %v5021
        %v5023 = vpop.f32.mrb[0].mxu0
        %5024 = vmatprep.mubr.f32.mxu0 0.0
        %v5025 = vand.u32 %v764, 4294901760
        %5026 = vmatmul.mubr.f32.gmra.mrb[0].mxu0 %v5025
        %v5027 = vpop.f32.mrb[0].mxu0
        %v5028 = vadd.f32 %v4371, %v5027
        %v5029 = vpop.f32.mrb[0].mxu0
        %5030 = vmatprep.mubr.f32.mxu0 0.0
        %v5031 = vand.u32 %v765, 4294901760
        %5032 = vmatmul.mubr.f32.gmra.mrb[0].mxu0 %v5031
        %v5033 = vpop.f32.mrb[0].mxu0
        %v5034 = vadd.f32 %v4377, %v5033
        %v5035 = vpop.f32.mrb[0].mxu0
        %5036 = vmatprep.mubr.f32.mxu0 0.0
        %v5037 = vand.u32 %v766, 4294901760
        %5038 = vmatmul.mubr.f32.gmra.mrb[0].mxu0 %v5037
        %v5039 = vpop.f32.mrb[0].mxu0
        %v5040 = vadd.f32 %v4383, %v5039
        %v5041 = vpop.f32.mrb[0].mxu0
        %5042 = vmatprep.mubr.f32.mxu0 0.0
        %v5043 = vand.u32 %v767, 4294901760
        %5044 = vmatmul.mubr.f32.gmra.mrb[0].mxu0 %v5043
        %v5045 = vpop.f32.mrb[0].mxu0
        %v5046 = vadd.f32 %v4389, %v5045
        %v5047 = vpop.f32.mrb[0].mxu0
        %5048 = vmatprep.mubr.f32.mxu0 0.0
        %v5049 = vand.u32 %v768, 4294901760
        %5050 = vmatmul.mubr.f32.gmra.mrb[0].mxu0 %v5049
        %v5051 = vpop.f32.mrb[0].mxu0
        %v5052 = vadd.f32 %v4395, %v5051
        %v5053 = vpop.f32.mrb[0].mxu0
        %5054 = vmatprep.mubr.f32.mxu0 0.0
        %v5055 = vand.u32 %v769, 4294901760
        %5056 = vmatmul.mubr.f32.gmra.mrb[0].mxu0 %v5055
        %v5057 = vpop.f32.mrb[0].mxu0
        %v5058 = vadd.f32 %v4401, %v5057
        %v5059 = vpop.f32.mrb[0].mxu0
        %5060 = vmatprep.mubr.f32.mxu0 0.0
        %v5061 = vand.u32 %v770, 4294901760
        %5062 = vmatmul.mubr.f32.gmra.mrb[0].mxu0 %v5061
        %v5063 = vpop.f32.mrb[0].mxu0
        %v5064 = vadd.f32 %v4407, %v5063
        %v5065 = vpop.f32.mrb[0].mxu0
        %5066 = vmatprep.mubr.f32.mxu0 0.0
        %v5067 = vand.u32 %v771, 4294901760
        %5068 = vmatmul.mubr.f32.gmra.mrb[0].mxu0 %v5067
        %v5069 = vpop.f32.mrb[0].mxu0
        %v5070 = vadd.f32 %v4413, %v5069
        %v5071 = vpop.f32.mrb[0].mxu0
        %5072 = vmatprep.mubr.f32.mxu0 0.0
        %v5073 = vand.u32 %v772, 4294901760
        %5074 = vmatmul.mubr.f32.gmra.mrb[0].mxu0 %v5073
        %v5075 = vpop.f32.mrb[0].mxu0
        %v5076 = vadd.f32 %v4419, %v5075
        %v5077 = vpop.f32.mrb[0].mxu0
        %5078 = vmatprep.mubr.f32.mxu0 0.0
        %v5079 = vand.u32 %v773, 4294901760
        %5080 = vmatmul.mubr.f32.gmra.mrb[0].mxu0 %v5079
        %v5081 = vpop.f32.mrb[0].mxu0
        %v5082 = vadd.f32 %v4425, %v5081
        %v5083 = vpop.f32.mrb[0].mxu0
        %5084 = vmatprep.mubr.f32.mxu0 0.0
        %v5085 = vand.u32 %v774, 4294901760
        %5086 = vmatmul.mubr.f32.gmra.mrb[0].mxu0 %v5085
        %v5087 = vpop.f32.mrb[0].mxu0
        %v5088 = vadd.f32 %v4431, %v5087
        %v5089 = vpop.f32.mrb[0].mxu0
        %5090 = vmatprep.mubr.f32.mxu0 0.0
        %v5091 = vand.u32 %v775, 4294901760
        %5092 = vmatmul.mubr.f32.gmra.mrb[0].mxu0 %v5091
        %v5093 = vpop.f32.mrb[0].mxu0
        %v5094 = vadd.f32 %v4437, %v5093
        %v5095 = vpop.f32.mrb[0].mxu0
        %5096 = vmatprep.mubr.f32.mxu0 0.0
        %v5097 = vand.u32 %v776, 4294901760
        %5098 = vmatmul.mubr.f32.gmra.mrb[0].mxu0 %v5097
        %v5099 = vpop.f32.mrb[0].mxu0
        %v5100 = vadd.f32 %v4443, %v5099
        %v5101 = vpop.f32.mrb[0].mxu0
        %5102 = vmatprep.mubr.f32.mxu0 0.0
        %v5103 = vand.u32 %v777, 4294901760
        %5104 = vmatmul.mubr.f32.gmra.mrb[0].mxu0 %v5103
        %v5105 = vpop.f32.mrb[0].mxu0
        %v5106 = vadd.f32 %v4449, %v5105
        %v5107 = vpop.f32.mrb[0].mxu0
        %5108 = vmatprep.mubr.f32.mxu0 0.0
        %v5109 = vand.u32 %v778, 4294901760
        %5110 = vmatmul.mubr.f32.gmra.mrb[0].mxu0 %v5109
        %v5111 = vpop.f32.mrb[0].mxu0
        %v5112 = vadd.f32 %v4455, %v5111
        %v5113 = vpop.f32.mrb[0].mxu0
        %5114 = vmatprep.mubr.f32.mxu0 0.0
        %v5115 = vand.u32 %v779, 4294901760
        %5116 = vmatmul.mubr.f32.gmra.mrb[0].mxu0 %v5115
        %v5117 = vpop.f32.mrb[0].mxu0
        %v5118 = vadd.f32 %v4461, %v5117
        %v5119 = vpop.f32.mrb[0].mxu0
        %5120 = vmatprep.mubr.f32.mxu0 0.0
        %v5121 = vand.u32 %v780, 4294901760
        %5122 = vmatmul.mubr.f32.gmra.mrb[0].mxu0 %v5121
        %v5123 = vpop.f32.mrb[0].mxu0
        %v5124 = vadd.f32 %v4467, %v5123
        %v5125 = vpop.f32.mrb[0].mxu0
        %5126 = vmatprep.mubr.f32.mxu0 0.0
        %v5127 = vand.u32 %v781, 4294901760
        %5128 = vmatmul.mubr.f32.gmra.mrb[0].mxu0 %v5127
        %v5129 = vpop.f32.mrb[0].mxu0
        %v5130 = vadd.f32 %v4473, %v5129
        %v5131 = vpop.f32.mrb[0].mxu0
        %5132 = vmatprep.mubr.f32.mxu0 0.0
        %v5133 = vand.u32 %v782, 4294901760
        %5134 = vmatmul.mubr.f32.gmra.mrb[0].mxu0 %v5133
        %v5135 = vpop.f32.mrb[0].mxu0
        %v5136 = vadd.f32 %v4479, %v5135
        %v5137 = vpop.f32.mrb[0].mxu0
        %5138 = vmatprep.mubr.f32.mxu0 0.0
        %v5139 = vand.u32 %v783, 4294901760
        %5140 = vmatmul.mubr.f32.gmra.mrb[0].mxu0 %v5139
        %v5141 = vpop.f32.mrb[0].mxu0
        %v5142 = vadd.f32 %v4485, %v5141
        %v5143 = vpop.f32.mrb[0].mxu0
        %5144 = vmatprep.mubr.f32.mxu0 0.0
        %v5145 = vand.u32 %v784, 4294901760
        %5146 = vmatmul.mubr.f32.gmra.mrb[0].mxu0 %v5145
        %v5147 = vpop.f32.mrb[0].mxu0
        %v5148 = vadd.f32 %v4491, %v5147
        %v5149 = vpop.f32.mrb[0].mxu0
        %5150 = vmatprep.mubr.f32.mxu0 0.0
        %v5151 = vand.u32 %v785, 4294901760
        %5152 = vmatmul.mubr.f32.gmra.mrb[0].mxu0 %v5151
        %v5153 = vpop.f32.mrb[0].mxu0
        %v5154 = vadd.f32 %v4497, %v5153
        %v5155 = vpop.f32.mrb[0].mxu0
        %5156 = vmatprep.mubr.f32.mxu0 0.0
        %v5157 = vand.u32 %v786, 4294901760
        %5158 = vmatmul.mubr.f32.gmra.mrb[0].mxu0 %v5157
        %v5159 = vpop.f32.mrb[0].mxu0
        %v5160 = vadd.f32 %v4503, %v5159
        %v5161 = vpop.f32.mrb[0].mxu0
        %5162 = vmatprep.mubr.f32.mxu0 0.0
        %v5163 = vand.u32 %v787, 4294901760
        %5164 = vmatmul.mubr.f32.gmra.mrb[0].mxu0 %v5163
        %v5165 = vpop.f32.mrb[0].mxu0
        %v5166 = vadd.f32 %v4509, %v5165
        %v5167 = vpop.f32.mrb[0].mxu0
        %5168 = vmatprep.mubr.f32.mxu0 0.0
        %v5169 = vand.u32 %v788, 4294901760
        %5170 = vmatmul.mubr.f32.gmra.mrb[0].mxu0 %v5169
        %v5171 = vpop.f32.mrb[0].mxu0
        %v5172 = vadd.f32 %v4515, %v5171
        %v5173 = vpop.f32.mrb[0].mxu0
        %5174 = vmatprep.mubr.f32.mxu0 0.0
        %v5175 = vand.u32 %v789, 4294901760
        %5176 = vmatmul.mubr.f32.gmra.mrb[0].mxu0 %v5175
        %v5177 = vpop.f32.mrb[0].mxu0
        %v5178 = vadd.f32 %v4521, %v5177
        %v5179 = vpop.f32.mrb[0].mxu0
        %5180 = vmatprep.mubr.f32.mxu0 0.0
        %v5181 = vand.u32 %v790, 4294901760
        %5182 = vmatmul.mubr.f32.gmra.mrb[0].mxu0 %v5181
        %v5183 = vpop.f32.mrb[0].mxu0
        %v5184 = vadd.f32 %v4527, %v5183
        %v5185 = vpop.f32.mrb[0].mxu0
        %5186 = vmatprep.mubr.f32.mxu0 0.0
        %v5187 = vand.u32 %v791, 4294901760
        %5188 = vmatmul.mubr.f32.gmra.mrb[0].mxu0 %v5187
        %v5189 = vpop.f32.mrb[0].mxu0
        %v5190 = vadd.f32 %v4533, %v5189
        %v5191 = vpop.f32.mrb[0].mxu0
        %5192 = vmatprep.mubr.f32.mxu0 0.0
        %v5193 = vand.u32 %v792, 4294901760
        %5194 = vmatmul.mubr.f32.gmra.mrb[0].mxu0 %v5193
        %v5195 = vpop.f32.mrb[0].mxu0
        %v5196 = vadd.f32 %v4539, %v5195
        %v5197 = vpop.f32.mrb[0].mxu0
        %5198 = vmatprep.mubr.f32.mxu0 0.0
        %v5199 = vand.u32 %v793, 4294901760
        %5200 = vmatmul.mubr.f32.gmra.mrb[0].mxu0 %v5199
        %v5201 = vpop.f32.mrb[0].mxu0
        %v5202 = vadd.f32 %v4545, %v5201
        %v5203 = vpop.f32.mrb[0].mxu0
        %5204 = vmatprep.mubr.f32.mxu0 0.0
        %v5205 = vand.u32 %v794, 4294901760
        %5206 = vmatmul.mubr.f32.gmra.mrb[0].mxu0 %v5205
        %v5207 = vpop.f32.mrb[0].mxu0
        %v5208 = vadd.f32 %v4551, %v5207
        %v5209 = vpop.f32.mrb[0].mxu0
        %5210 = vmatprep.mubr.f32.mxu0 0.0
        %v5211 = vand.u32 %v795, 4294901760
        %5212 = vmatmul.mubr.f32.gmra.mrb[0].mxu0 %v5211
        %v5213 = vpop.f32.mrb[0].mxu0
        %v5214 = vadd.f32 %v4557, %v5213
        %v5215 = vpop.f32.mrb[0].mxu0
        %5216 = vmatprep.mubr.f32.mxu0 0.0
        %v5217 = vand.u32 %v796, 4294901760
        %5218 = vmatmul.mubr.f32.gmra.mrb[0].mxu0 %v5217
        %v5219 = vpop.f32.mrb[0].mxu0
        %v5220 = vadd.f32 %v4563, %v5219
        %v5221 = vpop.f32.mrb[0].mxu0
        %5222 = vmatprep.mubr.f32.mxu0 0.0
        %v5223 = vand.u32 %v797, 4294901760
        %5224 = vmatmul.mubr.f32.gmra.mrb[0].mxu0 %v5223
        %v5225 = vpop.f32.mrb[0].mxu0
        %v5226 = vadd.f32 %v4569, %v5225
        %v5227 = vpop.f32.mrb[0].mxu0
        %5228 = vmatprep.mubr.f32.mxu0 0.0
        %v5229 = vand.u32 %v798, 4294901760
        %5230 = vmatmul.mubr.f32.gmra.mrb[0].mxu0 %v5229
        %v5231 = vpop.f32.mrb[0].mxu0
        %v5232 = vadd.f32 %v4575, %v5231
        %v5233 = vpop.f32.mrb[0].mxu0
        %5234 = vmatprep.mubr.f32.mxu0 0.0
        %v5235 = vand.u32 %v799, 4294901760
        %5236 = vmatmul.mubr.f32.gmra.mrb[0].mxu0 %v5235
        %v5237 = vpop.f32.mrb[0].mxu0
        %v5238 = vadd.f32 %v4581, %v5237
        %v5239 = vpop.f32.mrb[0].mxu0
        %5240 = vmatprep.mubr.f32.mxu0 0.0
        %v5241 = vand.u32 %v800, 4294901760
        %5242 = vmatmul.mubr.f32.gmra.mrb[0].mxu0 %v5241
        %v5243 = vpop.f32.mrb[0].mxu0
        %v5244 = vadd.f32 %v4587, %v5243
        %v5245 = vpop.f32.mrb[0].mxu0
        %5246 = vmatprep.mubr.f32.mxu0 0.0
        %v5247 = vand.u32 %v801, 4294901760
        %5248 = vmatmul.mubr.f32.gmra.mrb[0].mxu0 %v5247
        %v5249 = vpop.f32.mrb[0].mxu0
        %v5250 = vadd.f32 %v4593, %v5249
        %v5251 = vpop.f32.mrb[0].mxu0
        %5252 = vmatprep.mubr.f32.mxu0 0.0
        %v5253 = vand.u32 %v802, 4294901760
        %5254 = vmatmul.mubr.f32.gmra.mrb[0].mxu0 %v5253
        %v5255 = vpop.f32.mrb[0].mxu0
        %v5256 = vadd.f32 %v4599, %v5255
        %v5257 = vpop.f32.mrb[0].mxu0
        %5258 = vmatprep.mubr.f32.mxu0 0.0
        %v5259 = vand.u32 %v803, 4294901760
        %5260 = vmatmul.mubr.f32.gmra.mrb[0].mxu0 %v5259
        %v5261 = vpop.f32.mrb[0].mxu0
        %v5262 = vadd.f32 %v4605, %v5261
        %v5263 = vpop.f32.mrb[0].mxu0
        %5264 = vmatprep.mubr.f32.mxu0 0.0
        %v5265 = vand.u32 %v804, 4294901760
        %5266 = vmatmul.mubr.f32.gmra.mrb[0].mxu0 %v5265
        %v5267 = vpop.f32.mrb[0].mxu0
        %v5268 = vadd.f32 %v4611, %v5267
        %v5269 = vpop.f32.mrb[0].mxu0
        %5270 = vmatprep.mubr.f32.mxu0 0.0
        %v5271 = vand.u32 %v805, 4294901760
        %5272 = vmatmul.mubr.f32.gmra.mrb[0].mxu0 %v5271
        %v5273 = vpop.f32.mrb[0].mxu0
        %v5274 = vadd.f32 %v4617, %v5273
        %v5275 = vpop.f32.mrb[0].mxu0
        %5276 = vmatprep.mubr.f32.mxu0 0.0
        %v5277 = vand.u32 %v806, 4294901760
        %5278 = vmatmul.mubr.f32.gmra.mrb[0].mxu0 %v5277
        %v5279 = vpop.f32.mrb[0].mxu0
        %v5280 = vadd.f32 %v4623, %v5279
        %v5281 = vpop.f32.mrb[0].mxu0
        %5282 = vmatprep.mubr.f32.mxu0 0.0
        %v5283 = vand.u32 %v807, 4294901760
        %5284 = vmatmul.mubr.f32.gmra.mrb[0].mxu0 %v5283
        %v5285 = vpop.f32.mrb[0].mxu0
        %v5286 = vadd.f32 %v4629, %v5285
        %v5287 = vpop.f32.mrb[0].mxu0
        %5288 = vmatprep.mubr.f32.mxu0 0.0
        %v5289 = vand.u32 %v808, 4294901760
        %5290 = vmatmul.mubr.f32.gmra.mrb[0].mxu0 %v5289
        %v5291 = vpop.f32.mrb[0].mxu0
        %v5292 = vadd.f32 %v4635, %v5291
        %v5293 = vpop.f32.mrb[0].mxu0
        %5294 = vmatprep.mubr.f32.mxu0 0.0
        %v5295 = vand.u32 %v809, 4294901760
        %5296 = vmatmul.mubr.f32.gmra.mrb[0].mxu0 %v5295
        %v5297 = vpop.f32.mrb[0].mxu0
        %v5298 = vadd.f32 %v4641, %v5297
        %v5299 = vpop.f32.mrb[0].mxu0
        %5300 = vmatprep.mubr.f32.mxu0 0.0
        %v5301 = vand.u32 %v810, 4294901760
        %5302 = vmatmul.mubr.f32.gmra.mrb[0].mxu0 %v5301
        %v5303 = vpop.f32.mrb[0].mxu0
        %v5304 = vadd.f32 %v4647, %v5303
        %v5305 = vpop.f32.mrb[0].mxu0
        %5306 = vmatprep.mubr.f32.mxu0 0.0
        %v5307 = vand.u32 %v811, 4294901760
        %5308 = vmatmul.mubr.f32.gmra.mrb[0].mxu0 %v5307
        %v5309 = vpop.f32.mrb[0].mxu0
        %v5310 = vadd.f32 %v4653, %v5309
        %v5311 = vpop.f32.mrb[0].mxu0
        %5312 = vmatprep.mubr.f32.mxu0 0.0
        %v5313 = vand.u32 %v812, 4294901760
        %5314 = vmatmul.mubr.f32.gmra.mrb[0].mxu0 %v5313
        %v5315 = vpop.f32.mrb[0].mxu0
        %v5316 = vadd.f32 %v4659, %v5315
        %v5317 = vpop.f32.mrb[0].mxu0
        %5318 = vmatprep.mubr.f32.mxu0 0.0
        %v5319 = vand.u32 %v813, 4294901760
        %5320 = vmatmul.mubr.f32.gmra.mrb[0].mxu0 %v5319
        %v5321 = vpop.f32.mrb[0].mxu0
        %v5322 = vadd.f32 %v4665, %v5321
        %v5323 = vpop.f32.mrb[0].mxu0
        %5324 = vmatprep.mubr.f32.mxu0 0.0
        %v5325 = vand.u32 %v814, 4294901760
        %5326 = vmatmul.mubr.f32.gmra.mrb[0].mxu0 %v5325
        %v5327 = vpop.f32.mrb[0].mxu0
        %v5328 = vadd.f32 %v4671, %v5327
        %v5329 = vpop.f32.mrb[0].mxu0
        %5330 = vmatprep.mubr.f32.mxu0 0.0
        %v5331 = vand.u32 %v815, 4294901760
        %5332 = vmatmul.mubr.f32.gmra.mrb[0].mxu0 %v5331
        %v5333 = vpop.f32.mrb[0].mxu0
        %v5334 = vadd.f32 %v4677, %v5333
        %v5335 = vpop.f32.mrb[0].mxu0
        %5336 = vmatprep.mubr.f32.mxu0 0.0
        %v5337 = vand.u32 %v816, 4294901760
        %5338 = vmatmul.mubr.f32.gmra.mrb[0].mxu0 %v5337
        %v5339 = vpop.f32.mrb[0].mxu0
        %v5340 = vadd.f32 %v4683, %v5339
        %v5341 = vpop.f32.mrb[0].mxu0
        %5342 = vmatprep.mubr.f32.mxu0 0.0
        %v5343 = vand.u32 %v817, 4294901760
        %5344 = vmatmul.mubr.f32.gmra.mrb[0].mxu0 %v5343
        %v5345 = vpop.f32.mrb[0].mxu0
        %v5346 = vadd.f32 %v4689, %v5345
        %v5347 = vpop.f32.mrb[0].mxu0
        %5348 = vmatprep.mubr.f32.mxu0 0.0
        %v5349 = vand.u32 %v818, 4294901760
        %5350 = vmatmul.mubr.f32.gmra.mrb[0].mxu0 %v5349
        %v5351 = vpop.f32.mrb[0].mxu0
        %v5352 = vadd.f32 %v4695, %v5351
        %v5353 = vpop.f32.mrb[0].mxu0
        %5354 = vmatprep.mubr.f32.mxu0 0.0
        %v5355 = vand.u32 %v819, 4294901760
        %5356 = vmatmul.mubr.f32.gmra.mrb[0].mxu0 %v5355
        %v5357 = vpop.f32.mrb[0].mxu0
        %v5358 = vadd.f32 %v4701, %v5357
        %v5359 = vpop.f32.mrb[0].mxu0
        %5360 = vmatprep.mubr.f32.mxu0 0.0
        %v5361 = vand.u32 %v820, 4294901760
        %5362 = vmatmul.mubr.f32.gmra.mrb[0].mxu0 %v5361
        %v5363 = vpop.f32.mrb[0].mxu0
        %v5364 = vadd.f32 %v4707, %v5363
        %v5365 = vpop.f32.mrb[0].mxu0
        %5366 = vmatprep.mubr.f32.mxu0 0.0
        %v5367 = vand.u32 %v821, 4294901760
        %5368 = vmatmul.mubr.f32.gmra.mrb[0].mxu0 %v5367
        %v5369 = vpop.f32.mrb[0].mxu0
        %v5370 = vadd.f32 %v4713, %v5369
        %v5371 = vpop.f32.mrb[0].mxu0
        %5372 = vmatprep.mubr.f32.mxu0 0.0
        %v5373 = vand.u32 %v822, 4294901760
        %5374 = vmatmul.mubr.f32.gmra.mrb[0].mxu0 %v5373
        %v5375 = vpop.f32.mrb[0].mxu0
        %v5376 = vadd.f32 %v4719, %v5375
        %v5377 = vpop.f32.mrb[0].mxu0
        %5378 = vmatprep.mubr.f32.mxu0 0.0
        %v5379 = vand.u32 %v823, 4294901760
        %5380 = vmatmul.mubr.f32.gmra.mrb[0].mxu0 %v5379
        %v5381 = vpop.f32.mrb[0].mxu0
        %v5382 = vadd.f32 %v4725, %v5381
        %v5383 = vpop.f32.mrb[0].mxu0
        %5384 = vmatprep.mubr.f32.mxu0 0.0
        %v5385 = vand.u32 %v824, 4294901760
        %5386 = vmatmul.mubr.f32.gmra.mrb[0].mxu0 %v5385
        %v5387 = vpop.f32.mrb[0].mxu0
        %v5388 = vadd.f32 %v4731, %v5387
        %v5389 = vpop.f32.mrb[0].mxu0
        %5390 = vmatprep.mubr.f32.mxu0 0.0
        %v5391 = vand.u32 %v825, 4294901760
        %5392 = vmatmul.mubr.f32.gmra.mrb[0].mxu0 %v5391
        %v5393 = vpop.f32.mrb[0].mxu0
        %v5394 = vadd.f32 %v4737, %v5393
        %v5395 = vpop.f32.mrb[0].mxu0
        %5396 = vmatprep.mubr.f32.mxu0 0.0
        %v5397 = vand.u32 %v826, 4294901760
        %5398 = vmatmul.mubr.f32.gmra.mrb[0].mxu0 %v5397
        %v5399 = vpop.f32.mrb[0].mxu0
        %v5400 = vadd.f32 %v4743, %v5399
        %v5401 = vpop.f32.mrb[0].mxu0
        %5402 = vmatprep.mubr.f32.mxu0 0.0
        %v5403 = vand.u32 %v827, 4294901760
        %5404 = vmatmul.mubr.f32.gmra.mrb[0].mxu0 %v5403
        %v5405 = vpop.f32.mrb[0].mxu0
        %v5406 = vadd.f32 %v4749, %v5405
        %v5407 = vpop.f32.mrb[0].mxu0
        %5408 = vmatprep.mubr.f32.mxu0 0.0
        %v5409 = vand.u32 %v828, 4294901760
        %5410 = vmatmul.mubr.f32.gmra.mrb[0].mxu0 %v5409
        %v5411 = vpop.f32.mrb[0].mxu0
        %v5412 = vadd.f32 %v4755, %v5411
        %v5413 = vpop.f32.mrb[0].mxu0
        %5414 = vmatprep.mubr.f32.mxu0 0.0
        %v5415 = vand.u32 %v829, 4294901760
        %5416 = vmatmul.mubr.f32.gmra.mrb[0].mxu0 %v5415
        %v5417 = vpop.f32.mrb[0].mxu0
        %v5418 = vadd.f32 %v4761, %v5417
        %v5419 = vpop.f32.mrb[0].mxu0
        %5420 = vmatprep.mubr.f32.mxu0 0.0
        %v5421 = vand.u32 %v830, 4294901760
        %5422 = vmatmul.mubr.f32.gmra.mrb[0].mxu0 %v5421
        %v5423 = vpop.f32.mrb[0].mxu0
        %v5424 = vadd.f32 %v4767, %v5423
        %v5425 = vpop.f32.mrb[0].mxu0
        %5426 = vmatprep.mubr.f32.mxu0 0.0
        %v5427 = vand.u32 %v831, 4294901760
        %5428 = vmatmul.mubr.f32.gmra.mrb[0].mxu0 %v5427
        %v5429 = vpop.f32.mrb[0].mxu0
        %v5430 = vadd.f32 %v4773, %v5429
        %v5431 = vpop.f32.mrb[0].mxu0
        %5432 = vmatprep.mubr.f32.mxu0 0.0
        %v5433 = vand.u32 %v832, 4294901760
        %5434 = vmatmul.mubr.f32.gmra.mrb[0].mxu0 %v5433
        %v5435 = vpop.f32.mrb[0].mxu0
        %v5436 = vadd.f32 %v4779, %v5435
        %v5437 = vpop.f32.mrb[0].mxu0
        %5438 = vmatprep.mubr.f32.mxu0 0.0
        %v5439 = vand.u32 %v833, 4294901760
        %5440 = vmatmul.mubr.f32.gmra.mrb[0].mxu0 %v5439
        %v5441 = vpop.f32.mrb[0].mxu0
        %v5442 = vadd.f32 %v4785, %v5441
        %v5443 = vpop.f32.mrb[0].mxu0
        %5444 = vmatprep.mubr.f32.mxu0 0.0
        %v5445 = vand.u32 %v834, 4294901760
        %5446 = vmatmul.mubr.f32.gmra.mrb[0].mxu0 %v5445
        %v5447 = vpop.f32.mrb[0].mxu0
        %v5448 = vadd.f32 %v4791, %v5447
        %v5449 = vpop.f32.mrb[0].mxu0
        %5450 = vmatprep.mubr.f32.mxu0 0.0
        %v5451 = vand.u32 %v835, 4294901760
        %5452 = vmatmul.mubr.f32.gmra.mrb[0].mxu0 %v5451
        %v5453 = vpop.f32.mrb[0].mxu0
        %v5454 = vadd.f32 %v4797, %v5453
        %v5455 = vpop.f32.mrb[0].mxu0
        %5456 = vmatprep.mubr.f32.mxu0 0.0
        %v5457 = vand.u32 %v836, 4294901760
        %5458 = vmatmul.mubr.f32.gmra.mrb[0].mxu0 %v5457
        %v5459 = vpop.f32.mrb[0].mxu0
        %v5460 = vadd.f32 %v4803, %v5459
        %v5461 = vpop.f32.mrb[0].mxu0
        %5462 = vmatprep.mubr.f32.mxu0 0.0
        %v5463 = vand.u32 %v837, 4294901760
        %5464 = vmatmul.mubr.f32.gmra.mrb[0].mxu0 %v5463
        %v5465 = vpop.f32.mrb[0].mxu0
        %v5466 = vadd.f32 %v4809, %v5465
        %v5467 = vpop.f32.mrb[0].mxu0
        %5468 = vmatprep.mubr.f32.mxu0 0.0
        %v5469 = vand.u32 %v838, 4294901760
        %5470 = vmatmul.mubr.f32.gmra.mrb[0].mxu0 %v5469
        %v5471 = vpop.f32.mrb[0].mxu0
        %v5472 = vadd.f32 %v4815, %v5471
        %v5473 = vpop.f32.mrb[0].mxu0
        %5474 = vmatprep.mubr.f32.mxu0 0.0
        %v5475 = vand.u32 %v839, 4294901760
        %5476 = vmatmul.mubr.f32.gmra.mrb[0].mxu0 %v5475
        %v5477 = vpop.f32.mrb[0].mxu0
        %v5478 = vadd.f32 %v4821, %v5477
        %v5479 = vpop.f32.mrb[0].mxu0
        %5480 = vmatprep.mubr.f32.mxu0 0.0
        %v5481 = vand.u32 %v840, 4294901760
        %5482 = vmatmul.mubr.f32.gmra.mrb[0].mxu0 %v5481
        %v5483 = vpop.f32.mrb[0].mxu0
        %v5484 = vadd.f32 %v4827, %v5483
        %v5485 = vpop.f32.mrb[0].mxu0
        %5486 = vmatprep.mubr.f32.mxu0 0.0
        %v5487 = vand.u32 %v841, 4294901760
        %5488 = vmatmul.mubr.f32.gmra.mrb[0].mxu0 %v5487
        %v5489 = vpop.f32.mrb[0].mxu0
        %v5490 = vadd.f32 %v4833, %v5489
        %v5491 = vpop.f32.mrb[0].mxu0
        %5492 = vmatprep.mubr.f32.mxu0 0.0
        %v5493 = vand.u32 %v842, 4294901760
        %5494 = vmatmul.mubr.f32.gmra.mrb[0].mxu0 %v5493
        %v5495 = vpop.f32.mrb[0].mxu0
        %v5496 = vadd.f32 %v4839, %v5495
        %v5497 = vpop.f32.mrb[0].mxu0
        %5498 = vmatprep.mubr.f32.mxu0 0.0
        %v5499 = vand.u32 %v843, 4294901760
        %5500 = vmatmul.mubr.f32.gmra.mrb[0].mxu0 %v5499
        %v5501 = vpop.f32.mrb[0].mxu0
        %v5502 = vadd.f32 %v4845, %v5501
        %v5503 = vpop.f32.mrb[0].mxu0
        %5504 = vmatprep.mubr.f32.mxu0 0.0
        %v5505 = vand.u32 %v844, 4294901760
        %5506 = vmatmul.mubr.f32.gmra.mrb[0].mxu0 %v5505
        %v5507 = vpop.f32.mrb[0].mxu0
        %v5508 = vadd.f32 %v4851, %v5507
        %v5509 = vpop.f32.mrb[0].mxu0
        %5510 = vmatprep.mubr.f32.mxu0 0.0
        %v5511 = vand.u32 %v845, 4294901760
        %5512 = vmatmul.mubr.f32.gmra.mrb[0].mxu0 %v5511
        %v5513 = vpop.f32.mrb[0].mxu0
        %v5514 = vadd.f32 %v4857, %v5513
        %v5515 = vpop.f32.mrb[0].mxu0
        %5516 = vmatprep.mubr.f32.mxu0 0.0
        %v5517 = vand.u32 %v846, 4294901760
        %5518 = vmatmul.mubr.f32.gmra.mrb[0].mxu0 %v5517
        %v5519 = vpop.f32.mrb[0].mxu0
        %v5520 = vadd.f32 %v4863, %v5519
        %v5521 = vpop.f32.mrb[0].mxu0
        %5522 = vmatprep.mubr.f32.mxu0 0.0
        %v5523 = vand.u32 %v847, 4294901760
        %5524 = vmatmul.mubr.f32.gmra.mrb[0].mxu0 %v5523
        %v5525 = vpop.f32.mrb[0].mxu0
        %v5526 = vadd.f32 %v4869, %v5525
        %v5527 = vpop.f32.mrb[0].mxu0
        %5528 = vmatprep.mubr.f32.mxu0 0.0
        %v5529 = vand.u32 %v848, 4294901760
        %5530 = vmatmul.mubr.f32.gmra.mrb[0].mxu0 %v5529
        %v5531 = vpop.f32.mrb[0].mxu0
        %v5532 = vadd.f32 %v4875, %v5531
        %v5533 = vpop.f32.mrb[0].mxu0
        %5534 = vmatprep.mubr.f32.mxu0 0.0
        %v5535 = vand.u32 %v849, 4294901760
        %5536 = vmatmul.mubr.f32.gmra.mrb[0].mxu0 %v5535
        %v5537 = vpop.f32.mrb[0].mxu0
        %v5538 = vadd.f32 %v4881, %v5537
        %v5539 = vpop.f32.mrb[0].mxu0
        %5540 = vmatprep.mubr.f32.mxu0 0.0
        %v5541 = vand.u32 %v850, 4294901760
        %5542 = vmatmul.mubr.f32.gmra.mrb[0].mxu0 %v5541
        %v5543 = vpop.f32.mrb[0].mxu0
        %v5544 = vadd.f32 %v4887, %v5543
        %v5545 = vpop.f32.mrb[0].mxu0
        %5546 = vmatprep.mubr.f32.mxu0 0.0
        %v5547 = vand.u32 %v851, 4294901760
        %5548 = vmatmul.mubr.f32.gmra.mrb[0].mxu0 %v5547
        %v5549 = vpop.f32.mrb[0].mxu0
        %v5550 = vadd.f32 %v4893, %v5549
        %v5551 = vpop.f32.mrb[0].mxu0
        %5552 = vmatprep.mubr.f32.mxu0 0.0
        %v5553 = vand.u32 %v852, 4294901760
        %5554 = vmatmul.mubr.f32.gmra.mrb[0].mxu0 %v5553
        %v5555 = vpop.f32.mrb[0].mxu0
        %v5556 = vadd.f32 %v4899, %v5555
        %v5557 = vpop.f32.mrb[0].mxu0
        %5558 = vmatprep.mubr.f32.mxu0 0.0
        %v5559 = vand.u32 %v853, 4294901760
        %5560 = vmatmul.mubr.f32.gmra.mrb[0].mxu0 %v5559
        %v5561 = vpop.f32.mrb[0].mxu0
        %v5562 = vadd.f32 %v4905, %v5561
        %v5563 = vpop.f32.mrb[0].mxu0
        %5564 = vmatprep.mubr.f32.mxu0 0.0
        %v5565 = vand.u32 %v854, 4294901760
        %5566 = vmatmul.mubr.f32.gmra.mrb[0].mxu0 %v5565
        %v5567 = vpop.f32.mrb[0].mxu0
        %v5568 = vadd.f32 %v4911, %v5567
        %v5569 = vpop.f32.mrb[0].mxu0
        %5570 = vmatprep.mubr.f32.mxu0 0.0
        %v5571 = vand.u32 %v855, 4294901760
        %5572 = vmatmul.mubr.f32.gmra.mrb[0].mxu0 %v5571
        %v5573 = vpop.f32.mrb[0].mxu0
        %v5574 = vadd.f32 %v4917, %v5573
        %v5575 = vpop.f32.mrb[0].mxu0
        %5576 = vmatprep.mubr.f32.mxu0 0.0
        %v5577 = vand.u32 %v856, 4294901760
        %5578 = vmatmul.mubr.f32.gmra.mrb[0].mxu0 %v5577
        %v5579 = vpop.f32.mrb[0].mxu0
        %v5580 = vadd.f32 %v4923, %v5579
        %v5581 = vpop.f32.mrb[0].mxu0
        %5582 = vdwg.mxu0
        %v5583 = vmul.f32 %v5010, %v5106
        %v5584 = vmul.f32 %v5016, %v5112
        %v5585 = vmul.f32 %v5022, %v5118
        %v5586 = vmul.f32 %v5028, %v5124
        %v5587 = vmul.f32 %v5034, %v5130
        %v5588 = vmul.f32 %v5040, %v5136
        %v5589 = vmul.f32 %v5046, %v5142
        %v5590 = vmul.f32 %v5052, %v5148
        %v5591 = vmul.f32 %v5058, %v5154
        %v5592 = vmul.f32 %v5064, %v5160
        %v5593 = vmul.f32 %v5070, %v5166
        %v5594 = vmul.f32 %v5076, %v5172
        %v5595 = vmul.f32 %v5082, %v5178
        %v5596 = vmul.f32 %v5088, %v5184
        %v5597 = vmul.f32 %v5094, %v5190
        %v5598 = vmul.f32 %v5100, %v5196
        %v5599 = vmul.f32 %v5202, %v5106
        %v5600 = vmul.f32 %v5208, %v5112
        %v5601 = vmul.f32 %v5214, %v5118
        %v5602 = vmul.f32 %v5220, %v5124
        %v5603 = vmul.f32 %v5226, %v5130
        %v5604 = vmul.f32 %v5232, %v5136
        %v5605 = vmul.f32 %v5238, %v5142
        %v5606 = vmul.f32 %v5244, %v5148
        %v5607 = vmul.f32 %v5250, %v5154
        %v5608 = vmul.f32 %v5256, %v5160
        %v5609 = vmul.f32 %v5262, %v5166
        %v5610 = vmul.f32 %v5268, %v5172
        %v5611 = vmul.f32 %v5274, %v5178
        %v5612 = vmul.f32 %v5280, %v5184
        %v5613 = vmul.f32 %v5286, %v5190
        %v5614 = vmul.f32 %v5292, %v5196
        %v5615 = vmul.f32 %v5298, %v5106
        %v5616 = vmul.f32 %v5304, %v5112
        %v5617 = vmul.f32 %v5310, %v5118
        %v5618 = vmul.f32 %v5316, %v5124
        %v5619 = vmul.f32 %v5322, %v5130
        %v5620 = vmul.f32 %v5328, %v5136
        %v5621 = vmul.f32 %v5334, %v5142
        %v5622 = vmul.f32 %v5340, %v5148
        %v5623 = vmul.f32 %v5346, %v5154
        %v5624 = vmul.f32 %v5352, %v5160
        %v5625 = vmul.f32 %v5358, %v5166
        %v5626 = vmul.f32 %v5364, %v5172
        %v5627 = vmul.f32 %v5370, %v5178
        %v5628 = vmul.f32 %v5376, %v5184
        %v5629 = vmul.f32 %v5382, %v5190
        %v5630 = vmul.f32 %v5388, %v5196
        %v5631 = vmul.f32 %v5394, %v5106
        %v5632 = vmul.f32 %v5400, %v5112
        %v5633 = vmul.f32 %v5406, %v5118
        %v5634 = vmul.f32 %v5412, %v5124
        %v5635 = vmul.f32 %v5418, %v5130
        %v5636 = vmul.f32 %v5424, %v5136
        %v5637 = vmul.f32 %v5430, %v5142
        %v5638 = vmul.f32 %v5436, %v5148
        %v5639 = vmul.f32 %v5442, %v5154
        %v5640 = vmul.f32 %v5448, %v5160
        %v5641 = vmul.f32 %v5454, %v5166
        %v5642 = vmul.f32 %v5460, %v5172
        %v5643 = vmul.f32 %v5466, %v5178
        %v5644 = vmul.f32 %v5472, %v5184
        %v5645 = vmul.f32 %v5478, %v5190
        %v5646 = vmul.f32 %v5484, %v5196
        %v5647 = vmul.f32 %v5490, %v5106
        %v5648 = vmul.f32 %v5496, %v5112
        %v5649 = vmul.f32 %v5502, %v5118
        %v5650 = vmul.f32 %v5508, %v5124
        %v5651 = vmul.f32 %v5514, %v5130
        %v5652 = vmul.f32 %v5520, %v5136
        %v5653 = vmul.f32 %v5526, %v5142
        %v5654 = vmul.f32 %v5532, %v5148
        %v5655 = vmul.f32 %v5538, %v5154
        %v5656 = vmul.f32 %v5544, %v5160
        %v5657 = vmul.f32 %v5550, %v5166
        %v5658 = vmul.f32 %v5556, %v5172
        %v5659 = vmul.f32 %v5562, %v5178
        %v5660 = vmul.f32 %v5568, %v5184
        %v5661 = vmul.f32 %v5574, %v5190
        %v5662 = vmul.f32 %v5580, %v5196
        %vm5663 = vcmask 261120
        %v5664 = vsel %vm5663, %v5583, 0.0
        %5665 = vadd.xlane.f32.xlu0 %v5664
        %v5666 = vpop.xlane.xlu0 %5665
        %v5667 = vsel %vm5663, %v5584, 0.0
        %5668 = vadd.xlane.f32.xlu0 %v5667
        %v5669 = vpop.xlane.xlu0 %5668
        %v5670 = vsel %vm5663, %v5585, 0.0
        %5671 = vadd.xlane.f32.xlu0 %v5670
        %v5672 = vpop.xlane.xlu0 %5671
        %v5673 = vsel %vm5663, %v5586, 0.0
        %5674 = vadd.xlane.f32.xlu0 %v5673
        %v5675 = vpop.xlane.xlu0 %5674
        %v5676 = vsel %vm5663, %v5587, 0.0
        %5677 = vadd.xlane.f32.xlu0 %v5676
        %v5678 = vpop.xlane.xlu0 %5677
        %v5679 = vsel %vm5663, %v5588, 0.0
        %5680 = vadd.xlane.f32.xlu0 %v5679
        %v5681 = vpop.xlane.xlu0 %5680
        %v5682 = vsel %vm5663, %v5589, 0.0
        %5683 = vadd.xlane.f32.xlu0 %v5682
        %v5684 = vpop.xlane.xlu0 %5683
        %v5685 = vsel %vm5663, %v5590, 0.0
        %5686 = vadd.xlane.f32.xlu0 %v5685
        %v5687 = vpop.xlane.xlu0 %5686
        %v5688 = vsel %vm5663, %v5591, 0.0
        %5689 = vadd.xlane.f32.xlu0 %v5688
        %v5690 = vpop.xlane.xlu0 %5689
        %v5691 = vsel %vm5663, %v5592, 0.0
        %5692 = vadd.xlane.f32.xlu0 %v5691
        %v5693 = vpop.xlane.xlu0 %5692
        %v5694 = vsel %vm5663, %v5593, 0.0
        %5695 = vadd.xlane.f32.xlu0 %v5694
        %v5696 = vpop.xlane.xlu0 %5695
        %v5697 = vsel %vm5663, %v5594, 0.0
        %5698 = vadd.xlane.f32.xlu0 %v5697
        %v5699 = vpop.xlane.xlu0 %5698
        %v5700 = vsel %vm5663, %v5595, 0.0
        %5701 = vadd.xlane.f32.xlu0 %v5700
        %v5702 = vpop.xlane.xlu0 %5701
        %v5703 = vsel %vm5663, %v5596, 0.0
        %5704 = vadd.xlane.f32.xlu0 %v5703
        %v5705 = vpop.xlane.xlu0 %5704
        %v5706 = vsel %vm5663, %v5597, 0.0
        %5707 = vadd.xlane.f32.xlu0 %v5706
        %v5708 = vpop.xlane.xlu0 %5707
        %v5709 = vsel %vm5663, %v5598, 0.0
        %5710 = vadd.xlane.f32.xlu0 %v5709
        %v5711 = vpop.xlane.xlu0 %5710
        %v5712 = vsel %vm5663, %v5599, 0.0
        %5713 = vadd.xlane.f32.xlu0 %v5712
        %v5714 = vpop.xlane.xlu0 %5713
        %v5715 = vsel %vm5663, %v5600, 0.0
        %5716 = vadd.xlane.f32.xlu0 %v5715
        %v5717 = vpop.xlane.xlu0 %5716
        %v5718 = vsel %vm5663, %v5601, 0.0
        %5719 = vadd.xlane.f32.xlu0 %v5718
        %v5720 = vpop.xlane.xlu0 %5719
        %v5721 = vsel %vm5663, %v5602, 0.0
        %5722 = vadd.xlane.f32.xlu0 %v5721
        %v5723 = vpop.xlane.xlu0 %5722
        %v5724 = vsel %vm5663, %v5603, 0.0
        %5725 = vadd.xlane.f32.xlu0 %v5724
        %v5726 = vpop.xlane.xlu0 %5725
        %v5727 = vsel %vm5663, %v5604, 0.0
        %5728 = vadd.xlane.f32.xlu0 %v5727
        %v5729 = vpop.xlane.xlu0 %5728
        %v5730 = vsel %vm5663, %v5605, 0.0
        %5731 = vadd.xlane.f32.xlu0 %v5730
        %v5732 = vpop.xlane.xlu0 %5731
        %v5733 = vsel %vm5663, %v5606, 0.0
        %5734 = vadd.xlane.f32.xlu0 %v5733
        %v5735 = vpop.xlane.xlu0 %5734
        %v5736 = vsel %vm5663, %v5607, 0.0
        %5737 = vadd.xlane.f32.xlu0 %v5736
        %v5738 = vpop.xlane.xlu0 %5737
        %v5739 = vsel %vm5663, %v5608, 0.0
        %5740 = vadd.xlane.f32.xlu0 %v5739
        %v5741 = vpop.xlane.xlu0 %5740
        %v5742 = vsel %vm5663, %v5609, 0.0
        %5743 = vadd.xlane.f32.xlu0 %v5742
        %v5744 = vpop.xlane.xlu0 %5743
        %v5745 = vsel %vm5663, %v5610, 0.0
        %5746 = vadd.xlane.f32.xlu0 %v5745
        %v5747 = vpop.xlane.xlu0 %5746
        %v5748 = vsel %vm5663, %v5611, 0.0
        %5749 = vadd.xlane.f32.xlu0 %v5748
        %v5750 = vpop.xlane.xlu0 %5749
        %v5751 = vsel %vm5663, %v5612, 0.0
        %5752 = vadd.xlane.f32.xlu0 %v5751
        %v5753 = vpop.xlane.xlu0 %5752
        %v5754 = vsel %vm5663, %v5613, 0.0
        %5755 = vadd.xlane.f32.xlu0 %v5754
        %v5756 = vpop.xlane.xlu0 %5755
        %v5757 = vsel %vm5663, %v5614, 0.0
        %5758 = vadd.xlane.f32.xlu0 %v5757
        %v5759 = vpop.xlane.xlu0 %5758
        %v5760 = vsel %vm5663, %v5615, 0.0
        %5761 = vadd.xlane.f32.xlu0 %v5760
        %v5762 = vpop.xlane.xlu0 %5761
        %v5763 = vsel %vm5663, %v5616, 0.0
        %5764 = vadd.xlane.f32.xlu0 %v5763
        %v5765 = vpop.xlane.xlu0 %5764
        %v5766 = vsel %vm5663, %v5617, 0.0
        %5767 = vadd.xlane.f32.xlu0 %v5766
        %v5768 = vpop.xlane.xlu0 %5767
        %v5769 = vsel %vm5663, %v5618, 0.0
        %5770 = vadd.xlane.f32.xlu0 %v5769
        %v5771 = vpop.xlane.xlu0 %5770
        %v5772 = vsel %vm5663, %v5619, 0.0
        %5773 = vadd.xlane.f32.xlu0 %v5772
        %v5774 = vpop.xlane.xlu0 %5773
        %v5775 = vsel %vm5663, %v5620, 0.0
        %5776 = vadd.xlane.f32.xlu0 %v5775
        %v5777 = vpop.xlane.xlu0 %5776
        %v5778 = vsel %vm5663, %v5621, 0.0
        %5779 = vadd.xlane.f32.xlu0 %v5778
        %v5780 = vpop.xlane.xlu0 %5779
        %v5781 = vsel %vm5663, %v5622, 0.0
        %5782 = vadd.xlane.f32.xlu0 %v5781
        %v5783 = vpop.xlane.xlu0 %5782
        %v5784 = vsel %vm5663, %v5623, 0.0
        %5785 = vadd.xlane.f32.xlu0 %v5784
        %v5786 = vpop.xlane.xlu0 %5785
        %v5787 = vsel %vm5663, %v5624, 0.0
        %5788 = vadd.xlane.f32.xlu0 %v5787
        %v5789 = vpop.xlane.xlu0 %5788
        %v5790 = vsel %vm5663, %v5625, 0.0
        %5791 = vadd.xlane.f32.xlu0 %v5790
        %v5792 = vpop.xlane.xlu0 %5791
        %v5793 = vsel %vm5663, %v5626, 0.0
        %5794 = vadd.xlane.f32.xlu0 %v5793
        %v5795 = vpop.xlane.xlu0 %5794
        %v5796 = vsel %vm5663, %v5627, 0.0
        %5797 = vadd.xlane.f32.xlu0 %v5796
        %v5798 = vpop.xlane.xlu0 %5797
        %v5799 = vsel %vm5663, %v5628, 0.0
        %5800 = vadd.xlane.f32.xlu0 %v5799
        %v5801 = vpop.xlane.xlu0 %5800
        %v5802 = vsel %vm5663, %v5629, 0.0
        %5803 = vadd.xlane.f32.xlu0 %v5802
        %v5804 = vpop.xlane.xlu0 %5803
        %v5805 = vsel %vm5663, %v5630, 0.0
        %5806 = vadd.xlane.f32.xlu0 %v5805
        %v5807 = vpop.xlane.xlu0 %5806
        %v5808 = vsel %vm5663, %v5631, 0.0
        %5809 = vadd.xlane.f32.xlu0 %v5808
        %v5810 = vpop.xlane.xlu0 %5809
        %v5811 = vsel %vm5663, %v5632, 0.0
        %5812 = vadd.xlane.f32.xlu0 %v5811
        %v5813 = vpop.xlane.xlu0 %5812
        %v5814 = vsel %vm5663, %v5633, 0.0
        %5815 = vadd.xlane.f32.xlu0 %v5814
        %v5816 = vpop.xlane.xlu0 %5815
        %v5817 = vsel %vm5663, %v5634, 0.0
        %5818 = vadd.xlane.f32.xlu0 %v5817
        %v5819 = vpop.xlane.xlu0 %5818
        %v5820 = vsel %vm5663, %v5635, 0.0
        %5821 = vadd.xlane.f32.xlu0 %v5820
        %v5822 = vpop.xlane.xlu0 %5821
        %v5823 = vsel %vm5663, %v5636, 0.0
        %5824 = vadd.xlane.f32.xlu0 %v5823
        %v5825 = vpop.xlane.xlu0 %5824
        %v5826 = vsel %vm5663, %v5637, 0.0
        %5827 = vadd.xlane.f32.xlu0 %v5826
        %v5828 = vpop.xlane.xlu0 %5827
        %v5829 = vsel %vm5663, %v5638, 0.0
        %5830 = vadd.xlane.f32.xlu0 %v5829
        %v5831 = vpop.xlane.xlu0 %5830
        %v5832 = vsel %vm5663, %v5639, 0.0
        %5833 = vadd.xlane.f32.xlu0 %v5832
        %v5834 = vpop.xlane.xlu0 %5833
        %v5835 = vsel %vm5663, %v5640, 0.0
        %5836 = vadd.xlane.f32.xlu0 %v5835
        %v5837 = vpop.xlane.xlu0 %5836
        %v5838 = vsel %vm5663, %v5641, 0.0
        %5839 = vadd.xlane.f32.xlu0 %v5838
        %v5840 = vpop.xlane.xlu0 %5839
        %v5841 = vsel %vm5663, %v5642, 0.0
        %5842 = vadd.xlane.f32.xlu0 %v5841
        %v5843 = vpop.xlane.xlu0 %5842
        %v5844 = vsel %vm5663, %v5643, 0.0
        %5845 = vadd.xlane.f32.xlu0 %v5844
        %v5846 = vpop.xlane.xlu0 %5845
        %v5847 = vsel %vm5663, %v5644, 0.0
        %5848 = vadd.xlane.f32.xlu0 %v5847
        %v5849 = vpop.xlane.xlu0 %5848
        %v5850 = vsel %vm5663, %v5645, 0.0
        %5851 = vadd.xlane.f32.xlu0 %v5850
        %v5852 = vpop.xlane.xlu0 %5851
        %v5853 = vsel %vm5663, %v5646, 0.0
        %5854 = vadd.xlane.f32.xlu0 %v5853
        %v5855 = vpop.xlane.xlu0 %5854
        %v5856 = vsel %vm5663, %v5647, 0.0
        %5857 = vadd.xlane.f32.xlu0 %v5856
        %v5858 = vpop.xlane.xlu0 %5857
        %v5859 = vsel %vm5663, %v5648, 0.0
        %5860 = vadd.xlane.f32.xlu0 %v5859
        %v5861 = vpop.xlane.xlu0 %5860
        %v5862 = vsel %vm5663, %v5649, 0.0
        %5863 = vadd.xlane.f32.xlu0 %v5862
        %v5864 = vpop.xlane.xlu0 %5863
        %v5865 = vsel %vm5663, %v5650, 0.0
        %5866 = vadd.xlane.f32.xlu0 %v5865
        %v5867 = vpop.xlane.xlu0 %5866
        %v5868 = vsel %vm5663, %v5651, 0.0
        %5869 = vadd.xlane.f32.xlu0 %v5868
        %v5870 = vpop.xlane.xlu0 %5869
        %v5871 = vsel %vm5663, %v5652, 0.0
        %5872 = vadd.xlane.f32.xlu0 %v5871
        %v5873 = vpop.xlane.xlu0 %5872
        %v5874 = vsel %vm5663, %v5653, 0.0
        %5875 = vadd.xlane.f32.xlu0 %v5874
        %v5876 = vpop.xlane.xlu0 %5875
        %v5877 = vsel %vm5663, %v5654, 0.0
        %5878 = vadd.xlane.f32.xlu0 %v5877
        %v5879 = vpop.xlane.xlu0 %5878
        %v5880 = vsel %vm5663, %v5655, 0.0
        %5881 = vadd.xlane.f32.xlu0 %v5880
        %v5882 = vpop.xlane.xlu0 %5881
        %v5883 = vsel %vm5663, %v5656, 0.0
        %5884 = vadd.xlane.f32.xlu0 %v5883
        %v5885 = vpop.xlane.xlu0 %5884
        %v5886 = vsel %vm5663, %v5657, 0.0
        %5887 = vadd.xlane.f32.xlu0 %v5886
        %v5888 = vpop.xlane.xlu0 %5887
        %v5889 = vsel %vm5663, %v5658, 0.0
        %5890 = vadd.xlane.f32.xlu0 %v5889
        %v5891 = vpop.xlane.xlu0 %5890
        %v5892 = vsel %vm5663, %v5659, 0.0
        %5893 = vadd.xlane.f32.xlu0 %v5892
        %v5894 = vpop.xlane.xlu0 %5893
        %v5895 = vsel %vm5663, %v5660, 0.0
        %5896 = vadd.xlane.f32.xlu0 %v5895
        %v5897 = vpop.xlane.xlu0 %5896
        %v5898 = vsel %vm5663, %v5661, 0.0
        %5899 = vadd.xlane.f32.xlu0 %v5898
        %v5900 = vpop.xlane.xlu0 %5899
        %v5901 = vsel %vm5663, %v5662, 0.0
        %5902 = vadd.xlane.f32.xlu0 %v5901
        %v5903 = vpop.xlane.xlu0 %5902
        %v5904 = vsub.f32 0.0, %v5714
        %v5905 = vsub.f32 0.0, %v5717
        %v5906 = vsub.f32 0.0, %v5720
        %v5907 = vsub.f32 0.0, %v5723
        %v5908 = vsub.f32 0.0, %v5726
        %v5909 = vsub.f32 0.0, %v5729
        %v5910 = vsub.f32 0.0, %v5732
        %v5911 = vsub.f32 0.0, %v5735
        %v5912 = vsub.f32 0.0, %v5738
        %v5913 = vsub.f32 0.0, %v5741
        %v5914 = vsub.f32 0.0, %v5744
        %v5915 = vsub.f32 0.0, %v5747
        %v5916 = vsub.f32 0.0, %v5750
        %v5917 = vsub.f32 0.0, %v5753
        %v5918 = vsub.f32 0.0, %v5756
        %v5919 = vsub.f32 0.0, %v5759
        %v5920 = vsub.f32 0.0, %v5762
        %v5921 = vsub.f32 0.0, %v5765
        %v5922 = vsub.f32 0.0, %v5768
        %v5923 = vsub.f32 0.0, %v5771
        %v5924 = vsub.f32 0.0, %v5774
        %v5925 = vsub.f32 0.0, %v5777
        %v5926 = vsub.f32 0.0, %v5780
        %v5927 = vsub.f32 0.0, %v5783
        %v5928 = vsub.f32 0.0, %v5786
        %v5929 = vsub.f32 0.0, %v5789
        %v5930 = vsub.f32 0.0, %v5792
        %v5931 = vsub.f32 0.0, %v5795
        %v5932 = vsub.f32 0.0, %v5798
        %v5933 = vsub.f32 0.0, %v5801
        %v5934 = vsub.f32 0.0, %v5804
        %v5935 = vsub.f32 0.0, %v5807
        %v5936 = vsub.f32 0.0, %v5810
        %v5937 = vsub.f32 0.0, %v5813
        %v5938 = vsub.f32 0.0, %v5816
        %v5939 = vsub.f32 0.0, %v5819
        %v5940 = vsub.f32 0.0, %v5822
        %v5941 = vsub.f32 0.0, %v5825
        %v5942 = vsub.f32 0.0, %v5828
        %v5943 = vsub.f32 0.0, %v5831
        %v5944 = vsub.f32 0.0, %v5834
        %v5945 = vsub.f32 0.0, %v5837
        %v5946 = vsub.f32 0.0, %v5840
        %v5947 = vsub.f32 0.0, %v5843
        %v5948 = vsub.f32 0.0, %v5846
        %v5949 = vsub.f32 0.0, %v5849
        %v5950 = vsub.f32 0.0, %v5852
        %v5951 = vsub.f32 0.0, %v5855
        %v5952 = vsub.f32 0.0, %v5858
        %v5953 = vsub.f32 0.0, %v5861
        %v5954 = vsub.f32 0.0, %v5864
        %v5955 = vsub.f32 0.0, %v5867
        %v5956 = vsub.f32 0.0, %v5870
        %v5957 = vsub.f32 0.0, %v5873
        %v5958 = vsub.f32 0.0, %v5876
        %v5959 = vsub.f32 0.0, %v5879
        %v5960 = vsub.f32 0.0, %v5882
        %v5961 = vsub.f32 0.0, %v5885
        %v5962 = vsub.f32 0.0, %v5888
        %v5963 = vsub.f32 0.0, %v5891
        %v5964 = vsub.f32 0.0, %v5894
        %v5965 = vsub.f32 0.0, %v5897
        %v5966 = vsub.f32 0.0, %v5900
        %v5967 = vsub.f32 0.0, %v5903
        %v5984 = vlaneseq
        %v5985 = vshrl.u32 %v5984, 7
        %v5986 = vsub.s32 %v280, %v5985
        %v5987 = vrot.slane %v5666, %v5986
        %v5988 = vadd.s32 %v280, 4294967288
        %v5989 = vlaneseq
        %v5990 = vshrl.u32 %v5989, 7
        %v5991 = vsub.s32 %v5988, %v5990
        %v5992 = vrot.slane %v5669, %v5991
        %vm5993 = vcmask 130112
        %v5994 = vsel %vm5993, %v5992, %v5987
        %v5995 = vadd.s32 %v280, 4294967280
        %v5996 = vlaneseq
        %v5997 = vshrl.u32 %v5996, 7
        %v5998 = vsub.s32 %v5995, %v5997
        %v5999 = vrot.slane %v5672, %v5998
        %vm6000 = vcmask 195712
        %v6001 = vsel %vm6000, %v5999, %v5994
        %v6002 = vadd.s32 %v280, 4294967272
        %v6003 = vlaneseq
        %v6004 = vshrl.u32 %v6003, 7
        %v6005 = vsub.s32 %v6002, %v6004
        %v6006 = vrot.slane %v5675, %v6005
        %vm6007 = vcmask 261312
        %v6008 = vsel %vm6007, %v6006, %v6001
        %v6009 = vadd.s32 %v280, 4294967264
        %v6010 = vlaneseq
        %v6011 = vshrl.u32 %v6010, 7
        %v6012 = vsub.s32 %v6009, %v6011
        %v6013 = vrot.slane %v5678, %v6012
        %vm6014 = vcmask 326912
        %v6015 = vsel %vm6014, %v6013, %v6008
        %v6016 = vadd.s32 %v280, 4294967256
        %v6017 = vlaneseq
        %v6018 = vshrl.u32 %v6017, 7
        %v6019 = vsub.s32 %v6016, %v6018
        %v6020 = vrot.slane %v5681, %v6019
        %vm6021 = vcmask 392512
        %v6022 = vsel %vm6021, %v6020, %v6015
        %v6023 = vadd.s32 %v280, 4294967248
        %v6024 = vlaneseq
        %v6025 = vshrl.u32 %v6024, 7
        %v6026 = vsub.s32 %v6023, %v6025
        %v6027 = vrot.slane %v5684, %v6026
        %vm6028 = vcmask 458112
        %v6029 = vsel %vm6028, %v6027, %v6022
        %v6030 = vadd.s32 %v280, 4294967240
        %v6031 = vlaneseq
        %v6032 = vshrl.u32 %v6031, 7
        %v6033 = vsub.s32 %v6030, %v6032
        %v6034 = vrot.slane %v5687, %v6033
        %vm6035 = vcmask 523712
        %v6036 = vsel %vm6035, %v6034, %v6029
        %v6037 = vadd.s32 %v280, 4294967232
        %v6038 = vlaneseq
        %v6039 = vshrl.u32 %v6038, 7
        %v6040 = vsub.s32 %v6037, %v6039
        %v6041 = vrot.slane %v5690, %v6040
        %vm6042 = vcmask 589312
        %v6043 = vsel %vm6042, %v6041, %v6036
        %v6044 = vadd.s32 %v280, 4294967224
        %v6045 = vlaneseq
        %v6046 = vshrl.u32 %v6045, 7
        %v6047 = vsub.s32 %v6044, %v6046
        %v6048 = vrot.slane %v5693, %v6047
        %vm6049 = vcmask 654912
        %v6050 = vsel %vm6049, %v6048, %v6043
        %v6051 = vadd.s32 %v280, 4294967216
        %v6052 = vlaneseq
        %v6053 = vshrl.u32 %v6052, 7
        %v6054 = vsub.s32 %v6051, %v6053
        %v6055 = vrot.slane %v5696, %v6054
        %vm6056 = vcmask 720512
        %v6057 = vsel %vm6056, %v6055, %v6050
        %v6058 = vadd.s32 %v280, 4294967208
        %v6059 = vlaneseq
        %v6060 = vshrl.u32 %v6059, 7
        %v6061 = vsub.s32 %v6058, %v6060
        %v6062 = vrot.slane %v5699, %v6061
        %vm6063 = vcmask 786112
        %v6064 = vsel %vm6063, %v6062, %v6057
        %v6065 = vadd.s32 %v280, 4294967200
        %v6066 = vlaneseq
        %v6067 = vshrl.u32 %v6066, 7
        %v6068 = vsub.s32 %v6065, %v6067
        %v6069 = vrot.slane %v5702, %v6068
        %vm6070 = vcmask 851712
        %v6071 = vsel %vm6070, %v6069, %v6064
        %v6072 = vadd.s32 %v280, 4294967192
        %v6073 = vlaneseq
        %v6074 = vshrl.u32 %v6073, 7
        %v6075 = vsub.s32 %v6072, %v6074
        %v6076 = vrot.slane %v5705, %v6075
        %vm6077 = vcmask 917312
        %v6078 = vsel %vm6077, %v6076, %v6071
        %v6079 = vadd.s32 %v280, 4294967184
        %v6080 = vlaneseq
        %v6081 = vshrl.u32 %v6080, 7
        %v6082 = vsub.s32 %v6079, %v6081
        %v6083 = vrot.slane %v5708, %v6082
        %vm6084 = vcmask 982912
        %v6085 = vsel %vm6084, %v6083, %v6078
        %v6086 = vadd.s32 %v280, 4294967176
        %v6087 = vlaneseq
        %v6088 = vshrl.u32 %v6087, 7
        %v6089 = vsub.s32 %v6086, %v6088
        %v6090 = vrot.slane %v5711, %v6089
        %vm6091 = vcmask 1048512
        %v6092 = vsel %vm6091, %v6090, %v6085
        %v6158 = vlaneseq
        %v6159 = vshrl.u32 %v6158, 7
        %v6160 = vsub.s32 %v280, %v6159
        %v6161 = vrot.slane %v5904, %v6160
        %v6162 = vlaneseq
        %v6163 = vshrl.u32 %v6162, 7
        %v6164 = vsub.s32 %v5988, %v6163
        %v6165 = vrot.slane %v5905, %v6164
        %v6166 = vsel %vm5993, %v6165, %v6161
        %v6167 = vlaneseq
        %v6168 = vshrl.u32 %v6167, 7
        %v6169 = vsub.s32 %v5995, %v6168
        %v6170 = vrot.slane %v5906, %v6169
        %v6171 = vsel %vm6000, %v6170, %v6166
        %v6172 = vlaneseq
        %v6173 = vshrl.u32 %v6172, 7
        %v6174 = vsub.s32 %v6002, %v6173
        %v6175 = vrot.slane %v5907, %v6174
        %v6176 = vsel %vm6007, %v6175, %v6171
        %v6177 = vlaneseq
        %v6178 = vshrl.u32 %v6177, 7
        %v6179 = vsub.s32 %v6009, %v6178
        %v6180 = vrot.slane %v5908, %v6179
        %v6181 = vsel %vm6014, %v6180, %v6176
        %v6182 = vlaneseq
        %v6183 = vshrl.u32 %v6182, 7
        %v6184 = vsub.s32 %v6016, %v6183
        %v6185 = vrot.slane %v5909, %v6184
        %v6186 = vsel %vm6021, %v6185, %v6181
        %v6187 = vlaneseq
        %v6188 = vshrl.u32 %v6187, 7
        %v6189 = vsub.s32 %v6023, %v6188
        %v6190 = vrot.slane %v5910, %v6189
        %v6191 = vsel %vm6028, %v6190, %v6186
        %v6192 = vlaneseq
        %v6193 = vshrl.u32 %v6192, 7
        %v6194 = vsub.s32 %v6030, %v6193
        %v6195 = vrot.slane %v5911, %v6194
        %v6196 = vsel %vm6035, %v6195, %v6191
        %v6197 = vlaneseq
        %v6198 = vshrl.u32 %v6197, 7
        %v6199 = vsub.s32 %v6037, %v6198
        %v6200 = vrot.slane %v5912, %v6199
        %v6201 = vsel %vm6042, %v6200, %v6196
        %v6202 = vlaneseq
        %v6203 = vshrl.u32 %v6202, 7
        %v6204 = vsub.s32 %v6044, %v6203
        %v6205 = vrot.slane %v5913, %v6204
        %v6206 = vsel %vm6049, %v6205, %v6201
        %v6207 = vlaneseq
        %v6208 = vshrl.u32 %v6207, 7
        %v6209 = vsub.s32 %v6051, %v6208
        %v6210 = vrot.slane %v5914, %v6209
        %v6211 = vsel %vm6056, %v6210, %v6206
        %v6212 = vlaneseq
        %v6213 = vshrl.u32 %v6212, 7
        %v6214 = vsub.s32 %v6058, %v6213
        %v6215 = vrot.slane %v5915, %v6214
        %v6216 = vsel %vm6063, %v6215, %v6211
        %v6217 = vlaneseq
        %v6218 = vshrl.u32 %v6217, 7
        %v6219 = vsub.s32 %v6065, %v6218
        %v6220 = vrot.slane %v5916, %v6219
        %v6221 = vsel %vm6070, %v6220, %v6216
        %v6222 = vlaneseq
        %v6223 = vshrl.u32 %v6222, 7
        %v6224 = vsub.s32 %v6072, %v6223
        %v6225 = vrot.slane %v5917, %v6224
        %v6226 = vsel %vm6077, %v6225, %v6221
        %v6227 = vlaneseq
        %v6228 = vshrl.u32 %v6227, 7
        %v6229 = vsub.s32 %v6079, %v6228
        %v6230 = vrot.slane %v5918, %v6229
        %v6231 = vsel %vm6084, %v6230, %v6226
        %v6232 = vlaneseq
        %v6233 = vshrl.u32 %v6232, 7
        %v6234 = vsub.s32 %v6086, %v6233
        %v6235 = vrot.slane %v5919, %v6234
        %v6236 = vsel %vm6091, %v6235, %v6231
        %v6237 = vlaneseq
        %v6238 = vshrl.u32 %v6237, 7
        %v6239 = vsub.s32 %v280, %v6238
        %v6240 = vrot.slane %v5920, %v6239
        %v6241 = vlaneseq
        %v6242 = vshrl.u32 %v6241, 7
        %v6243 = vsub.s32 %v5988, %v6242
        %v6244 = vrot.slane %v5921, %v6243
        %v6245 = vsel %vm5993, %v6244, %v6240
        %v6246 = vlaneseq
        %v6247 = vshrl.u32 %v6246, 7
        %v6248 = vsub.s32 %v5995, %v6247
        %v6249 = vrot.slane %v5922, %v6248
        %v6250 = vsel %vm6000, %v6249, %v6245
        %v6251 = vlaneseq
        %v6252 = vshrl.u32 %v6251, 7
        %v6253 = vsub.s32 %v6002, %v6252
        %v6254 = vrot.slane %v5923, %v6253
        %v6255 = vsel %vm6007, %v6254, %v6250
        %v6256 = vlaneseq
        %v6257 = vshrl.u32 %v6256, 7
        %v6258 = vsub.s32 %v6009, %v6257
        %v6259 = vrot.slane %v5924, %v6258
        %v6260 = vsel %vm6014, %v6259, %v6255
        %v6261 = vlaneseq
        %v6262 = vshrl.u32 %v6261, 7
        %v6263 = vsub.s32 %v6016, %v6262
        %v6264 = vrot.slane %v5925, %v6263
        %v6265 = vsel %vm6021, %v6264, %v6260
        %v6266 = vlaneseq
        %v6267 = vshrl.u32 %v6266, 7
        %v6268 = vsub.s32 %v6023, %v6267
        %v6269 = vrot.slane %v5926, %v6268
        %v6270 = vsel %vm6028, %v6269, %v6265
        %v6271 = vlaneseq
        %v6272 = vshrl.u32 %v6271, 7
        %v6273 = vsub.s32 %v6030, %v6272
        %v6274 = vrot.slane %v5927, %v6273
        %v6275 = vsel %vm6035, %v6274, %v6270
        %v6276 = vlaneseq
        %v6277 = vshrl.u32 %v6276, 7
        %v6278 = vsub.s32 %v6037, %v6277
        %v6279 = vrot.slane %v5928, %v6278
        %v6280 = vsel %vm6042, %v6279, %v6275
        %v6281 = vlaneseq
        %v6282 = vshrl.u32 %v6281, 7
        %v6283 = vsub.s32 %v6044, %v6282
        %v6284 = vrot.slane %v5929, %v6283
        %v6285 = vsel %vm6049, %v6284, %v6280
        %v6286 = vlaneseq
        %v6287 = vshrl.u32 %v6286, 7
        %v6288 = vsub.s32 %v6051, %v6287
        %v6289 = vrot.slane %v5930, %v6288
        %v6290 = vsel %vm6056, %v6289, %v6285
        %v6291 = vlaneseq
        %v6292 = vshrl.u32 %v6291, 7
        %v6293 = vsub.s32 %v6058, %v6292
        %v6294 = vrot.slane %v5931, %v6293
        %v6295 = vsel %vm6063, %v6294, %v6290
        %v6296 = vlaneseq
        %v6297 = vshrl.u32 %v6296, 7
        %v6298 = vsub.s32 %v6065, %v6297
        %v6299 = vrot.slane %v5932, %v6298
        %v6300 = vsel %vm6070, %v6299, %v6295
        %v6301 = vlaneseq
        %v6302 = vshrl.u32 %v6301, 7
        %v6303 = vsub.s32 %v6072, %v6302
        %v6304 = vrot.slane %v5933, %v6303
        %v6305 = vsel %vm6077, %v6304, %v6300
        %v6306 = vlaneseq
        %v6307 = vshrl.u32 %v6306, 7
        %v6308 = vsub.s32 %v6079, %v6307
        %v6309 = vrot.slane %v5934, %v6308
        %v6310 = vsel %vm6084, %v6309, %v6305
        %v6311 = vlaneseq
        %v6312 = vshrl.u32 %v6311, 7
        %v6313 = vsub.s32 %v6086, %v6312
        %v6314 = vrot.slane %v5935, %v6313
        %v6315 = vsel %vm6091, %v6314, %v6310
        %v6316 = vlaneseq
        %v6317 = vshrl.u32 %v6316, 7
        %v6318 = vsub.s32 %v280, %v6317
        %v6319 = vrot.slane %v5936, %v6318
        %v6320 = vlaneseq
        %v6321 = vshrl.u32 %v6320, 7
        %v6322 = vsub.s32 %v5988, %v6321
        %v6323 = vrot.slane %v5937, %v6322
        %v6324 = vsel %vm5993, %v6323, %v6319
        %v6325 = vlaneseq
        %v6326 = vshrl.u32 %v6325, 7
        %v6327 = vsub.s32 %v5995, %v6326
        %v6328 = vrot.slane %v5938, %v6327
        %v6329 = vsel %vm6000, %v6328, %v6324
        %v6330 = vlaneseq
        %v6331 = vshrl.u32 %v6330, 7
        %v6332 = vsub.s32 %v6002, %v6331
        %v6333 = vrot.slane %v5939, %v6332
        %v6334 = vsel %vm6007, %v6333, %v6329
        %v6335 = vlaneseq
        %v6336 = vshrl.u32 %v6335, 7
        %v6337 = vsub.s32 %v6009, %v6336
        %v6338 = vrot.slane %v5940, %v6337
        %v6339 = vsel %vm6014, %v6338, %v6334
        %v6340 = vlaneseq
        %v6341 = vshrl.u32 %v6340, 7
        %v6342 = vsub.s32 %v6016, %v6341
        %v6343 = vrot.slane %v5941, %v6342
        %v6344 = vsel %vm6021, %v6343, %v6339
        %v6345 = vlaneseq
        %v6346 = vshrl.u32 %v6345, 7
        %v6347 = vsub.s32 %v6023, %v6346
        %v6348 = vrot.slane %v5942, %v6347
        %v6349 = vsel %vm6028, %v6348, %v6344
        %v6350 = vlaneseq
        %v6351 = vshrl.u32 %v6350, 7
        %v6352 = vsub.s32 %v6030, %v6351
        %v6353 = vrot.slane %v5943, %v6352
        %v6354 = vsel %vm6035, %v6353, %v6349
        %v6355 = vlaneseq
        %v6356 = vshrl.u32 %v6355, 7
        %v6357 = vsub.s32 %v6037, %v6356
        %v6358 = vrot.slane %v5944, %v6357
        %v6359 = vsel %vm6042, %v6358, %v6354
        %v6360 = vlaneseq
        %v6361 = vshrl.u32 %v6360, 7
        %v6362 = vsub.s32 %v6044, %v6361
        %v6363 = vrot.slane %v5945, %v6362
        %v6364 = vsel %vm6049, %v6363, %v6359
        %v6365 = vlaneseq
        %v6366 = vshrl.u32 %v6365, 7
        %v6367 = vsub.s32 %v6051, %v6366
        %v6368 = vrot.slane %v5946, %v6367
        %v6369 = vsel %vm6056, %v6368, %v6364
        %v6370 = vlaneseq
        %v6371 = vshrl.u32 %v6370, 7
        %v6372 = vsub.s32 %v6058, %v6371
        %v6373 = vrot.slane %v5947, %v6372
        %v6374 = vsel %vm6063, %v6373, %v6369
        %v6375 = vlaneseq
        %v6376 = vshrl.u32 %v6375, 7
        %v6377 = vsub.s32 %v6065, %v6376
        %v6378 = vrot.slane %v5948, %v6377
        %v6379 = vsel %vm6070, %v6378, %v6374
        %v6380 = vlaneseq
        %v6381 = vshrl.u32 %v6380, 7
        %v6382 = vsub.s32 %v6072, %v6381
        %v6383 = vrot.slane %v5949, %v6382
        %v6384 = vsel %vm6077, %v6383, %v6379
        %v6385 = vlaneseq
        %v6386 = vshrl.u32 %v6385, 7
        %v6387 = vsub.s32 %v6079, %v6386
        %v6388 = vrot.slane %v5950, %v6387
        %v6389 = vsel %vm6084, %v6388, %v6384
        %v6390 = vlaneseq
        %v6391 = vshrl.u32 %v6390, 7
        %v6392 = vsub.s32 %v6086, %v6391
        %v6393 = vrot.slane %v5951, %v6392
        %v6394 = vsel %vm6091, %v6393, %v6389
        %v6395 = vlaneseq
        %v6396 = vshrl.u32 %v6395, 7
        %v6397 = vsub.s32 %v280, %v6396
        %v6398 = vrot.slane %v5952, %v6397
        %v6399 = vlaneseq
        %v6400 = vshrl.u32 %v6399, 7
        %v6401 = vsub.s32 %v5988, %v6400
        %v6402 = vrot.slane %v5953, %v6401
        %v6403 = vsel %vm5993, %v6402, %v6398
        %v6404 = vlaneseq
        %v6405 = vshrl.u32 %v6404, 7
        %v6406 = vsub.s32 %v5995, %v6405
        %v6407 = vrot.slane %v5954, %v6406
        %v6408 = vsel %vm6000, %v6407, %v6403
        %v6409 = vlaneseq
        %v6410 = vshrl.u32 %v6409, 7
        %v6411 = vsub.s32 %v6002, %v6410
        %v6412 = vrot.slane %v5955, %v6411
        %v6413 = vsel %vm6007, %v6412, %v6408
        %v6414 = vlaneseq
        %v6415 = vshrl.u32 %v6414, 7
        %v6416 = vsub.s32 %v6009, %v6415
        %v6417 = vrot.slane %v5956, %v6416
        %v6418 = vsel %vm6014, %v6417, %v6413
        %v6419 = vlaneseq
        %v6420 = vshrl.u32 %v6419, 7
        %v6421 = vsub.s32 %v6016, %v6420
        %v6422 = vrot.slane %v5957, %v6421
        %v6423 = vsel %vm6021, %v6422, %v6418
        %v6424 = vlaneseq
        %v6425 = vshrl.u32 %v6424, 7
        %v6426 = vsub.s32 %v6023, %v6425
        %v6427 = vrot.slane %v5958, %v6426
        %v6428 = vsel %vm6028, %v6427, %v6423
        %v6429 = vlaneseq
        %v6430 = vshrl.u32 %v6429, 7
        %v6431 = vsub.s32 %v6030, %v6430
        %v6432 = vrot.slane %v5959, %v6431
        %v6433 = vsel %vm6035, %v6432, %v6428
        %v6434 = vlaneseq
        %v6435 = vshrl.u32 %v6434, 7
        %v6436 = vsub.s32 %v6037, %v6435
        %v6437 = vrot.slane %v5960, %v6436
        %v6438 = vsel %vm6042, %v6437, %v6433
        %v6439 = vlaneseq
        %v6440 = vshrl.u32 %v6439, 7
        %v6441 = vsub.s32 %v6044, %v6440
        %v6442 = vrot.slane %v5961, %v6441
        %v6443 = vsel %vm6049, %v6442, %v6438
        %v6444 = vlaneseq
        %v6445 = vshrl.u32 %v6444, 7
        %v6446 = vsub.s32 %v6051, %v6445
        %v6447 = vrot.slane %v5962, %v6446
        %v6448 = vsel %vm6056, %v6447, %v6443
        %v6449 = vlaneseq
        %v6450 = vshrl.u32 %v6449, 7
        %v6451 = vsub.s32 %v6058, %v6450
        %v6452 = vrot.slane %v5963, %v6451
        %v6453 = vsel %vm6063, %v6452, %v6448
        %v6454 = vlaneseq
        %v6455 = vshrl.u32 %v6454, 7
        %v6456 = vsub.s32 %v6065, %v6455
        %v6457 = vrot.slane %v5964, %v6456
        %v6458 = vsel %vm6070, %v6457, %v6453
        %v6459 = vlaneseq
        %v6460 = vshrl.u32 %v6459, 7
        %v6461 = vsub.s32 %v6072, %v6460
        %v6462 = vrot.slane %v5965, %v6461
        %v6463 = vsel %vm6077, %v6462, %v6458
        %v6464 = vlaneseq
        %v6465 = vshrl.u32 %v6464, 7
        %v6466 = vsub.s32 %v6079, %v6465
        %v6467 = vrot.slane %v5966, %v6466
        %v6468 = vsel %vm6084, %v6467, %v6463
        %v6469 = vlaneseq
        %v6470 = vshrl.u32 %v6469, 7
        %v6471 = vsub.s32 %v6086, %v6470
        %v6472 = vrot.slane %v5967, %v6471
        %v6473 = vsel %vm6091, %v6472, %v6468
        %vm6474 = vcmask 1042434
        %v6475 = vsel %vm6474, %v6315, %v6236
        %vm6476 = vcmask 1043459
        %v6477 = vsel %vm6476, %v6394, %v6475
        %vm6478 = vcmask 1044484
        %v6479 = vsel %vm6478, %v6473, %v6477
        %vm6481 = vcmask 1040384
        %v6482 = vsel %vm6481, %v6092, %v6479
        %v6483 = vmin.f32 %v6482, 0.0
        %v6484 = vand.u32 2147483647, %v6482
        %v6485 = vsub.f32 0.0, %v6484
        %v6486 = vmul.f32 %v6485, 1.442695
        %v6487 = vpow.pop %v6486
        %v6488 = vadd.f32 %v6487, 1.0
        %v6489 = vlog2.pop %v6488
        %v6490 = vmul.f32 %v6489, 0.6931472
        %v6491 = vmul.f32 -0.5, %v6487
        %v6492 = vadd.f32 %v6491, 1.0
        %v6493 = vmul.f32 %v6492, %v6487
        %v6494 = vand.u32 2147483647, %v6487
        %vm6495 = vcmp.lt.f32.partialorder %v6494, 0.0004427343
        %v6496 = vsel %vm6495, %v6493, %v6490
        %v6497 = vsub.f32 %v6483, %v6496
        %s6498 = sadd.s32 %s20, %s21
        %s6499 = smul.u32 %s6498, 128
        %v6500 = vstv %s6499
        %v6501 = vadd.s32 %v6500, %v280
        %vm6502 = vcmp.lt.s32.totalorder %v6501, 12
        %v6503 = vsel %vm6502, 1, 0
        %v6504 = vcvt.s32.f32 %v6503
        %v6505 = vld [vmem:[#allocation2] sm:$0x1]
        %v6506 = vmul.f32 %v6497, %v6504
        %vm6507 = vcmask 1044480
        %v6508 = vsel %vm6507, %v6506, 0.0
        %v6509 = vrot.slane %v6508, 4
        %v6510 = vadd.f32 %v6508, %v6509
        %v6511 = vrot.slane %v6510, 2
        %v6512 = vadd.f32 %v6510, %v6511
        %v6513 = vrot.slane %v6512, 1
        %v6514 = vadd.f32 %v6512, %v6513
        %v6515 = vadd.f32 %v6505, %v6514
        %6516 = vst [vmem:[#allocation2] sm:$0x1] %v6515
        // Predicated region
        $region33: #{tpu_custom_call.1} parent=27 // pred_check
          %p6517 = pneg %p162
        $region34: #{tpu_custom_call.1} parent=27 // pred_check_branch
          %6519 = sbr.rel (%p6517) target = $region36
        $region35: #{tpu_custom_call.1} parent=27 // pred_region
          %v6520 = vld [vmem:[#allocation2] sm:$0x1]
          %v6521 = vsel %vm6481, %v6520, 0.0
          %6522 = vadd.xlane.f32.xlu0 %v6521
          %v6523 = vpop.xlane.xlu0 %6522
          %6524 = vst [vmem:[%s153] sm:$0x1] %v6523
        $region36: #{tpu_custom_call.1} parent=27 // pred_fallthru
          _
        %s6525 = sand.u32 %s85, 1
        %s6526 = scalar_lea.sflag [#allocation4], %s6525
        %s6527 = sand.u32 %s85, 1
        %s6528 = scalar_lea.vmem [#allocation3], %s6527
        // Predicated region
        $region37: #{tpu_custom_call.1} parent=27 // pred_check
          %p6529 = pneg %p95
        $region38: #{tpu_custom_call.1} parent=27 // pred_check_branch
          %6531 = sbr.rel (%p6529) target = $region40
        $region39: #{tpu_custom_call.1} parent=27 // pred_region
          %s6533 = ssub.s32 16, 16
          %6534 = vsyncadd %s6526, %s6533
          %s6535 = smul.addr %s20, 16
          %s6536 = scalar_lea.hbm %s2, %s6535
          %s6538 = sshll.u32 %s6528, 4
          %s6539 = int_to_ptr.vmem [resolvable:$true] %s6538
          %6541 = dma.vmem_to_hbm [thread:$0]  %s6539, 16, %s6536, %s6526
        $region40: #{tpu_custom_call.1} parent=27 // pred_fallthru
          _
      $region28: #{tpu_custom_call.1} parent=5 // pred_fallthru
        _
      %p6542 = scmp.le.s32.totalorder 2, %s11
      // Predicated region
      $region41: #{tpu_custom_call.1} parent=5 // pred_check
        %p6543 = pneg %p6542
      $region42: #{tpu_custom_call.1} parent=5 // pred_check_branch
        %6545 = sbr.rel (%p6543) target = $region44
      $region43: #{tpu_custom_call.1} parent=5 // pred_region
        %s6546 = ssub.s32 %s11, 2
        // Predicated region
        $region45: #{tpu_custom_call.1} parent=43 // pred_check
          %p6547 = pneg %p101
        $region46: #{tpu_custom_call.1} parent=43 // pred_check_branch
          %6549 = sbr.rel (%p6547) target = $region48
        $region47: #{tpu_custom_call.1} parent=43 // pred_region
          %s6550 = sand.u32 %s86, 1
          %s6551 = scalar_lea.sflag [#allocation4], %s6550
          %s6552 = sand.u32 %s86, 1
          %s6553 = scalar_lea.vmem [#allocation3], %s6552
          %6554 = dma.done %s6551, 16
        $region48: #{tpu_custom_call.1} parent=43 // pred_fallthru
          _
      $region44: #{tpu_custom_call.1} parent=5 // pred_fallthru
        _
    $region6: #{tpu_custom_call.1} parent=1 // loop_footer
      %s15 = sadd.s32 1, %s11
    $region7: #{tpu_custom_call.1} parent=1 // loop_footer_branch
      %10 = sbr.rel target = $region3
    $region8: #{tpu_custom_call.1} parent=1 // loop_exit
      _
    %6555 = vsyncpa [#allocation4], 1
    %s6556 = scalar_lea.sflag [#allocation4], 1
    %6557 = vsyncpa %s6556, 1

</llo_original>
